<compile_context>
chip_gen: v7x
topology: tpu7x:2x2x1
jax: 0.10.0
libtpu: 0.0.40
codegen_flags: <defaults>
</compile_context>

<pallas_src>
import jax
import jax.numpy as jnp
from jax import lax
from jax.experimental import pallas as pl
from jax.experimental.pallas import tpu as pltpu

_VMEM_LIMIT = 48 * 1024 * 1024  # safe on v5e/v6e (128 MiB) and v7x (64 MiB/TC)


# ----------------------------------------------------------------------------
# Pallas kernels
# ----------------------------------------------------------------------------
def _conv_relu_pool_kernel(x_ref, w_ref, b_ref, o_ref, hm_scr):
    """One row-chunk of one image: 3x3 conv (single fused matmul, K=9*Cin)
    + bias + ReLU + 2x2/stride-2 max-pool.

    x_ref : (1, H, W, Cin)      full un-padded NHWC image, resident across chunks (bf16)
    w_ref : (9*Cin, Cout)       conv weights, tap-major contraction (bf16)
    b_ref : (1, Cout)           bias (f32)
    o_ref : (1, CH2, W2, Cout)  pooled rows of this chunk (bf16)
    hm_scr: (CH2*W, Cout)       f32 scratch for the W-direction pool
    """
    _, H, W, Cin = x_ref.shape
    _, CH2, W2, Cout = o_ref.shape
    CH = 2 * CH2
    rj = pl.program_id(1)
    nch = pl.num_programs(1)
    r0 = pl.multiple_of(rj * CH, CH)

    # ---- in-kernel zero padding (halo rows + halo columns), all in bf16 ----
    core = x_ref[0, pl.ds(r0, CH), :, :]                        # (CH, W, Cin)
    top = x_ref[0, pl.ds(jnp.maximum(r0 - 1, 0), 1), :, :]
    top = top * (rj > 0).astype(top.dtype)                      # zero halo at image top
    bot = x_ref[0, pl.ds(jnp.minimum(r0 + CH, H - 1), 1), :, :]
    bot = bot * (rj < nch - 1).astype(bot.dtype)                # zero halo at image bottom
    rows = jnp.concatenate([top, core, bot], axis=0)            # (CH+2, W, Cin)
    zcol = jnp.zeros((CH + 2, 1, Cin), dtype=rows.dtype)
    xpad = jnp.concatenate([zcol, rows, zcol], axis=1)          # (CH+2, W+2, Cin)

    # ---- im2col in bf16 -> ONE MXU matmul with K = 9*Cin ----
    taps = [xpad[dy:dy + CH, dx:dx + W, :]
            for dy in range(3) for dx in range(3)]              # 9 x (CH, W, Cin)
    patch = jnp.concatenate(taps, axis=-1).reshape(CH * W, 9 * Cin)

    acc = jnp.dot(patch, w_ref[...], preferred_element_type=jnp.float32)
    acc = jnp.maximum(acc + b_ref[...], 0.0)                    # bias + ReLU (f32)

    # ---- 2x2 / stride-2 max-pool ----
    # H direction on the value: acc row index is h*W + w, so the free reshape
    # (CH2, 2*W, Cout) puts even-h rows in [:, :W] and odd-h rows in [:, W:].
    acc2 = acc.reshape(CH2, 2 * W, Cout)
    hmax = jnp.maximum(acc2[:, :W, :], acc2[:, W:, :])          # (CH2, W, Cout)
    # W direction via stride-2 sublane reads of a small (already halved) scratch.
    hm_scr[...] = hmax.reshape(CH2 * W, Cout)                   # row = c2*W + w
    w_even = hm_scr[pl.ds(0, CH2 * W2, stride=2), :]
    w_odd = hm_scr[pl.ds(1, CH2 * W2, stride=2), :]
    pooled = jnp.maximum(w_even, w_odd)                         # row = c2*W2 + w2
    o_ref[0] = pooled.reshape(CH2, W2, Cout).astype(o_ref.dtype)


def _mlp_head_kernel(x_ref, w1_ref, b1_ref, w2_ref, o_ref, acc_ref):
    """One Hdim-slice: fc1 (K-tiled, f32 accumulator) -> ReLU ->
    (dropout: eval-mode identity) -> partial fc2 for that slice."""
    k = pl.program_id(1)

    @pl.when(k == 0)
    def _():
        acc_ref[...] = jnp.zeros_like(acc_ref)

    acc_ref[...] += jnp.dot(x_ref[...], w1_ref[...],
                            preferred_element_type=jnp.float32)

    @pl.when(k == pl.num_programs(1) - 1)
    def _():
        h = jnp.maximum(acc_ref[...] + b1_ref[...], 0.0).astype(jnp.bfloat16)
        # TODO(synk): train-mode Dropout(0.5) would use pltpu.prng_seed +
        # pltpu.prng_random_bits; eval-mode dropout is the identity (used here).
        o_ref[0] = jnp.dot(h, w2_ref[...], preferred_element_type=jnp.float32)


# ----------------------------------------------------------------------------
# Wrappers
# ----------------------------------------------------------------------------
def conv_relu_pool(x_nhwc, w_km, b_1c, *, row_chunk=16):
    """Conv2d(3x3, pad=1) + ReLU + MaxPool(2,2): grid over (batch, row chunks)."""
    B, H, W, Cin = x_nhwc.shape
    Cout = w_km.shape[1]
    assert w_km.shape[0] == 9 * Cin
    assert H % 2 == 0 and W % 2 == 0, "2x2 max-pool needs even spatial dims"

    ch = H                                   # largest even divisor of H <= row_chunk
    for c in range(min(row_chunk, H), 1, -1):
        if H % c == 0 and c % 2 == 0:
            ch = c
            break
    nch = H // ch
    ch2, w2 = ch // 2, W // 2

    return pl.pallas_call(
        _conv_relu_pool_kernel,
        out_shape=jax.ShapeDtypeStruct((B, H // 2, w2, Cout), jnp.bfloat16),
        grid=(B, nch),
        in_specs=[
            pl.BlockSpec((1, H, W, Cin), lambda bi, rj: (bi, 0, 0, 0)),
            pl.BlockSpec((9 * Cin, Cout), lambda bi, rj: (0, 0)),
            pl.BlockSpec((1, Cout), lambda bi, rj: (0, 0)),
        ],
        out_specs=pl.BlockSpec((1, ch2, w2, Cout), lambda bi, rj: (bi, rj, 0, 0)),
        scratch_shapes=[pltpu.VMEM((ch2 * W, Cout), jnp.float32)],
        compiler_params=pltpu.CompilerParams(
            dimension_semantics=("parallel", "parallel"),
            vmem_limit_bytes=_VMEM_LIMIT),
    )(x_nhwc, w_km, b_1c)


def mlp_head(x_bf16, w1, b1, w2, b2, *, tk=2048, n_split=2):
    """fc1 -> ReLU -> fc2.  Grid = (Hdim split ["parallel", megacore on v7x],
    fc1-K tiles ["arbitrary", streamed]); per-split fc2 partials summed here."""
    B, D1 = x_bf16.shape
    Hdim = w1.shape[1]
    out_dim = w2.shape[1]

    tk = min(tk, D1)
    kp = pl.cdiv(D1, tk) * tk       # pad K -- never fall back to one whole-weight block
    if kp != D1:
        x_bf16 = jnp.pad(x_bf16, ((0, 0), (0, kp - D1)))
        w1 = jnp.pad(w1, ((0, kp - D1), (0, 0)))
    nk = kp // tk
    nh = n_split if Hdim % n_split == 0 else 1
    tn = Hdim // nh

    parts = pl.pallas_call(
        _mlp_head_kernel,
        out_shape=jax.ShapeDtypeStruct((nh, B, out_dim), jnp.float32),
        grid=(nh, nk),
        in_specs=[
            pl.BlockSpec((B, tk), lambda hj, k: (0, k)),
            pl.BlockSpec((tk, tn), lambda hj, k: (k, hj)),
            pl.BlockSpec((1, tn), lambda hj, k: (0, hj)),
            pl.BlockSpec((tn, out_dim), lambda hj, k: (hj, 0)),
        ],
        out_specs=pl.BlockSpec((1, B, out_dim), lambda hj, k: (hj, 0, 0)),
        scratch_shapes=[pltpu.VMEM((B, tn), jnp.float32)],
        compiler_params=pltpu.CompilerParams(
            dimension_semantics=("parallel", "arbitrary"),
            vmem_limit_bytes=_VMEM_LIMIT),
    )(x_bf16, w1, b1, w2)
    return parts.sum(axis=0) + b2


def prepare_params(p, spatial):
    """One-time (outside the jitted forward) conversion of PyTorch-layout params
    into kernel-ready layout: bf16 weights, tap-major conv contraction, fc1 rows
    permuted from NCHW-flatten (torch) to NHWC-flatten order."""
    def conv_w(w):  # (Cout, Cin, 3, 3) -> (9*Cin, Cout)
        return jnp.transpose(w, (2, 3, 1, 0)).reshape(-1, w.shape[0]).astype(jnp.bfloat16)

    c3, s3 = 128, spatial // 8
    hdim, d1 = p["fc1_w"].shape
    assert d1 == c3 * s3 * s3
    fc1_w = (p["fc1_w"].reshape(hdim, c3, s3, s3)
             .transpose(2, 3, 1, 0).reshape(d1, hdim).astype(jnp.bfloat16))
    return {
        "w1": conv_w(p["w1"]), "b1": p["b1"].reshape(1, -1).astype(jnp.float32),
        "w2": conv_w(p["w2"]), "b2": p["b2"].reshape(1, -1).astype(jnp.float32),
        "w3": conv_w(p["w3"]), "b3": p["b3"].reshape(1, -1).astype(jnp.float32),
        "fc1_w": fc1_w, "fc1_b": p["fc1_b"].reshape(1, -1).astype(jnp.float32),
        "fc2_w": p["fc2_w"].T.astype(jnp.bfloat16),
        "fc2_b": p["fc2_b"].reshape(1, -1).astype(jnp.float32),
    }


@jax.jit
def cnn_image_encoder_forward(x_nchw, kp):
    """Forward pass equivalent to CNNImageEncoder.forward (eval mode)."""
    x = jnp.transpose(x_nchw, (0, 2, 3, 1)).astype(jnp.bfloat16)   # NCHW -> NHWC
    x = conv_relu_pool(x, kp["w1"], kp["b1"])
    x = conv_relu_pool(x, kp["w2"], kp["b2"])
    x = conv_relu_pool(x, kp["w3"], kp["b3"])
    x_flat = x.reshape(x.shape[0], -1)     # NHWC flatten; fc1_w rows pre-permuted
    return mlp_head(x_flat, kp["fc1_w"], kp["fc1_b"], kp["fc2_w"], kp["fc2_b"])


# ----------------------------------------------------------------------------
# Deterministic parameter init (PyTorch-default-style uniform bounds)
# ----------------------------------------------------------------------------
def init_params(key, out_dim=512, spatial=32):
    ks = jax.random.split(key, 10)

    def u(k, shape, fan_in):
        bound = 1.0 / (fan_in ** 0.5)
        return jax.random.uniform(k, shape, jnp.float32, -bound, bound)

    d1 = 128 * (spatial // 8) * (spatial // 8)  # 128*28*28 for the full 224 case
    return {
        "w1": u(ks[0], (32, 3, 3, 3), 3 * 9),    "b1": u(ks[1], (32,), 3 * 9),
        "w2": u(ks[2], (64, 32, 3, 3), 32 * 9),  "b2": u(ks[3], (64,), 32 * 9),
        "w3": u(ks[4], (128, 64, 3, 3), 64 * 9), "b3": u(ks[5], (128,), 64 * 9),
        "fc1_w": u(ks[6], (1024, d1), d1),       "fc1_b": u(ks[7], (1024,), d1),
        "fc2_w": u(ks[8], (out_dim, 1024), 1024),
        "fc2_b": u(ks[9], (out_dim,), 1024),
    }


# ----------------------------------------------------------------------------
# Pure-JAX reference mirroring the kernel's numerics (bf16 storage, f32 accum)
# ----------------------------------------------------------------------------
def reference_forward(x_nchw, p):
    bf16 = jnp.bfloat16

    def conv_block(x, w, b):
        y = lax.conv_general_dilated(
            x.astype(bf16), w.astype(bf16), (1, 1), ((1, 1), (1, 1)),
            dimension_numbers=("NCHW", "OIHW", "NCHW"),
            preferred_element_type=jnp.float32)
        y = jnp.maximum(y + b[None, :, None, None], 0.0)
        y = lax.reduce_window(y, -jnp.inf, lax.max,
                              (1, 1, 2, 2), (1, 1, 2, 2), "VALID")
        return y.astype(bf16)

    x = conv_block(x_nchw, p["w1"], p["b1"])
    x = conv_block(x, p["w2"], p["b2"])
    x = conv_block(x, p["w3"], p["b3"])
    xf = x.reshape(x.shape[0], -1)                         # NCHW flatten
    h = jnp.maximum(
        jnp.dot(xf, p["fc1_w"].T.astype(bf16),
                preferred_element_type=jnp.float32) + p["fc1_b"], 0.0)
    h = h.astype(bf16)
    return (jnp.dot(h, p["fc2_w"].T.astype(bf16),
                    preferred_element_type=jnp.float32) + p["fc2_b"])


if __name__ == "__main__":
    key = jax.random.PRNGKey(0)
    kx, kparam = jax.random.split(key)

    B, spatial, out_dim = 2, 32, 512          # small demo shapes
    x = jax.random.normal(kx, (B, 3, spatial, spatial), jnp.float32)
    params = init_params(kparam, out_dim=out_dim, spatial=spatial)
    kparams = prepare_params(params, spatial)  # one-time weight layout prep

    y = cnn_image_encoder_forward(x, kparams)
    y = jax.block_until_ready(y)
    assert y.shape == (B, out_dim), y.shape

    y_ref = reference_forward(x, params)
    if not jnp.allclose(y, y_ref, rtol=2e-2, atol=2e-2):
        max_err = float(jnp.max(jnp.abs(y - y_ref)))
        raise AssertionError(f"Pallas vs reference mismatch, max abs err {max_err}")

    print("KERNEL_OK")
</pallas_src>

<mosaic_0001>
module attributes {stable_mosaic.version = 11 : i64} {
  func.func @_conv_relu_pool_kernel(%arg0: i32, %arg1: i32, %arg2: memref<1x32x32x3xbf16, #tpu.memory_space<vmem>>, %arg3: memref<27x32xbf16, #tpu.memory_space<vmem>>, %arg4: memref<1x32xf32, #tpu.memory_space<vmem>>, %arg5: memref<1x8x16x32xbf16, #tpu.memory_space<vmem>>, %arg6: memref<256x32xf32, #tpu.memory_space<vmem>>) attributes {dimension_semantics = [#tpu.dimension_semantics<parallel>, #tpu.dimension_semantics<parallel>], iteration_bounds = array<i64: 2, 2>, scalar_prefetch = 0 : i64, scratch_operands = 1 : i64, tpu.core_type = #tpu.core_type<tc>, window_params = [{transform_indices = @transform_0, window_bounds = array<i64: 1, 32, 32, 3>}, {pipeline_mode = #tpu.pipeline_mode<synchronous>, transform_indices = @transform_1, window_bounds = array<i64: 27, 32>}, {pipeline_mode = #tpu.pipeline_mode<synchronous>, transform_indices = @transform_2, window_bounds = array<i64: 1, 32>}, {transform_indices = @transform_3, window_bounds = array<i64: 1, 8, 16, 32>}]} {
    %c16_i32 = arith.constant 16 : i32
    %0 = arith.muli %arg1, %c16_i32 : i32
    %1 = tpu.assume_multiple %0, 16 : i32
    %c0 = arith.constant 0 : index
    %2 = arith.index_cast %1 : i32 to index
    %c0_0 = arith.constant 0 : index
    %c0_1 = arith.constant 0 : index
    %3 = vector.load %arg2[%c0, %2, %c0_0, %c0_1] : memref<1x32x32x3xbf16, #tpu.memory_space<vmem>>, vector<1x16x32x3xbf16>
    %4 = vector.shape_cast %3 : vector<1x16x32x3xbf16> to vector<16x32x3xbf16>
    %c1_i32 = arith.constant 1 : i32
    %5 = arith.subi %1, %c1_i32 : i32
    %c0_i32 = arith.constant 0 : i32
    %6 = arith.maxsi %5, %c0_i32 : i32
    %c0_2 = arith.constant 0 : index
    %7 = arith.index_cast %6 : i32 to index
    %c0_3 = arith.constant 0 : index
    %c0_4 = arith.constant 0 : index
    %8 = vector.load %arg2[%c0_2, %7, %c0_3, %c0_4] : memref<1x32x32x3xbf16, #tpu.memory_space<vmem>>, vector<1x1x32x3xbf16>
    %9 = vector.shape_cast %8 : vector<1x1x32x3xbf16> to vector<1x32x3xbf16>
    %c0_i32_5 = arith.constant 0 : i32
    %10 = arith.cmpi sgt, %arg1, %c0_i32_5 : i32
    %11 = arith.extui %10 : i1 to i32
    %12 = arith.sitofp %11 : i32 to f32
    %13 = arith.truncf %12 : f32 to bf16
    %14 = vector.broadcast %13 : bf16 to vector<1x32x3xbf16>
    %15 = arith.mulf %9, %14 : vector<1x32x3xbf16>
    %c16_i32_6 = arith.constant 16 : i32
    %16 = arith.addi %1, %c16_i32_6 : i32
    %c31_i32 = arith.constant 31 : i32
    %17 = arith.minsi %16, %c31_i32 : i32
    %c0_7 = arith.constant 0 : index
    %18 = arith.index_cast %17 : i32 to index
    %c0_8 = arith.constant 0 : index
    %c0_9 = arith.constant 0 : index
    %19 = vector.load %arg2[%c0_7, %18, %c0_8, %c0_9] : memref<1x32x32x3xbf16, #tpu.memory_space<vmem>>, vector<1x1x32x3xbf16>
    %20 = vector.shape_cast %19 : vector<1x1x32x3xbf16> to vector<1x32x3xbf16>
    %c1_i32_10 = arith.constant 1 : i32
    %21 = arith.cmpi slt, %arg1, %c1_i32_10 : i32
    %22 = arith.extui %21 : i1 to i32
    %23 = arith.sitofp %22 : i32 to f32
    %24 = arith.truncf %23 : f32 to bf16
    %25 = vector.broadcast %24 : bf16 to vector<1x32x3xbf16>
    %26 = arith.mulf %20, %25 : vector<1x32x3xbf16>
    %27 = tpu.concatenate %15, %4, %26 in 0 : vector<1x32x3xbf16>, vector<16x32x3xbf16>, vector<1x32x3xbf16> -> vector<18x32x3xbf16>
    %cst = arith.constant 0.000000e+00 : bf16
    %28 = vector.broadcast %cst : bf16 to vector<18x1x3xbf16>
    %29 = tpu.concatenate %28, %27, %28 in 1 : vector<18x1x3xbf16>, vector<18x32x3xbf16>, vector<18x1x3xbf16> -> vector<18x34x3xbf16>
    %30 = vector.extract_strided_slice %29 {offsets = [0, 0, 0], sizes = [16, 32, 3], strides = [1, 1, 1]} : vector<18x34x3xbf16> to vector<16x32x3xbf16>
    %31 = vector.extract_strided_slice %29 {offsets = [0, 1, 0], sizes = [16, 32, 3], strides = [1, 1, 1]} : vector<18x34x3xbf16> to vector<16x32x3xbf16>
    %32 = vector.extract_strided_slice %29 {offsets = [0, 2, 0], sizes = [16, 32, 3], strides = [1, 1, 1]} : vector<18x34x3xbf16> to vector<16x32x3xbf16>
    %33 = vector.extract_strided_slice %29 {offsets = [1, 0, 0], sizes = [16, 32, 3], strides = [1, 1, 1]} : vector<18x34x3xbf16> to vector<16x32x3xbf16>
    %34 = vector.extract_strided_slice %29 {offsets = [1, 1, 0], sizes = [16, 32, 3], strides = [1, 1, 1]} : vector<18x34x3xbf16> to vector<16x32x3xbf16>
    %35 = vector.extract_strided_slice %29 {offsets = [1, 2, 0], sizes = [16, 32, 3], strides = [1, 1, 1]} : vector<18x34x3xbf16> to vector<16x32x3xbf16>
    %36 = vector.extract_strided_slice %29 {offsets = [2, 0, 0], sizes = [16, 32, 3], strides = [1, 1, 1]} : vector<18x34x3xbf16> to vector<16x32x3xbf16>
    %37 = vector.extract_strided_slice %29 {offsets = [2, 1, 0], sizes = [16, 32, 3], strides = [1, 1, 1]} : vector<18x34x3xbf16> to vector<16x32x3xbf16>
    %38 = vector.extract_strided_slice %29 {offsets = [2, 2, 0], sizes = [16, 32, 3], strides = [1, 1, 1]} : vector<18x34x3xbf16> to vector<16x32x3xbf16>
    %39 = tpu.concatenate %30, %31, %32, %33, %34, %35, %36, %37, %38 in 2 : vector<16x32x3xbf16>, vector<16x32x3xbf16>, vector<16x32x3xbf16>, vector<16x32x3xbf16>, vector<16x32x3xbf16>, vector<16x32x3xbf16>, vector<16x32x3xbf16>, vector<16x32x3xbf16>, vector<16x32x3xbf16> -> vector<16x32x27xbf16>
    %40 = vector.shape_cast %39 : vector<16x32x27xbf16> to vector<512x27xbf16>
    %c0_11 = arith.constant 0 : index
    %c0_12 = arith.constant 0 : index
    %41 = vector.load %arg3[%c0_11, %c0_12] : memref<27x32xbf16, #tpu.memory_space<vmem>>, vector<27x32xbf16>
    %cst_13 = arith.constant dense<0.000000e+00> : vector<512x32xf32>
    %42 = tpu.matmul %40, %41, %cst_13 {dimension_numbers = #tpu.dot_dimension_numbers<[1], [0], [0], [1], [0, 0, 1, 1], [], []>} : vector<512x27xbf16>, vector<27x32xbf16>, vector<512x32xf32> -> vector<512x32xf32>
    %c0_14 = arith.constant 0 : index
    %c0_15 = arith.constant 0 : index
    %43 = vector.load %arg4[%c0_14, %c0_15] : memref<1x32xf32, #tpu.memory_space<vmem>>, vector<1x32xf32>
    %44 = vector.broadcast %43 : vector<1x32xf32> to vector<512x32xf32>
    %45 = arith.addf %42, %44 : vector<512x32xf32>
    %cst_16 = arith.constant 0.000000e+00 : f32
    %46 = vector.broadcast %cst_16 : f32 to vector<512x32xf32>
    %47 = arith.maximumf %45, %46 : vector<512x32xf32>
    %48 = vector.shape_cast %47 : vector<512x32xf32> to vector<8x64x32xf32>
    %49 = vector.extract_strided_slice %48 {offsets = [0, 0, 0], sizes = [8, 32, 32], strides = [1, 1, 1]} : vector<8x64x32xf32> to vector<8x32x32xf32>
    %50 = vector.extract_strided_slice %48 {offsets = [0, 32, 0], sizes = [8, 32, 32], strides = [1, 1, 1]} : vector<8x64x32xf32> to vector<8x32x32xf32>
    %51 = arith.maximumf %49, %50 : vector<8x32x32xf32>
    %52 = vector.shape_cast %51 : vector<8x32x32xf32> to vector<256x32xf32>
    %c0_17 = arith.constant 0 : index
    %c0_18 = arith.constant 0 : index
    %53 = vector.load %arg6[%c0_17, %c0_18] : memref<256x32xf32, #tpu.memory_space<vmem>>, vector<256x32xf32>
    tpu.vector_store %arg6[%c0_17, %c0_18], %52 {strides = array<i32>} : memref<256x32xf32, #tpu.memory_space<vmem>>, vector<256x32xf32>,
    %c0_19 = arith.constant 0 : index
    %c0_20 = arith.constant 0 : index
    %54 = tpu.strided_load %arg6[%c0_19, %c0_20] {strides = array<i32: 2, 1>} : memref<256x32xf32, #tpu.memory_space<vmem>>, vector<128x32xf32>
    %c1 = arith.constant 1 : index
    %c0_21 = arith.constant 0 : index
    %55 = tpu.strided_load %arg6[%c1, %c0_21] {strides = array<i32: 2, 1>} : memref<256x32xf32, #tpu.memory_space<vmem>>, vector<128x32xf32>
    %56 = arith.maximumf %54, %55 : vector<128x32xf32>
    %57 = vector.shape_cast %56 : vector<128x32xf32> to vector<8x16x32xf32>
    %58 = arith.truncf %57 : vector<8x16x32xf32> to vector<8x16x32xbf16>
    %c0_22 = arith.constant 0 : index
    %c0_23 = arith.constant 0 : index
    %c0_24 = arith.constant 0 : index
    %c0_25 = arith.constant 0 : index
    %59 = vector.load %arg5[%c0_22, %c0_23, %c0_24, %c0_25] : memref<1x8x16x32xbf16, #tpu.memory_space<vmem>>, vector<1x8x16x32xbf16>
    %60 = vector.shape_cast %59 : vector<1x8x16x32xbf16> to vector<8x16x32xbf16>
    %61 = vector.shape_cast %58 : vector<8x16x32xbf16> to vector<1x8x16x32xbf16>
    tpu.vector_store %arg5[%c0_22, %c0_23, %c0_24, %c0_25], %61 {strides = array<i32>} : memref<1x8x16x32xbf16, #tpu.memory_space<vmem>>, vector<1x8x16x32xbf16>,
    return
  }
  func.func @transform_0(%arg0: i32, %arg1: i32) -> (i32, i32, i32, i32) {
    %c0_i32 = arith.constant 0 : i32
    %c0_i32_0 = arith.constant 0 : i32
    %c0_i32_1 = arith.constant 0 : i32
    %c0_i32_2 = arith.constant 0 : i32
    return %arg0, %c0_i32, %c0_i32_0, %c0_i32_1 : i32, i32, i32, i32
  }
  func.func @transform_1(%arg0: i32, %arg1: i32) -> (i32, i32) {
    %c0_i32 = arith.constant 0 : i32
    %c0_i32_0 = arith.constant 0 : i32
    %c0_i32_1 = arith.constant 0 : i32
    return %c0_i32, %c0_i32_0 : i32, i32
  }
  func.func @transform_2(%arg0: i32, %arg1: i32) -> (i32, i32) {
    %c0_i32 = arith.constant 0 : i32
    %c0_i32_0 = arith.constant 0 : i32
    %c0_i32_1 = arith.constant 0 : i32
    return %c0_i32, %c0_i32_0 : i32, i32
  }
  func.func @transform_3(%arg0: i32, %arg1: i32) -> (i32, i32, i32, i32) {
    %c0_i32 = arith.constant 0 : i32
    %c0_i32_0 = arith.constant 0 : i32
    %c0_i32_1 = arith.constant 0 : i32
    return %arg0, %arg1, %c0_i32, %c0_i32_0 : i32, i32, i32, i32
  }
}

module attributes {stable_mosaic.version = 11 : i64} {
  func.func @_conv_relu_pool_kernel(%arg0: i32, %arg1: i32, %arg2: memref<1x16x16x32xbf16, #tpu.memory_space<vmem>>, %arg3: memref<288x64xbf16, #tpu.memory_space<vmem>>, %arg4: memref<1x64xf32, #tpu.memory_space<vmem>>, %arg5: memref<1x8x8x64xbf16, #tpu.memory_space<vmem>>, %arg6: memref<128x64xf32, #tpu.memory_space<vmem>>) attributes {dimension_semantics = [#tpu.dimension_semantics<parallel>, #tpu.dimension_semantics<parallel>], iteration_bounds = array<i64: 2, 1>, scalar_prefetch = 0 : i64, scratch_operands = 1 : i64, tpu.core_type = #tpu.core_type<tc>, window_params = [{transform_indices = @transform_0, window_bounds = array<i64: 1, 16, 16, 32>}, {pipeline_mode = #tpu.pipeline_mode<synchronous>, transform_indices = @transform_1, window_bounds = array<i64: 288, 64>}, {pipeline_mode = #tpu.pipeline_mode<synchronous>, transform_indices = @transform_2, window_bounds = array<i64: 1, 64>}, {transform_indices = @transform_3, window_bounds = array<i64: 1, 8, 8, 64>}]} {
    %c16_i32 = arith.constant 16 : i32
    %0 = arith.muli %arg1, %c16_i32 : i32
    %1 = tpu.assume_multiple %0, 16 : i32
    %c0 = arith.constant 0 : index
    %2 = arith.index_cast %1 : i32 to index
    %c0_0 = arith.constant 0 : index
    %c0_1 = arith.constant 0 : index
    %3 = vector.load %arg2[%c0, %2, %c0_0, %c0_1] : memref<1x16x16x32xbf16, #tpu.memory_space<vmem>>, vector<1x16x16x32xbf16>
    %4 = vector.shape_cast %3 : vector<1x16x16x32xbf16> to vector<16x16x32xbf16>
    %c1_i32 = arith.constant 1 : i32
    %5 = arith.subi %1, %c1_i32 : i32
    %c0_i32 = arith.constant 0 : i32
    %6 = arith.maxsi %5, %c0_i32 : i32
    %c0_2 = arith.constant 0 : index
    %7 = arith.index_cast %6 : i32 to index
    %c0_3 = arith.constant 0 : index
    %c0_4 = arith.constant 0 : index
    %8 = vector.load %arg2[%c0_2, %7, %c0_3, %c0_4] : memref<1x16x16x32xbf16, #tpu.memory_space<vmem>>, vector<1x1x16x32xbf16>
    %9 = vector.shape_cast %8 : vector<1x1x16x32xbf16> to vector<1x16x32xbf16>
    %c0_i32_5 = arith.constant 0 : i32
    %10 = arith.cmpi sgt, %arg1, %c0_i32_5 : i32
    %11 = arith.extui %10 : i1 to i32
    %12 = arith.sitofp %11 : i32 to f32
    %13 = arith.truncf %12 : f32 to bf16
    %14 = vector.broadcast %13 : bf16 to vector<1x16x32xbf16>
    %15 = arith.mulf %9, %14 : vector<1x16x32xbf16>
    %c16_i32_6 = arith.constant 16 : i32
    %16 = arith.addi %1, %c16_i32_6 : i32
    %c15_i32 = arith.constant 15 : i32
    %17 = arith.minsi %16, %c15_i32 : i32
    %c0_7 = arith.constant 0 : index
    %18 = arith.index_cast %17 : i32 to index
    %c0_8 = arith.constant 0 : index
    %c0_9 = arith.constant 0 : index
    %19 = vector.load %arg2[%c0_7, %18, %c0_8, %c0_9] : memref<1x16x16x32xbf16, #tpu.memory_space<vmem>>, vector<1x1x16x32xbf16>
    %20 = vector.shape_cast %19 : vector<1x1x16x32xbf16> to vector<1x16x32xbf16>
    %c0_i32_10 = arith.constant 0 : i32
    %21 = arith.cmpi slt, %arg1, %c0_i32_10 : i32
    %22 = arith.extui %21 : i1 to i32
    %23 = arith.sitofp %22 : i32 to f32
    %24 = arith.truncf %23 : f32 to bf16
    %25 = vector.broadcast %24 : bf16 to vector<1x16x32xbf16>
    %26 = arith.mulf %20, %25 : vector<1x16x32xbf16>
    %27 = tpu.concatenate %15, %4, %26 in 0 : vector<1x16x32xbf16>, vector<16x16x32xbf16>, vector<1x16x32xbf16> -> vector<18x16x32xbf16>
    %cst = arith.constant 0.000000e+00 : bf16
    %28 = vector.broadcast %cst : bf16 to vector<18x1x32xbf16>
    %29 = tpu.concatenate %28, %27, %28 in 1 : vector<18x1x32xbf16>, vector<18x16x32xbf16>, vector<18x1x32xbf16> -> vector<18x18x32xbf16>
    %30 = vector.extract_strided_slice %29 {offsets = [0, 0, 0], sizes = [16, 16, 32], strides = [1, 1, 1]} : vector<18x18x32xbf16> to vector<16x16x32xbf16>
    %31 = vector.extract_strided_slice %29 {offsets = [0, 1, 0], sizes = [16, 16, 32], strides = [1, 1, 1]} : vector<18x18x32xbf16> to vector<16x16x32xbf16>
    %32 = vector.extract_strided_slice %29 {offsets = [0, 2, 0], sizes = [16, 16, 32], strides = [1, 1, 1]} : vector<18x18x32xbf16> to vector<16x16x32xbf16>
    %33 = vector.extract_strided_slice %29 {offsets = [1, 0, 0], sizes = [16, 16, 32], strides = [1, 1, 1]} : vector<18x18x32xbf16> to vector<16x16x32xbf16>
    %34 = vector.extract_strided_slice %29 {offsets = [1, 1, 0], sizes = [16, 16, 32], strides = [1, 1, 1]} : vector<18x18x32xbf16> to vector<16x16x32xbf16>
    %35 = vector.extract_strided_slice %29 {offsets = [1, 2, 0], sizes = [16, 16, 32], strides = [1, 1, 1]} : vector<18x18x32xbf16> to vector<16x16x32xbf16>
    %36 = vector.extract_strided_slice %29 {offsets = [2, 0, 0], sizes = [16, 16, 32], strides = [1, 1, 1]} : vector<18x18x32xbf16> to vector<16x16x32xbf16>
    %37 = vector.extract_strided_slice %29 {offsets = [2, 1, 0], sizes = [16, 16, 32], strides = [1, 1, 1]} : vector<18x18x32xbf16> to vector<16x16x32xbf16>
    %38 = vector.extract_strided_slice %29 {offsets = [2, 2, 0], sizes = [16, 16, 32], strides = [1, 1, 1]} : vector<18x18x32xbf16> to vector<16x16x32xbf16>
    %39 = tpu.concatenate %30, %31, %32, %33, %34, %35, %36, %37, %38 in 2 : vector<16x16x32xbf16>, vector<16x16x32xbf16>, vector<16x16x32xbf16>, vector<16x16x32xbf16>, vector<16x16x32xbf16>, vector<16x16x32xbf16>, vector<16x16x32xbf16>, vector<16x16x32xbf16>, vector<16x16x32xbf16> -> vector<16x16x288xbf16>
    %40 = vector.shape_cast %39 : vector<16x16x288xbf16> to vector<256x288xbf16>
    %c0_11 = arith.constant 0 : index
    %c0_12 = arith.constant 0 : index
    %41 = vector.load %arg3[%c0_11, %c0_12] : memref<288x64xbf16, #tpu.memory_space<vmem>>, vector<288x64xbf16>
    %cst_13 = arith.constant dense<0.000000e+00> : vector<256x64xf32>
    %42 = tpu.matmul %40, %41, %cst_13 {dimension_numbers = #tpu.dot_dimension_numbers<[1], [0], [0], [1], [0, 0, 1, 1], [], []>} : vector<256x288xbf16>, vector<288x64xbf16>, vector<256x64xf32> -> vector<256x64xf32>
    %c0_14 = arith.constant 0 : index
    %c0_15 = arith.constant 0 : index
    %43 = vector.load %arg4[%c0_14, %c0_15] : memref<1x64xf32, #tpu.memory_space<vmem>>, vector<1x64xf32>
    %44 = vector.broadcast %43 : vector<1x64xf32> to vector<256x64xf32>
    %45 = arith.addf %42, %44 : vector<256x64xf32>
    %cst_16 = arith.constant 0.000000e+00 : f32
    %46 = vector.broadcast %cst_16 : f32 to vector<256x64xf32>
    %47 = arith.maximumf %45, %46 : vector<256x64xf32>
    %48 = vector.shape_cast %47 : vector<256x64xf32> to vector<8x32x64xf32>
    %49 = vector.extract_strided_slice %48 {offsets = [0, 0, 0], sizes = [8, 16, 64], strides = [1, 1, 1]} : vector<8x32x64xf32> to vector<8x16x64xf32>
    %50 = vector.extract_strided_slice %48 {offsets = [0, 16, 0], sizes = [8, 16, 64], strides = [1, 1, 1]} : vector<8x32x64xf32> to vector<8x16x64xf32>
    %51 = arith.maximumf %49, %50 : vector<8x16x64xf32>
    %52 = vector.shape_cast %51 : vector<8x16x64xf32> to vector<128x64xf32>
    %c0_17 = arith.constant 0 : index
    %c0_18 = arith.constant 0 : index
    %53 = vector.load %arg6[%c0_17, %c0_18] : memref<128x64xf32, #tpu.memory_space<vmem>>, vector<128x64xf32>
    tpu.vector_store %arg6[%c0_17, %c0_18], %52 {strides = array<i32>} : memref<128x64xf32, #tpu.memory_space<vmem>>, vector<128x64xf32>,
    %c0_19 = arith.constant 0 : index
    %c0_20 = arith.constant 0 : index
    %54 = tpu.strided_load %arg6[%c0_19, %c0_20] {strides = array<i32: 2, 1>} : memref<128x64xf32, #tpu.memory_space<vmem>>, vector<64x64xf32>
    %c1 = arith.constant 1 : index
    %c0_21 = arith.constant 0 : index
    %55 = tpu.strided_load %arg6[%c1, %c0_21] {strides = array<i32: 2, 1>} : memref<128x64xf32, #tpu.memory_space<vmem>>, vector<64x64xf32>
    %56 = arith.maximumf %54, %55 : vector<64x64xf32>
    %57 = vector.shape_cast %56 : vector<64x64xf32> to vector<8x8x64xf32>
    %58 = arith.truncf %57 : vector<8x8x64xf32> to vector<8x8x64xbf16>
    %c0_22 = arith.constant 0 : index
    %c0_23 = arith.constant 0 : index
    %c0_24 = arith.constant 0 : index
    %c0_25 = arith.constant 0 : index
    %59 = vector.load %arg5[%c0_22, %c0_23, %c0_24, %c0_25] : memref<1x8x8x64xbf16, #tpu.memory_space<vmem>>, vector<1x8x8x64xbf16>
    %60 = vector.shape_cast %59 : vector<1x8x8x64xbf16> to vector<8x8x64xbf16>
    %61 = vector.shape_cast %58 : vector<8x8x64xbf16> to vector<1x8x8x64xbf16>
    tpu.vector_store %arg5[%c0_22, %c0_23, %c0_24, %c0_25], %61 {strides = array<i32>} : memref<1x8x8x64xbf16, #tpu.memory_space<vmem>>, vector<1x8x8x64xbf16>,
    return
  }
  func.func @transform_0(%arg0: i32, %arg1: i32) -> (i32, i32, i32, i32) {
    %c0_i32 = arith.constant 0 : i32
    %c0_i32_0 = arith.constant 0 : i32
    %c0_i32_1 = arith.constant 0 : i32
    %c0_i32_2 = arith.constant 0 : i32
    return %arg0, %c0_i32, %c0_i32_0, %c0_i32_1 : i32, i32, i32, i32
  }
  func.func @transform_1(%arg0: i32, %arg1: i32) -> (i32, i32) {
    %c0_i32 = arith.constant 0 : i32
    %c0_i32_0 = arith.constant 0 : i32
    %c0_i32_1 = arith.constant 0 : i32
    return %c0_i32, %c0_i32_0 : i32, i32
  }
  func.func @transform_2(%arg0: i32, %arg1: i32) -> (i32, i32) {
    %c0_i32 = arith.constant 0 : i32
    %c0_i32_0 = arith.constant 0 : i32
    %c0_i32_1 = arith.constant 0 : i32
    return %c0_i32, %c0_i32_0 : i32, i32
  }
  func.func @transform_3(%arg0: i32, %arg1: i32) -> (i32, i32, i32, i32) {
    %c0_i32 = arith.constant 0 : i32
    %c0_i32_0 = arith.constant 0 : i32
    %c0_i32_1 = arith.constant 0 : i32
    return %arg0, %arg1, %c0_i32, %c0_i32_0 : i32, i32, i32, i32
  }
}

module attributes {stable_mosaic.version = 11 : i64} {
  func.func @_conv_relu_pool_kernel(%arg0: i32, %arg1: i32, %arg2: memref<1x8x8x64xbf16, #tpu.memory_space<vmem>>, %arg3: memref<576x128xbf16, #tpu.memory_space<vmem>>, %arg4: memref<1x128xf32, #tpu.memory_space<vmem>>, %arg5: memref<1x4x4x128xbf16, #tpu.memory_space<vmem>>, %arg6: memref<32x128xf32, #tpu.memory_space<vmem>>) attributes {dimension_semantics = [#tpu.dimension_semantics<parallel>, #tpu.dimension_semantics<parallel>], iteration_bounds = array<i64: 2, 1>, scalar_prefetch = 0 : i64, scratch_operands = 1 : i64, tpu.core_type = #tpu.core_type<tc>, window_params = [{transform_indices = @transform_0, window_bounds = array<i64: 1, 8, 8, 64>}, {pipeline_mode = #tpu.pipeline_mode<synchronous>, transform_indices = @transform_1, window_bounds = array<i64: 576, 128>}, {pipeline_mode = #tpu.pipeline_mode<synchronous>, transform_indices = @transform_2, window_bounds = array<i64: 1, 128>}, {transform_indices = @transform_3, window_bounds = array<i64: 1, 4, 4, 128>}]} {
    %c8_i32 = arith.constant 8 : i32
    %0 = arith.muli %arg1, %c8_i32 : i32
    %1 = tpu.assume_multiple %0, 8 : i32
    %c0 = arith.constant 0 : index
    %2 = arith.index_cast %1 : i32 to index
    %c0_0 = arith.constant 0 : index
    %c0_1 = arith.constant 0 : index
    %3 = vector.load %arg2[%c0, %2, %c0_0, %c0_1] : memref<1x8x8x64xbf16, #tpu.memory_space<vmem>>, vector<1x8x8x64xbf16>
    %4 = vector.shape_cast %3 : vector<1x8x8x64xbf16> to vector<8x8x64xbf16>
    %c1_i32 = arith.constant 1 : i32
    %5 = arith.subi %1, %c1_i32 : i32
    %c0_i32 = arith.constant 0 : i32
    %6 = arith.maxsi %5, %c0_i32 : i32
    %c0_2 = arith.constant 0 : index
    %7 = arith.index_cast %6 : i32 to index
    %c0_3 = arith.constant 0 : index
    %c0_4 = arith.constant 0 : index
    %8 = vector.load %arg2[%c0_2, %7, %c0_3, %c0_4] : memref<1x8x8x64xbf16, #tpu.memory_space<vmem>>, vector<1x1x8x64xbf16>
    %9 = vector.shape_cast %8 : vector<1x1x8x64xbf16> to vector<1x8x64xbf16>
    %c0_i32_5 = arith.constant 0 : i32
    %10 = arith.cmpi sgt, %arg1, %c0_i32_5 : i32
    %11 = arith.extui %10 : i1 to i32
    %12 = arith.sitofp %11 : i32 to f32
    %13 = arith.truncf %12 : f32 to bf16
    %14 = vector.broadcast %13 : bf16 to vector<1x8x64xbf16>
    %15 = arith.mulf %9, %14 : vector<1x8x64xbf16>
    %c8_i32_6 = arith.constant 8 : i32
    %16 = arith.addi %1, %c8_i32_6 : i32
    %c7_i32 = arith.constant 7 : i32
    %17 = arith.minsi %16, %c7_i32 : i32
    %c0_7 = arith.constant 0 : index
    %18 = arith.index_cast %17 : i32 to index
    %c0_8 = arith.constant 0 : index
    %c0_9 = arith.constant 0 : index
    %19 = vector.load %arg2[%c0_7, %18, %c0_8, %c0_9] : memref<1x8x8x64xbf16, #tpu.memory_space<vmem>>, vector<1x1x8x64xbf16>
    %20 = vector.shape_cast %19 : vector<1x1x8x64xbf16> to vector<1x8x64xbf16>
    %c0_i32_10 = arith.constant 0 : i32
    %21 = arith.cmpi slt, %arg1, %c0_i32_10 : i32
    %22 = arith.extui %21 : i1 to i32
    %23 = arith.sitofp %22 : i32 to f32
    %24 = arith.truncf %23 : f32 to bf16
    %25 = vector.broadcast %24 : bf16 to vector<1x8x64xbf16>
    %26 = arith.mulf %20, %25 : vector<1x8x64xbf16>
    %27 = tpu.concatenate %15, %4, %26 in 0 : vector<1x8x64xbf16>, vector<8x8x64xbf16>, vector<1x8x64xbf16> -> vector<10x8x64xbf16>
    %cst = arith.constant 0.000000e+00 : bf16
    %28 = vector.broadcast %cst : bf16 to vector<10x1x64xbf16>
    %29 = tpu.concatenate %28, %27, %28 in 1 : vector<10x1x64xbf16>, vector<10x8x64xbf16>, vector<10x1x64xbf16> -> vector<10x10x64xbf16>
    %30 = vector.extract_strided_slice %29 {offsets = [0, 0, 0], sizes = [8, 8, 64], strides = [1, 1, 1]} : vector<10x10x64xbf16> to vector<8x8x64xbf16>
    %31 = vector.extract_strided_slice %29 {offsets = [0, 1, 0], sizes = [8, 8, 64], strides = [1, 1, 1]} : vector<10x10x64xbf16> to vector<8x8x64xbf16>
    %32 = vector.extract_strided_slice %29 {offsets = [0, 2, 0], sizes = [8, 8, 64], strides = [1, 1, 1]} : vector<10x10x64xbf16> to vector<8x8x64xbf16>
    %33 = vector.extract_strided_slice %29 {offsets = [1, 0, 0], sizes = [8, 8, 64], strides = [1, 1, 1]} : vector<10x10x64xbf16> to vector<8x8x64xbf16>
    %34 = vector.extract_strided_slice %29 {offsets = [1, 1, 0], sizes = [8, 8, 64], strides = [1, 1, 1]} : vector<10x10x64xbf16> to vector<8x8x64xbf16>
    %35 = vector.extract_strided_slice %29 {offsets = [1, 2, 0], sizes = [8, 8, 64], strides = [1, 1, 1]} : vector<10x10x64xbf16> to vector<8x8x64xbf16>
    %36 = vector.extract_strided_slice %29 {offsets = [2, 0, 0], sizes = [8, 8, 64], strides = [1, 1, 1]} : vector<10x10x64xbf16> to vector<8x8x64xbf16>
    %37 = vector.extract_strided_slice %29 {offsets = [2, 1, 0], sizes = [8, 8, 64], strides = [1, 1, 1]} : vector<10x10x64xbf16> to vector<8x8x64xbf16>
    %38 = vector.extract_strided_slice %29 {offsets = [2, 2, 0], sizes = [8, 8, 64], strides = [1, 1, 1]} : vector<10x10x64xbf16> to vector<8x8x64xbf16>
    %39 = tpu.concatenate %30, %31, %32, %33, %34, %35, %36, %37, %38 in 2 : vector<8x8x64xbf16>, vector<8x8x64xbf16>, vector<8x8x64xbf16>, vector<8x8x64xbf16>, vector<8x8x64xbf16>, vector<8x8x64xbf16>, vector<8x8x64xbf16>, vector<8x8x64xbf16>, vector<8x8x64xbf16> -> vector<8x8x576xbf16>
    %40 = vector.shape_cast %39 : vector<8x8x576xbf16> to vector<64x576xbf16>
    %c0_11 = arith.constant 0 : index
    %c0_12 = arith.constant 0 : index
    %41 = vector.load %arg3[%c0_11, %c0_12] : memref<576x128xbf16, #tpu.memory_space<vmem>>, vector<576x128xbf16>
    %cst_13 = arith.constant dense<0.000000e+00> : vector<64x128xf32>
    %42 = tpu.matmul %40, %41, %cst_13 {dimension_numbers = #tpu.dot_dimension_numbers<[1], [0], [0], [1], [0, 0, 1, 1], [], []>} : vector<64x576xbf16>, vector<576x128xbf16>, vector<64x128xf32> -> vector<64x128xf32>
    %c0_14 = arith.constant 0 : index
    %c0_15 = arith.constant 0 : index
    %43 = vector.load %arg4[%c0_14, %c0_15] : memref<1x128xf32, #tpu.memory_space<vmem>>, vector<1x128xf32>
    %44 = vector.broadcast %43 : vector<1x128xf32> to vector<64x128xf32>
    %45 = arith.addf %42, %44 : vector<64x128xf32>
    %cst_16 = arith.constant 0.000000e+00 : f32
    %46 = vector.broadcast %cst_16 : f32 to vector<64x128xf32>
    %47 = arith.maximumf %45, %46 : vector<64x128xf32>
    %48 = vector.shape_cast %47 : vector<64x128xf32> to vector<4x16x128xf32>
    %49 = vector.extract_strided_slice %48 {offsets = [0, 0, 0], sizes = [4, 8, 128], strides = [1, 1, 1]} : vector<4x16x128xf32> to vector<4x8x128xf32>
    %50 = vector.extract_strided_slice %48 {offsets = [0, 8, 0], sizes = [4, 8, 128], strides = [1, 1, 1]} : vector<4x16x128xf32> to vector<4x8x128xf32>
    %51 = arith.maximumf %49, %50 : vector<4x8x128xf32>
    %52 = vector.shape_cast %51 : vector<4x8x128xf32> to vector<32x128xf32>
    %c0_17 = arith.constant 0 : index
    %c0_18 = arith.constant 0 : index
    %53 = vector.load %arg6[%c0_17, %c0_18] : memref<32x128xf32, #tpu.memory_space<vmem>>, vector<32x128xf32>
    tpu.vector_store %arg6[%c0_17, %c0_18], %52 {strides = array<i32>} : memref<32x128xf32, #tpu.memory_space<vmem>>, vector<32x128xf32>,
    %c0_19 = arith.constant 0 : index
    %c0_20 = arith.constant 0 : index
    %54 = tpu.strided_load %arg6[%c0_19, %c0_20] {strides = array<i32: 2, 1>} : memref<32x128xf32, #tpu.memory_space<vmem>>, vector<16x128xf32>
    %c1 = arith.constant 1 : index
    %c0_21 = arith.constant 0 : index
    %55 = tpu.strided_load %arg6[%c1, %c0_21] {strides = array<i32: 2, 1>} : memref<32x128xf32, #tpu.memory_space<vmem>>, vector<16x128xf32>
    %56 = arith.maximumf %54, %55 : vector<16x128xf32>
    %57 = vector.shape_cast %56 : vector<16x128xf32> to vector<4x4x128xf32>
    %58 = arith.truncf %57 : vector<4x4x128xf32> to vector<4x4x128xbf16>
    %c0_22 = arith.constant 0 : index
    %c0_23 = arith.constant 0 : index
    %c0_24 = arith.constant 0 : index
    %c0_25 = arith.constant 0 : index
    %59 = vector.load %arg5[%c0_22, %c0_23, %c0_24, %c0_25] : memref<1x4x4x128xbf16, #tpu.memory_space<vmem>>, vector<1x4x4x128xbf16>
    %60 = vector.shape_cast %59 : vector<1x4x4x128xbf16> to vector<4x4x128xbf16>
    %61 = vector.shape_cast %58 : vector<4x4x128xbf16> to vector<1x4x4x128xbf16>
    tpu.vector_store %arg5[%c0_22, %c0_23, %c0_24, %c0_25], %61 {strides = array<i32>} : memref<1x4x4x128xbf16, #tpu.memory_space<vmem>>, vector<1x4x4x128xbf16>,
    return
  }
  func.func @transform_0(%arg0: i32, %arg1: i32) -> (i32, i32, i32, i32) {
    %c0_i32 = arith.constant 0 : i32
    %c0_i32_0 = arith.constant 0 : i32
    %c0_i32_1 = arith.constant 0 : i32
    %c0_i32_2 = arith.constant 0 : i32
    return %arg0, %c0_i32, %c0_i32_0, %c0_i32_1 : i32, i32, i32, i32
  }
  func.func @transform_1(%arg0: i32, %arg1: i32) -> (i32, i32) {
    %c0_i32 = arith.constant 0 : i32
    %c0_i32_0 = arith.constant 0 : i32
    %c0_i32_1 = arith.constant 0 : i32
    return %c0_i32, %c0_i32_0 : i32, i32
  }
  func.func @transform_2(%arg0: i32, %arg1: i32) -> (i32, i32) {
    %c0_i32 = arith.constant 0 : i32
    %c0_i32_0 = arith.constant 0 : i32
    %c0_i32_1 = arith.constant 0 : i32
    return %c0_i32, %c0_i32_0 : i32, i32
  }
  func.func @transform_3(%arg0: i32, %arg1: i32) -> (i32, i32, i32, i32) {
    %c0_i32 = arith.constant 0 : i32
    %c0_i32_0 = arith.constant 0 : i32
    %c0_i32_1 = arith.constant 0 : i32
    return %arg0, %arg1, %c0_i32, %c0_i32_0 : i32, i32, i32, i32
  }
}

module attributes {stable_mosaic.version = 11 : i64} {
  func.func @_mlp_head_kernel(%arg0: i32, %arg1: i32, %arg2: memref<2x2048xbf16, #tpu.memory_space<vmem>>, %arg3: memref<2048x512xbf16, #tpu.memory_space<vmem>>, %arg4: memref<1x512xf32, #tpu.memory_space<vmem>>, %arg5: memref<512x512xbf16, #tpu.memory_space<vmem>>, %arg6: memref<1x2x512xf32, #tpu.memory_space<vmem>>, %arg7: memref<2x512xf32, #tpu.memory_space<vmem>>) attributes {dimension_semantics = [#tpu.dimension_semantics<parallel>, #tpu.dimension_semantics<arbitrary>], iteration_bounds = array<i64: 2, 1>, scalar_prefetch = 0 : i64, scratch_operands = 1 : i64, tpu.core_type = #tpu.core_type<tc>, window_params = [{transform_indices = @transform_0, window_bounds = array<i64: 2, 2048>}, {transform_indices = @transform_1, window_bounds = array<i64: 2048, 512>}, {transform_indices = @transform_2, window_bounds = array<i64: 1, 512>}, {transform_indices = @transform_3, window_bounds = array<i64: 512, 512>}, {transform_indices = @transform_4, window_bounds = array<i64: 1, 2, 512>}]} {
    %c0_i32 = arith.constant 0 : i32
    %0 = arith.cmpi eq, %arg1, %c0_i32 : i32
    %1 = arith.extui %0 : i1 to i32
    %c0_i32_0 = arith.constant 0 : i32
    %2 = arith.cmpi ne, %1, %c0_i32_0 : i32
    scf.if %2 {
      %cst_10 = arith.constant 0.000000e+00 : f32
      %12 = vector.broadcast %cst_10 : f32 to vector<2x512xf32>
      %c0_11 = arith.constant 0 : index
      %c0_12 = arith.constant 0 : index
      %13 = vector.load %arg7[%c0_11, %c0_12] : memref<2x512xf32, #tpu.memory_space<vmem>>, vector<2x512xf32>
      tpu.vector_store %arg7[%c0_11, %c0_12], %12 {strides = array<i32>} : memref<2x512xf32, #tpu.memory_space<vmem>>, vector<2x512xf32>,
    } else {
    }
    %c0 = arith.constant 0 : index
    %c0_1 = arith.constant 0 : index
    %3 = vector.load %arg7[%c0, %c0_1] : memref<2x512xf32, #tpu.memory_space<vmem>>, vector<2x512xf32>
    %c0_2 = arith.constant 0 : index
    %c0_3 = arith.constant 0 : index
    %4 = vector.load %arg2[%c0_2, %c0_3] : memref<2x2048xbf16, #tpu.memory_space<vmem>>, vector<2x2048xbf16>
    %c0_4 = arith.constant 0 : index
    %c0_5 = arith.constant 0 : index
    %5 = vector.load %arg3[%c0_4, %c0_5] : memref<2048x512xbf16, #tpu.memory_space<vmem>>, vector<2048x512xbf16>
    %cst = arith.constant dense<0.000000e+00> : vector<2x512xf32>
    %6 = tpu.matmul %4, %5, %cst {dimension_numbers = #tpu.dot_dimension_numbers<[1], [0], [0], [1], [0, 0, 1, 1], [], []>} : vector<2x2048xbf16>, vector<2048x512xbf16>, vector<2x512xf32> -> vector<2x512xf32>
    %7 = arith.addf %3, %6 : vector<2x512xf32>
    %c0_6 = arith.constant 0 : index
    %c0_7 = arith.constant 0 : index
    %8 = vector.load %arg7[%c0_6, %c0_7] : memref<2x512xf32, #tpu.memory_space<vmem>>, vector<2x512xf32>
    tpu.vector_store %arg7[%c0_6, %c0_7], %7 {strides = array<i32>} : memref<2x512xf32, #tpu.memory_space<vmem>>, vector<2x512xf32>,
    %c0_i32_8 = arith.constant 0 : i32
    %9 = arith.cmpi eq, %arg1, %c0_i32_8 : i32
    %10 = arith.extui %9 : i1 to i32
    %c0_i32_9 = arith.constant 0 : i32
    %11 = arith.cmpi ne, %10, %c0_i32_9 : i32
    scf.if %11 {
      %c0_10 = arith.constant 0 : index
      %c0_11 = arith.constant 0 : index
      %12 = vector.load %arg7[%c0_10, %c0_11] : memref<2x512xf32, #tpu.memory_space<vmem>>, vector<2x512xf32>
      %c0_12 = arith.constant 0 : index
      %c0_13 = arith.constant 0 : index
      %13 = vector.load %arg4[%c0_12, %c0_13] : memref<1x512xf32, #tpu.memory_space<vmem>>, vector<1x512xf32>
      %14 = vector.broadcast %13 : vector<1x512xf32> to vector<2x512xf32>
      %15 = arith.addf %12, %14 : vector<2x512xf32>
      %cst_14 = arith.constant 0.000000e+00 : f32
      %16 = vector.broadcast %cst_14 : f32 to vector<2x512xf32>
      %17 = arith.maximumf %15, %16 : vector<2x512xf32>
      %18 = arith.truncf %17 : vector<2x512xf32> to vector<2x512xbf16>
      %c0_15 = arith.constant 0 : index
      %c0_16 = arith.constant 0 : index
      %19 = vector.load %arg5[%c0_15, %c0_16] : memref<512x512xbf16, #tpu.memory_space<vmem>>, vector<512x512xbf16>
      %cst_17 = arith.constant dense<0.000000e+00> : vector<2x512xf32>
      %20 = tpu.matmul %18, %19, %cst_17 {dimension_numbers = #tpu.dot_dimension_numbers<[1], [0], [0], [1], [0, 0, 1, 1], [], []>} : vector<2x512xbf16>, vector<512x512xbf16>, vector<2x512xf32> -> vector<2x512xf32>
      %c0_18 = arith.constant 0 : index
      %c0_19 = arith.constant 0 : index
      %c0_20 = arith.constant 0 : index
      %21 = vector.load %arg6[%c0_18, %c0_19, %c0_20] : memref<1x2x512xf32, #tpu.memory_space<vmem>>, vector<1x2x512xf32>
      %22 = vector.shape_cast %21 : vector<1x2x512xf32> to vector<2x512xf32>
      %23 = vector.shape_cast %20 : vector<2x512xf32> to vector<1x2x512xf32>
      tpu.vector_store %arg6[%c0_18, %c0_19, %c0_20], %23 {strides = array<i32>} : memref<1x2x512xf32, #tpu.memory_space<vmem>>, vector<1x2x512xf32>,
    } else {
    }
    return
  }
  func.func @transform_0(%arg0: i32, %arg1: i32) -> (i32, i32) {
    %c0_i32 = arith.constant 0 : i32
    %c0_i32_0 = arith.constant 0 : i32
    return %c0_i32, %arg1 : i32, i32
  }
  func.func @transform_1(%arg0: i32, %arg1: i32) -> (i32, i32) {
    %c0_i32 = arith.constant 0 : i32
    return %arg1, %arg0 : i32, i32
  }
  func.func @transform_2(%arg0: i32, %arg1: i32) -> (i32, i32) {
    %c0_i32 = arith.constant 0 : i32
    %c0_i32_0 = arith.constant 0 : i32
    return %c0_i32, %arg0 : i32, i32
  }
  func.func @transform_3(%arg0: i32, %arg1: i32) -> (i32, i32) {
    %c0_i32 = arith.constant 0 : i32
    %c0_i32_0 = arith.constant 0 : i32
    return %arg0, %c0_i32 : i32, i32
  }
  func.func @transform_4(%arg0: i32, %arg1: i32) -> (i32, i32, i32) {
    %c0_i32 = arith.constant 0 : i32
    %c0_i32_0 = arith.constant 0 : i32
    %c0_i32_1 = arith.constant 0 : i32
    return %arg0, %c0_i32, %c0_i32_0 : i32, i32, i32
  }
}

</mosaic_0001>

<llo_original>
// kernel: cnn_image_encoder_forward.6
$region0: #{cnn_image_encoder_forward.6}
  #allocation0 [shape = 'u32[]', space=smem, size = 0x4, offset = 0x4, fixed_abs, tag = 'smem constant byte address 0x4 - core index']
  #allocation1 [shape = 'u32[144,128]{1,0:T(1,128)}', space=vmem, size = 0x12000, scoped, tag = 'internal scratch']
  #allocation2 [shape = 'f32[32,128]{1,0:T(8,128)}', space=vmem, size = 0x4000, scoped, tag = 'scratch operand']
  %s0 = inlined_call_operand.vmem [shape: bf16[2,8,8,64], index: 0, kind: input, shape index: {}]
  %s1 = inlined_call_operand.hbm [shape: bf16[576,128], index: 1, kind: input, shape index: {}]
  %s2 = inlined_call_operand.hbm [shape: f32[1,128], index: 2, kind: input, shape index: {}]
  %s3 = inlined_call_operand.vmem [shape: bf16[2,4,4,128], index: 3, kind: output, shape index: {}]
  %s4 = sld [smem:[#allocation0]]
  $region53: #{cnn_image_encoder_forward.6} parent=0
    _
  %s6 = ssub.s32 1, %s4
  %s7 = scalar_select 0, %s6, %s4
  $region1: #{cnn_image_encoder_forward.6} parent=0
    #allocation3 [shape = 'u8[147456]{0}', space=vmem, size = 0x24000, scoped, tag = 'input window, operand 1, single buffered']
    #allocation4 [shape = 's32[2]{0}', space=sflag, size = 0x8, scoped, tag = 'scoped memory for cnn_image_encoder_forward.6']
    #allocation5 [shape = 'u8[512]{0}', space=vmem, size = 0x400, scoped, tag = 'input window, operand 2, single buffered']
    #allocation6 [shape = 's32[1]{0}', space=sflag, size = 0x4, scoped, tag = 'scoped memory for cnn_image_encoder_forward.6']
    %8 = vsyncpa [#allocation4], 0
    %9 = vsyncpa [#allocation6], 0
    loop: start=0, step=1, limit=4
    $region2: #{cnn_image_encoder_forward.6} parent=1 // loop_pre_header
      _
    $region3: #{cnn_image_encoder_forward.6} parent=1 // loop_header
      %s11 = sphi 0, %s15
      %p12 = scmp.ge.s32.totalorder %s11, 4
      %s18 = sphi 0, %s30
      %s19 = sphi 0, %s26
      %s20 = sphi 0, %s18
      %s21 = sphi 0, %s19
      %s22 = sphi 0, %s20
      %s23 = sphi 0, %s21
      %s33 = sphi 0, %s35
      %s36 = sphi 0, %s33
      %s37 = sphi 0, %s36
      %s53 = sphi 0, %s37
      %s57 = sphi 0, %s57
      %s59 = sphi 0, %s57
      %s60 = sphi 0, %s59
      %s74 = sphi 0, %s60
      %s78 = sphi 0, %s78
      %s80 = sphi 0, %s78
      %s81 = sphi 0, %s80
      %s95 = sphi 0, %s81
      %s103 = sphi 0, %s105
      %s106 = sphi 0, %s103
      %s107 = sphi 0, %s106
      %s123 = sphi 0, %s107
    $region4: #{cnn_image_encoder_forward.6} parent=1 // loop_header_branch
      %14 = sbr.rel (%p12) target = $region8
    $region5: #{cnn_image_encoder_forward.6} parent=1 // loop_body
      %s16 = ssub.s32 %s11, 1
      %s17 = ssub.s32 %s11, 2
      %s24 = sadd.s32 1, %s19
      %p25 = scmp.ge.s32.totalorder %s24, 1
      %s26 = scalar_select %p25, 0, %s24
      %s27 = sadd.s32 1, %s18
      %s28 = scalar_select %p25, %s27, %s18
      %p29 = scmp.ge.s32.totalorder %s28, 2
      %s30 = scalar_select %p29, 0, %s28
      %s31 = ssub.s32 %s18, %s30
      %p32 = scmp.eq.s32.totalorder %s31, 0
      %s34 = sadd.s32 %s33, 1
      %s35 = scalar_select %p32, %s33, %s34
      %p38 = pneg %p32
      %p39 = scmp.eq.s32.totalorder %s11, 1
      %p40 = por %p38, %p39
      %p41 = scmp.ne.s32.totalorder %s33, %s36
      %p42 = scmp.eq.s32.totalorder %s11, 0
      %p43 = por %p41, %p42
      %p44 = scmp.ne.s32.totalorder %s33, %s36
      %p45 = scmp.eq.s32.totalorder %s16, 1
      %p46 = por %p44, %p45
      %p47 = scmp.ne.s32.totalorder %s36, %s37
      %p48 = scmp.eq.s32.totalorder %s16, 0
      %p49 = por %p47, %p48
      %p50 = scmp.ne.s32.totalorder %s36, %s37
      %p51 = scmp.eq.s32.totalorder %s17, 1
      %p52 = por %p50, %p51
      %p54 = scmp.ne.s32.totalorder %s37, %s53
      %p55 = scmp.eq.s32.totalorder %s17, 0
      %p56 = por %p54, %p55
      %s58 = sadd.s32 %s57, 1
      %p61 = scmp.eq.s32.totalorder %s11, 1
      %p62 = scmp.ne.s32.totalorder %s57, %s59
      %p63 = scmp.eq.s32.totalorder %s11, 0
      %p64 = por %p62, %p63
      %p65 = scmp.ne.s32.totalorder %s57, %s59
      %p66 = scmp.eq.s32.totalorder %s16, 1
      %p67 = por %p65, %p66
      %p68 = scmp.ne.s32.totalorder %s59, %s60
      %p69 = scmp.eq.s32.totalorder %s16, 0
      %p70 = por %p68, %p69
      %p71 = scmp.ne.s32.totalorder %s59, %s60
      %p72 = scmp.eq.s32.totalorder %s17, 1
      %p73 = por %p71, %p72
      %p75 = scmp.ne.s32.totalorder %s60, %s74
      %p76 = scmp.eq.s32.totalorder %s17, 0
      %p77 = por %p75, %p76
      %s79 = sadd.s32 %s78, 1
      %p82 = scmp.eq.s32.totalorder %s11, 1
      %p83 = scmp.ne.s32.totalorder %s78, %s80
      %p84 = scmp.eq.s32.totalorder %s11, 0
      %p85 = por %p83, %p84
      %p86 = scmp.ne.s32.totalorder %s78, %s80
      %p87 = scmp.eq.s32.totalorder %s16, 1
      %p88 = por %p86, %p87
      %p89 = scmp.ne.s32.totalorder %s80, %s81
      %p90 = scmp.eq.s32.totalorder %s16, 0
      %p91 = por %p89, %p90
      %p92 = scmp.ne.s32.totalorder %s80, %s81
      %p93 = scmp.eq.s32.totalorder %s17, 1
      %p94 = por %p92, %p93
      %p96 = scmp.ne.s32.totalorder %s81, %s95
      %p97 = scmp.eq.s32.totalorder %s17, 0
      %p98 = por %p96, %p97
      %s99 = ssub.s32 %s18, %s30
      %s100 = ssub.s32 %s19, %s26
      %s101 = sor.u32 %s99, %s100
      %p102 = scmp.eq.s32.totalorder %s101, 0
      %s104 = sadd.s32 %s103, 1
      %s105 = scalar_select %p102, %s103, %s104
      %p108 = pneg %p102
      %p109 = scmp.eq.s32.totalorder %s11, 1
      %p110 = por %p108, %p109
      %p111 = scmp.ne.s32.totalorder %s103, %s106
      %p112 = scmp.eq.s32.totalorder %s11, 0
      %p113 = por %p111, %p112
      %p114 = scmp.ne.s32.totalorder %s103, %s106
      %p115 = scmp.eq.s32.totalorder %s16, 1
      %p116 = por %p114, %p115
      %p117 = scmp.ne.s32.totalorder %s106, %s107
      %p118 = scmp.eq.s32.totalorder %s16, 0
      %p119 = por %p117, %p118
      %p120 = scmp.ne.s32.totalorder %s106, %s107
      %p121 = scmp.eq.s32.totalorder %s17, 1
      %p122 = por %p120, %p121
      %p124 = scmp.ne.s32.totalorder %s107, %s123
      %p125 = scmp.eq.s32.totalorder %s17, 0
      %p126 = por %p124, %p125
      %p127 = scmp.le.s32.totalorder 1, %s11
      %p128 = scmp.lt.s32.totalorder %s11, 3
      %p129 = pnand %p127, %p128
      %p130 = pneg %p129
      // Predicated region
      $region9: #{cnn_image_encoder_forward.6} parent=5 // pred_check
        _
      $region10: #{cnn_image_encoder_forward.6} parent=5 // pred_check_branch
        %132 = sbr.rel (%p129) target = $region12
      $region11: #{cnn_image_encoder_forward.6} parent=5 // pred_region
        %s133 = ssub.s32 %s11, 1
        // Predicated region
        $region13: #{cnn_image_encoder_forward.6} parent=11 // pred_check
          %p134 = pneg %p70
        $region14: #{cnn_image_encoder_forward.6} parent=11 // pred_check_branch
          %136 = sbr.rel (%p134) target = $region16
        $region15: #{cnn_image_encoder_forward.6} parent=11 // pred_region
          %s138 = ssub.s32 4608, 4608
          %139 = vsyncadd [#allocation4], %s138
          %s140 = sshll.u32 [#allocation3], 4
          %s141 = int_to_ptr.vmem [resolvable:$true] %s140
          %146 = dma.hbm_to_vmem [thread:$0]  %s1, 4608, %s141, [#allocation4], 64, 64, 4
        $region16: #{cnn_image_encoder_forward.6} parent=11 // pred_fallthru
          _
        // Predicated region
        $region17: #{cnn_image_encoder_forward.6} parent=11 // pred_check
          %p147 = pneg %p91
        $region18: #{cnn_image_encoder_forward.6} parent=11 // pred_check_branch
          %149 = sbr.rel (%p147) target = $region20
        $region19: #{cnn_image_encoder_forward.6} parent=11 // pred_region
          %s151 = ssub.s32 16, 16
          %152 = vsyncadd [#allocation6], %s151
          %s154 = sshll.u32 [#allocation5], 4
          %s155 = int_to_ptr.vmem [resolvable:$true] %s154
          %157 = dma.hbm_to_vmem [thread:$0]  %s2, 16, %s155, [#allocation6]
        $region20: #{cnn_image_encoder_forward.6} parent=11 // pred_fallthru
          _
      $region12: #{cnn_image_encoder_forward.6} parent=5 // pred_fallthru
        _
      %p158 = scmp.lt.s32.totalorder %s11, 2
      // Predicated region
      $region21: #{cnn_image_encoder_forward.6} parent=5 // pred_check
        %p159 = pneg %p158
      $region22: #{cnn_image_encoder_forward.6} parent=5 // pred_check_branch
        %161 = sbr.rel (%p159) target = $region24
      $region23: #{cnn_image_encoder_forward.6} parent=5 // pred_region
        // Predicated region
        $region25: #{cnn_image_encoder_forward.6} parent=23 // pred_check
          %p162 = pneg %p43
        $region26: #{cnn_image_encoder_forward.6} parent=23 // pred_check_branch
          %164 = sbr.rel (%p162) target = $region28
        $region27: #{cnn_image_encoder_forward.6} parent=23 // pred_region
          %p165 = scmp.lt.s32.totalorder %s18, 1
          %s166 = scalar_select %p165, %s18, 1
          %s167 = smul.addr %s166, 8
          %s168 = smul.addr %s167, 4
          %s169 = scalar_lea.vmem %s0, %s168
        $region28: #{cnn_image_encoder_forward.6} parent=23 // pred_fallthru
          _
      $region24: #{cnn_image_encoder_forward.6} parent=5 // pred_fallthru
        _
      %p170 = scmp.le.s32.totalorder 1, %s11
      %p171 = scmp.lt.s32.totalorder %s11, 3
      %p172 = pnand %p170, %p171
      %p173 = pneg %p172
      // Predicated region
      $region29: #{cnn_image_encoder_forward.6} parent=5 // pred_check
        _
      $region30: #{cnn_image_encoder_forward.6} parent=5 // pred_check_branch
        %175 = sbr.rel (%p172) target = $region32
      $region31: #{cnn_image_encoder_forward.6} parent=5 // pred_region
        %s176 = ssub.s32 %s11, 1
        // Predicated region
        $region33: #{cnn_image_encoder_forward.6} parent=31 // pred_check
          %p177 = pneg %p70
        $region34: #{cnn_image_encoder_forward.6} parent=31 // pred_check_branch
          %179 = sbr.rel (%p177) target = $region36
        $region35: #{cnn_image_encoder_forward.6} parent=31 // pred_region
          %180 = dma.done [#allocation4], 4608
        $region36: #{cnn_image_encoder_forward.6} parent=31 // pred_fallthru
          _
        // Predicated region
        $region37: #{cnn_image_encoder_forward.6} parent=31 // pred_check
          %p181 = pneg %p91
        $region38: #{cnn_image_encoder_forward.6} parent=31 // pred_check_branch
          %183 = sbr.rel (%p181) target = $region40
        $region39: #{cnn_image_encoder_forward.6} parent=31 // pred_region
          %184 = dma.done [#allocation6], 16
        $region40: #{cnn_image_encoder_forward.6} parent=31 // pred_fallthru
          _
        %p185 = scmp.lt.s32.totalorder %s20, 1
        %s186 = scalar_select %p185, %s20, 1
        %s187 = smul.addr %s186, 8
        %s188 = smul.addr %s187, 4
        %s189 = scalar_lea.vmem %s0, %s188
        %p190 = pneg %p49
        %p191 = pneg %p46
        %p192 = pneg %p70
        %p193 = pneg %p67
        %p194 = pneg %p91
        %p195 = pneg %p88
        %p196 = pneg %p119
        %p197 = pneg %p116
        %s198 = smul.u32 4, %s21
        %p199 = scmp.lt.s32.totalorder %s20, 1
        %s200 = scalar_select %p199, %s20, 1
        %p201 = scmp.lt.s32.totalorder %s198, 3
        %s202 = scalar_select %p201, %s198, 3
        %s203 = smul.addr %s200, 4
        %s204 = sadd.s32 %s202, %s203
        %s205 = smul.addr %s204, 2
        %s206 = scalar_lea.vmem %s3, %s205
        %p207 = scmp.lt.s32.totalorder %s20, 1
        %s208 = scalar_select %p207, %s20, 1
        %s209 = smul.addr %s208, 8
        %s210 = smul.addr %s209, 4
        %s211 = scalar_lea.vmem %s0, %s210
        %s212 = smul.u32 4, %s21
        %p213 = scmp.lt.s32.totalorder %s20, 1
        %s214 = scalar_select %p213, %s20, 1
        %p215 = scmp.lt.s32.totalorder %s212, 3
        %s216 = scalar_select %p215, %s212, 3
        %s217 = smul.addr %s214, 4
        %s218 = sadd.s32 %s216, %s217
        %s219 = smul.addr %s218, 2
        %s220 = scalar_lea.vmem %s3, %s219
        %s221 = smul.u32 4, %s21
        %s223 = smul.u32 %s21, 8
        %s224 = smul.addr %s223, 4
        %s225 = scalar_lea.vmem %s211, %s224
        %v226 = vld [vmem:[%s225] sm:$0xf]
        %v227 = vld [vmem:[%s225 + $0x4] sm:$0xf]
        %v228 = vld [vmem:[%s225 + $0x8] sm:$0xf]
        %v229 = vld [vmem:[%s225 + $0xc] sm:$0xf]
        %v230 = vld [vmem:[%s225 + $0x10] sm:$0xf]
        %v231 = vld [vmem:[%s225 + $0x14] sm:$0xf]
        %v232 = vld [vmem:[%s225 + $0x18] sm:$0xf]
        %v233 = vld [vmem:[%s225 + $0x1c] sm:$0xf]
        %s234 = ssub.s32 %s223, 1
        %p235 = scmp.gt.s32.totalorder %s234, 0
        %s236 = scalar_select %p235, %s234, 0
        %s237 = smul.addr %s236, 4
        %s238 = scalar_lea.vmem %s211, %s237
        %v239 = vld [vmem:[%s238] sm:$0xf]
        %p240 = scmp.gt.s32.totalorder %s21, 0
        %s241 = scalar_select %p240, 1, 0
        %s242 = scvt.s32.f32 %s241
        %p244 = scmp.ne.f32.partialorder %s242, %s242
        %s245 = sshrl.u32 %s242, 16
        %s246 = sand.u32 %s245, 1
        %s247 = sadd.s32 32767, %s246
        %s248 = sadd.s32 %s242, %s247
        %s249 = sand.u32 %s248, 4294901760
        %s250 = scalar_select %p244, 2143289344, %s249
        %s252 = sshrl.u32 %s250, 16
        %s253 = sshll.u32 %s252, 16
        %s254 = sor.u32 %s252, %s253
        %v255 = vstv %s254
        %v257 = vmul.bf16 %v239, %v255
        %s258 = sadd.s32 %s223, 8
        %p259 = scmp.lt.s32.totalorder %s258, 7
        %s260 = scalar_select %p259, %s258, 7
        %s261 = smul.addr %s260, 4
        %s262 = scalar_lea.vmem %s211, %s261
        %v263 = vld [vmem:[%s262] sm:$0xf]
        %p264 = scmp.lt.s32.totalorder %s21, 0
        %s265 = scalar_select %p264, 1, 0
        %s266 = scvt.s32.f32 %s265
        %p268 = scmp.ne.f32.partialorder %s266, %s266
        %s269 = sshrl.u32 %s266, 16
        %s270 = sand.u32 %s269, 1
        %s271 = sadd.s32 32767, %s270
        %s272 = sadd.s32 %s266, %s271
        %s273 = sand.u32 %s272, 4294901760
        %s274 = scalar_select %p268, 2143289344, %s273
        %s276 = sshrl.u32 %s274, 16
        %s277 = sshll.u32 %s276, 16
        %s278 = sor.u32 %s276, %s277
        %v279 = vstv %s278
        %v281 = vmul.bf16 %v263, %v279
        %v292 = vunpack.c.l.b16 %v257
        %v293 = vunpack.c.l.b16 %v226
        %v294 = vunpack.c.l.b16 %v227
        %v295 = vunpack.c.l.b16 %v228
        %v296 = vunpack.c.l.b16 %v229
        %v297 = vunpack.c.l.b16 %v230
        %v298 = vunpack.c.l.b16 %v231
        %v299 = vunpack.c.l.b16 %v232
        %v300 = vunpack.c.l.b16 %v233
        %v301 = vunpack.c.l.b16 %v281
        %v302 = vpack.c.b16 %v292, %v292
        %v303 = vpack.c.b16 %v293, %v293
        %v304 = vpack.c.b16 %v294, %v294
        %v305 = vpack.c.b16 %v295, %v295
        %v306 = vpack.c.b16 %v296, %v296
        %v307 = vpack.c.b16 %v297, %v297
        %v308 = vpack.c.b16 %v298, %v298
        %v309 = vpack.c.b16 %v299, %v299
        %v310 = vpack.c.b16 %v300, %v300
        %v311 = vpack.c.b16 %v301, %v301
        %v313 = vshrl.u32 %v302, 16
        %v315 = vrot.slane %v313, 7
        %v316 = vshll.u32 %v302, 16
        %v318 = vor.u32 %v315, %v316
        %v320 = vshrl.u32 %v303, 16
        %v322 = vrot.slane %v320, 7
        %v323 = vshll.u32 %v303, 16
        %v325 = vor.u32 %v322, %v323
        %v327 = vshrl.u32 %v304, 16
        %v329 = vrot.slane %v327, 7
        %v330 = vshll.u32 %v304, 16
        %v332 = vor.u32 %v329, %v330
        %v334 = vshrl.u32 %v305, 16
        %v336 = vrot.slane %v334, 7
        %v337 = vshll.u32 %v305, 16
        %v339 = vor.u32 %v336, %v337
        %v341 = vshrl.u32 %v306, 16
        %v343 = vrot.slane %v341, 7
        %v344 = vshll.u32 %v306, 16
        %v346 = vor.u32 %v343, %v344
        %v348 = vshrl.u32 %v307, 16
        %v350 = vrot.slane %v348, 7
        %v351 = vshll.u32 %v307, 16
        %v353 = vor.u32 %v350, %v351
        %v355 = vshrl.u32 %v308, 16
        %v357 = vrot.slane %v355, 7
        %v358 = vshll.u32 %v308, 16
        %v360 = vor.u32 %v357, %v358
        %v362 = vshrl.u32 %v309, 16
        %v364 = vrot.slane %v362, 7
        %v365 = vshll.u32 %v309, 16
        %v367 = vor.u32 %v364, %v365
        %v369 = vshrl.u32 %v310, 16
        %v371 = vrot.slane %v369, 7
        %v372 = vshll.u32 %v310, 16
        %v374 = vor.u32 %v371, %v372
        %v376 = vshrl.u32 %v311, 16
        %v378 = vrot.slane %v376, 7
        %v379 = vshll.u32 %v311, 16
        %v381 = vor.u32 %v378, %v379
        %vm392 = vcmask 1040384
        %vm393 = vsmask.f32 256
        %vm394 = vmand %vm392, %vm393
        %v395 = vsel %vm394, 0, %v318
        %v396 = vsel %vm394, 0, %v325
        %v397 = vsel %vm394, 0, %v332
        %v398 = vsel %vm394, 0, %v339
        %v399 = vsel %vm394, 0, %v346
        %v400 = vsel %vm394, 0, %v353
        %v401 = vsel %vm394, 0, %v360
        %v402 = vsel %vm394, 0, %v367
        %v403 = vsel %vm394, 0, %v374
        %v404 = vsel %vm394, 0, %v381
        %vm405 = vcmask 1044480
        %vm406 = vsmask.f32 4352
        %vm407 = vmand %vm405, %vm406
        %v408 = vsel %vm407, %v395, 0
        %v409 = vsel %vm407, %v396, 0
        %v410 = vsel %vm407, %v397, 0
        %v411 = vsel %vm407, %v398, 0
        %v412 = vsel %vm407, %v399, 0
        %v413 = vsel %vm407, %v400, 0
        %v414 = vsel %vm407, %v401, 0
        %v415 = vsel %vm407, %v402, 0
        %v416 = vsel %vm407, %v403, 0
        %v417 = vsel %vm407, %v404, 0
        %v419 = vshrl.u32 %v408, 16
        %v421 = vshll.u32 %v408, 16
        %v423 = vrot.slane %v421, 1
        %v424 = vor.u32 %v419, %v423
        %v426 = vshrl.u32 %v409, 16
        %v428 = vshll.u32 %v409, 16
        %v430 = vrot.slane %v428, 1
        %v431 = vor.u32 %v426, %v430
        %v433 = vshrl.u32 %v410, 16
        %v435 = vshll.u32 %v410, 16
        %v437 = vrot.slane %v435, 1
        %v438 = vor.u32 %v433, %v437
        %v440 = vshrl.u32 %v411, 16
        %v442 = vshll.u32 %v411, 16
        %v444 = vrot.slane %v442, 1
        %v445 = vor.u32 %v440, %v444
        %v447 = vshrl.u32 %v412, 16
        %v449 = vshll.u32 %v412, 16
        %v451 = vrot.slane %v449, 1
        %v452 = vor.u32 %v447, %v451
        %v454 = vshrl.u32 %v413, 16
        %v456 = vshll.u32 %v413, 16
        %v458 = vrot.slane %v456, 1
        %v459 = vor.u32 %v454, %v458
        %v461 = vshrl.u32 %v414, 16
        %v463 = vshll.u32 %v414, 16
        %v465 = vrot.slane %v463, 1
        %v466 = vor.u32 %v461, %v465
        %v468 = vshrl.u32 %v415, 16
        %v470 = vshll.u32 %v415, 16
        %v472 = vrot.slane %v470, 1
        %v473 = vor.u32 %v468, %v472
        %474 = vrot.lane.b32.xlu0 %v424, 64
        %v475 = vpop.permute.xlu0 %474
        %476 = vrot.lane.b32.xlu0 %v431, 64
        %v477 = vpop.permute.xlu0 %476
        %478 = vrot.lane.b32.xlu0 %v438, 64
        %v479 = vpop.permute.xlu0 %478
        %480 = vrot.lane.b32.xlu0 %v445, 64
        %v481 = vpop.permute.xlu0 %480
        %482 = vrot.lane.b32.xlu0 %v452, 64
        %v483 = vpop.permute.xlu0 %482
        %484 = vrot.lane.b32.xlu0 %v459, 64
        %v485 = vpop.permute.xlu0 %484
        %486 = vrot.lane.b32.xlu0 %v466, 64
        %v487 = vpop.permute.xlu0 %486
        %488 = vrot.lane.b32.xlu0 %v473, 64
        %v489 = vpop.permute.xlu0 %488
        %v498 = vrot.slane %v408, 1
        %v499 = vrot.slane %v409, 1
        %v500 = vrot.slane %v410, 1
        %v501 = vrot.slane %v411, 1
        %v502 = vrot.slane %v412, 1
        %v503 = vrot.slane %v413, 1
        %v504 = vrot.slane %v414, 1
        %v505 = vrot.slane %v415, 1
        %507 = vrot.lane.b32.xlu0 %v409, 64
        %v508 = vpop.permute.xlu0 %507
        %509 = vrot.lane.b32.xlu0 %v410, 64
        %v510 = vpop.permute.xlu0 %509
        %511 = vrot.lane.b32.xlu0 %v411, 64
        %v512 = vpop.permute.xlu0 %511
        %513 = vrot.lane.b32.xlu0 %v412, 64
        %v514 = vpop.permute.xlu0 %513
        %515 = vrot.lane.b32.xlu0 %v413, 64
        %v516 = vpop.permute.xlu0 %515
        %517 = vrot.lane.b32.xlu0 %v414, 64
        %v518 = vpop.permute.xlu0 %517
        %519 = vrot.lane.b32.xlu0 %v415, 64
        %v520 = vpop.permute.xlu0 %519
        %521 = vrot.lane.b32.xlu0 %v416, 64
        %v522 = vpop.permute.xlu0 %521
        %v524 = vshrl.u32 %v416, 16
        %v526 = vshll.u32 %v416, 16
        %v528 = vrot.slane %v526, 1
        %v529 = vor.u32 %v524, %v528
        %v530 = vrot.slane %v416, 1
        %531 = vrot.lane.b32.xlu0 %v499, 64
        %v532 = vpop.permute.xlu0 %531
        %533 = vrot.lane.b32.xlu0 %v500, 64
        %v534 = vpop.permute.xlu0 %533
        %535 = vrot.lane.b32.xlu0 %v501, 64
        %v536 = vpop.permute.xlu0 %535
        %537 = vrot.lane.b32.xlu0 %v502, 64
        %v538 = vpop.permute.xlu0 %537
        %539 = vrot.lane.b32.xlu0 %v503, 64
        %v540 = vpop.permute.xlu0 %539
        %541 = vrot.lane.b32.xlu0 %v504, 64
        %v542 = vpop.permute.xlu0 %541
        %543 = vrot.lane.b32.xlu0 %v505, 64
        %v544 = vpop.permute.xlu0 %543
        %545 = vrot.lane.b32.xlu0 %v530, 64
        %v546 = vpop.permute.xlu0 %545
        %v548 = vshrl.u32 %v417, 16
        %v550 = vshll.u32 %v417, 16
        %v552 = vrot.slane %v550, 1
        %v553 = vor.u32 %v548, %v552
        %554 = vrot.lane.b32.xlu0 %v529, 64
        %v555 = vpop.permute.xlu0 %554
        %556 = vrot.lane.b32.xlu0 %v553, 64
        %v557 = vpop.permute.xlu0 %556
        %v559 = vrot.slane %v417, 1
        %vm560 = vcmask 523264
        %v562 = vsel %vm560, %v408, %v475
        %v564 = vsel %vm560, %v409, %v477
        %v566 = vsel %vm560, %v410, %v479
        %v568 = vsel %vm560, %v411, %v481
        %v570 = vsel %vm560, %v412, %v483
        %v572 = vsel %vm560, %v413, %v485
        %v574 = vsel %vm560, %v414, %v487
        %v576 = vsel %vm560, %v415, %v489
        %v579 = vsel %vm560, %v498, %v508
        %v582 = vsel %vm560, %v499, %v510
        %v585 = vsel %vm560, %v500, %v512
        %v588 = vsel %vm560, %v501, %v514
        %v591 = vsel %vm560, %v502, %v516
        %v594 = vsel %vm560, %v503, %v518
        %v597 = vsel %vm560, %v504, %v520
        %v600 = vsel %vm560, %v505, %v522
        %v603 = vsel %vm560, %v431, %v532
        %v606 = vsel %vm560, %v438, %v534
        %v609 = vsel %vm560, %v445, %v536
        %v612 = vsel %vm560, %v452, %v538
        %v615 = vsel %vm560, %v459, %v540
        %v618 = vsel %vm560, %v466, %v542
        %v621 = vsel %vm560, %v473, %v544
        %v624 = vsel %vm560, %v529, %v546
        %v626 = vsel %vm560, %v416, %v555
        %v628 = vsel %vm560, %v417, %v557
        %v655 = vunpack.c.l.b16 %v562
        %v656 = vunpack.c.l.b16 %v579
        %v657 = vunpack.c.l.b16 %v603
        %v658 = vunpack.c.l.b16 %v566
        %v659 = vunpack.c.l.b16 %v500
        %v660 = vunpack.c.l.b16 %v564
        %v661 = vunpack.c.l.b16 %v582
        %v662 = vunpack.c.l.b16 %v606
        %v663 = vunpack.c.l.b16 %v568
        %v664 = vunpack.c.l.b16 %v501
        %v665 = vunpack.c.l.b16 %v585
        %v666 = vunpack.c.l.b16 %v609
        %v667 = vunpack.c.l.b16 %v570
        %v668 = vunpack.c.l.b16 %v502
        %v669 = vunpack.c.l.b16 %v588
        %v670 = vunpack.c.l.b16 %v612
        %v671 = vunpack.c.l.b16 %v572
        %v672 = vunpack.c.l.b16 %v503
        %v673 = vunpack.c.l.b16 %v591
        %v674 = vunpack.c.l.b16 %v615
        %v675 = vunpack.c.l.b16 %v574
        %v676 = vunpack.c.l.b16 %v504
        %v677 = vunpack.c.l.b16 %v594
        %v678 = vunpack.c.l.b16 %v618
        %v679 = vunpack.c.l.b16 %v576
        %v680 = vunpack.c.l.b16 %v505
        %v681 = vunpack.c.l.b16 %v597
        %v682 = vunpack.c.l.b16 %v621
        %v683 = vunpack.c.l.b16 %v626
        %v684 = vunpack.c.l.b16 %v530
        %v685 = vunpack.c.l.b16 %v600
        %v686 = vunpack.c.l.b16 %v624
        %v687 = vunpack.c.l.b16 %v628
        %v688 = vunpack.c.l.b16 %v559
        %v689 = vld [vmem:[#allocation3] sm:$0xf]
        %v690 = vld [vmem:[#allocation3 + $0x4] sm:$0xf]
        %v691 = vld [vmem:[#allocation3 + $0x8] sm:$0xf]
        %v692 = vld [vmem:[#allocation3 + $0xc] sm:$0xf]
        %v693 = vld [vmem:[#allocation3 + $0x10] sm:$0xf]
        %v694 = vld [vmem:[#allocation3 + $0x14] sm:$0xf]
        %v695 = vld [vmem:[#allocation3 + $0x18] sm:$0xf]
        %v696 = vld [vmem:[#allocation3 + $0x1c] sm:$0xf]
        %v697 = vld [vmem:[#allocation3 + $0x20] sm:$0xf]
        %v698 = vld [vmem:[#allocation3 + $0x24] sm:$0xf]
        %v699 = vld [vmem:[#allocation3 + $0x28] sm:$0xf]
        %v700 = vld [vmem:[#allocation3 + $0x2c] sm:$0xf]
        %v701 = vld [vmem:[#allocation3 + $0x30] sm:$0xf]
        %v702 = vld [vmem:[#allocation3 + $0x34] sm:$0xf]
        %v703 = vld [vmem:[#allocation3 + $0x38] sm:$0xf]
        %v704 = vld [vmem:[#allocation3 + $0x3c] sm:$0xf]
        %v705 = vld [vmem:[#allocation3 + $0x40] sm:$0xf]
        %v706 = vld [vmem:[#allocation3 + $0x44] sm:$0xf]
        %v707 = vld [vmem:[#allocation3 + $0x48] sm:$0xf]
        %v708 = vld [vmem:[#allocation3 + $0x4c] sm:$0xf]
        %v709 = vld [vmem:[#allocation3 + $0x50] sm:$0xf]
        %v710 = vld [vmem:[#allocation3 + $0x54] sm:$0xf]
        %v711 = vld [vmem:[#allocation3 + $0x58] sm:$0xf]
        %v712 = vld [vmem:[#allocation3 + $0x5c] sm:$0xf]
        %v713 = vld [vmem:[#allocation3 + $0x60] sm:$0xf]
        %v714 = vld [vmem:[#allocation3 + $0x64] sm:$0xf]
        %v715 = vld [vmem:[#allocation3 + $0x68] sm:$0xf]
        %v716 = vld [vmem:[#allocation3 + $0x6c] sm:$0xf]
        %v717 = vld [vmem:[#allocation3 + $0x70] sm:$0xf]
        %v718 = vld [vmem:[#allocation3 + $0x74] sm:$0xf]
        %v719 = vld [vmem:[#allocation3 + $0x78] sm:$0xf]
        %v720 = vld [vmem:[#allocation3 + $0x7c] sm:$0xf]
        %v721 = vld [vmem:[#allocation3 + $0x80] sm:$0xf]
        %v722 = vld [vmem:[#allocation3 + $0x84] sm:$0xf]
        %v723 = vld [vmem:[#allocation3 + $0x88] sm:$0xf]
        %v724 = vld [vmem:[#allocation3 + $0x8c] sm:$0xf]
        %v725 = vld [vmem:[#allocation3 + $0x90] sm:$0xf]
        %v726 = vld [vmem:[#allocation3 + $0x94] sm:$0xf]
        %v727 = vld [vmem:[#allocation3 + $0x98] sm:$0xf]
        %v728 = vld [vmem:[#allocation3 + $0x9c] sm:$0xf]
        %v729 = vld [vmem:[#allocation3 + $0xa0] sm:$0xf]
        %v730 = vld [vmem:[#allocation3 + $0xa4] sm:$0xf]
        %v731 = vld [vmem:[#allocation3 + $0xa8] sm:$0xf]
        %v732 = vld [vmem:[#allocation3 + $0xac] sm:$0xf]
        %v733 = vld [vmem:[#allocation3 + $0xb0] sm:$0xf]
        %v734 = vld [vmem:[#allocation3 + $0xb4] sm:$0xf]
        %v735 = vld [vmem:[#allocation3 + $0xb8] sm:$0xf]
        %v736 = vld [vmem:[#allocation3 + $0xbc] sm:$0xf]
        %v737 = vld [vmem:[#allocation3 + $0xc0] sm:$0xf]
        %v738 = vld [vmem:[#allocation3 + $0xc4] sm:$0xf]
        %v739 = vld [vmem:[#allocation3 + $0xc8] sm:$0xf]
        %v740 = vld [vmem:[#allocation3 + $0xcc] sm:$0xf]
        %v741 = vld [vmem:[#allocation3 + $0xd0] sm:$0xf]
        %v742 = vld [vmem:[#allocation3 + $0xd4] sm:$0xf]
        %v743 = vld [vmem:[#allocation3 + $0xd8] sm:$0xf]
        %v744 = vld [vmem:[#allocation3 + $0xdc] sm:$0xf]
        %v745 = vld [vmem:[#allocation3 + $0xe0] sm:$0xf]
        %v746 = vld [vmem:[#allocation3 + $0xe4] sm:$0xf]
        %v747 = vld [vmem:[#allocation3 + $0xe8] sm:$0xf]
        %v748 = vld [vmem:[#allocation3 + $0xec] sm:$0xf]
        %v749 = vld [vmem:[#allocation3 + $0xf0] sm:$0xf]
        %v750 = vld [vmem:[#allocation3 + $0xf4] sm:$0xf]
        %v751 = vld [vmem:[#allocation3 + $0xf8] sm:$0xf]
        %v752 = vld [vmem:[#allocation3 + $0xfc] sm:$0xf]
        %v753 = vld [vmem:[#allocation3 + $0x100] sm:$0xf]
        %v754 = vld [vmem:[#allocation3 + $0x104] sm:$0xf]
        %v755 = vld [vmem:[#allocation3 + $0x108] sm:$0xf]
        %v756 = vld [vmem:[#allocation3 + $0x10c] sm:$0xf]
        %v757 = vld [vmem:[#allocation3 + $0x110] sm:$0xf]
        %v758 = vld [vmem:[#allocation3 + $0x114] sm:$0xf]
        %v759 = vld [vmem:[#allocation3 + $0x118] sm:$0xf]
        %v760 = vld [vmem:[#allocation3 + $0x11c] sm:$0xf]
        %v761 = vld [vmem:[#allocation5] sm:$0x1]
        %v763 = vlaneseq
        %v764 = vshrl.u32 %v763, 7
        %v765 = vsub.s32 0, %v764
        %v766 = vrot.slane %v761, %v765
        %v768 = vpack.c.b16 %v660, %v655
        %v769 = vpack.c.b16 %v661, %v656
        %v770 = vpack.c.b16 %v662, %v657
        %v771 = vpack.c.b16 %v663, %v658
        %v772 = vpack.c.b16 %v664, %v659
        %v773 = vpack.c.b16 %v669, %v665
        %v774 = vpack.c.b16 %v670, %v666
        %v775 = vpack.c.b16 %v671, %v667
        %v776 = vpack.c.b16 %v672, %v668
        %v777 = vpack.c.b16 %v677, %v673
        %v778 = vpack.c.b16 %v678, %v674
        %v779 = vpack.c.b16 %v679, %v675
        %v780 = vpack.c.b16 %v680, %v676
        %v781 = vpack.c.b16 %v685, %v681
        %v782 = vpack.c.b16 %v686, %v682
        %v783 = vpack.c.b16 %v687, %v683
        %v784 = vpack.c.b16 %v688, %v684
        %v870 = vunpack.c.l.b16 %v689
        %v871 = vunpack.c.l.b16 %v690
        %v872 = vunpack.c.l.b16 %v691
        %v873 = vunpack.c.l.b16 %v692
        %v874 = vunpack.c.l.b16 %v693
        %v875 = vunpack.c.l.b16 %v694
        %v876 = vunpack.c.l.b16 %v695
        %v877 = vunpack.c.l.b16 %v696
        %v878 = vunpack.c.l.b16 %v697
        %v879 = vunpack.c.l.b16 %v698
        %v880 = vunpack.c.l.b16 %v699
        %v881 = vunpack.c.l.b16 %v700
        %v882 = vunpack.c.l.b16 %v701
        %v883 = vunpack.c.l.b16 %v702
        %v884 = vunpack.c.l.b16 %v703
        %v885 = vunpack.c.l.b16 %v704
        %v886 = vunpack.c.l.b16 %v705
        %v887 = vunpack.c.l.b16 %v706
        %v888 = vunpack.c.l.b16 %v707
        %v889 = vunpack.c.l.b16 %v708
        %v890 = vunpack.c.l.b16 %v709
        %v891 = vunpack.c.l.b16 %v710
        %v892 = vunpack.c.l.b16 %v711
        %v893 = vunpack.c.l.b16 %v712
        %v894 = vunpack.c.l.b16 %v713
        %v895 = vunpack.c.l.b16 %v714
        %v896 = vunpack.c.l.b16 %v715
        %v897 = vunpack.c.l.b16 %v716
        %v898 = vunpack.c.l.b16 %v717
        %v899 = vunpack.c.l.b16 %v718
        %v900 = vunpack.c.l.b16 %v719
        %v901 = vunpack.c.l.b16 %v720
        %v902 = vunpack.c.l.b16 %v721
        %v903 = vunpack.c.l.b16 %v722
        %v904 = vunpack.c.l.b16 %v723
        %v905 = vunpack.c.l.b16 %v724
        %v906 = vunpack.c.l.b16 %v725
        %v907 = vunpack.c.l.b16 %v726
        %v908 = vunpack.c.l.b16 %v727
        %v909 = vunpack.c.l.b16 %v728
        %v910 = vunpack.c.l.b16 %v729
        %v911 = vunpack.c.l.b16 %v730
        %v912 = vunpack.c.l.b16 %v731
        %v913 = vunpack.c.l.b16 %v732
        %v914 = vunpack.c.l.b16 %v733
        %v915 = vunpack.c.l.b16 %v734
        %v916 = vunpack.c.l.b16 %v735
        %v917 = vunpack.c.l.b16 %v736
        %v918 = vunpack.c.l.b16 %v737
        %v919 = vunpack.c.l.b16 %v738
        %v920 = vunpack.c.l.b16 %v739
        %v921 = vunpack.c.l.b16 %v740
        %v922 = vunpack.c.l.b16 %v741
        %v923 = vunpack.c.l.b16 %v742
        %v924 = vunpack.c.l.b16 %v743
        %v925 = vunpack.c.l.b16 %v744
        %v926 = vunpack.c.l.b16 %v745
        %v927 = vunpack.c.l.b16 %v746
        %v928 = vunpack.c.l.b16 %v747
        %v929 = vunpack.c.l.b16 %v748
        %v930 = vunpack.c.l.b16 %v749
        %v931 = vunpack.c.l.b16 %v750
        %v932 = vunpack.c.l.b16 %v751
        %v933 = vunpack.c.l.b16 %v752
        %v934 = vunpack.c.l.b16 %v753
        %v935 = vunpack.c.l.b16 %v754
        %v936 = vunpack.c.l.b16 %v755
        %v937 = vunpack.c.l.b16 %v756
        %v938 = vunpack.c.l.b16 %v757
        %v939 = vunpack.c.l.b16 %v758
        %v940 = vunpack.c.l.b16 %v759
        %v941 = vunpack.c.l.b16 %v760
        %v942 = vpack.c.b16 %v871, %v870
        %v943 = vpack.c.b16 %v873, %v872
        %v944 = vpack.c.b16 %v875, %v874
        %v945 = vpack.c.b16 %v877, %v876
        %v946 = vpack.c.b16 %v879, %v878
        %v947 = vpack.c.b16 %v881, %v880
        %v948 = vpack.c.b16 %v883, %v882
        %v949 = vpack.c.b16 %v885, %v884
        %v950 = vpack.c.b16 %v887, %v886
        %v951 = vpack.c.b16 %v889, %v888
        %v952 = vpack.c.b16 %v891, %v890
        %v953 = vpack.c.b16 %v893, %v892
        %v954 = vpack.c.b16 %v895, %v894
        %v955 = vpack.c.b16 %v897, %v896
        %v956 = vpack.c.b16 %v899, %v898
        %v957 = vpack.c.b16 %v901, %v900
        %v958 = vpack.c.b16 %v903, %v902
        %v959 = vpack.c.b16 %v905, %v904
        %v960 = vpack.c.b16 %v907, %v906
        %v961 = vpack.c.b16 %v909, %v908
        %v962 = vpack.c.b16 %v911, %v910
        %v963 = vpack.c.b16 %v913, %v912
        %v964 = vpack.c.b16 %v915, %v914
        %v965 = vpack.c.b16 %v917, %v916
        %v966 = vpack.c.b16 %v919, %v918
        %v967 = vpack.c.b16 %v921, %v920
        %v968 = vpack.c.b16 %v923, %v922
        %v969 = vpack.c.b16 %v925, %v924
        %v970 = vpack.c.b16 %v927, %v926
        %v971 = vpack.c.b16 %v929, %v928
        %v972 = vpack.c.b16 %v931, %v930
        %v973 = vpack.c.b16 %v933, %v932
        %v974 = vpack.c.b16 %v935, %v934
        %v975 = vpack.c.b16 %v937, %v936
        %v976 = vpack.c.b16 %v939, %v938
        %v977 = vpack.c.b16 %v941, %v940
        %v1015 = vsel %vm560, %v772, 0
        %v1018 = vsel %vm560, %v776, 0
        %v1021 = vsel %vm560, %v780, 0
        %v1024 = vsel %vm560, %v784, 0
        %1026 = vmatprep.subr.bf16.mxu0 0
        %1027 = vmatpush1.bf16.msra.mxu0 %v942
        %1028 = vmatprep.subr.bf16.mxu0 0
        %1029 = vmatpush1.bf16.msra.mxu0 %v943
        %1030 = vmatprep.subr.bf16.mxu0 0
        %1031 = vmatpush1.bf16.msra.mxu0 %v944
        %1032 = vmatprep.subr.bf16.mxu0 0
        %1033 = vmatpush1.bf16.msra.mxu0 %v945
        %1034 = vmatprep.subr.bf16.mxu0 0
        %1035 = vmatpush1.bf16.msra.mxu0 %v946
        %1036 = vmatprep.subr.bf16.mxu0 0
        %1037 = vmatpush1.bf16.msra.mxu0 %v947
        %1038 = vmatprep.subr.bf16.mxu0 0
        %1039 = vmatpush1.bf16.msra.mxu0 %v948
        %1040 = vmatprep.subr.bf16.mxu0 0
        %1041 = vmatpush1.bf16.msra.mxu0 %v949
        %1042 = vmatprep.subr.bf16.mxu0 0
        %1043 = vmatpush1.bf16.msra.mxu0 %v950
        %1044 = vmatprep.subr.bf16.mxu0 0
        %1045 = vmatpush1.bf16.msra.mxu0 %v951
        %1046 = vmatprep.subr.bf16.mxu0 0
        %1047 = vmatpush1.bf16.msra.mxu0 %v952
        %1048 = vmatprep.subr.bf16.mxu0 0
        %1049 = vmatpush1.bf16.msra.mxu0 %v953
        %1050 = vmatprep.subr.bf16.mxu0 0
        %1051 = vmatpush1.bf16.msra.mxu0 %v954
        %1052 = vmatprep.subr.bf16.mxu0 0
        %1053 = vmatpush1.bf16.msra.mxu0 %v955
        %1054 = vmatprep.subr.bf16.mxu0 0
        %1055 = vmatpush1.bf16.msra.mxu0 %v956
        %1056 = vmatprep.subr.bf16.mxu0 0
        %1057 = vmatpush1.bf16.msra.mxu0 %v957
        %1058 = vmatprep.mubr.bf16.mxu0 %v769
        %1059 = vmatmul.mubr.bf16.gmra.mrb[0].mxu0 %v768
        %v1060 = vpop.f32.mrb[0].mxu0
        %v1061 = vadd.f32 %v766, %v1060
        %v1062 = vpop.f32.mrb[0].mxu0
        %v1063 = vpop.f32.mrb[0].mxu0
        %v1064 = vadd.f32 %v766, %v1063
        %v1065 = vpop.f32.mrb[0].mxu0
        %1066 = vmatprep.mubr.bf16.mxu0 %v773
        %1067 = vmatmul.mubr.bf16.gmra.mrb[0].mxu0 %v771
        %v1068 = vpop.f32.mrb[0].mxu0
        %v1069 = vadd.f32 %v766, %v1068
        %v1070 = vpop.f32.mrb[0].mxu0
        %v1071 = vpop.f32.mrb[0].mxu0
        %v1072 = vadd.f32 %v766, %v1071
        %v1073 = vpop.f32.mrb[0].mxu0
        %1074 = vmatprep.mubr.bf16.mxu0 %v777
        %1075 = vmatmul.mubr.bf16.gmra.mrb[0].mxu0 %v775
        %v1076 = vpop.f32.mrb[0].mxu0
        %v1077 = vadd.f32 %v766, %v1076
        %v1078 = vpop.f32.mrb[0].mxu0
        %v1079 = vpop.f32.mrb[0].mxu0
        %v1080 = vadd.f32 %v766, %v1079
        %v1081 = vpop.f32.mrb[0].mxu0
        %1082 = vmatprep.mubr.bf16.mxu0 %v781
        %1083 = vmatmul.mubr.bf16.gmra.mrb[0].mxu0 %v779
        %v1084 = vpop.f32.mrb[0].mxu0
        %v1085 = vadd.f32 %v766, %v1084
        %v1086 = vpop.f32.mrb[0].mxu0
        %v1087 = vpop.f32.mrb[0].mxu0
        %v1088 = vadd.f32 %v766, %v1087
        %v1089 = vpop.f32.mrb[0].mxu0
        %1090 = vdwg.mxu0
        %1091 = vmatprep.subr.bf16.mxu0 0
        %1092 = vmatpush1.bf16.msra.mxu0 %v958
        %1093 = vmatprep.subr.bf16.mxu0 0
        %1094 = vmatpush1.bf16.msra.mxu0 %v959
        %1095 = vmatprep.subr.bf16.mxu0 0
        %1096 = vmatpush1.bf16.msra.mxu0 %v960
        %1097 = vmatprep.subr.bf16.mxu0 0
        %1098 = vmatpush1.bf16.msra.mxu0 %v961
        %1099 = vmatprep.subr.bf16.mxu0 0
        %1100 = vmatpush1.bf16.msra.mxu0 %v962
        %1101 = vmatprep.subr.bf16.mxu0 0
        %1102 = vmatpush1.bf16.msra.mxu0 %v963
        %1103 = vmatprep.subr.bf16.mxu0 0
        %1104 = vmatpush1.bf16.msra.mxu0 %v964
        %1105 = vmatprep.subr.bf16.mxu0 0
        %1106 = vmatpush1.bf16.msra.mxu0 %v965
        %1107 = vmatprep.subr.bf16.mxu0 0
        %1108 = vmatpush1.bf16.msra.mxu0 %v966
        %1109 = vmatprep.subr.bf16.mxu0 0
        %1110 = vmatpush1.bf16.msra.mxu0 %v967
        %1111 = vmatprep.subr.bf16.mxu0 0
        %1112 = vmatpush1.bf16.msra.mxu0 %v968
        %1113 = vmatprep.subr.bf16.mxu0 0
        %1114 = vmatpush1.bf16.msra.mxu0 %v969
        %1115 = vmatprep.subr.bf16.mxu0 0
        %1116 = vmatpush1.bf16.msra.mxu0 %v970
        %1117 = vmatprep.subr.bf16.mxu0 0
        %1118 = vmatpush1.bf16.msra.mxu0 %v971
        %1119 = vmatprep.subr.bf16.mxu0 0
        %1120 = vmatpush1.bf16.msra.mxu0 %v972
        %1121 = vmatprep.subr.bf16.mxu0 0
        %1122 = vmatpush1.bf16.msra.mxu0 %v973
        %1123 = vmatprep.mubr.bf16.mxu0 %v771
        %1124 = vmatmul.mubr.bf16.gmra.mrb[0].mxu0 %v770
        %v1125 = vpop.f32.mrb[0].mxu0
        %v1126 = vadd.f32 %v1061, %v1125
        %v1127 = vpop.f32.mrb[0].mxu0
        %v1128 = vpop.f32.mrb[0].mxu0
        %v1129 = vadd.f32 %v1064, %v1128
        %v1130 = vpop.f32.mrb[0].mxu0
        %1131 = vmatprep.mubr.bf16.mxu0 %v775
        %1132 = vmatmul.mubr.bf16.gmra.mrb[0].mxu0 %v774
        %v1133 = vpop.f32.mrb[0].mxu0
        %v1134 = vadd.f32 %v1069, %v1133
        %v1135 = vpop.f32.mrb[0].mxu0
        %v1136 = vpop.f32.mrb[0].mxu0
        %v1137 = vadd.f32 %v1072, %v1136
        %v1138 = vpop.f32.mrb[0].mxu0
        %1139 = vmatprep.mubr.bf16.mxu0 %v779
        %1140 = vmatmul.mubr.bf16.gmra.mrb[0].mxu0 %v778
        %v1141 = vpop.f32.mrb[0].mxu0
        %v1142 = vadd.f32 %v1077, %v1141
        %v1143 = vpop.f32.mrb[0].mxu0
        %v1144 = vpop.f32.mrb[0].mxu0
        %v1145 = vadd.f32 %v1080, %v1144
        %v1146 = vpop.f32.mrb[0].mxu0
        %1147 = vmatprep.mubr.bf16.mxu0 %v783
        %1148 = vmatmul.mubr.bf16.gmra.mrb[0].mxu0 %v782
        %v1149 = vpop.f32.mrb[0].mxu0
        %v1150 = vadd.f32 %v1085, %v1149
        %v1151 = vpop.f32.mrb[0].mxu0
        %v1152 = vpop.f32.mrb[0].mxu0
        %v1153 = vadd.f32 %v1088, %v1152
        %v1154 = vpop.f32.mrb[0].mxu0
        %1155 = vdwg.mxu0
        %1156 = vmatprep.subr.bf16.mxu0 0
        %1157 = vmatpush1.bf16.msra.mxu0 %v974
        %1158 = vmatprep.subr.bf16.mxu0 0
        %1159 = vmatpush1.bf16.msra.mxu0 %v975
        %1160 = vmatprep.subr.bf16.mxu0 0
        %1161 = vmatpush1.bf16.msra.mxu0 %v976
        %1162 = vmatprep.subr.bf16.mxu0 0
        %1163 = vmatpush1.bf16.msra.mxu0 %v977
        %1164 = vmatprep.subr.bf16.mxu0 0
        %1165 = vmatpush1.bf16.msra.mxu0 0
        %1166 = vmatprep.subr.bf16.mxu0 0
        %1167 = vmatpush1.bf16.msra.mxu0 0
        %1168 = vmatprep.subr.bf16.mxu0 0
        %1169 = vmatpush1.bf16.msra.mxu0 0
        %1170 = vmatprep.subr.bf16.mxu0 0
        %1171 = vmatpush1.bf16.msra.mxu0 0
        %1172 = vmatprep.subr.bf16.mxu0 0
        %1173 = vmatpush1.bf16.msra.mxu0 0
        %1174 = vmatprep.subr.bf16.mxu0 0
        %1175 = vmatpush1.bf16.msra.mxu0 0
        %1176 = vmatprep.subr.bf16.mxu0 0
        %1177 = vmatpush1.bf16.msra.mxu0 0
        %1178 = vmatprep.subr.bf16.mxu0 0
        %1179 = vmatpush1.bf16.msra.mxu0 0
        %1180 = vmatprep.subr.bf16.mxu0 0
        %1181 = vmatpush1.bf16.msra.mxu0 0
        %1182 = vmatprep.subr.bf16.mxu0 0
        %1183 = vmatpush1.bf16.msra.mxu0 0
        %1184 = vmatprep.subr.bf16.mxu0 0
        %1185 = vmatpush1.bf16.msra.mxu0 0
        %1186 = vmatprep.subr.bf16.mxu0 0
        %1187 = vmatpush1.bf16.msra.mxu0 0
        %1188 = vmatprep.mubr.bf16.mxu0 0
        %1189 = vmatmul.mubr.bf16.gmra.mrb[0].mxu0 %v1015
        %v1190 = vpop.f32.mrb[0].mxu0
        %v1191 = vadd.f32 %v1126, %v1190
        %v1192 = vpop.f32.mrb[0].mxu0
        %v1193 = vpop.f32.mrb[0].mxu0
        %v1194 = vadd.f32 %v1129, %v1193
        %v1195 = vpop.f32.mrb[0].mxu0
        %1196 = vmatprep.mubr.bf16.mxu0 0
        %1197 = vmatmul.mubr.bf16.gmra.mrb[0].mxu0 %v1018
        %v1198 = vpop.f32.mrb[0].mxu0
        %v1199 = vadd.f32 %v1134, %v1198
        %v1200 = vpop.f32.mrb[0].mxu0
        %v1201 = vpop.f32.mrb[0].mxu0
        %v1202 = vadd.f32 %v1137, %v1201
        %v1203 = vpop.f32.mrb[0].mxu0
        %1204 = vmatprep.mubr.bf16.mxu0 0
        %1205 = vmatmul.mubr.bf16.gmra.mrb[0].mxu0 %v1021
        %v1206 = vpop.f32.mrb[0].mxu0
        %v1207 = vadd.f32 %v1142, %v1206
        %v1208 = vpop.f32.mrb[0].mxu0
        %v1209 = vpop.f32.mrb[0].mxu0
        %v1210 = vadd.f32 %v1145, %v1209
        %v1211 = vpop.f32.mrb[0].mxu0
        %1212 = vmatprep.mubr.bf16.mxu0 0
        %1213 = vmatmul.mubr.bf16.gmra.mrb[0].mxu0 %v1024
        %v1214 = vpop.f32.mrb[0].mxu0
        %v1215 = vadd.f32 %v1150, %v1214
        %v1216 = vpop.f32.mrb[0].mxu0
        %v1217 = vpop.f32.mrb[0].mxu0
        %v1218 = vadd.f32 %v1153, %v1217
        %v1219 = vpop.f32.mrb[0].mxu0
        %1220 = vdwg.mxu0
        %v1221 = vmax.f32 %v1191, 0.0
        %v1222 = vmax.f32 %v1194, 0.0
        %v1223 = vmax.f32 %v1199, 0.0
        %v1224 = vmax.f32 %v1202, 0.0
        %v1225 = vmax.f32 %v1207, 0.0
        %v1226 = vmax.f32 %v1210, 0.0
        %v1227 = vmax.f32 %v1215, 0.0
        %v1228 = vmax.f32 %v1218, 0.0
        %v1229 = vmax.f32 %v1221, %v1222
        %v1230 = vmax.f32 %v1223, %v1224
        %v1231 = vmax.f32 %v1225, %v1226
        %v1232 = vmax.f32 %v1227, %v1228
        %1233 = vst [vmem:[#allocation2] sm:$0xff] %v1229
        %1234 = vst [vmem:[#allocation2 + $0x8] sm:$0xff] %v1230
        %1235 = vst [vmem:[#allocation2 + $0x10] sm:$0xff] %v1231
        %1236 = vst [vmem:[#allocation2 + $0x18] sm:$0xff] %v1232
        %v1237 = vld [vmem:[#allocation2] ss:$2 sm:$0xff]
        %s1238 = scalar_lea.vmem [#allocation2], 16
        %v1239 = vld [vmem:[%s1238] ss:$2 sm:$0xff]
        %s1240 = scalar_lea.vmem [#allocation2], 1
        %v1241 = vld [vmem:[%s1240] ss:$2 sm:$0xff]
        %s1242 = scalar_lea.vmem [#allocation2], 17
        %v1243 = vld [vmem:[%s1242] ss:$2 sm:$0xff]
        %v1244 = vmax.f32 %v1237, %v1241
        %v1245 = vmax.f32 %v1239, %v1243
        %v1248 = vcombine.high %v1244, %v1244
        %v1249 = vcombine.high %v1245, %v1245
        %v1252 = vpack.c.bf16 %v1244, %v1244
        %v1253 = vpack.c.bf16 %v1248, %v1248
        %v1254 = vpack.c.bf16 %v1245, %v1245
        %v1255 = vpack.c.bf16 %v1249, %v1249
        %1256 = vst [vmem:[%s220] sm:$0x3] %v1252
        %1257 = vst [vmem:[%s220 + $0x2] sm:$0x3] %v1253
        %1258 = vst [vmem:[%s220 + $0x4] sm:$0x3] %v1254
        %1259 = vst [vmem:[%s220 + $0x6] sm:$0x3] %v1255
        %s1260 = smul.u32 4, %s21
        %p1261 = scmp.lt.s32.totalorder %s20, 1
        %s1262 = scalar_select %p1261, %s20, 1
        %p1263 = scmp.lt.s32.totalorder %s1260, 3
        %s1264 = scalar_select %p1263, %s1260, 3
        %s1265 = smul.addr %s1262, 4
        %s1266 = sadd.s32 %s1264, %s1265
        %s1267 = smul.addr %s1266, 2
        %s1268 = scalar_lea.vmem %s3, %s1267
        // Predicated region
        $region41: #{cnn_image_encoder_forward.6} parent=31 // pred_check
          %p1269 = pneg %p116
        $region42: #{cnn_image_encoder_forward.6} parent=31 // pred_check_branch
          %1271 = sbr.rel (%p1269) target = $region44
        $region43: #{cnn_image_encoder_forward.6} parent=31 // pred_region
          %s1272 = smul.u32 4, %s21
        $region44: #{cnn_image_encoder_forward.6} parent=31 // pred_fallthru
          _
      $region32: #{cnn_image_encoder_forward.6} parent=5 // pred_fallthru
        _
      %p1273 = scmp.le.s32.totalorder 2, %s11
      // Predicated region
      $region45: #{cnn_image_encoder_forward.6} parent=5 // pred_check
        %p1274 = pneg %p1273
      $region46: #{cnn_image_encoder_forward.6} parent=5 // pred_check_branch
        %1276 = sbr.rel (%p1274) target = $region48
      $region47: #{cnn_image_encoder_forward.6} parent=5 // pred_region
        %s1277 = ssub.s32 %s11, 2
        // Predicated region
        $region49: #{cnn_image_encoder_forward.6} parent=47 // pred_check
          %p1278 = pneg %p122
        $region50: #{cnn_image_encoder_forward.6} parent=47 // pred_check_branch
          %1280 = sbr.rel (%p1278) target = $region52
        $region51: #{cnn_image_encoder_forward.6} parent=47 // pred_region
          %s1281 = smul.u32 4, %s23
          %p1282 = scmp.lt.s32.totalorder %s22, 1
          %s1283 = scalar_select %p1282, %s22, 1
          %p1284 = scmp.lt.s32.totalorder %s1281, 3
          %s1285 = scalar_select %p1284, %s1281, 3
          %s1286 = smul.addr %s1283, 4
          %s1287 = sadd.s32 %s1285, %s1286
          %s1288 = smul.addr %s1287, 2
          %s1289 = scalar_lea.vmem %s3, %s1288
        $region52: #{cnn_image_encoder_forward.6} parent=47 // pred_fallthru
          _
      $region48: #{cnn_image_encoder_forward.6} parent=5 // pred_fallthru
        _
    $region6: #{cnn_image_encoder_forward.6} parent=1 // loop_footer
      %s15 = sadd.s32 1, %s11
    $region7: #{cnn_image_encoder_forward.6} parent=1 // loop_footer_branch
      %10 = sbr.rel target = $region3
    $region8: #{cnn_image_encoder_forward.6} parent=1 // loop_exit
      _
    %1290 = vsyncpa [#allocation4], 1
    %s1291 = scalar_lea.sflag [#allocation4], 1
    %1292 = vsyncpa %s1291, 1
    %1293 = vsyncpa [#allocation6], 1

// kernel: cnn_image_encoder_forward.5
$region0: #{cnn_image_encoder_forward.5}
  #allocation0 [shape = 'u32[]', space=smem, size = 0x4, offset = 0x4, fixed_abs, tag = 'smem constant byte address 0x4 - core index']
  #allocation1 [shape = 'u32[144,128]{1,0:T(1,128)}', space=vmem, size = 0x12000, scoped, tag = 'internal scratch']
  #allocation2 [shape = 'f32[128,64]{1,0:T(8,128)}', space=vmem, size = 0x10000, scoped, tag = 'scratch operand']
  %s0 = inlined_call_operand.vmem [shape: bf16[2,16,16,32], index: 0, kind: input, shape index: {}]
  %s1 = inlined_call_operand.vmem [shape: bf16[288,64], index: 1, kind: input, shape index: {}]
  %s2 = inlined_call_operand.hbm [shape: f32[1,64], index: 2, kind: input, shape index: {}]
  %s3 = inlined_call_operand.vmem [shape: bf16[2,8,8,64], index: 3, kind: output, shape index: {}]
  %s4 = sld [smem:[#allocation0]]
  $region49: #{cnn_image_encoder_forward.5} parent=0
    _
  %s6 = ssub.s32 1, %s4
  %s7 = scalar_select 0, %s6, %s4
  $region1: #{cnn_image_encoder_forward.5} parent=0
    #allocation3 [shape = 'u8[512]{0}', space=vmem, size = 0x400, scoped, tag = 'input window, operand 2, single buffered']
    #allocation4 [shape = 's32[2]{0}', space=sflag, size = 0x8, scoped, tag = 'scoped memory for cnn_image_encoder_forward.5']
    %8 = vsyncpa [#allocation4], 0
    loop: start=0, step=1, limit=4
    $region2: #{cnn_image_encoder_forward.5} parent=1 // loop_pre_header
      _
    $region3: #{cnn_image_encoder_forward.5} parent=1 // loop_header
      %s10 = sphi 0, %s14
      %p11 = scmp.ge.s32.totalorder %s10, 4
      %s17 = sphi 0, %s29
      %s18 = sphi 0, %s25
      %s19 = sphi 0, %s17
      %s20 = sphi 0, %s18
      %s21 = sphi 0, %s19
      %s22 = sphi 0, %s20
      %s32 = sphi 0, %s34
      %s35 = sphi 0, %s32
      %s36 = sphi 0, %s35
      %s52 = sphi 0, %s36
      %s56 = sphi 0, %s56
      %s58 = sphi 0, %s56
      %s59 = sphi 0, %s58
      %s73 = sphi 0, %s59
      %s77 = sphi 0, %s77
      %s79 = sphi 0, %s77
      %s80 = sphi 0, %s79
      %s94 = sphi 0, %s80
      %s102 = sphi 0, %s104
      %s105 = sphi 0, %s102
      %s106 = sphi 0, %s105
      %s122 = sphi 0, %s106
    $region4: #{cnn_image_encoder_forward.5} parent=1 // loop_header_branch
      %13 = sbr.rel (%p11) target = $region8
    $region5: #{cnn_image_encoder_forward.5} parent=1 // loop_body
      %s15 = ssub.s32 %s10, 1
      %s16 = ssub.s32 %s10, 2
      %s23 = sadd.s32 1, %s18
      %p24 = scmp.ge.s32.totalorder %s23, 1
      %s25 = scalar_select %p24, 0, %s23
      %s26 = sadd.s32 1, %s17
      %s27 = scalar_select %p24, %s26, %s17
      %p28 = scmp.ge.s32.totalorder %s27, 2
      %s29 = scalar_select %p28, 0, %s27
      %s30 = ssub.s32 %s17, %s29
      %p31 = scmp.eq.s32.totalorder %s30, 0
      %s33 = sadd.s32 %s32, 1
      %s34 = scalar_select %p31, %s32, %s33
      %p37 = pneg %p31
      %p38 = scmp.eq.s32.totalorder %s10, 1
      %p39 = por %p37, %p38
      %p40 = scmp.ne.s32.totalorder %s32, %s35
      %p41 = scmp.eq.s32.totalorder %s10, 0
      %p42 = por %p40, %p41
      %p43 = scmp.ne.s32.totalorder %s32, %s35
      %p44 = scmp.eq.s32.totalorder %s15, 1
      %p45 = por %p43, %p44
      %p46 = scmp.ne.s32.totalorder %s35, %s36
      %p47 = scmp.eq.s32.totalorder %s15, 0
      %p48 = por %p46, %p47
      %p49 = scmp.ne.s32.totalorder %s35, %s36
      %p50 = scmp.eq.s32.totalorder %s16, 1
      %p51 = por %p49, %p50
      %p53 = scmp.ne.s32.totalorder %s36, %s52
      %p54 = scmp.eq.s32.totalorder %s16, 0
      %p55 = por %p53, %p54
      %s57 = sadd.s32 %s56, 1
      %p60 = scmp.eq.s32.totalorder %s10, 1
      %p61 = scmp.ne.s32.totalorder %s56, %s58
      %p62 = scmp.eq.s32.totalorder %s10, 0
      %p63 = por %p61, %p62
      %p64 = scmp.ne.s32.totalorder %s56, %s58
      %p65 = scmp.eq.s32.totalorder %s15, 1
      %p66 = por %p64, %p65
      %p67 = scmp.ne.s32.totalorder %s58, %s59
      %p68 = scmp.eq.s32.totalorder %s15, 0
      %p69 = por %p67, %p68
      %p70 = scmp.ne.s32.totalorder %s58, %s59
      %p71 = scmp.eq.s32.totalorder %s16, 1
      %p72 = por %p70, %p71
      %p74 = scmp.ne.s32.totalorder %s59, %s73
      %p75 = scmp.eq.s32.totalorder %s16, 0
      %p76 = por %p74, %p75
      %s78 = sadd.s32 %s77, 1
      %p81 = scmp.eq.s32.totalorder %s10, 1
      %p82 = scmp.ne.s32.totalorder %s77, %s79
      %p83 = scmp.eq.s32.totalorder %s10, 0
      %p84 = por %p82, %p83
      %p85 = scmp.ne.s32.totalorder %s77, %s79
      %p86 = scmp.eq.s32.totalorder %s15, 1
      %p87 = por %p85, %p86
      %p88 = scmp.ne.s32.totalorder %s79, %s80
      %p89 = scmp.eq.s32.totalorder %s15, 0
      %p90 = por %p88, %p89
      %p91 = scmp.ne.s32.totalorder %s79, %s80
      %p92 = scmp.eq.s32.totalorder %s16, 1
      %p93 = por %p91, %p92
      %p95 = scmp.ne.s32.totalorder %s80, %s94
      %p96 = scmp.eq.s32.totalorder %s16, 0
      %p97 = por %p95, %p96
      %s98 = ssub.s32 %s17, %s29
      %s99 = ssub.s32 %s18, %s25
      %s100 = sor.u32 %s98, %s99
      %p101 = scmp.eq.s32.totalorder %s100, 0
      %s103 = sadd.s32 %s102, 1
      %s104 = scalar_select %p101, %s102, %s103
      %p107 = pneg %p101
      %p108 = scmp.eq.s32.totalorder %s10, 1
      %p109 = por %p107, %p108
      %p110 = scmp.ne.s32.totalorder %s102, %s105
      %p111 = scmp.eq.s32.totalorder %s10, 0
      %p112 = por %p110, %p111
      %p113 = scmp.ne.s32.totalorder %s102, %s105
      %p114 = scmp.eq.s32.totalorder %s15, 1
      %p115 = por %p113, %p114
      %p116 = scmp.ne.s32.totalorder %s105, %s106
      %p117 = scmp.eq.s32.totalorder %s15, 0
      %p118 = por %p116, %p117
      %p119 = scmp.ne.s32.totalorder %s105, %s106
      %p120 = scmp.eq.s32.totalorder %s16, 1
      %p121 = por %p119, %p120
      %p123 = scmp.ne.s32.totalorder %s106, %s122
      %p124 = scmp.eq.s32.totalorder %s16, 0
      %p125 = por %p123, %p124
      %p126 = scmp.le.s32.totalorder 1, %s10
      %p127 = scmp.lt.s32.totalorder %s10, 3
      %p128 = pnand %p126, %p127
      %p129 = pneg %p128
      // Predicated region
      $region9: #{cnn_image_encoder_forward.5} parent=5 // pred_check
        _
      $region10: #{cnn_image_encoder_forward.5} parent=5 // pred_check_branch
        %131 = sbr.rel (%p128) target = $region12
      $region11: #{cnn_image_encoder_forward.5} parent=5 // pred_region
        %s132 = ssub.s32 %s10, 1
        // Predicated region
        $region13: #{cnn_image_encoder_forward.5} parent=11 // pred_check
          %p133 = pneg %p69
        $region14: #{cnn_image_encoder_forward.5} parent=11 // pred_check_branch
          %135 = sbr.rel (%p133) target = $region16
        $region15: #{cnn_image_encoder_forward.5} parent=11 // pred_region
          _
        $region16: #{cnn_image_encoder_forward.5} parent=11 // pred_fallthru
          _
        // Predicated region
        $region17: #{cnn_image_encoder_forward.5} parent=11 // pred_check
          %p136 = pneg %p90
        $region18: #{cnn_image_encoder_forward.5} parent=11 // pred_check_branch
          %138 = sbr.rel (%p136) target = $region20
        $region19: #{cnn_image_encoder_forward.5} parent=11 // pred_region
          %s140 = ssub.s32 16, 16
          %141 = vsyncadd [#allocation4], %s140
          %s143 = sshll.u32 [#allocation3], 4
          %s144 = int_to_ptr.vmem [resolvable:$true] %s143
          %146 = dma.hbm_to_vmem [thread:$0]  %s2, 16, %s144, [#allocation4]
        $region20: #{cnn_image_encoder_forward.5} parent=11 // pred_fallthru
          _
      $region12: #{cnn_image_encoder_forward.5} parent=5 // pred_fallthru
        _
      %p147 = scmp.lt.s32.totalorder %s10, 2
      // Predicated region
      $region21: #{cnn_image_encoder_forward.5} parent=5 // pred_check
        %p148 = pneg %p147
      $region22: #{cnn_image_encoder_forward.5} parent=5 // pred_check_branch
        %150 = sbr.rel (%p148) target = $region24
      $region23: #{cnn_image_encoder_forward.5} parent=5 // pred_region
        // Predicated region
        $region25: #{cnn_image_encoder_forward.5} parent=23 // pred_check
          %p151 = pneg %p42
        $region26: #{cnn_image_encoder_forward.5} parent=23 // pred_check_branch
          %153 = sbr.rel (%p151) target = $region28
        $region27: #{cnn_image_encoder_forward.5} parent=23 // pred_region
          %p154 = scmp.lt.s32.totalorder %s17, 1
          %s155 = scalar_select %p154, %s17, 1
          %s156 = smul.addr %s155, 32
          %s157 = smul.addr %s156, 4
          %s158 = scalar_lea.vmem %s0, %s157
        $region28: #{cnn_image_encoder_forward.5} parent=23 // pred_fallthru
          _
      $region24: #{cnn_image_encoder_forward.5} parent=5 // pred_fallthru
        _
      %p159 = scmp.le.s32.totalorder 1, %s10
      %p160 = scmp.lt.s32.totalorder %s10, 3
      %p161 = pnand %p159, %p160
      %p162 = pneg %p161
      // Predicated region
      $region29: #{cnn_image_encoder_forward.5} parent=5 // pred_check
        _
      $region30: #{cnn_image_encoder_forward.5} parent=5 // pred_check_branch
        %164 = sbr.rel (%p161) target = $region32
      $region31: #{cnn_image_encoder_forward.5} parent=5 // pred_region
        %s165 = ssub.s32 %s10, 1
        // Predicated region
        $region33: #{cnn_image_encoder_forward.5} parent=31 // pred_check
          %p166 = pneg %p90
        $region34: #{cnn_image_encoder_forward.5} parent=31 // pred_check_branch
          %168 = sbr.rel (%p166) target = $region36
        $region35: #{cnn_image_encoder_forward.5} parent=31 // pred_region
          %169 = dma.done [#allocation4], 16
        $region36: #{cnn_image_encoder_forward.5} parent=31 // pred_fallthru
          _
        %p170 = scmp.lt.s32.totalorder %s19, 1
        %s171 = scalar_select %p170, %s19, 1
        %s172 = smul.addr %s171, 32
        %s173 = smul.addr %s172, 4
        %s174 = scalar_lea.vmem %s0, %s173
        %p175 = pneg %p48
        %p176 = pneg %p45
        %p177 = pneg %p69
        %p178 = pneg %p66
        %p179 = pneg %p90
        %p180 = pneg %p87
        %p181 = pneg %p118
        %p182 = pneg %p115
        %s183 = smul.u32 8, %s20
        %p184 = scmp.lt.s32.totalorder %s19, 1
        %s185 = scalar_select %p184, %s19, 1
        %p186 = scmp.lt.s32.totalorder %s183, 7
        %s187 = scalar_select %p186, %s183, 7
        %s188 = smul.addr %s185, 8
        %s189 = sadd.s32 %s187, %s188
        %s190 = smul.addr %s189, 4
        %s191 = scalar_lea.vmem %s3, %s190
        %p192 = scmp.lt.s32.totalorder %s19, 1
        %s193 = scalar_select %p192, %s19, 1
        %s194 = smul.addr %s193, 32
        %s195 = smul.addr %s194, 4
        %s196 = scalar_lea.vmem %s0, %s195
        %s197 = smul.u32 8, %s20
        %p198 = scmp.lt.s32.totalorder %s19, 1
        %s199 = scalar_select %p198, %s19, 1
        %p200 = scmp.lt.s32.totalorder %s197, 7
        %s201 = scalar_select %p200, %s197, 7
        %s202 = smul.addr %s199, 8
        %s203 = sadd.s32 %s201, %s202
        %s204 = smul.addr %s203, 4
        %s205 = scalar_lea.vmem %s3, %s204
        %s206 = smul.u32 8, %s20
        %s208 = smul.u32 %s20, 16
        %s209 = smul.u32 %s208, 2
        %s210 = smul.addr %s209, 4
        %s211 = scalar_lea.vmem %s196, %s210
        %v212 = vld [vmem:[%s211] sm:$0xf]
        %v213 = vld [vmem:[%s211 + $0x4] sm:$0xf]
        %v214 = vld [vmem:[%s211 + $0x8] sm:$0xf]
        %v215 = vld [vmem:[%s211 + $0xc] sm:$0xf]
        %v216 = vld [vmem:[%s211 + $0x10] sm:$0xf]
        %v217 = vld [vmem:[%s211 + $0x14] sm:$0xf]
        %v218 = vld [vmem:[%s211 + $0x18] sm:$0xf]
        %v219 = vld [vmem:[%s211 + $0x1c] sm:$0xf]
        %v220 = vld [vmem:[%s211 + $0x20] sm:$0xf]
        %v221 = vld [vmem:[%s211 + $0x24] sm:$0xf]
        %v222 = vld [vmem:[%s211 + $0x28] sm:$0xf]
        %v223 = vld [vmem:[%s211 + $0x2c] sm:$0xf]
        %v224 = vld [vmem:[%s211 + $0x30] sm:$0xf]
        %v225 = vld [vmem:[%s211 + $0x34] sm:$0xf]
        %v226 = vld [vmem:[%s211 + $0x38] sm:$0xf]
        %v227 = vld [vmem:[%s211 + $0x3c] sm:$0xf]
        %v228 = vld [vmem:[%s211 + $0x40] sm:$0xf]
        %v229 = vld [vmem:[%s211 + $0x44] sm:$0xf]
        %v230 = vld [vmem:[%s211 + $0x48] sm:$0xf]
        %v231 = vld [vmem:[%s211 + $0x4c] sm:$0xf]
        %v232 = vld [vmem:[%s211 + $0x50] sm:$0xf]
        %v233 = vld [vmem:[%s211 + $0x54] sm:$0xf]
        %v234 = vld [vmem:[%s211 + $0x58] sm:$0xf]
        %v235 = vld [vmem:[%s211 + $0x5c] sm:$0xf]
        %v236 = vld [vmem:[%s211 + $0x60] sm:$0xf]
        %v237 = vld [vmem:[%s211 + $0x64] sm:$0xf]
        %v238 = vld [vmem:[%s211 + $0x68] sm:$0xf]
        %v239 = vld [vmem:[%s211 + $0x6c] sm:$0xf]
        %v240 = vld [vmem:[%s211 + $0x70] sm:$0xf]
        %v241 = vld [vmem:[%s211 + $0x74] sm:$0xf]
        %v242 = vld [vmem:[%s211 + $0x78] sm:$0xf]
        %v243 = vld [vmem:[%s211 + $0x7c] sm:$0xf]
        %s244 = ssub.s32 %s208, 1
        %p245 = scmp.gt.s32.totalorder %s244, 0
        %s246 = scalar_select %p245, %s244, 0
        %s247 = smul.u32 %s246, 2
        %s248 = smul.addr %s247, 4
        %s249 = scalar_lea.vmem %s196, %s248
        %v250 = vld [vmem:[%s249] sm:$0xf]
        %v251 = vld [vmem:[%s249 + $0x4] sm:$0xf]
        %p252 = scmp.gt.s32.totalorder %s20, 0
        %s253 = scalar_select %p252, 1, 0
        %s254 = scvt.s32.f32 %s253
        %p256 = scmp.ne.f32.partialorder %s254, %s254
        %s257 = sshrl.u32 %s254, 16
        %s258 = sand.u32 %s257, 1
        %s259 = sadd.s32 32767, %s258
        %s260 = sadd.s32 %s254, %s259
        %s261 = sand.u32 %s260, 4294901760
        %s262 = scalar_select %p256, 2143289344, %s261
        %s264 = sshrl.u32 %s262, 16
        %s265 = sshll.u32 %s264, 16
        %s266 = sor.u32 %s264, %s265
        %v267 = vstv %s266
        %v269 = vmul.bf16 %v250, %v267
        %v270 = vmul.bf16 %v251, %v267
        %s271 = sadd.s32 %s208, 16
        %p272 = scmp.lt.s32.totalorder %s271, 15
        %s273 = scalar_select %p272, %s271, 15
        %s274 = smul.u32 %s273, 2
        %s275 = smul.addr %s274, 4
        %s276 = scalar_lea.vmem %s196, %s275
        %v277 = vld [vmem:[%s276] sm:$0xf]
        %v278 = vld [vmem:[%s276 + $0x4] sm:$0xf]
        %p279 = scmp.lt.s32.totalorder %s20, 0
        %s280 = scalar_select %p279, 1, 0
        %s281 = scvt.s32.f32 %s280
        %p283 = scmp.ne.f32.partialorder %s281, %s281
        %s284 = sshrl.u32 %s281, 16
        %s285 = sand.u32 %s284, 1
        %s286 = sadd.s32 32767, %s285
        %s287 = sadd.s32 %s281, %s286
        %s288 = sand.u32 %s287, 4294901760
        %s289 = scalar_select %p283, 2143289344, %s288
        %s291 = sshrl.u32 %s289, 16
        %s292 = sshll.u32 %s291, 16
        %s293 = sor.u32 %s291, %s292
        %v294 = vstv %s293
        %v296 = vmul.bf16 %v277, %v294
        %v297 = vmul.bf16 %v278, %v294
        %v334 = vunpack.c.l.b16 %v269
        %v335 = vunpack.c.l.b16 %v270
        %v336 = vunpack.c.l.b16 %v212
        %v337 = vunpack.c.l.b16 %v213
        %v338 = vunpack.c.l.b16 %v214
        %v339 = vunpack.c.l.b16 %v215
        %v340 = vunpack.c.l.b16 %v216
        %v341 = vunpack.c.l.b16 %v217
        %v342 = vunpack.c.l.b16 %v218
        %v343 = vunpack.c.l.b16 %v219
        %v344 = vunpack.c.l.b16 %v220
        %v345 = vunpack.c.l.b16 %v221
        %v346 = vunpack.c.l.b16 %v222
        %v347 = vunpack.c.l.b16 %v223
        %v348 = vunpack.c.l.b16 %v224
        %v349 = vunpack.c.l.b16 %v225
        %v350 = vunpack.c.l.b16 %v226
        %v351 = vunpack.c.l.b16 %v227
        %v352 = vunpack.c.l.b16 %v228
        %v353 = vunpack.c.l.b16 %v229
        %v354 = vunpack.c.l.b16 %v230
        %v355 = vunpack.c.l.b16 %v231
        %v356 = vunpack.c.l.b16 %v232
        %v357 = vunpack.c.l.b16 %v233
        %v358 = vunpack.c.l.b16 %v234
        %v359 = vunpack.c.l.b16 %v235
        %v360 = vunpack.c.l.b16 %v236
        %v361 = vunpack.c.l.b16 %v237
        %v362 = vunpack.c.l.b16 %v238
        %v363 = vunpack.c.l.b16 %v239
        %v364 = vunpack.c.l.b16 %v240
        %v365 = vunpack.c.l.b16 %v241
        %v366 = vunpack.c.l.b16 %v242
        %v367 = vunpack.c.l.b16 %v243
        %v368 = vunpack.c.l.b16 %v296
        %v369 = vunpack.c.l.b16 %v297
        %v370 = vpack.c.b16 %v335, %v334
        %v371 = vpack.c.b16 %v337, %v336
        %v372 = vpack.c.b16 %v339, %v338
        %v373 = vpack.c.b16 %v341, %v340
        %v374 = vpack.c.b16 %v343, %v342
        %v375 = vpack.c.b16 %v345, %v344
        %v376 = vpack.c.b16 %v347, %v346
        %v377 = vpack.c.b16 %v349, %v348
        %v378 = vpack.c.b16 %v351, %v350
        %v379 = vpack.c.b16 %v353, %v352
        %v380 = vpack.c.b16 %v355, %v354
        %v381 = vpack.c.b16 %v357, %v356
        %v382 = vpack.c.b16 %v359, %v358
        %v383 = vpack.c.b16 %v361, %v360
        %v384 = vpack.c.b16 %v363, %v362
        %v385 = vpack.c.b16 %v365, %v364
        %v386 = vpack.c.b16 %v367, %v366
        %v387 = vpack.c.b16 %v369, %v368
        %v389 = vshrl.u32 %v370, 16
        %v391 = vrot.slane %v389, 7
        %v392 = vshll.u32 %v370, 16
        %v394 = vor.u32 %v391, %v392
        %v396 = vshrl.u32 %v371, 16
        %v398 = vrot.slane %v396, 7
        %v399 = vshll.u32 %v371, 16
        %v401 = vor.u32 %v398, %v399
        %v403 = vshrl.u32 %v372, 16
        %v405 = vrot.slane %v403, 7
        %v406 = vshll.u32 %v372, 16
        %v408 = vor.u32 %v405, %v406
        %v410 = vshrl.u32 %v373, 16
        %v412 = vrot.slane %v410, 7
        %v413 = vshll.u32 %v373, 16
        %v415 = vor.u32 %v412, %v413
        %v417 = vshrl.u32 %v374, 16
        %v419 = vrot.slane %v417, 7
        %v420 = vshll.u32 %v374, 16
        %v422 = vor.u32 %v419, %v420
        %v424 = vshrl.u32 %v375, 16
        %v426 = vrot.slane %v424, 7
        %v427 = vshll.u32 %v375, 16
        %v429 = vor.u32 %v426, %v427
        %v431 = vshrl.u32 %v376, 16
        %v433 = vrot.slane %v431, 7
        %v434 = vshll.u32 %v376, 16
        %v436 = vor.u32 %v433, %v434
        %v438 = vshrl.u32 %v377, 16
        %v440 = vrot.slane %v438, 7
        %v441 = vshll.u32 %v377, 16
        %v443 = vor.u32 %v440, %v441
        %v445 = vshrl.u32 %v378, 16
        %v447 = vrot.slane %v445, 7
        %v448 = vshll.u32 %v378, 16
        %v450 = vor.u32 %v447, %v448
        %v452 = vshrl.u32 %v379, 16
        %v454 = vrot.slane %v452, 7
        %v455 = vshll.u32 %v379, 16
        %v457 = vor.u32 %v454, %v455
        %v459 = vshrl.u32 %v380, 16
        %v461 = vrot.slane %v459, 7
        %v462 = vshll.u32 %v380, 16
        %v464 = vor.u32 %v461, %v462
        %v466 = vshrl.u32 %v381, 16
        %v468 = vrot.slane %v466, 7
        %v469 = vshll.u32 %v381, 16
        %v471 = vor.u32 %v468, %v469
        %v473 = vshrl.u32 %v382, 16
        %v475 = vrot.slane %v473, 7
        %v476 = vshll.u32 %v382, 16
        %v478 = vor.u32 %v475, %v476
        %v480 = vshrl.u32 %v383, 16
        %v482 = vrot.slane %v480, 7
        %v483 = vshll.u32 %v383, 16
        %v485 = vor.u32 %v482, %v483
        %v487 = vshrl.u32 %v384, 16
        %v489 = vrot.slane %v487, 7
        %v490 = vshll.u32 %v384, 16
        %v492 = vor.u32 %v489, %v490
        %v494 = vshrl.u32 %v385, 16
        %v496 = vrot.slane %v494, 7
        %v497 = vshll.u32 %v385, 16
        %v499 = vor.u32 %v496, %v497
        %v501 = vshrl.u32 %v386, 16
        %v503 = vrot.slane %v501, 7
        %v504 = vshll.u32 %v386, 16
        %v506 = vor.u32 %v503, %v504
        %v508 = vshrl.u32 %v387, 16
        %v510 = vrot.slane %v508, 7
        %v511 = vshll.u32 %v387, 16
        %v513 = vor.u32 %v510, %v511
        %vm550 = vcmask 1040384
        %vm551 = vsmask.f32 256
        %vm552 = vmand %vm550, %vm551
        %v553 = vsel %vm552, 0, %v394
        %v554 = vsel %vm552, 0, %v401
        %v555 = vsel %vm552, 0, %v408
        %v556 = vsel %vm552, 0, %v415
        %v557 = vsel %vm552, 0, %v422
        %v558 = vsel %vm552, 0, %v429
        %v559 = vsel %vm552, 0, %v436
        %v560 = vsel %vm552, 0, %v443
        %v561 = vsel %vm552, 0, %v450
        %v562 = vsel %vm552, 0, %v457
        %v563 = vsel %vm552, 0, %v464
        %v564 = vsel %vm552, 0, %v471
        %v565 = vsel %vm552, 0, %v478
        %v566 = vsel %vm552, 0, %v485
        %v567 = vsel %vm552, 0, %v492
        %v568 = vsel %vm552, 0, %v499
        %v569 = vsel %vm552, 0, %v506
        %v570 = vsel %vm552, 0, %v513
        %v571 = vsel %vm552, %v391, 0
        %v572 = vsel %vm552, %v398, 0
        %v573 = vsel %vm552, %v405, 0
        %v574 = vsel %vm552, %v412, 0
        %v575 = vsel %vm552, %v419, 0
        %v576 = vsel %vm552, %v426, 0
        %v577 = vsel %vm552, %v433, 0
        %v578 = vsel %vm552, %v440, 0
        %v579 = vsel %vm552, %v447, 0
        %v580 = vsel %vm552, %v454, 0
        %v581 = vsel %vm552, %v461, 0
        %v582 = vsel %vm552, %v468, 0
        %v583 = vsel %vm552, %v475, 0
        %v584 = vsel %vm552, %v482, 0
        %v585 = vsel %vm552, %v489, 0
        %v586 = vsel %vm552, %v496, 0
        %v587 = vsel %vm552, %v503, 0
        %v588 = vsel %vm552, %v510, 0
        %vm589 = vsmask.f32 7424
        %v591 = vshrl.u32 %v553, 16
        %v593 = vshll.u32 %v553, 16
        %v595 = vrot.slane %v593, 1
        %v596 = vor.u32 %v591, %v595
        %v598 = vshll.u32 %v571, 16
        %v600 = vrot.slane %v598, 1
        %v601 = vsel %vm589, %v596, %v600
        %v603 = vshrl.u32 %v554, 16
        %v605 = vshll.u32 %v554, 16
        %v607 = vrot.slane %v605, 1
        %v608 = vor.u32 %v603, %v607
        %v610 = vshll.u32 %v572, 16
        %v612 = vrot.slane %v610, 1
        %v613 = vsel %vm589, %v608, %v612
        %v615 = vshrl.u32 %v555, 16
        %v617 = vshll.u32 %v555, 16
        %v619 = vrot.slane %v617, 1
        %v620 = vor.u32 %v615, %v619
        %v622 = vshll.u32 %v573, 16
        %v624 = vrot.slane %v622, 1
        %v625 = vsel %vm589, %v620, %v624
        %v627 = vshrl.u32 %v556, 16
        %v629 = vshll.u32 %v556, 16
        %v631 = vrot.slane %v629, 1
        %v632 = vor.u32 %v627, %v631
        %v634 = vshll.u32 %v574, 16
        %v636 = vrot.slane %v634, 1
        %v637 = vsel %vm589, %v632, %v636
        %v639 = vshrl.u32 %v557, 16
        %v641 = vshll.u32 %v557, 16
        %v643 = vrot.slane %v641, 1
        %v644 = vor.u32 %v639, %v643
        %v646 = vshll.u32 %v575, 16
        %v648 = vrot.slane %v646, 1
        %v649 = vsel %vm589, %v644, %v648
        %v651 = vshrl.u32 %v558, 16
        %v653 = vshll.u32 %v558, 16
        %v655 = vrot.slane %v653, 1
        %v656 = vor.u32 %v651, %v655
        %v658 = vshll.u32 %v576, 16
        %v660 = vrot.slane %v658, 1
        %v661 = vsel %vm589, %v656, %v660
        %v663 = vshrl.u32 %v559, 16
        %v665 = vshll.u32 %v559, 16
        %v667 = vrot.slane %v665, 1
        %v668 = vor.u32 %v663, %v667
        %v670 = vshll.u32 %v577, 16
        %v672 = vrot.slane %v670, 1
        %v673 = vsel %vm589, %v668, %v672
        %v675 = vshrl.u32 %v560, 16
        %v677 = vshll.u32 %v560, 16
        %v679 = vrot.slane %v677, 1
        %v680 = vor.u32 %v675, %v679
        %v682 = vshll.u32 %v578, 16
        %v684 = vrot.slane %v682, 1
        %v685 = vsel %vm589, %v680, %v684
        %v687 = vshrl.u32 %v561, 16
        %v689 = vshll.u32 %v561, 16
        %v691 = vrot.slane %v689, 1
        %v692 = vor.u32 %v687, %v691
        %v694 = vshll.u32 %v579, 16
        %v696 = vrot.slane %v694, 1
        %v697 = vsel %vm589, %v692, %v696
        %v699 = vshrl.u32 %v562, 16
        %v701 = vshll.u32 %v562, 16
        %v703 = vrot.slane %v701, 1
        %v704 = vor.u32 %v699, %v703
        %v706 = vshll.u32 %v580, 16
        %v708 = vrot.slane %v706, 1
        %v709 = vsel %vm589, %v704, %v708
        %v711 = vshrl.u32 %v563, 16
        %v713 = vshll.u32 %v563, 16
        %v715 = vrot.slane %v713, 1
        %v716 = vor.u32 %v711, %v715
        %v718 = vshll.u32 %v581, 16
        %v720 = vrot.slane %v718, 1
        %v721 = vsel %vm589, %v716, %v720
        %v723 = vshrl.u32 %v564, 16
        %v725 = vshll.u32 %v564, 16
        %v727 = vrot.slane %v725, 1
        %v728 = vor.u32 %v723, %v727
        %v730 = vshll.u32 %v582, 16
        %v732 = vrot.slane %v730, 1
        %v733 = vsel %vm589, %v728, %v732
        %v735 = vshrl.u32 %v565, 16
        %v737 = vshll.u32 %v565, 16
        %v739 = vrot.slane %v737, 1
        %v740 = vor.u32 %v735, %v739
        %v742 = vshll.u32 %v583, 16
        %v744 = vrot.slane %v742, 1
        %v745 = vsel %vm589, %v740, %v744
        %v747 = vshrl.u32 %v566, 16
        %v749 = vshll.u32 %v566, 16
        %v751 = vrot.slane %v749, 1
        %v752 = vor.u32 %v747, %v751
        %v754 = vshll.u32 %v584, 16
        %v756 = vrot.slane %v754, 1
        %v757 = vsel %vm589, %v752, %v756
        %v759 = vshrl.u32 %v567, 16
        %v761 = vshll.u32 %v567, 16
        %v763 = vrot.slane %v761, 1
        %v764 = vor.u32 %v759, %v763
        %v766 = vshll.u32 %v585, 16
        %v768 = vrot.slane %v766, 1
        %v769 = vsel %vm589, %v764, %v768
        %v771 = vshrl.u32 %v568, 16
        %v773 = vshll.u32 %v568, 16
        %v775 = vrot.slane %v773, 1
        %v776 = vor.u32 %v771, %v775
        %v778 = vshll.u32 %v586, 16
        %v780 = vrot.slane %v778, 1
        %v781 = vsel %vm589, %v776, %v780
        %782 = vrot.lane.b32.xlu0 %v601, 32
        %v783 = vpop.permute.xlu0 %782
        %784 = vrot.lane.b32.xlu0 %v613, 32
        %v785 = vpop.permute.xlu0 %784
        %786 = vrot.lane.b32.xlu0 %v625, 32
        %v787 = vpop.permute.xlu0 %786
        %788 = vrot.lane.b32.xlu0 %v637, 32
        %v789 = vpop.permute.xlu0 %788
        %790 = vrot.lane.b32.xlu0 %v649, 32
        %v791 = vpop.permute.xlu0 %790
        %792 = vrot.lane.b32.xlu0 %v661, 32
        %v793 = vpop.permute.xlu0 %792
        %794 = vrot.lane.b32.xlu0 %v673, 32
        %v795 = vpop.permute.xlu0 %794
        %796 = vrot.lane.b32.xlu0 %v685, 32
        %v797 = vpop.permute.xlu0 %796
        %798 = vrot.lane.b32.xlu0 %v697, 32
        %v799 = vpop.permute.xlu0 %798
        %800 = vrot.lane.b32.xlu0 %v709, 32
        %v801 = vpop.permute.xlu0 %800
        %802 = vrot.lane.b32.xlu0 %v721, 32
        %v803 = vpop.permute.xlu0 %802
        %804 = vrot.lane.b32.xlu0 %v733, 32
        %v805 = vpop.permute.xlu0 %804
        %806 = vrot.lane.b32.xlu0 %v745, 32
        %v807 = vpop.permute.xlu0 %806
        %808 = vrot.lane.b32.xlu0 %v757, 32
        %v809 = vpop.permute.xlu0 %808
        %810 = vrot.lane.b32.xlu0 %v769, 32
        %v811 = vpop.permute.xlu0 %810
        %812 = vrot.lane.b32.xlu0 %v781, 32
        %v813 = vpop.permute.xlu0 %812
        %vm846 = vcmask 1046528
        %v847 = vrot.slane %v553, 1
        %v848 = vrot.slane %v571, 1
        %v849 = vsel %vm846, %v847, %v848
        %v850 = vrot.slane %v554, 1
        %v851 = vrot.slane %v572, 1
        %v852 = vsel %vm846, %v850, %v851
        %v853 = vrot.slane %v555, 1
        %v854 = vrot.slane %v573, 1
        %v855 = vsel %vm846, %v853, %v854
        %v856 = vrot.slane %v556, 1
        %v857 = vrot.slane %v574, 1
        %v858 = vsel %vm846, %v856, %v857
        %v859 = vrot.slane %v557, 1
        %v860 = vrot.slane %v575, 1
        %v861 = vsel %vm846, %v859, %v860
        %v862 = vrot.slane %v558, 1
        %v863 = vrot.slane %v576, 1
        %v864 = vsel %vm846, %v862, %v863
        %v865 = vrot.slane %v559, 1
        %v866 = vrot.slane %v577, 1
        %v867 = vsel %vm846, %v865, %v866
        %v868 = vrot.slane %v560, 1
        %v869 = vrot.slane %v578, 1
        %v870 = vsel %vm846, %v868, %v869
        %v871 = vrot.slane %v561, 1
        %v872 = vrot.slane %v579, 1
        %v873 = vsel %vm846, %v871, %v872
        %v874 = vrot.slane %v562, 1
        %v875 = vrot.slane %v580, 1
        %v876 = vsel %vm846, %v874, %v875
        %v877 = vrot.slane %v563, 1
        %v878 = vrot.slane %v581, 1
        %v879 = vsel %vm846, %v877, %v878
        %v880 = vrot.slane %v564, 1
        %v881 = vrot.slane %v582, 1
        %v882 = vsel %vm846, %v880, %v881
        %v883 = vrot.slane %v565, 1
        %v884 = vrot.slane %v583, 1
        %v885 = vsel %vm846, %v883, %v884
        %v886 = vrot.slane %v566, 1
        %v887 = vrot.slane %v584, 1
        %v888 = vsel %vm846, %v886, %v887
        %v889 = vrot.slane %v567, 1
        %v890 = vrot.slane %v585, 1
        %v891 = vsel %vm846, %v889, %v890
        %v892 = vrot.slane %v568, 1
        %v893 = vrot.slane %v586, 1
        %v894 = vsel %vm846, %v892, %v893
        %895 = vrot.lane.b32.xlu0 %v849, 64
        %v896 = vpop.permute.xlu0 %895
        %897 = vrot.lane.b32.xlu0 %v852, 64
        %v898 = vpop.permute.xlu0 %897
        %899 = vrot.lane.b32.xlu0 %v855, 64
        %v900 = vpop.permute.xlu0 %899
        %901 = vrot.lane.b32.xlu0 %v858, 64
        %v902 = vpop.permute.xlu0 %901
        %903 = vrot.lane.b32.xlu0 %v861, 64
        %v904 = vpop.permute.xlu0 %903
        %905 = vrot.lane.b32.xlu0 %v864, 64
        %v906 = vpop.permute.xlu0 %905
        %907 = vrot.lane.b32.xlu0 %v867, 64
        %v908 = vpop.permute.xlu0 %907
        %909 = vrot.lane.b32.xlu0 %v870, 64
        %v910 = vpop.permute.xlu0 %909
        %911 = vrot.lane.b32.xlu0 %v873, 64
        %v912 = vpop.permute.xlu0 %911
        %913 = vrot.lane.b32.xlu0 %v876, 64
        %v914 = vpop.permute.xlu0 %913
        %915 = vrot.lane.b32.xlu0 %v879, 64
        %v916 = vpop.permute.xlu0 %915
        %917 = vrot.lane.b32.xlu0 %v882, 64
        %v918 = vpop.permute.xlu0 %917
        %919 = vrot.lane.b32.xlu0 %v885, 64
        %v920 = vpop.permute.xlu0 %919
        %921 = vrot.lane.b32.xlu0 %v888, 64
        %v922 = vpop.permute.xlu0 %921
        %923 = vrot.lane.b32.xlu0 %v891, 64
        %v924 = vpop.permute.xlu0 %923
        %925 = vrot.lane.b32.xlu0 %v894, 64
        %v926 = vpop.permute.xlu0 %925
        %928 = vrot.lane.b32.xlu0 %v554, 96
        %v929 = vpop.permute.xlu0 %928
        %930 = vrot.lane.b32.xlu0 %v555, 96
        %v931 = vpop.permute.xlu0 %930
        %932 = vrot.lane.b32.xlu0 %v556, 96
        %v933 = vpop.permute.xlu0 %932
        %934 = vrot.lane.b32.xlu0 %v557, 96
        %v935 = vpop.permute.xlu0 %934
        %936 = vrot.lane.b32.xlu0 %v558, 96
        %v937 = vpop.permute.xlu0 %936
        %938 = vrot.lane.b32.xlu0 %v559, 96
        %v939 = vpop.permute.xlu0 %938
        %940 = vrot.lane.b32.xlu0 %v560, 96
        %v941 = vpop.permute.xlu0 %940
        %942 = vrot.lane.b32.xlu0 %v561, 96
        %v943 = vpop.permute.xlu0 %942
        %944 = vrot.lane.b32.xlu0 %v562, 96
        %v945 = vpop.permute.xlu0 %944
        %946 = vrot.lane.b32.xlu0 %v563, 96
        %v947 = vpop.permute.xlu0 %946
        %948 = vrot.lane.b32.xlu0 %v564, 96
        %v949 = vpop.permute.xlu0 %948
        %950 = vrot.lane.b32.xlu0 %v565, 96
        %v951 = vpop.permute.xlu0 %950
        %952 = vrot.lane.b32.xlu0 %v566, 96
        %v953 = vpop.permute.xlu0 %952
        %954 = vrot.lane.b32.xlu0 %v567, 96
        %v955 = vpop.permute.xlu0 %954
        %956 = vrot.lane.b32.xlu0 %v568, 96
        %v957 = vpop.permute.xlu0 %956
        %958 = vrot.lane.b32.xlu0 %v569, 96
        %v959 = vpop.permute.xlu0 %958
        %v961 = vshrl.u32 %v569, 16
        %v963 = vshll.u32 %v569, 16
        %v965 = vrot.slane %v963, 1
        %v966 = vor.u32 %v961, %v965
        %v968 = vshll.u32 %v587, 16
        %v970 = vrot.slane %v968, 1
        %v971 = vsel %vm589, %v966, %v970
        %v973 = vrot.slane %v569, 1
        %v974 = vrot.slane %v587, 1
        %v975 = vsel %vm846, %v973, %v974
        %976 = vrot.lane.b32.xlu0 %v852, 32
        %v977 = vpop.permute.xlu0 %976
        %978 = vrot.lane.b32.xlu0 %v855, 32
        %v979 = vpop.permute.xlu0 %978
        %980 = vrot.lane.b32.xlu0 %v858, 32
        %v981 = vpop.permute.xlu0 %980
        %982 = vrot.lane.b32.xlu0 %v861, 32
        %v983 = vpop.permute.xlu0 %982
        %984 = vrot.lane.b32.xlu0 %v864, 32
        %v985 = vpop.permute.xlu0 %984
        %986 = vrot.lane.b32.xlu0 %v867, 32
        %v987 = vpop.permute.xlu0 %986
        %988 = vrot.lane.b32.xlu0 %v870, 32
        %v989 = vpop.permute.xlu0 %988
        %990 = vrot.lane.b32.xlu0 %v873, 32
        %v991 = vpop.permute.xlu0 %990
        %992 = vrot.lane.b32.xlu0 %v876, 32
        %v993 = vpop.permute.xlu0 %992
        %994 = vrot.lane.b32.xlu0 %v879, 32
        %v995 = vpop.permute.xlu0 %994
        %996 = vrot.lane.b32.xlu0 %v882, 32
        %v997 = vpop.permute.xlu0 %996
        %998 = vrot.lane.b32.xlu0 %v885, 32
        %v999 = vpop.permute.xlu0 %998
        %1000 = vrot.lane.b32.xlu0 %v888, 32
        %v1001 = vpop.permute.xlu0 %1000
        %1002 = vrot.lane.b32.xlu0 %v891, 32
        %v1003 = vpop.permute.xlu0 %1002
        %1004 = vrot.lane.b32.xlu0 %v894, 32
        %v1005 = vpop.permute.xlu0 %1004
        %1006 = vrot.lane.b32.xlu0 %v975, 32
        %v1007 = vpop.permute.xlu0 %1006
        %1009 = vrot.lane.b32.xlu0 %v555, 64
        %v1010 = vpop.permute.xlu0 %1009
        %1011 = vrot.lane.b32.xlu0 %v556, 64
        %v1012 = vpop.permute.xlu0 %1011
        %1013 = vrot.lane.b32.xlu0 %v557, 64
        %v1014 = vpop.permute.xlu0 %1013
        %1015 = vrot.lane.b32.xlu0 %v558, 64
        %v1016 = vpop.permute.xlu0 %1015
        %1017 = vrot.lane.b32.xlu0 %v559, 64
        %v1018 = vpop.permute.xlu0 %1017
        %1019 = vrot.lane.b32.xlu0 %v560, 64
        %v1020 = vpop.permute.xlu0 %1019
        %1021 = vrot.lane.b32.xlu0 %v561, 64
        %v1022 = vpop.permute.xlu0 %1021
        %1023 = vrot.lane.b32.xlu0 %v562, 64
        %v1024 = vpop.permute.xlu0 %1023
        %1025 = vrot.lane.b32.xlu0 %v563, 64
        %v1026 = vpop.permute.xlu0 %1025
        %1027 = vrot.lane.b32.xlu0 %v564, 64
        %v1028 = vpop.permute.xlu0 %1027
        %1029 = vrot.lane.b32.xlu0 %v565, 64
        %v1030 = vpop.permute.xlu0 %1029
        %1031 = vrot.lane.b32.xlu0 %v566, 64
        %v1032 = vpop.permute.xlu0 %1031
        %1033 = vrot.lane.b32.xlu0 %v567, 64
        %v1034 = vpop.permute.xlu0 %1033
        %1035 = vrot.lane.b32.xlu0 %v568, 64
        %v1036 = vpop.permute.xlu0 %1035
        %1037 = vrot.lane.b32.xlu0 %v569, 64
        %v1038 = vpop.permute.xlu0 %1037
        %1039 = vrot.lane.b32.xlu0 %v570, 64
        %v1040 = vpop.permute.xlu0 %1039
        %v1042 = vshrl.u32 %v570, 16
        %v1044 = vshll.u32 %v570, 16
        %v1046 = vrot.slane %v1044, 1
        %v1047 = vor.u32 %v1042, %v1046
        %v1049 = vshll.u32 %v588, 16
        %v1051 = vrot.slane %v1049, 1
        %v1052 = vsel %vm589, %v1047, %v1051
        %1053 = vrot.lane.b32.xlu0 %v625, 96
        %v1054 = vpop.permute.xlu0 %1053
        %1055 = vrot.lane.b32.xlu0 %v637, 96
        %v1056 = vpop.permute.xlu0 %1055
        %1057 = vrot.lane.b32.xlu0 %v649, 96
        %v1058 = vpop.permute.xlu0 %1057
        %1059 = vrot.lane.b32.xlu0 %v661, 96
        %v1060 = vpop.permute.xlu0 %1059
        %1061 = vrot.lane.b32.xlu0 %v673, 96
        %v1062 = vpop.permute.xlu0 %1061
        %1063 = vrot.lane.b32.xlu0 %v685, 96
        %v1064 = vpop.permute.xlu0 %1063
        %1065 = vrot.lane.b32.xlu0 %v697, 96
        %v1066 = vpop.permute.xlu0 %1065
        %1067 = vrot.lane.b32.xlu0 %v709, 96
        %v1068 = vpop.permute.xlu0 %1067
        %1069 = vrot.lane.b32.xlu0 %v721, 96
        %v1070 = vpop.permute.xlu0 %1069
        %1071 = vrot.lane.b32.xlu0 %v733, 96
        %v1072 = vpop.permute.xlu0 %1071
        %1073 = vrot.lane.b32.xlu0 %v745, 96
        %v1074 = vpop.permute.xlu0 %1073
        %1075 = vrot.lane.b32.xlu0 %v757, 96
        %v1076 = vpop.permute.xlu0 %1075
        %1077 = vrot.lane.b32.xlu0 %v769, 96
        %v1078 = vpop.permute.xlu0 %1077
        %1079 = vrot.lane.b32.xlu0 %v781, 96
        %v1080 = vpop.permute.xlu0 %1079
        %1081 = vrot.lane.b32.xlu0 %v971, 96
        %v1082 = vpop.permute.xlu0 %1081
        %1083 = vrot.lane.b32.xlu0 %v1052, 96
        %v1084 = vpop.permute.xlu0 %1083
        %v1086 = vrot.slane %v570, 1
        %v1087 = vrot.slane %v588, 1
        %v1088 = vsel %vm846, %v1086, %v1087
        %vm1089 = vcmask 261120
        %v1091 = vsel %vm1089, %v553, %v783
        %v1093 = vsel %vm1089, %v554, %v785
        %v1095 = vsel %vm1089, %v555, %v787
        %v1097 = vsel %vm1089, %v556, %v789
        %v1099 = vsel %vm1089, %v557, %v791
        %v1101 = vsel %vm1089, %v558, %v793
        %v1103 = vsel %vm1089, %v559, %v795
        %v1105 = vsel %vm1089, %v560, %v797
        %v1107 = vsel %vm1089, %v561, %v799
        %v1109 = vsel %vm1089, %v562, %v801
        %v1111 = vsel %vm1089, %v563, %v803
        %v1113 = vsel %vm1089, %v564, %v805
        %v1115 = vsel %vm1089, %v565, %v807
        %v1117 = vsel %vm1089, %v566, %v809
        %v1119 = vsel %vm1089, %v567, %v811
        %v1121 = vsel %vm1089, %v568, %v813
        %vm1122 = vcmask 523264
        %v1124 = vsel %vm1122, %v1091, %v896
        %v1126 = vsel %vm1122, %v1093, %v898
        %v1128 = vsel %vm1122, %v1095, %v900
        %v1130 = vsel %vm1122, %v1097, %v902
        %v1132 = vsel %vm1122, %v1099, %v904
        %v1134 = vsel %vm1122, %v1101, %v906
        %v1136 = vsel %vm1122, %v1103, %v908
        %v1138 = vsel %vm1122, %v1105, %v910
        %v1140 = vsel %vm1122, %v1107, %v912
        %v1142 = vsel %vm1122, %v1109, %v914
        %v1144 = vsel %vm1122, %v1111, %v916
        %v1146 = vsel %vm1122, %v1113, %v918
        %v1148 = vsel %vm1122, %v1115, %v920
        %v1150 = vsel %vm1122, %v1117, %v922
        %v1152 = vsel %vm1122, %v1119, %v924
        %v1154 = vsel %vm1122, %v1121, %v926
        %vm1155 = vcmask 785408
        %v1157 = vsel %vm1155, %v1124, %v929
        %v1160 = vsel %vm1155, %v1126, %v931
        %v1163 = vsel %vm1155, %v1128, %v933
        %v1166 = vsel %vm1155, %v1130, %v935
        %v1169 = vsel %vm1155, %v1132, %v937
        %v1172 = vsel %vm1155, %v1134, %v939
        %v1175 = vsel %vm1155, %v1136, %v941
        %v1178 = vsel %vm1155, %v1138, %v943
        %v1181 = vsel %vm1155, %v1140, %v945
        %v1184 = vsel %vm1155, %v1142, %v947
        %v1187 = vsel %vm1155, %v1144, %v949
        %v1190 = vsel %vm1155, %v1146, %v951
        %v1193 = vsel %vm1155, %v1148, %v953
        %v1196 = vsel %vm1155, %v1150, %v955
        %v1199 = vsel %vm1155, %v1152, %v957
        %v1202 = vsel %vm1155, %v1154, %v959
        %v1206 = vsel %vm1089, %v613, %v977
        %v1209 = vsel %vm1089, %v625, %v979
        %v1212 = vsel %vm1089, %v637, %v981
        %v1215 = vsel %vm1089, %v649, %v983
        %v1218 = vsel %vm1089, %v661, %v985
        %v1221 = vsel %vm1089, %v673, %v987
        %v1224 = vsel %vm1089, %v685, %v989
        %v1227 = vsel %vm1089, %v697, %v991
        %v1230 = vsel %vm1089, %v709, %v993
        %v1233 = vsel %vm1089, %v721, %v995
        %v1236 = vsel %vm1089, %v733, %v997
        %v1239 = vsel %vm1089, %v745, %v999
        %v1242 = vsel %vm1089, %v757, %v1001
        %v1245 = vsel %vm1089, %v769, %v1003
        %v1248 = vsel %vm1089, %v781, %v1005
        %v1251 = vsel %vm1089, %v971, %v1007
        %v1253 = vsel %vm1122, %v1206, %v1010
        %v1255 = vsel %vm1122, %v1209, %v1012
        %v1257 = vsel %vm1122, %v1212, %v1014
        %v1259 = vsel %vm1122, %v1215, %v1016
        %v1261 = vsel %vm1122, %v1218, %v1018
        %v1263 = vsel %vm1122, %v1221, %v1020
        %v1265 = vsel %vm1122, %v1224, %v1022
        %v1267 = vsel %vm1122, %v1227, %v1024
        %v1269 = vsel %vm1122, %v1230, %v1026
        %v1271 = vsel %vm1122, %v1233, %v1028
        %v1273 = vsel %vm1122, %v1236, %v1030
        %v1275 = vsel %vm1122, %v1239, %v1032
        %v1277 = vsel %vm1122, %v1242, %v1034
        %v1279 = vsel %vm1122, %v1245, %v1036
        %v1281 = vsel %vm1122, %v1248, %v1038
        %v1283 = vsel %vm1122, %v1251, %v1040
        %v1285 = vsel %vm1155, %v1253, %v1054
        %v1288 = vsel %vm1155, %v1255, %v1056
        %v1291 = vsel %vm1155, %v1257, %v1058
        %v1294 = vsel %vm1155, %v1259, %v1060
        %v1297 = vsel %vm1155, %v1261, %v1062
        %v1300 = vsel %vm1155, %v1263, %v1064
        %v1303 = vsel %vm1155, %v1265, %v1066
        %v1306 = vsel %vm1155, %v1267, %v1068
        %v1309 = vsel %vm1155, %v1269, %v1070
        %v1312 = vsel %vm1155, %v1271, %v1072
        %v1315 = vsel %vm1155, %v1273, %v1074
        %v1318 = vsel %vm1155, %v1275, %v1076
        %v1321 = vsel %vm1155, %v1277, %v1078
        %v1324 = vsel %vm1155, %v1279, %v1080
        %v1327 = vsel %vm1155, %v1281, %v1082
        %v1330 = vsel %vm1155, %v1283, %v1084
        %v1332 = vld [vmem:[%s1] sm:$0xf]
        %v1333 = vld [vmem:[%s1 + $0x4] sm:$0xf]
        %v1334 = vld [vmem:[%s1 + $0x8] sm:$0xf]
        %v1335 = vld [vmem:[%s1 + $0xc] sm:$0xf]
        %v1336 = vld [vmem:[%s1 + $0x10] sm:$0xf]
        %v1337 = vld [vmem:[%s1 + $0x14] sm:$0xf]
        %v1338 = vld [vmem:[%s1 + $0x18] sm:$0xf]
        %v1339 = vld [vmem:[%s1 + $0x1c] sm:$0xf]
        %v1340 = vld [vmem:[%s1 + $0x20] sm:$0xf]
        %v1341 = vld [vmem:[%s1 + $0x24] sm:$0xf]
        %v1342 = vld [vmem:[%s1 + $0x28] sm:$0xf]
        %v1343 = vld [vmem:[%s1 + $0x2c] sm:$0xf]
        %v1344 = vld [vmem:[%s1 + $0x30] sm:$0xf]
        %v1345 = vld [vmem:[%s1 + $0x34] sm:$0xf]
        %v1346 = vld [vmem:[%s1 + $0x38] sm:$0xf]
        %v1347 = vld [vmem:[%s1 + $0x3c] sm:$0xf]
        %v1348 = vld [vmem:[%s1 + $0x40] sm:$0xf]
        %v1349 = vld [vmem:[%s1 + $0x44] sm:$0xf]
        %v1350 = vld [vmem:[%s1 + $0x48] sm:$0xf]
        %v1351 = vld [vmem:[%s1 + $0x4c] sm:$0xf]
        %v1352 = vld [vmem:[%s1 + $0x50] sm:$0xf]
        %v1353 = vld [vmem:[%s1 + $0x54] sm:$0xf]
        %v1354 = vld [vmem:[%s1 + $0x58] sm:$0xf]
        %v1355 = vld [vmem:[%s1 + $0x5c] sm:$0xf]
        %v1356 = vld [vmem:[%s1 + $0x60] sm:$0xf]
        %v1357 = vld [vmem:[%s1 + $0x64] sm:$0xf]
        %v1358 = vld [vmem:[%s1 + $0x68] sm:$0xf]
        %v1359 = vld [vmem:[%s1 + $0x6c] sm:$0xf]
        %v1360 = vld [vmem:[%s1 + $0x70] sm:$0xf]
        %v1361 = vld [vmem:[%s1 + $0x74] sm:$0xf]
        %v1362 = vld [vmem:[%s1 + $0x78] sm:$0xf]
        %v1363 = vld [vmem:[%s1 + $0x7c] sm:$0xf]
        %v1364 = vld [vmem:[%s1 + $0x80] sm:$0xf]
        %v1365 = vld [vmem:[%s1 + $0x84] sm:$0xf]
        %v1366 = vld [vmem:[%s1 + $0x88] sm:$0xf]
        %v1367 = vld [vmem:[%s1 + $0x8c] sm:$0xf]
        %v1368 = vld [vmem:[#allocation3] sm:$0x1]
        %v1370 = vlaneseq
        %v1371 = vshrl.u32 %v1370, 7
        %v1372 = vsub.s32 0, %v1371
        %v1373 = vrot.slane %v1368, %v1372
        %v1411 = vunpack.c.l.b16 %v1332
        %v1412 = vunpack.c.l.b16 %v1333
        %v1413 = vunpack.c.l.b16 %v1334
        %v1414 = vunpack.c.l.b16 %v1335
        %v1415 = vunpack.c.l.b16 %v1336
        %v1416 = vunpack.c.l.b16 %v1337
        %v1417 = vunpack.c.l.b16 %v1338
        %v1418 = vunpack.c.l.b16 %v1339
        %v1419 = vunpack.c.l.b16 %v1340
        %v1420 = vunpack.c.l.b16 %v1341
        %v1421 = vunpack.c.l.b16 %v1342
        %v1422 = vunpack.c.l.b16 %v1343
        %v1423 = vunpack.c.l.b16 %v1344
        %v1424 = vunpack.c.l.b16 %v1345
        %v1425 = vunpack.c.l.b16 %v1346
        %v1426 = vunpack.c.l.b16 %v1347
        %v1427 = vunpack.c.l.b16 %v1348
        %v1428 = vunpack.c.l.b16 %v1349
        %v1429 = vunpack.c.l.b16 %v1350
        %v1430 = vunpack.c.l.b16 %v1351
        %v1431 = vunpack.c.l.b16 %v1352
        %v1432 = vunpack.c.l.b16 %v1353
        %v1433 = vunpack.c.l.b16 %v1354
        %v1434 = vunpack.c.l.b16 %v1355
        %v1435 = vunpack.c.l.b16 %v1356
        %v1436 = vunpack.c.l.b16 %v1357
        %v1437 = vunpack.c.l.b16 %v1358
        %v1438 = vunpack.c.l.b16 %v1359
        %v1439 = vunpack.c.l.b16 %v1360
        %v1440 = vunpack.c.l.b16 %v1361
        %v1441 = vunpack.c.l.b16 %v1362
        %v1442 = vunpack.c.l.b16 %v1363
        %v1443 = vunpack.c.l.b16 %v1364
        %v1444 = vunpack.c.l.b16 %v1365
        %v1445 = vunpack.c.l.b16 %v1366
        %v1446 = vunpack.c.l.b16 %v1367
        %v1447 = vpack.c.b16 %v1412, %v1411
        %v1448 = vpack.c.b16 %v1414, %v1413
        %v1449 = vpack.c.b16 %v1416, %v1415
        %v1450 = vpack.c.b16 %v1418, %v1417
        %v1451 = vpack.c.b16 %v1420, %v1419
        %v1452 = vpack.c.b16 %v1422, %v1421
        %v1453 = vpack.c.b16 %v1424, %v1423
        %v1454 = vpack.c.b16 %v1426, %v1425
        %v1455 = vpack.c.b16 %v1428, %v1427
        %v1456 = vpack.c.b16 %v1430, %v1429
        %v1457 = vpack.c.b16 %v1432, %v1431
        %v1458 = vpack.c.b16 %v1434, %v1433
        %v1459 = vpack.c.b16 %v1436, %v1435
        %v1460 = vpack.c.b16 %v1438, %v1437
        %v1461 = vpack.c.b16 %v1440, %v1439
        %v1462 = vpack.c.b16 %v1442, %v1441
        %v1463 = vpack.c.b16 %v1444, %v1443
        %v1464 = vpack.c.b16 %v1446, %v1445
        %v1484 = vsel %vm1089, %v855, 0
        %v1487 = vsel %vm1089, %v858, 0
        %v1490 = vsel %vm1089, %v861, 0
        %v1493 = vsel %vm1089, %v864, 0
        %v1496 = vsel %vm1089, %v867, 0
        %v1499 = vsel %vm1089, %v870, 0
        %v1502 = vsel %vm1089, %v873, 0
        %v1505 = vsel %vm1089, %v876, 0
        %v1508 = vsel %vm1089, %v879, 0
        %v1511 = vsel %vm1089, %v882, 0
        %v1514 = vsel %vm1089, %v885, 0
        %v1517 = vsel %vm1089, %v888, 0
        %v1520 = vsel %vm1089, %v891, 0
        %v1523 = vsel %vm1089, %v894, 0
        %v1526 = vsel %vm1089, %v975, 0
        %v1529 = vsel %vm1089, %v1088, 0
        %1531 = vmatprep.subr.bf16.mxu0 0
        %1532 = vmatpush1.bf16.msra.mxu0 %v1447
        %1533 = vmatprep.subr.bf16.mxu0 0
        %1534 = vmatpush1.bf16.msra.mxu0 %v1448
        %1535 = vmatprep.subr.bf16.mxu0 0
        %1536 = vmatpush1.bf16.msra.mxu0 %v1449
        %1537 = vmatprep.subr.bf16.mxu0 0
        %1538 = vmatpush1.bf16.msra.mxu0 %v1450
        %1539 = vmatprep.subr.bf16.mxu0 0
        %1540 = vmatpush1.bf16.msra.mxu0 %v1451
        %1541 = vmatprep.subr.bf16.mxu0 0
        %1542 = vmatpush1.bf16.msra.mxu0 %v1452
        %1543 = vmatprep.subr.bf16.mxu0 0
        %1544 = vmatpush1.bf16.msra.mxu0 %v1453
        %1545 = vmatprep.subr.bf16.mxu0 0
        %1546 = vmatpush1.bf16.msra.mxu0 %v1454
        %1547 = vmatprep.subr.bf16.mxu0 0
        %1548 = vmatpush1.bf16.msra.mxu0 %v1455
        %1549 = vmatprep.subr.bf16.mxu0 0
        %1550 = vmatpush1.bf16.msra.mxu0 %v1456
        %1551 = vmatprep.subr.bf16.mxu0 0
        %1552 = vmatpush1.bf16.msra.mxu0 %v1457
        %1553 = vmatprep.subr.bf16.mxu0 0
        %1554 = vmatpush1.bf16.msra.mxu0 %v1458
        %1555 = vmatprep.subr.bf16.mxu0 0
        %1556 = vmatpush1.bf16.msra.mxu0 %v1459
        %1557 = vmatprep.subr.bf16.mxu0 0
        %1558 = vmatpush1.bf16.msra.mxu0 %v1460
        %1559 = vmatprep.subr.bf16.mxu0 0
        %1560 = vmatpush1.bf16.msra.mxu0 %v1461
        %1561 = vmatprep.subr.bf16.mxu0 0
        %1562 = vmatpush1.bf16.msra.mxu0 %v1462
        %1563 = vmatprep.mubr.bf16.mxu0 %v1285
        %1564 = vmatmul.mubr.bf16.gmra.mrb[0].mxu0 %v1157
        %v1565 = vpop.f32.mrb[0].mxu0
        %v1566 = vadd.f32 %v1373, %v1565
        %v1567 = vpop.f32.mrb[0].mxu0
        %v1568 = vpop.f32.mrb[0].mxu0
        %v1569 = vadd.f32 %v1373, %v1568
        %v1570 = vpop.f32.mrb[0].mxu0
        %1571 = vmatprep.mubr.bf16.mxu0 %v1288
        %1572 = vmatmul.mubr.bf16.gmra.mrb[0].mxu0 %v1160
        %v1573 = vpop.f32.mrb[0].mxu0
        %v1574 = vadd.f32 %v1373, %v1573
        %v1575 = vpop.f32.mrb[0].mxu0
        %v1576 = vpop.f32.mrb[0].mxu0
        %v1577 = vadd.f32 %v1373, %v1576
        %v1578 = vpop.f32.mrb[0].mxu0
        %1579 = vmatprep.mubr.bf16.mxu0 %v1291
        %1580 = vmatmul.mubr.bf16.gmra.mrb[0].mxu0 %v1163
        %v1581 = vpop.f32.mrb[0].mxu0
        %v1582 = vadd.f32 %v1373, %v1581
        %v1583 = vpop.f32.mrb[0].mxu0
        %v1584 = vpop.f32.mrb[0].mxu0
        %v1585 = vadd.f32 %v1373, %v1584
        %v1586 = vpop.f32.mrb[0].mxu0
        %1587 = vmatprep.mubr.bf16.mxu0 %v1294
        %1588 = vmatmul.mubr.bf16.gmra.mrb[0].mxu0 %v1166
        %v1589 = vpop.f32.mrb[0].mxu0
        %v1590 = vadd.f32 %v1373, %v1589
        %v1591 = vpop.f32.mrb[0].mxu0
        %v1592 = vpop.f32.mrb[0].mxu0
        %v1593 = vadd.f32 %v1373, %v1592
        %v1594 = vpop.f32.mrb[0].mxu0
        %1595 = vmatprep.mubr.bf16.mxu0 %v1297
        %1596 = vmatmul.mubr.bf16.gmra.mrb[0].mxu0 %v1169
        %v1597 = vpop.f32.mrb[0].mxu0
        %v1598 = vadd.f32 %v1373, %v1597
        %v1599 = vpop.f32.mrb[0].mxu0
        %v1600 = vpop.f32.mrb[0].mxu0
        %v1601 = vadd.f32 %v1373, %v1600
        %v1602 = vpop.f32.mrb[0].mxu0
        %1603 = vmatprep.mubr.bf16.mxu0 %v1300
        %1604 = vmatmul.mubr.bf16.gmra.mrb[0].mxu0 %v1172
        %v1605 = vpop.f32.mrb[0].mxu0
        %v1606 = vadd.f32 %v1373, %v1605
        %v1607 = vpop.f32.mrb[0].mxu0
        %v1608 = vpop.f32.mrb[0].mxu0
        %v1609 = vadd.f32 %v1373, %v1608
        %v1610 = vpop.f32.mrb[0].mxu0
        %1611 = vmatprep.mubr.bf16.mxu0 %v1303
        %1612 = vmatmul.mubr.bf16.gmra.mrb[0].mxu0 %v1175
        %v1613 = vpop.f32.mrb[0].mxu0
        %v1614 = vadd.f32 %v1373, %v1613
        %v1615 = vpop.f32.mrb[0].mxu0
        %v1616 = vpop.f32.mrb[0].mxu0
        %v1617 = vadd.f32 %v1373, %v1616
        %v1618 = vpop.f32.mrb[0].mxu0
        %1619 = vmatprep.mubr.bf16.mxu0 %v1306
        %1620 = vmatmul.mubr.bf16.gmra.mrb[0].mxu0 %v1178
        %v1621 = vpop.f32.mrb[0].mxu0
        %v1622 = vadd.f32 %v1373, %v1621
        %v1623 = vpop.f32.mrb[0].mxu0
        %v1624 = vpop.f32.mrb[0].mxu0
        %v1625 = vadd.f32 %v1373, %v1624
        %v1626 = vpop.f32.mrb[0].mxu0
        %1627 = vmatprep.mubr.bf16.mxu0 %v1309
        %1628 = vmatmul.mubr.bf16.gmra.mrb[0].mxu0 %v1181
        %v1629 = vpop.f32.mrb[0].mxu0
        %v1630 = vadd.f32 %v1373, %v1629
        %v1631 = vpop.f32.mrb[0].mxu0
        %v1632 = vpop.f32.mrb[0].mxu0
        %v1633 = vadd.f32 %v1373, %v1632
        %v1634 = vpop.f32.mrb[0].mxu0
        %1635 = vmatprep.mubr.bf16.mxu0 %v1312
        %1636 = vmatmul.mubr.bf16.gmra.mrb[0].mxu0 %v1184
        %v1637 = vpop.f32.mrb[0].mxu0
        %v1638 = vadd.f32 %v1373, %v1637
        %v1639 = vpop.f32.mrb[0].mxu0
        %v1640 = vpop.f32.mrb[0].mxu0
        %v1641 = vadd.f32 %v1373, %v1640
        %v1642 = vpop.f32.mrb[0].mxu0
        %1643 = vmatprep.mubr.bf16.mxu0 %v1315
        %1644 = vmatmul.mubr.bf16.gmra.mrb[0].mxu0 %v1187
        %v1645 = vpop.f32.mrb[0].mxu0
        %v1646 = vadd.f32 %v1373, %v1645
        %v1647 = vpop.f32.mrb[0].mxu0
        %v1648 = vpop.f32.mrb[0].mxu0
        %v1649 = vadd.f32 %v1373, %v1648
        %v1650 = vpop.f32.mrb[0].mxu0
        %1651 = vmatprep.mubr.bf16.mxu0 %v1318
        %1652 = vmatmul.mubr.bf16.gmra.mrb[0].mxu0 %v1190
        %v1653 = vpop.f32.mrb[0].mxu0
        %v1654 = vadd.f32 %v1373, %v1653
        %v1655 = vpop.f32.mrb[0].mxu0
        %v1656 = vpop.f32.mrb[0].mxu0
        %v1657 = vadd.f32 %v1373, %v1656
        %v1658 = vpop.f32.mrb[0].mxu0
        %1659 = vmatprep.mubr.bf16.mxu0 %v1321
        %1660 = vmatmul.mubr.bf16.gmra.mrb[0].mxu0 %v1193
        %v1661 = vpop.f32.mrb[0].mxu0
        %v1662 = vadd.f32 %v1373, %v1661
        %v1663 = vpop.f32.mrb[0].mxu0
        %v1664 = vpop.f32.mrb[0].mxu0
        %v1665 = vadd.f32 %v1373, %v1664
        %v1666 = vpop.f32.mrb[0].mxu0
        %1667 = vmatprep.mubr.bf16.mxu0 %v1324
        %1668 = vmatmul.mubr.bf16.gmra.mrb[0].mxu0 %v1196
        %v1669 = vpop.f32.mrb[0].mxu0
        %v1670 = vadd.f32 %v1373, %v1669
        %v1671 = vpop.f32.mrb[0].mxu0
        %v1672 = vpop.f32.mrb[0].mxu0
        %v1673 = vadd.f32 %v1373, %v1672
        %v1674 = vpop.f32.mrb[0].mxu0
        %1675 = vmatprep.mubr.bf16.mxu0 %v1327
        %1676 = vmatmul.mubr.bf16.gmra.mrb[0].mxu0 %v1199
        %v1677 = vpop.f32.mrb[0].mxu0
        %v1678 = vadd.f32 %v1373, %v1677
        %v1679 = vpop.f32.mrb[0].mxu0
        %v1680 = vpop.f32.mrb[0].mxu0
        %v1681 = vadd.f32 %v1373, %v1680
        %v1682 = vpop.f32.mrb[0].mxu0
        %1683 = vmatprep.mubr.bf16.mxu0 %v1330
        %1684 = vmatmul.mubr.bf16.gmra.mrb[0].mxu0 %v1202
        %v1685 = vpop.f32.mrb[0].mxu0
        %v1686 = vadd.f32 %v1373, %v1685
        %v1687 = vpop.f32.mrb[0].mxu0
        %v1688 = vpop.f32.mrb[0].mxu0
        %v1689 = vadd.f32 %v1373, %v1688
        %v1690 = vpop.f32.mrb[0].mxu0
        %1691 = vdwg.mxu0
        %1692 = vmatprep.subr.bf16.mxu0 0
        %1693 = vmatpush1.bf16.msra.mxu0 %v1463
        %1694 = vmatprep.subr.bf16.mxu0 0
        %1695 = vmatpush1.bf16.msra.mxu0 %v1464
        %1696 = vmatprep.subr.bf16.mxu0 0
        %1697 = vmatpush1.bf16.msra.mxu0 0
        %1698 = vmatprep.subr.bf16.mxu0 0
        %1699 = vmatpush1.bf16.msra.mxu0 0
        %1700 = vmatprep.subr.bf16.mxu0 0
        %1701 = vmatpush1.bf16.msra.mxu0 0
        %1702 = vmatprep.subr.bf16.mxu0 0
        %1703 = vmatpush1.bf16.msra.mxu0 0
        %1704 = vmatprep.subr.bf16.mxu0 0
        %1705 = vmatpush1.bf16.msra.mxu0 0
        %1706 = vmatprep.subr.bf16.mxu0 0
        %1707 = vmatpush1.bf16.msra.mxu0 0
        %1708 = vmatprep.subr.bf16.mxu0 0
        %1709 = vmatpush1.bf16.msra.mxu0 0
        %1710 = vmatprep.subr.bf16.mxu0 0
        %1711 = vmatpush1.bf16.msra.mxu0 0
        %1712 = vmatprep.subr.bf16.mxu0 0
        %1713 = vmatpush1.bf16.msra.mxu0 0
        %1714 = vmatprep.subr.bf16.mxu0 0
        %1715 = vmatpush1.bf16.msra.mxu0 0
        %1716 = vmatprep.subr.bf16.mxu0 0
        %1717 = vmatpush1.bf16.msra.mxu0 0
        %1718 = vmatprep.subr.bf16.mxu0 0
        %1719 = vmatpush1.bf16.msra.mxu0 0
        %1720 = vmatprep.subr.bf16.mxu0 0
        %1721 = vmatpush1.bf16.msra.mxu0 0
        %1722 = vmatprep.subr.bf16.mxu0 0
        %1723 = vmatpush1.bf16.msra.mxu0 0
        %1724 = vmatprep.mubr.bf16.mxu0 0
        %1725 = vmatmul.mubr.bf16.gmra.mrb[0].mxu0 %v1484
        %v1726 = vpop.f32.mrb[0].mxu0
        %v1727 = vadd.f32 %v1566, %v1726
        %v1728 = vpop.f32.mrb[0].mxu0
        %v1729 = vpop.f32.mrb[0].mxu0
        %v1730 = vadd.f32 %v1569, %v1729
        %v1731 = vpop.f32.mrb[0].mxu0
        %1732 = vmatprep.mubr.bf16.mxu0 0
        %1733 = vmatmul.mubr.bf16.gmra.mrb[0].mxu0 %v1487
        %v1734 = vpop.f32.mrb[0].mxu0
        %v1735 = vadd.f32 %v1574, %v1734
        %v1736 = vpop.f32.mrb[0].mxu0
        %v1737 = vpop.f32.mrb[0].mxu0
        %v1738 = vadd.f32 %v1577, %v1737
        %v1739 = vpop.f32.mrb[0].mxu0
        %1740 = vmatprep.mubr.bf16.mxu0 0
        %1741 = vmatmul.mubr.bf16.gmra.mrb[0].mxu0 %v1490
        %v1742 = vpop.f32.mrb[0].mxu0
        %v1743 = vadd.f32 %v1582, %v1742
        %v1744 = vpop.f32.mrb[0].mxu0
        %v1745 = vpop.f32.mrb[0].mxu0
        %v1746 = vadd.f32 %v1585, %v1745
        %v1747 = vpop.f32.mrb[0].mxu0
        %1748 = vmatprep.mubr.bf16.mxu0 0
        %1749 = vmatmul.mubr.bf16.gmra.mrb[0].mxu0 %v1493
        %v1750 = vpop.f32.mrb[0].mxu0
        %v1751 = vadd.f32 %v1590, %v1750
        %v1752 = vpop.f32.mrb[0].mxu0
        %v1753 = vpop.f32.mrb[0].mxu0
        %v1754 = vadd.f32 %v1593, %v1753
        %v1755 = vpop.f32.mrb[0].mxu0
        %1756 = vmatprep.mubr.bf16.mxu0 0
        %1757 = vmatmul.mubr.bf16.gmra.mrb[0].mxu0 %v1496
        %v1758 = vpop.f32.mrb[0].mxu0
        %v1759 = vadd.f32 %v1598, %v1758
        %v1760 = vpop.f32.mrb[0].mxu0
        %v1761 = vpop.f32.mrb[0].mxu0
        %v1762 = vadd.f32 %v1601, %v1761
        %v1763 = vpop.f32.mrb[0].mxu0
        %1764 = vmatprep.mubr.bf16.mxu0 0
        %1765 = vmatmul.mubr.bf16.gmra.mrb[0].mxu0 %v1499
        %v1766 = vpop.f32.mrb[0].mxu0
        %v1767 = vadd.f32 %v1606, %v1766
        %v1768 = vpop.f32.mrb[0].mxu0
        %v1769 = vpop.f32.mrb[0].mxu0
        %v1770 = vadd.f32 %v1609, %v1769
        %v1771 = vpop.f32.mrb[0].mxu0
        %1772 = vmatprep.mubr.bf16.mxu0 0
        %1773 = vmatmul.mubr.bf16.gmra.mrb[0].mxu0 %v1502
        %v1774 = vpop.f32.mrb[0].mxu0
        %v1775 = vadd.f32 %v1614, %v1774
        %v1776 = vpop.f32.mrb[0].mxu0
        %v1777 = vpop.f32.mrb[0].mxu0
        %v1778 = vadd.f32 %v1617, %v1777
        %v1779 = vpop.f32.mrb[0].mxu0
        %1780 = vmatprep.mubr.bf16.mxu0 0
        %1781 = vmatmul.mubr.bf16.gmra.mrb[0].mxu0 %v1505
        %v1782 = vpop.f32.mrb[0].mxu0
        %v1783 = vadd.f32 %v1622, %v1782
        %v1784 = vpop.f32.mrb[0].mxu0
        %v1785 = vpop.f32.mrb[0].mxu0
        %v1786 = vadd.f32 %v1625, %v1785
        %v1787 = vpop.f32.mrb[0].mxu0
        %1788 = vmatprep.mubr.bf16.mxu0 0
        %1789 = vmatmul.mubr.bf16.gmra.mrb[0].mxu0 %v1508
        %v1790 = vpop.f32.mrb[0].mxu0
        %v1791 = vadd.f32 %v1630, %v1790
        %v1792 = vpop.f32.mrb[0].mxu0
        %v1793 = vpop.f32.mrb[0].mxu0
        %v1794 = vadd.f32 %v1633, %v1793
        %v1795 = vpop.f32.mrb[0].mxu0
        %1796 = vmatprep.mubr.bf16.mxu0 0
        %1797 = vmatmul.mubr.bf16.gmra.mrb[0].mxu0 %v1511
        %v1798 = vpop.f32.mrb[0].mxu0
        %v1799 = vadd.f32 %v1638, %v1798
        %v1800 = vpop.f32.mrb[0].mxu0
        %v1801 = vpop.f32.mrb[0].mxu0
        %v1802 = vadd.f32 %v1641, %v1801
        %v1803 = vpop.f32.mrb[0].mxu0
        %1804 = vmatprep.mubr.bf16.mxu0 0
        %1805 = vmatmul.mubr.bf16.gmra.mrb[0].mxu0 %v1514
        %v1806 = vpop.f32.mrb[0].mxu0
        %v1807 = vadd.f32 %v1646, %v1806
        %v1808 = vpop.f32.mrb[0].mxu0
        %v1809 = vpop.f32.mrb[0].mxu0
        %v1810 = vadd.f32 %v1649, %v1809
        %v1811 = vpop.f32.mrb[0].mxu0
        %1812 = vmatprep.mubr.bf16.mxu0 0
        %1813 = vmatmul.mubr.bf16.gmra.mrb[0].mxu0 %v1517
        %v1814 = vpop.f32.mrb[0].mxu0
        %v1815 = vadd.f32 %v1654, %v1814
        %v1816 = vpop.f32.mrb[0].mxu0
        %v1817 = vpop.f32.mrb[0].mxu0
        %v1818 = vadd.f32 %v1657, %v1817
        %v1819 = vpop.f32.mrb[0].mxu0
        %1820 = vmatprep.mubr.bf16.mxu0 0
        %1821 = vmatmul.mubr.bf16.gmra.mrb[0].mxu0 %v1520
        %v1822 = vpop.f32.mrb[0].mxu0
        %v1823 = vadd.f32 %v1662, %v1822
        %v1824 = vpop.f32.mrb[0].mxu0
        %v1825 = vpop.f32.mrb[0].mxu0
        %v1826 = vadd.f32 %v1665, %v1825
        %v1827 = vpop.f32.mrb[0].mxu0
        %1828 = vmatprep.mubr.bf16.mxu0 0
        %1829 = vmatmul.mubr.bf16.gmra.mrb[0].mxu0 %v1523
        %v1830 = vpop.f32.mrb[0].mxu0
        %v1831 = vadd.f32 %v1670, %v1830
        %v1832 = vpop.f32.mrb[0].mxu0
        %v1833 = vpop.f32.mrb[0].mxu0
        %v1834 = vadd.f32 %v1673, %v1833
        %v1835 = vpop.f32.mrb[0].mxu0
        %1836 = vmatprep.mubr.bf16.mxu0 0
        %1837 = vmatmul.mubr.bf16.gmra.mrb[0].mxu0 %v1526
        %v1838 = vpop.f32.mrb[0].mxu0
        %v1839 = vadd.f32 %v1678, %v1838
        %v1840 = vpop.f32.mrb[0].mxu0
        %v1841 = vpop.f32.mrb[0].mxu0
        %v1842 = vadd.f32 %v1681, %v1841
        %v1843 = vpop.f32.mrb[0].mxu0
        %1844 = vmatprep.mubr.bf16.mxu0 0
        %1845 = vmatmul.mubr.bf16.gmra.mrb[0].mxu0 %v1529
        %v1846 = vpop.f32.mrb[0].mxu0
        %v1847 = vadd.f32 %v1686, %v1846
        %v1848 = vpop.f32.mrb[0].mxu0
        %v1849 = vpop.f32.mrb[0].mxu0
        %v1850 = vadd.f32 %v1689, %v1849
        %v1851 = vpop.f32.mrb[0].mxu0
        %1852 = vdwg.mxu0
        %v1853 = vmax.f32 %v1727, 0.0
        %v1854 = vmax.f32 %v1730, 0.0
        %v1855 = vmax.f32 %v1735, 0.0
        %v1856 = vmax.f32 %v1738, 0.0
        %v1857 = vmax.f32 %v1743, 0.0
        %v1858 = vmax.f32 %v1746, 0.0
        %v1859 = vmax.f32 %v1751, 0.0
        %v1860 = vmax.f32 %v1754, 0.0
        %v1861 = vmax.f32 %v1759, 0.0
        %v1862 = vmax.f32 %v1762, 0.0
        %v1863 = vmax.f32 %v1767, 0.0
        %v1864 = vmax.f32 %v1770, 0.0
        %v1865 = vmax.f32 %v1775, 0.0
        %v1866 = vmax.f32 %v1778, 0.0
        %v1867 = vmax.f32 %v1783, 0.0
        %v1868 = vmax.f32 %v1786, 0.0
        %v1869 = vmax.f32 %v1791, 0.0
        %v1870 = vmax.f32 %v1794, 0.0
        %v1871 = vmax.f32 %v1799, 0.0
        %v1872 = vmax.f32 %v1802, 0.0
        %v1873 = vmax.f32 %v1807, 0.0
        %v1874 = vmax.f32 %v1810, 0.0
        %v1875 = vmax.f32 %v1815, 0.0
        %v1876 = vmax.f32 %v1818, 0.0
        %v1877 = vmax.f32 %v1823, 0.0
        %v1878 = vmax.f32 %v1826, 0.0
        %v1879 = vmax.f32 %v1831, 0.0
        %v1880 = vmax.f32 %v1834, 0.0
        %v1881 = vmax.f32 %v1839, 0.0
        %v1882 = vmax.f32 %v1842, 0.0
        %v1883 = vmax.f32 %v1847, 0.0
        %v1884 = vmax.f32 %v1850, 0.0
        %v1885 = vmax.f32 %v1853, %v1855
        %v1886 = vmax.f32 %v1854, %v1856
        %v1887 = vmax.f32 %v1857, %v1859
        %v1888 = vmax.f32 %v1858, %v1860
        %v1889 = vmax.f32 %v1861, %v1863
        %v1890 = vmax.f32 %v1862, %v1864
        %v1891 = vmax.f32 %v1865, %v1867
        %v1892 = vmax.f32 %v1866, %v1868
        %v1893 = vmax.f32 %v1869, %v1871
        %v1894 = vmax.f32 %v1870, %v1872
        %v1895 = vmax.f32 %v1873, %v1875
        %v1896 = vmax.f32 %v1874, %v1876
        %v1897 = vmax.f32 %v1877, %v1879
        %v1898 = vmax.f32 %v1878, %v1880
        %v1899 = vmax.f32 %v1881, %v1883
        %v1900 = vmax.f32 %v1882, %v1884
        %1901 = vst.msk [vmem:[#allocation2] sm:$0xff] %vm1122, %v1885
        %1902 = vst.msk [vmem:[#allocation2 + $0x8] sm:$0xff] %vm1122, %v1886
        %1903 = vst.msk [vmem:[#allocation2 + $0x10] sm:$0xff] %vm1122, %v1887
        %1904 = vst.msk [vmem:[#allocation2 + $0x18] sm:$0xff] %vm1122, %v1888
        %1905 = vst.msk [vmem:[#allocation2 + $0x20] sm:$0xff] %vm1122, %v1889
        %1906 = vst.msk [vmem:[#allocation2 + $0x28] sm:$0xff] %vm1122, %v1890
        %1907 = vst.msk [vmem:[#allocation2 + $0x30] sm:$0xff] %vm1122, %v1891
        %1908 = vst.msk [vmem:[#allocation2 + $0x38] sm:$0xff] %vm1122, %v1892
        %1909 = vst.msk [vmem:[#allocation2 + $0x40] sm:$0xff] %vm1122, %v1893
        %1910 = vst.msk [vmem:[#allocation2 + $0x48] sm:$0xff] %vm1122, %v1894
        %1911 = vst.msk [vmem:[#allocation2 + $0x50] sm:$0xff] %vm1122, %v1895
        %1912 = vst.msk [vmem:[#allocation2 + $0x58] sm:$0xff] %vm1122, %v1896
        %1913 = vst.msk [vmem:[#allocation2 + $0x60] sm:$0xff] %vm1122, %v1897
        %1914 = vst.msk [vmem:[#allocation2 + $0x68] sm:$0xff] %vm1122, %v1898
        %1915 = vst.msk [vmem:[#allocation2 + $0x70] sm:$0xff] %vm1122, %v1899
        %1916 = vst.msk [vmem:[#allocation2 + $0x78] sm:$0xff] %vm1122, %v1900
        %v1917 = vld [vmem:[#allocation2] ss:$2 sm:$0xff]
        %s1918 = scalar_lea.vmem [#allocation2], 16
        %v1919 = vld [vmem:[%s1918] ss:$2 sm:$0xff]
        %s1920 = scalar_lea.vmem [#allocation2], 32
        %v1921 = vld [vmem:[%s1920] ss:$2 sm:$0xff]
        %s1922 = scalar_lea.vmem [#allocation2], 48
        %v1923 = vld [vmem:[%s1922] ss:$2 sm:$0xff]
        %s1924 = scalar_lea.vmem [#allocation2], 64
        %v1925 = vld [vmem:[%s1924] ss:$2 sm:$0xff]
        %s1926 = scalar_lea.vmem [#allocation2], 80
        %v1927 = vld [vmem:[%s1926] ss:$2 sm:$0xff]
        %s1928 = scalar_lea.vmem [#allocation2], 96
        %v1929 = vld [vmem:[%s1928] ss:$2 sm:$0xff]
        %s1930 = scalar_lea.vmem [#allocation2], 112
        %v1931 = vld [vmem:[%s1930] ss:$2 sm:$0xff]
        %s1932 = scalar_lea.vmem [#allocation2], 1
        %v1933 = vld [vmem:[%s1932] ss:$2 sm:$0xff]
        %s1934 = scalar_lea.vmem [#allocation2], 17
        %v1935 = vld [vmem:[%s1934] ss:$2 sm:$0xff]
        %s1936 = scalar_lea.vmem [#allocation2], 33
        %v1937 = vld [vmem:[%s1936] ss:$2 sm:$0xff]
        %s1938 = scalar_lea.vmem [#allocation2], 49
        %v1939 = vld [vmem:[%s1938] ss:$2 sm:$0xff]
        %s1940 = scalar_lea.vmem [#allocation2], 65
        %v1941 = vld [vmem:[%s1940] ss:$2 sm:$0xff]
        %s1942 = scalar_lea.vmem [#allocation2], 81
        %v1943 = vld [vmem:[%s1942] ss:$2 sm:$0xff]
        %s1944 = scalar_lea.vmem [#allocation2], 97
        %v1945 = vld [vmem:[%s1944] ss:$2 sm:$0xff]
        %s1946 = scalar_lea.vmem [#allocation2], 113
        %v1947 = vld [vmem:[%s1946] ss:$2 sm:$0xff]
        %v1948 = vmax.f32 %v1917, %v1933
        %v1949 = vmax.f32 %v1919, %v1935
        %v1950 = vmax.f32 %v1921, %v1937
        %v1951 = vmax.f32 %v1923, %v1939
        %v1952 = vmax.f32 %v1925, %v1941
        %v1953 = vmax.f32 %v1927, %v1943
        %v1954 = vmax.f32 %v1929, %v1945
        %v1955 = vmax.f32 %v1931, %v1947
        %v1956 = vpack.c.bf16 %v1948, %v1948
        %v1957 = vpack.c.bf16 %v1949, %v1949
        %v1958 = vpack.c.bf16 %v1950, %v1950
        %v1959 = vpack.c.bf16 %v1951, %v1951
        %v1960 = vpack.c.bf16 %v1952, %v1952
        %v1961 = vpack.c.bf16 %v1953, %v1953
        %v1962 = vpack.c.bf16 %v1954, %v1954
        %v1963 = vpack.c.bf16 %v1955, %v1955
        %vm1964 = vcmask 519168
        %1965 = vst.msk [vmem:[%s205] sm:$0xf] %vm1964, %v1956
        %1966 = vst.msk [vmem:[%s205 + $0x4] sm:$0xf] %vm1964, %v1957
        %1967 = vst.msk [vmem:[%s205 + $0x8] sm:$0xf] %vm1964, %v1958
        %1968 = vst.msk [vmem:[%s205 + $0xc] sm:$0xf] %vm1964, %v1959
        %1969 = vst.msk [vmem:[%s205 + $0x10] sm:$0xf] %vm1964, %v1960
        %1970 = vst.msk [vmem:[%s205 + $0x14] sm:$0xf] %vm1964, %v1961
        %1971 = vst.msk [vmem:[%s205 + $0x18] sm:$0xf] %vm1964, %v1962
        %1972 = vst.msk [vmem:[%s205 + $0x1c] sm:$0xf] %vm1964, %v1963
        %s1973 = smul.u32 8, %s20
        %p1974 = scmp.lt.s32.totalorder %s19, 1
        %s1975 = scalar_select %p1974, %s19, 1
        %p1976 = scmp.lt.s32.totalorder %s1973, 7
        %s1977 = scalar_select %p1976, %s1973, 7
        %s1978 = smul.addr %s1975, 8
        %s1979 = sadd.s32 %s1977, %s1978
        %s1980 = smul.addr %s1979, 4
        %s1981 = scalar_lea.vmem %s3, %s1980
        // Predicated region
        $region37: #{cnn_image_encoder_forward.5} parent=31 // pred_check
          %p1982 = pneg %p115
        $region38: #{cnn_image_encoder_forward.5} parent=31 // pred_check_branch
          %1984 = sbr.rel (%p1982) target = $region40
        $region39: #{cnn_image_encoder_forward.5} parent=31 // pred_region
          %s1985 = smul.u32 8, %s20
        $region40: #{cnn_image_encoder_forward.5} parent=31 // pred_fallthru
          _
      $region32: #{cnn_image_encoder_forward.5} parent=5 // pred_fallthru
        _
      %p1986 = scmp.le.s32.totalorder 2, %s10
      // Predicated region
      $region41: #{cnn_image_encoder_forward.5} parent=5 // pred_check
        %p1987 = pneg %p1986
      $region42: #{cnn_image_encoder_forward.5} parent=5 // pred_check_branch
        %1989 = sbr.rel (%p1987) target = $region44
      $region43: #{cnn_image_encoder_forward.5} parent=5 // pred_region
        %s1990 = ssub.s32 %s10, 2
        // Predicated region
        $region45: #{cnn_image_encoder_forward.5} parent=43 // pred_check
          %p1991 = pneg %p121
        $region46: #{cnn_image_encoder_forward.5} parent=43 // pred_check_branch
          %1993 = sbr.rel (%p1991) target = $region48
        $region47: #{cnn_image_encoder_forward.5} parent=43 // pred_region
          %s1994 = smul.u32 8, %s22
          %p1995 = scmp.lt.s32.totalorder %s21, 1
          %s1996 = scalar_select %p1995, %s21, 1
          %p1997 = scmp.lt.s32.totalorder %s1994, 7
          %s1998 = scalar_select %p1997, %s1994, 7
          %s1999 = smul.addr %s1996, 8
          %s2000 = sadd.s32 %s1998, %s1999
          %s2001 = smul.addr %s2000, 4
          %s2002 = scalar_lea.vmem %s3, %s2001
        $region48: #{cnn_image_encoder_forward.5} parent=43 // pred_fallthru
          _
      $region44: #{cnn_image_encoder_forward.5} parent=5 // pred_fallthru
        _
    $region6: #{cnn_image_encoder_forward.5} parent=1 // loop_footer
      %s14 = sadd.s32 1, %s10
    $region7: #{cnn_image_encoder_forward.5} parent=1 // loop_footer_branch
      %9 = sbr.rel target = $region3
    $region8: #{cnn_image_encoder_forward.5} parent=1 // loop_exit
      _
    %2003 = vsyncpa [#allocation4], 1
    %s2004 = scalar_lea.sflag [#allocation4], 1
    %2005 = vsyncpa %s2004, 1

// kernel: cnn_image_encoder_forward.4
$region0: #{cnn_image_encoder_forward.4}
  #allocation0 [shape = 'u32[]', space=smem, size = 0x4, offset = 0x4, fixed_abs, tag = 'smem constant byte address 0x4 - core index']
  #allocation1 [shape = 'u32[144,128]{1,0:T(1,128)}', space=vmem, size = 0x12000, scoped, tag = 'internal scratch']
  #allocation2 [shape = 'f32[256,32]{1,0:T(8,128)}', space=vmem, size = 0x20000, scoped, tag = 'scratch operand']
  %s0 = inlined_call_operand.vmem [shape: bf16[2,32,32,3], index: 0, kind: input, shape index: {}]
  %s1 = inlined_call_operand.hbm [shape: bf16[27,32], index: 1, kind: input, shape index: {}]
  %s2 = inlined_call_operand.hbm [shape: f32[1,32], index: 2, kind: input, shape index: {}]
  %s3 = inlined_call_operand.vmem [shape: bf16[2,16,16,32], index: 3, kind: output, shape index: {}]
  %s4 = sld [smem:[#allocation0]]
  $region53: #{cnn_image_encoder_forward.4} parent=0
    _
  %s6 = ssub.s32 1, %s4
  %s7 = scalar_select 0, %s6, %s4
  $region1: #{cnn_image_encoder_forward.4} parent=0
    #allocation3 [shape = 'u8[8192]{0}', space=vmem, size = 0x2000, scoped, tag = 'input window, operand 1, single buffered']
    #allocation4 [shape = 's32[2]{0}', space=sflag, size = 0x8, scoped, tag = 'scoped memory for cnn_image_encoder_forward.4']
    #allocation5 [shape = 'u8[512]{0}', space=vmem, size = 0x400, scoped, tag = 'input window, operand 2, single buffered']
    #allocation6 [shape = 's32[1]{0}', space=sflag, size = 0x4, scoped, tag = 'scoped memory for cnn_image_encoder_forward.4']
    %8 = vsyncpa [#allocation4], 0
    %9 = vsyncpa [#allocation6], 0
    loop: start=0, step=1, limit=6
    $region2: #{cnn_image_encoder_forward.4} parent=1 // loop_pre_header
      _
    $region3: #{cnn_image_encoder_forward.4} parent=1 // loop_header
      %s11 = sphi 0, %s15
      %p12 = scmp.ge.s32.totalorder %s11, 6
      %s18 = sphi 0, %s30
      %s19 = sphi 0, %s26
      %s20 = sphi 0, %s18
      %s21 = sphi 0, %s19
      %s22 = sphi 0, %s20
      %s23 = sphi 0, %s21
      %s33 = sphi 0, %s35
      %s36 = sphi 0, %s33
      %s37 = sphi 0, %s36
      %s53 = sphi 0, %s37
      %s57 = sphi 0, %s57
      %s59 = sphi 0, %s57
      %s60 = sphi 0, %s59
      %s74 = sphi 0, %s60
      %s78 = sphi 0, %s78
      %s80 = sphi 0, %s78
      %s81 = sphi 0, %s80
      %s95 = sphi 0, %s81
      %s103 = sphi 0, %s105
      %s106 = sphi 0, %s103
      %s107 = sphi 0, %s106
      %s123 = sphi 0, %s107
    $region4: #{cnn_image_encoder_forward.4} parent=1 // loop_header_branch
      %14 = sbr.rel (%p12) target = $region8
    $region5: #{cnn_image_encoder_forward.4} parent=1 // loop_body
      %s16 = ssub.s32 %s11, 1
      %s17 = ssub.s32 %s11, 2
      %s24 = sadd.s32 1, %s19
      %p25 = scmp.ge.s32.totalorder %s24, 2
      %s26 = scalar_select %p25, 0, %s24
      %s27 = sadd.s32 1, %s18
      %s28 = scalar_select %p25, %s27, %s18
      %p29 = scmp.ge.s32.totalorder %s28, 2
      %s30 = scalar_select %p29, 0, %s28
      %s31 = ssub.s32 %s18, %s30
      %p32 = scmp.eq.s32.totalorder %s31, 0
      %s34 = sadd.s32 %s33, 1
      %s35 = scalar_select %p32, %s33, %s34
      %p38 = pneg %p32
      %p39 = scmp.eq.s32.totalorder %s11, 3
      %p40 = por %p38, %p39
      %p41 = scmp.ne.s32.totalorder %s33, %s36
      %p42 = scmp.eq.s32.totalorder %s11, 0
      %p43 = por %p41, %p42
      %p44 = scmp.ne.s32.totalorder %s33, %s36
      %p45 = scmp.eq.s32.totalorder %s16, 3
      %p46 = por %p44, %p45
      %p47 = scmp.ne.s32.totalorder %s36, %s37
      %p48 = scmp.eq.s32.totalorder %s16, 0
      %p49 = por %p47, %p48
      %p50 = scmp.ne.s32.totalorder %s36, %s37
      %p51 = scmp.eq.s32.totalorder %s17, 3
      %p52 = por %p50, %p51
      %p54 = scmp.ne.s32.totalorder %s37, %s53
      %p55 = scmp.eq.s32.totalorder %s17, 0
      %p56 = por %p54, %p55
      %s58 = sadd.s32 %s57, 1
      %p61 = scmp.eq.s32.totalorder %s11, 3
      %p62 = scmp.ne.s32.totalorder %s57, %s59
      %p63 = scmp.eq.s32.totalorder %s11, 0
      %p64 = por %p62, %p63
      %p65 = scmp.ne.s32.totalorder %s57, %s59
      %p66 = scmp.eq.s32.totalorder %s16, 3
      %p67 = por %p65, %p66
      %p68 = scmp.ne.s32.totalorder %s59, %s60
      %p69 = scmp.eq.s32.totalorder %s16, 0
      %p70 = por %p68, %p69
      %p71 = scmp.ne.s32.totalorder %s59, %s60
      %p72 = scmp.eq.s32.totalorder %s17, 3
      %p73 = por %p71, %p72
      %p75 = scmp.ne.s32.totalorder %s60, %s74
      %p76 = scmp.eq.s32.totalorder %s17, 0
      %p77 = por %p75, %p76
      %s79 = sadd.s32 %s78, 1
      %p82 = scmp.eq.s32.totalorder %s11, 3
      %p83 = scmp.ne.s32.totalorder %s78, %s80
      %p84 = scmp.eq.s32.totalorder %s11, 0
      %p85 = por %p83, %p84
      %p86 = scmp.ne.s32.totalorder %s78, %s80
      %p87 = scmp.eq.s32.totalorder %s16, 3
      %p88 = por %p86, %p87
      %p89 = scmp.ne.s32.totalorder %s80, %s81
      %p90 = scmp.eq.s32.totalorder %s16, 0
      %p91 = por %p89, %p90
      %p92 = scmp.ne.s32.totalorder %s80, %s81
      %p93 = scmp.eq.s32.totalorder %s17, 3
      %p94 = por %p92, %p93
      %p96 = scmp.ne.s32.totalorder %s81, %s95
      %p97 = scmp.eq.s32.totalorder %s17, 0
      %p98 = por %p96, %p97
      %s99 = ssub.s32 %s18, %s30
      %s100 = ssub.s32 %s19, %s26
      %s101 = sor.u32 %s99, %s100
      %p102 = scmp.eq.s32.totalorder %s101, 0
      %s104 = sadd.s32 %s103, 1
      %s105 = scalar_select %p102, %s103, %s104
      %p108 = pneg %p102
      %p109 = scmp.eq.s32.totalorder %s11, 3
      %p110 = por %p108, %p109
      %p111 = scmp.ne.s32.totalorder %s103, %s106
      %p112 = scmp.eq.s32.totalorder %s11, 0
      %p113 = por %p111, %p112
      %p114 = scmp.ne.s32.totalorder %s103, %s106
      %p115 = scmp.eq.s32.totalorder %s16, 3
      %p116 = por %p114, %p115
      %p117 = scmp.ne.s32.totalorder %s106, %s107
      %p118 = scmp.eq.s32.totalorder %s16, 0
      %p119 = por %p117, %p118
      %p120 = scmp.ne.s32.totalorder %s106, %s107
      %p121 = scmp.eq.s32.totalorder %s17, 3
      %p122 = por %p120, %p121
      %p124 = scmp.ne.s32.totalorder %s107, %s123
      %p125 = scmp.eq.s32.totalorder %s17, 0
      %p126 = por %p124, %p125
      %p127 = scmp.le.s32.totalorder 1, %s11
      %p128 = scmp.lt.s32.totalorder %s11, 5
      %p129 = pnand %p127, %p128
      %p130 = pneg %p129
      // Predicated region
      $region9: #{cnn_image_encoder_forward.4} parent=5 // pred_check
        _
      $region10: #{cnn_image_encoder_forward.4} parent=5 // pred_check_branch
        %132 = sbr.rel (%p129) target = $region12
      $region11: #{cnn_image_encoder_forward.4} parent=5 // pred_region
        %s133 = ssub.s32 %s11, 1
        // Predicated region
        $region13: #{cnn_image_encoder_forward.4} parent=11 // pred_check
          %p134 = pneg %p70
        $region14: #{cnn_image_encoder_forward.4} parent=11 // pred_check_branch
          %136 = sbr.rel (%p134) target = $region16
        $region15: #{cnn_image_encoder_forward.4} parent=11 // pred_region
          %s138 = ssub.s32 256, 256
          %139 = vsyncadd [#allocation4], %s138
          %s140 = sshll.u32 [#allocation3], 4
          %s141 = int_to_ptr.vmem [resolvable:$true] %s140
          %146 = dma.hbm_to_vmem [thread:$0]  %s1, 256, %s141, [#allocation4], 64, 64, 4
        $region16: #{cnn_image_encoder_forward.4} parent=11 // pred_fallthru
          _
        // Predicated region
        $region17: #{cnn_image_encoder_forward.4} parent=11 // pred_check
          %p147 = pneg %p91
        $region18: #{cnn_image_encoder_forward.4} parent=11 // pred_check_branch
          %149 = sbr.rel (%p147) target = $region20
        $region19: #{cnn_image_encoder_forward.4} parent=11 // pred_region
          %s151 = ssub.s32 16, 16
          %152 = vsyncadd [#allocation6], %s151
          %s154 = sshll.u32 [#allocation5], 4
          %s155 = int_to_ptr.vmem [resolvable:$true] %s154
          %157 = dma.hbm_to_vmem [thread:$0]  %s2, 16, %s155, [#allocation6]
        $region20: #{cnn_image_encoder_forward.4} parent=11 // pred_fallthru
          _
      $region12: #{cnn_image_encoder_forward.4} parent=5 // pred_fallthru
        _
      %p158 = scmp.lt.s32.totalorder %s11, 4
      // Predicated region
      $region21: #{cnn_image_encoder_forward.4} parent=5 // pred_check
        %p159 = pneg %p158
      $region22: #{cnn_image_encoder_forward.4} parent=5 // pred_check_branch
        %161 = sbr.rel (%p159) target = $region24
      $region23: #{cnn_image_encoder_forward.4} parent=5 // pred_region
        // Predicated region
        $region25: #{cnn_image_encoder_forward.4} parent=23 // pred_check
          %p162 = pneg %p43
        $region26: #{cnn_image_encoder_forward.4} parent=23 // pred_check_branch
          %164 = sbr.rel (%p162) target = $region28
        $region27: #{cnn_image_encoder_forward.4} parent=23 // pred_region
          %p165 = scmp.lt.s32.totalorder %s18, 1
          %s166 = scalar_select %p165, %s18, 1
          %s167 = smul.addr %s166, 128
          %s168 = smul.addr %s167, 4
          %s169 = scalar_lea.vmem %s0, %s168
        $region28: #{cnn_image_encoder_forward.4} parent=23 // pred_fallthru
          _
      $region24: #{cnn_image_encoder_forward.4} parent=5 // pred_fallthru
        _
      %p170 = scmp.le.s32.totalorder 1, %s11
      %p171 = scmp.lt.s32.totalorder %s11, 5
      %p172 = pnand %p170, %p171
      %p173 = pneg %p172
      // Predicated region
      $region29: #{cnn_image_encoder_forward.4} parent=5 // pred_check
        _
      $region30: #{cnn_image_encoder_forward.4} parent=5 // pred_check_branch
        %175 = sbr.rel (%p172) target = $region32
      $region31: #{cnn_image_encoder_forward.4} parent=5 // pred_region
        %s176 = ssub.s32 %s11, 1
        // Predicated region
        $region33: #{cnn_image_encoder_forward.4} parent=31 // pred_check
          %p177 = pneg %p70
        $region34: #{cnn_image_encoder_forward.4} parent=31 // pred_check_branch
          %179 = sbr.rel (%p177) target = $region36
        $region35: #{cnn_image_encoder_forward.4} parent=31 // pred_region
          %180 = dma.done [#allocation4], 256
        $region36: #{cnn_image_encoder_forward.4} parent=31 // pred_fallthru
          _
        // Predicated region
        $region37: #{cnn_image_encoder_forward.4} parent=31 // pred_check
          %p181 = pneg %p91
        $region38: #{cnn_image_encoder_forward.4} parent=31 // pred_check_branch
          %183 = sbr.rel (%p181) target = $region40
        $region39: #{cnn_image_encoder_forward.4} parent=31 // pred_region
          %184 = dma.done [#allocation6], 16
        $region40: #{cnn_image_encoder_forward.4} parent=31 // pred_fallthru
          _
        %p185 = scmp.lt.s32.totalorder %s20, 1
        %s186 = scalar_select %p185, %s20, 1
        %s187 = smul.addr %s186, 128
        %s188 = smul.addr %s187, 4
        %s189 = scalar_lea.vmem %s0, %s188
        %p190 = pneg %p49
        %p191 = pneg %p46
        %p192 = pneg %p70
        %p193 = pneg %p67
        %p194 = pneg %p91
        %p195 = pneg %p88
        %p196 = pneg %p119
        %p197 = pneg %p116
        %s198 = smul.u32 8, %s21
        %p199 = scmp.lt.s32.totalorder %s20, 1
        %s200 = scalar_select %p199, %s20, 1
        %p201 = scmp.lt.s32.totalorder %s198, 15
        %s202 = scalar_select %p201, %s198, 15
        %s203 = smul.addr %s202, 2
        %s204 = smul.addr %s200, 32
        %s205 = sadd.s32 %s203, %s204
        %s206 = smul.addr %s205, 4
        %s207 = scalar_lea.vmem %s3, %s206
        %p208 = scmp.lt.s32.totalorder %s20, 1
        %s209 = scalar_select %p208, %s20, 1
        %s210 = smul.addr %s209, 128
        %s211 = smul.addr %s210, 4
        %s212 = scalar_lea.vmem %s0, %s211
        %s213 = smul.u32 8, %s21
        %p214 = scmp.lt.s32.totalorder %s20, 1
        %s215 = scalar_select %p214, %s20, 1
        %p216 = scmp.lt.s32.totalorder %s213, 15
        %s217 = scalar_select %p216, %s213, 15
        %s218 = smul.addr %s217, 2
        %s219 = smul.addr %s215, 32
        %s220 = sadd.s32 %s218, %s219
        %s221 = smul.addr %s220, 4
        %s222 = scalar_lea.vmem %s3, %s221
        %s223 = smul.u32 8, %s21
        %s225 = smul.u32 %s21, 16
        %s226 = smul.u32 %s225, 4
        %s227 = smul.addr %s226, 4
        %s228 = scalar_lea.vmem %s212, %s227
        %v229 = vld [vmem:[%s228] sm:$0xf]
        %v230 = vld [vmem:[%s228 + $0x4] sm:$0xf]
        %v231 = vld [vmem:[%s228 + $0x8] sm:$0xf]
        %v232 = vld [vmem:[%s228 + $0xc] sm:$0xf]
        %v233 = vld [vmem:[%s228 + $0x10] sm:$0xf]
        %v234 = vld [vmem:[%s228 + $0x14] sm:$0xf]
        %v235 = vld [vmem:[%s228 + $0x18] sm:$0xf]
        %v236 = vld [vmem:[%s228 + $0x1c] sm:$0xf]
        %v237 = vld [vmem:[%s228 + $0x20] sm:$0xf]
        %v238 = vld [vmem:[%s228 + $0x24] sm:$0xf]
        %v239 = vld [vmem:[%s228 + $0x28] sm:$0xf]
        %v240 = vld [vmem:[%s228 + $0x2c] sm:$0xf]
        %v241 = vld [vmem:[%s228 + $0x30] sm:$0xf]
        %v242 = vld [vmem:[%s228 + $0x34] sm:$0xf]
        %v243 = vld [vmem:[%s228 + $0x38] sm:$0xf]
        %v244 = vld [vmem:[%s228 + $0x3c] sm:$0xf]
        %v245 = vld [vmem:[%s228 + $0x40] sm:$0xf]
        %v246 = vld [vmem:[%s228 + $0x44] sm:$0xf]
        %v247 = vld [vmem:[%s228 + $0x48] sm:$0xf]
        %v248 = vld [vmem:[%s228 + $0x4c] sm:$0xf]
        %v249 = vld [vmem:[%s228 + $0x50] sm:$0xf]
        %v250 = vld [vmem:[%s228 + $0x54] sm:$0xf]
        %v251 = vld [vmem:[%s228 + $0x58] sm:$0xf]
        %v252 = vld [vmem:[%s228 + $0x5c] sm:$0xf]
        %v253 = vld [vmem:[%s228 + $0x60] sm:$0xf]
        %v254 = vld [vmem:[%s228 + $0x64] sm:$0xf]
        %v255 = vld [vmem:[%s228 + $0x68] sm:$0xf]
        %v256 = vld [vmem:[%s228 + $0x6c] sm:$0xf]
        %v257 = vld [vmem:[%s228 + $0x70] sm:$0xf]
        %v258 = vld [vmem:[%s228 + $0x74] sm:$0xf]
        %v259 = vld [vmem:[%s228 + $0x78] sm:$0xf]
        %v260 = vld [vmem:[%s228 + $0x7c] sm:$0xf]
        %v261 = vld [vmem:[%s228 + $0x80] sm:$0xf]
        %v262 = vld [vmem:[%s228 + $0x84] sm:$0xf]
        %v263 = vld [vmem:[%s228 + $0x88] sm:$0xf]
        %v264 = vld [vmem:[%s228 + $0x8c] sm:$0xf]
        %v265 = vld [vmem:[%s228 + $0x90] sm:$0xf]
        %v266 = vld [vmem:[%s228 + $0x94] sm:$0xf]
        %v267 = vld [vmem:[%s228 + $0x98] sm:$0xf]
        %v268 = vld [vmem:[%s228 + $0x9c] sm:$0xf]
        %v269 = vld [vmem:[%s228 + $0xa0] sm:$0xf]
        %v270 = vld [vmem:[%s228 + $0xa4] sm:$0xf]
        %v271 = vld [vmem:[%s228 + $0xa8] sm:$0xf]
        %v272 = vld [vmem:[%s228 + $0xac] sm:$0xf]
        %v273 = vld [vmem:[%s228 + $0xb0] sm:$0xf]
        %v274 = vld [vmem:[%s228 + $0xb4] sm:$0xf]
        %v275 = vld [vmem:[%s228 + $0xb8] sm:$0xf]
        %v276 = vld [vmem:[%s228 + $0xbc] sm:$0xf]
        %v277 = vld [vmem:[%s228 + $0xc0] sm:$0xf]
        %v278 = vld [vmem:[%s228 + $0xc4] sm:$0xf]
        %v279 = vld [vmem:[%s228 + $0xc8] sm:$0xf]
        %v280 = vld [vmem:[%s228 + $0xcc] sm:$0xf]
        %v281 = vld [vmem:[%s228 + $0xd0] sm:$0xf]
        %v282 = vld [vmem:[%s228 + $0xd4] sm:$0xf]
        %v283 = vld [vmem:[%s228 + $0xd8] sm:$0xf]
        %v284 = vld [vmem:[%s228 + $0xdc] sm:$0xf]
        %v285 = vld [vmem:[%s228 + $0xe0] sm:$0xf]
        %v286 = vld [vmem:[%s228 + $0xe4] sm:$0xf]
        %v287 = vld [vmem:[%s228 + $0xe8] sm:$0xf]
        %v288 = vld [vmem:[%s228 + $0xec] sm:$0xf]
        %v289 = vld [vmem:[%s228 + $0xf0] sm:$0xf]
        %v290 = vld [vmem:[%s228 + $0xf4] sm:$0xf]
        %v291 = vld [vmem:[%s228 + $0xf8] sm:$0xf]
        %v292 = vld [vmem:[%s228 + $0xfc] sm:$0xf]
        %s293 = ssub.s32 %s225, 1
        %p294 = scmp.gt.s32.totalorder %s293, 0
        %s295 = scalar_select %p294, %s293, 0
        %s296 = smul.u32 %s295, 4
        %s297 = smul.addr %s296, 4
        %s298 = scalar_lea.vmem %s212, %s297
        %v299 = vld [vmem:[%s298] sm:$0xf]
        %v300 = vld [vmem:[%s298 + $0x4] sm:$0xf]
        %v301 = vld [vmem:[%s298 + $0x8] sm:$0xf]
        %v302 = vld [vmem:[%s298 + $0xc] sm:$0xf]
        %p303 = scmp.gt.s32.totalorder %s21, 0
        %s304 = scalar_select %p303, 1, 0
        %s305 = scvt.s32.f32 %s304
        %p307 = scmp.ne.f32.partialorder %s305, %s305
        %s308 = sshrl.u32 %s305, 16
        %s309 = sand.u32 %s308, 1
        %s310 = sadd.s32 32767, %s309
        %s311 = sadd.s32 %s305, %s310
        %s312 = sand.u32 %s311, 4294901760
        %s313 = scalar_select %p307, 2143289344, %s312
        %s315 = sshrl.u32 %s313, 16
        %s316 = sshll.u32 %s315, 16
        %s317 = sor.u32 %s315, %s316
        %v318 = vstv %s317
        %v320 = vmul.bf16 %v299, %v318
        %v321 = vmul.bf16 %v300, %v318
        %v322 = vmul.bf16 %v301, %v318
        %v323 = vmul.bf16 %v302, %v318
        %s324 = sadd.s32 %s225, 16
        %p325 = scmp.lt.s32.totalorder %s324, 31
        %s326 = scalar_select %p325, %s324, 31
        %s327 = smul.u32 %s326, 4
        %s328 = smul.addr %s327, 4
        %s329 = scalar_lea.vmem %s212, %s328
        %v330 = vld [vmem:[%s329] sm:$0xf]
        %v331 = vld [vmem:[%s329 + $0x4] sm:$0xf]
        %v332 = vld [vmem:[%s329 + $0x8] sm:$0xf]
        %v333 = vld [vmem:[%s329 + $0xc] sm:$0xf]
        %p334 = scmp.lt.s32.totalorder %s21, 1
        %s335 = scalar_select %p334, 1, 0
        %s336 = scvt.s32.f32 %s335
        %p338 = scmp.ne.f32.partialorder %s336, %s336
        %s339 = sshrl.u32 %s336, 16
        %s340 = sand.u32 %s339, 1
        %s341 = sadd.s32 32767, %s340
        %s342 = sadd.s32 %s336, %s341
        %s343 = sand.u32 %s342, 4294901760
        %s344 = scalar_select %p338, 2143289344, %s343
        %s346 = sshrl.u32 %s344, 16
        %s347 = sshll.u32 %s346, 16
        %s348 = sor.u32 %s346, %s347
        %v349 = vstv %s348
        %v351 = vmul.bf16 %v330, %v349
        %v352 = vmul.bf16 %v331, %v349
        %v353 = vmul.bf16 %v332, %v349
        %v354 = vmul.bf16 %v333, %v349
        %v427 = vunpack.c.l.b16 %v320
        %v428 = vunpack.c.l.b16 %v321
        %v429 = vunpack.c.l.b16 %v322
        %v430 = vunpack.c.l.b16 %v323
        %v431 = vunpack.c.l.b16 %v229
        %v432 = vunpack.c.l.b16 %v230
        %v433 = vunpack.c.l.b16 %v231
        %v434 = vunpack.c.l.b16 %v232
        %v435 = vunpack.c.l.b16 %v233
        %v436 = vunpack.c.l.b16 %v234
        %v437 = vunpack.c.l.b16 %v235
        %v438 = vunpack.c.l.b16 %v236
        %v439 = vunpack.c.l.b16 %v237
        %v440 = vunpack.c.l.b16 %v238
        %v441 = vunpack.c.l.b16 %v239
        %v442 = vunpack.c.l.b16 %v240
        %v443 = vunpack.c.l.b16 %v241
        %v444 = vunpack.c.l.b16 %v242
        %v445 = vunpack.c.l.b16 %v243
        %v446 = vunpack.c.l.b16 %v244
        %v447 = vunpack.c.l.b16 %v245
        %v448 = vunpack.c.l.b16 %v246
        %v449 = vunpack.c.l.b16 %v247
        %v450 = vunpack.c.l.b16 %v248
        %v451 = vunpack.c.l.b16 %v249
        %v452 = vunpack.c.l.b16 %v250
        %v453 = vunpack.c.l.b16 %v251
        %v454 = vunpack.c.l.b16 %v252
        %v455 = vunpack.c.l.b16 %v253
        %v456 = vunpack.c.l.b16 %v254
        %v457 = vunpack.c.l.b16 %v255
        %v458 = vunpack.c.l.b16 %v256
        %v459 = vunpack.c.l.b16 %v257
        %v460 = vunpack.c.l.b16 %v258
        %v461 = vunpack.c.l.b16 %v259
        %v462 = vunpack.c.l.b16 %v260
        %v463 = vunpack.c.l.b16 %v261
        %v464 = vunpack.c.l.b16 %v262
        %v465 = vunpack.c.l.b16 %v263
        %v466 = vunpack.c.l.b16 %v264
        %v467 = vunpack.c.l.b16 %v265
        %v468 = vunpack.c.l.b16 %v266
        %v469 = vunpack.c.l.b16 %v267
        %v470 = vunpack.c.l.b16 %v268
        %v471 = vunpack.c.l.b16 %v269
        %v472 = vunpack.c.l.b16 %v270
        %v473 = vunpack.c.l.b16 %v271
        %v474 = vunpack.c.l.b16 %v272
        %v475 = vunpack.c.l.b16 %v273
        %v476 = vunpack.c.l.b16 %v274
        %v477 = vunpack.c.l.b16 %v275
        %v478 = vunpack.c.l.b16 %v276
        %v479 = vunpack.c.l.b16 %v277
        %v480 = vunpack.c.l.b16 %v278
        %v481 = vunpack.c.l.b16 %v279
        %v482 = vunpack.c.l.b16 %v280
        %v483 = vunpack.c.l.b16 %v281
        %v484 = vunpack.c.l.b16 %v282
        %v485 = vunpack.c.l.b16 %v283
        %v486 = vunpack.c.l.b16 %v284
        %v487 = vunpack.c.l.b16 %v285
        %v488 = vunpack.c.l.b16 %v286
        %v489 = vunpack.c.l.b16 %v287
        %v490 = vunpack.c.l.b16 %v288
        %v491 = vunpack.c.l.b16 %v289
        %v492 = vunpack.c.l.b16 %v290
        %v493 = vunpack.c.l.b16 %v291
        %v494 = vunpack.c.l.b16 %v292
        %v495 = vunpack.c.l.b16 %v351
        %v496 = vunpack.c.l.b16 %v352
        %v497 = vunpack.c.l.b16 %v353
        %v498 = vunpack.c.l.b16 %v354
        %v499 = vpack.c.b16 %v428, %v427
        %v500 = vpack.c.b16 %v430, %v429
        %v501 = vpack.c.b16 %v432, %v431
        %v502 = vpack.c.b16 %v434, %v433
        %v503 = vpack.c.b16 %v436, %v435
        %v504 = vpack.c.b16 %v438, %v437
        %v505 = vpack.c.b16 %v440, %v439
        %v506 = vpack.c.b16 %v442, %v441
        %v507 = vpack.c.b16 %v444, %v443
        %v508 = vpack.c.b16 %v446, %v445
        %v509 = vpack.c.b16 %v448, %v447
        %v510 = vpack.c.b16 %v450, %v449
        %v511 = vpack.c.b16 %v452, %v451
        %v512 = vpack.c.b16 %v454, %v453
        %v513 = vpack.c.b16 %v456, %v455
        %v514 = vpack.c.b16 %v458, %v457
        %v515 = vpack.c.b16 %v460, %v459
        %v516 = vpack.c.b16 %v462, %v461
        %v517 = vpack.c.b16 %v464, %v463
        %v518 = vpack.c.b16 %v466, %v465
        %v519 = vpack.c.b16 %v468, %v467
        %v520 = vpack.c.b16 %v470, %v469
        %v521 = vpack.c.b16 %v472, %v471
        %v522 = vpack.c.b16 %v474, %v473
        %v523 = vpack.c.b16 %v476, %v475
        %v524 = vpack.c.b16 %v478, %v477
        %v525 = vpack.c.b16 %v480, %v479
        %v526 = vpack.c.b16 %v482, %v481
        %v527 = vpack.c.b16 %v484, %v483
        %v528 = vpack.c.b16 %v486, %v485
        %v529 = vpack.c.b16 %v488, %v487
        %v530 = vpack.c.b16 %v490, %v489
        %v531 = vpack.c.b16 %v492, %v491
        %v532 = vpack.c.b16 %v494, %v493
        %v533 = vpack.c.b16 %v496, %v495
        %v534 = vpack.c.b16 %v498, %v497
        %vm535 = vsmask.f32 256
        %v537 = vshrl.u32 %v499, 16
        %v539 = vrot.slane %v537, 7
        %v540 = vshll.u32 %v499, 16
        %v542 = vor.u32 %v539, %v540
        %v544 = vshrl.u32 %v500, 16
        %v546 = vrot.slane %v544, 7
        %v547 = vshll.u32 %v500, 16
        %v549 = vor.u32 %v546, %v547
        %v550 = vsel %vm535, %v539, %v549
        %v552 = vshrl.u32 %v501, 16
        %v554 = vrot.slane %v552, 7
        %v555 = vshll.u32 %v501, 16
        %v557 = vor.u32 %v554, %v555
        %v559 = vshrl.u32 %v502, 16
        %v561 = vrot.slane %v559, 7
        %v562 = vshll.u32 %v502, 16
        %v564 = vor.u32 %v561, %v562
        %v565 = vsel %vm535, %v554, %v564
        %v567 = vshrl.u32 %v503, 16
        %v569 = vrot.slane %v567, 7
        %v570 = vshll.u32 %v503, 16
        %v572 = vor.u32 %v569, %v570
        %v574 = vshrl.u32 %v504, 16
        %v576 = vrot.slane %v574, 7
        %v577 = vshll.u32 %v504, 16
        %v579 = vor.u32 %v576, %v577
        %v580 = vsel %vm535, %v569, %v579
        %v582 = vshrl.u32 %v505, 16
        %v584 = vrot.slane %v582, 7
        %v585 = vshll.u32 %v505, 16
        %v587 = vor.u32 %v584, %v585
        %v589 = vshrl.u32 %v506, 16
        %v591 = vrot.slane %v589, 7
        %v592 = vshll.u32 %v506, 16
        %v594 = vor.u32 %v591, %v592
        %v595 = vsel %vm535, %v584, %v594
        %v597 = vshrl.u32 %v507, 16
        %v599 = vrot.slane %v597, 7
        %v600 = vshll.u32 %v507, 16
        %v602 = vor.u32 %v599, %v600
        %v604 = vshrl.u32 %v508, 16
        %v606 = vrot.slane %v604, 7
        %v607 = vshll.u32 %v508, 16
        %v609 = vor.u32 %v606, %v607
        %v610 = vsel %vm535, %v599, %v609
        %v612 = vshrl.u32 %v509, 16
        %v614 = vrot.slane %v612, 7
        %v615 = vshll.u32 %v509, 16
        %v617 = vor.u32 %v614, %v615
        %v619 = vshrl.u32 %v510, 16
        %v621 = vrot.slane %v619, 7
        %v622 = vshll.u32 %v510, 16
        %v624 = vor.u32 %v621, %v622
        %v625 = vsel %vm535, %v614, %v624
        %v627 = vshrl.u32 %v511, 16
        %v629 = vrot.slane %v627, 7
        %v630 = vshll.u32 %v511, 16
        %v632 = vor.u32 %v629, %v630
        %v634 = vshrl.u32 %v512, 16
        %v636 = vrot.slane %v634, 7
        %v637 = vshll.u32 %v512, 16
        %v639 = vor.u32 %v636, %v637
        %v640 = vsel %vm535, %v629, %v639
        %v642 = vshrl.u32 %v513, 16
        %v644 = vrot.slane %v642, 7
        %v645 = vshll.u32 %v513, 16
        %v647 = vor.u32 %v644, %v645
        %v649 = vshrl.u32 %v514, 16
        %v651 = vrot.slane %v649, 7
        %v652 = vshll.u32 %v514, 16
        %v654 = vor.u32 %v651, %v652
        %v655 = vsel %vm535, %v644, %v654
        %v657 = vshrl.u32 %v515, 16
        %v659 = vrot.slane %v657, 7
        %v660 = vshll.u32 %v515, 16
        %v662 = vor.u32 %v659, %v660
        %v664 = vshrl.u32 %v516, 16
        %v666 = vrot.slane %v664, 7
        %v667 = vshll.u32 %v516, 16
        %v669 = vor.u32 %v666, %v667
        %v670 = vsel %vm535, %v659, %v669
        %v672 = vshrl.u32 %v517, 16
        %v674 = vrot.slane %v672, 7
        %v675 = vshll.u32 %v517, 16
        %v677 = vor.u32 %v674, %v675
        %v679 = vshrl.u32 %v518, 16
        %v681 = vrot.slane %v679, 7
        %v682 = vshll.u32 %v518, 16
        %v684 = vor.u32 %v681, %v682
        %v685 = vsel %vm535, %v674, %v684
        %v687 = vshrl.u32 %v519, 16
        %v689 = vrot.slane %v687, 7
        %v690 = vshll.u32 %v519, 16
        %v692 = vor.u32 %v689, %v690
        %v694 = vshrl.u32 %v520, 16
        %v696 = vrot.slane %v694, 7
        %v697 = vshll.u32 %v520, 16
        %v699 = vor.u32 %v696, %v697
        %v700 = vsel %vm535, %v689, %v699
        %v702 = vshrl.u32 %v521, 16
        %v704 = vrot.slane %v702, 7
        %v705 = vshll.u32 %v521, 16
        %v707 = vor.u32 %v704, %v705
        %v709 = vshrl.u32 %v522, 16
        %v711 = vrot.slane %v709, 7
        %v712 = vshll.u32 %v522, 16
        %v714 = vor.u32 %v711, %v712
        %v715 = vsel %vm535, %v704, %v714
        %v717 = vshrl.u32 %v523, 16
        %v719 = vrot.slane %v717, 7
        %v720 = vshll.u32 %v523, 16
        %v722 = vor.u32 %v719, %v720
        %v724 = vshrl.u32 %v524, 16
        %v726 = vrot.slane %v724, 7
        %v727 = vshll.u32 %v524, 16
        %v729 = vor.u32 %v726, %v727
        %v730 = vsel %vm535, %v719, %v729
        %v732 = vshrl.u32 %v525, 16
        %v734 = vrot.slane %v732, 7
        %v735 = vshll.u32 %v525, 16
        %v737 = vor.u32 %v734, %v735
        %v739 = vshrl.u32 %v526, 16
        %v741 = vrot.slane %v739, 7
        %v742 = vshll.u32 %v526, 16
        %v744 = vor.u32 %v741, %v742
        %v745 = vsel %vm535, %v734, %v744
        %v747 = vshrl.u32 %v527, 16
        %v749 = vrot.slane %v747, 7
        %v750 = vshll.u32 %v527, 16
        %v752 = vor.u32 %v749, %v750
        %v754 = vshrl.u32 %v528, 16
        %v756 = vrot.slane %v754, 7
        %v757 = vshll.u32 %v528, 16
        %v759 = vor.u32 %v756, %v757
        %v760 = vsel %vm535, %v749, %v759
        %v762 = vshrl.u32 %v529, 16
        %v764 = vrot.slane %v762, 7
        %v765 = vshll.u32 %v529, 16
        %v767 = vor.u32 %v764, %v765
        %v769 = vshrl.u32 %v530, 16
        %v771 = vrot.slane %v769, 7
        %v772 = vshll.u32 %v530, 16
        %v774 = vor.u32 %v771, %v772
        %v775 = vsel %vm535, %v764, %v774
        %v777 = vshrl.u32 %v531, 16
        %v779 = vrot.slane %v777, 7
        %v780 = vshll.u32 %v531, 16
        %v782 = vor.u32 %v779, %v780
        %v784 = vshrl.u32 %v532, 16
        %v786 = vrot.slane %v784, 7
        %v787 = vshll.u32 %v532, 16
        %v789 = vor.u32 %v786, %v787
        %v790 = vsel %vm535, %v779, %v789
        %v792 = vshrl.u32 %v533, 16
        %v794 = vrot.slane %v792, 7
        %v795 = vshll.u32 %v533, 16
        %v797 = vor.u32 %v794, %v795
        %v799 = vshrl.u32 %v534, 16
        %v801 = vrot.slane %v799, 7
        %v802 = vshll.u32 %v534, 16
        %v804 = vor.u32 %v801, %v802
        %v805 = vsel %vm535, %v794, %v804
        %vm842 = vcmask 1040384
        %vm843 = vmand %vm842, %vm535
        %v844 = vsel %vm843, 0, %v542
        %v845 = vsel %vm843, 0, %v557
        %v846 = vsel %vm843, 0, %v572
        %v847 = vsel %vm843, 0, %v587
        %v848 = vsel %vm843, 0, %v602
        %v849 = vsel %vm843, 0, %v617
        %v850 = vsel %vm843, 0, %v632
        %v851 = vsel %vm843, 0, %v647
        %v852 = vsel %vm843, 0, %v662
        %v853 = vsel %vm843, 0, %v677
        %v854 = vsel %vm843, 0, %v692
        %v855 = vsel %vm843, 0, %v707
        %v856 = vsel %vm843, 0, %v722
        %v857 = vsel %vm843, 0, %v737
        %v858 = vsel %vm843, 0, %v752
        %v859 = vsel %vm843, 0, %v767
        %v860 = vsel %vm843, 0, %v782
        %v861 = vsel %vm843, 0, %v797
        %v862 = vsel %vm843, %v546, 0
        %v863 = vsel %vm843, %v561, 0
        %v864 = vsel %vm843, %v576, 0
        %v865 = vsel %vm843, %v591, 0
        %v866 = vsel %vm843, %v606, 0
        %v867 = vsel %vm843, %v621, 0
        %v868 = vsel %vm843, %v636, 0
        %v869 = vsel %vm843, %v651, 0
        %v870 = vsel %vm843, %v666, 0
        %v871 = vsel %vm843, %v681, 0
        %v872 = vsel %vm843, %v696, 0
        %v873 = vsel %vm843, %v711, 0
        %v874 = vsel %vm843, %v726, 0
        %v875 = vsel %vm843, %v741, 0
        %v876 = vsel %vm843, %v756, 0
        %v877 = vsel %vm843, %v771, 0
        %v878 = vsel %vm843, %v786, 0
        %v879 = vsel %vm843, %v801, 0
        %vm880 = vsmask.f32 7424
        %v882 = vshrl.u32 %v844, 16
        %v884 = vshll.u32 %v844, 16
        %v886 = vrot.slane %v884, 1
        %v887 = vor.u32 %v882, %v886
        %v889 = vshll.u32 %v550, 16
        %v891 = vrot.slane %v889, 1
        %v892 = vsel %vm880, %v887, %v891
        %v893 = vshrl.u32 %v550, 16
        %v895 = vor.u32 %v893, %v891
        %v897 = vshll.u32 %v862, 16
        %v899 = vrot.slane %v897, 1
        %v900 = vsel %vm880, %v895, %v899
        %v902 = vshrl.u32 %v845, 16
        %v904 = vshll.u32 %v845, 16
        %v906 = vrot.slane %v904, 1
        %v907 = vor.u32 %v902, %v906
        %v909 = vshll.u32 %v565, 16
        %v911 = vrot.slane %v909, 1
        %v912 = vsel %vm880, %v907, %v911
        %v913 = vshrl.u32 %v565, 16
        %v915 = vor.u32 %v913, %v911
        %v917 = vshll.u32 %v863, 16
        %v919 = vrot.slane %v917, 1
        %v920 = vsel %vm880, %v915, %v919
        %v922 = vshrl.u32 %v846, 16
        %v924 = vshll.u32 %v846, 16
        %v926 = vrot.slane %v924, 1
        %v927 = vor.u32 %v922, %v926
        %v929 = vshll.u32 %v580, 16
        %v931 = vrot.slane %v929, 1
        %v932 = vsel %vm880, %v927, %v931
        %v933 = vshrl.u32 %v580, 16
        %v935 = vor.u32 %v933, %v931
        %v937 = vshll.u32 %v864, 16
        %v939 = vrot.slane %v937, 1
        %v940 = vsel %vm880, %v935, %v939
        %v942 = vshrl.u32 %v847, 16
        %v944 = vshll.u32 %v847, 16
        %v946 = vrot.slane %v944, 1
        %v947 = vor.u32 %v942, %v946
        %v949 = vshll.u32 %v595, 16
        %v951 = vrot.slane %v949, 1
        %v952 = vsel %vm880, %v947, %v951
        %v953 = vshrl.u32 %v595, 16
        %v955 = vor.u32 %v953, %v951
        %v957 = vshll.u32 %v865, 16
        %v959 = vrot.slane %v957, 1
        %v960 = vsel %vm880, %v955, %v959
        %v962 = vshrl.u32 %v848, 16
        %v964 = vshll.u32 %v848, 16
        %v966 = vrot.slane %v964, 1
        %v967 = vor.u32 %v962, %v966
        %v969 = vshll.u32 %v610, 16
        %v971 = vrot.slane %v969, 1
        %v972 = vsel %vm880, %v967, %v971
        %v973 = vshrl.u32 %v610, 16
        %v975 = vor.u32 %v973, %v971
        %v977 = vshll.u32 %v866, 16
        %v979 = vrot.slane %v977, 1
        %v980 = vsel %vm880, %v975, %v979
        %v982 = vshrl.u32 %v849, 16
        %v984 = vshll.u32 %v849, 16
        %v986 = vrot.slane %v984, 1
        %v987 = vor.u32 %v982, %v986
        %v989 = vshll.u32 %v625, 16
        %v991 = vrot.slane %v989, 1
        %v992 = vsel %vm880, %v987, %v991
        %v993 = vshrl.u32 %v625, 16
        %v995 = vor.u32 %v993, %v991
        %v997 = vshll.u32 %v867, 16
        %v999 = vrot.slane %v997, 1
        %v1000 = vsel %vm880, %v995, %v999
        %v1002 = vshrl.u32 %v850, 16
        %v1004 = vshll.u32 %v850, 16
        %v1006 = vrot.slane %v1004, 1
        %v1007 = vor.u32 %v1002, %v1006
        %v1009 = vshll.u32 %v640, 16
        %v1011 = vrot.slane %v1009, 1
        %v1012 = vsel %vm880, %v1007, %v1011
        %v1013 = vshrl.u32 %v640, 16
        %v1015 = vor.u32 %v1013, %v1011
        %v1017 = vshll.u32 %v868, 16
        %v1019 = vrot.slane %v1017, 1
        %v1020 = vsel %vm880, %v1015, %v1019
        %v1022 = vshrl.u32 %v851, 16
        %v1024 = vshll.u32 %v851, 16
        %v1026 = vrot.slane %v1024, 1
        %v1027 = vor.u32 %v1022, %v1026
        %v1029 = vshll.u32 %v655, 16
        %v1031 = vrot.slane %v1029, 1
        %v1032 = vsel %vm880, %v1027, %v1031
        %v1033 = vshrl.u32 %v655, 16
        %v1035 = vor.u32 %v1033, %v1031
        %v1037 = vshll.u32 %v869, 16
        %v1039 = vrot.slane %v1037, 1
        %v1040 = vsel %vm880, %v1035, %v1039
        %v1042 = vshrl.u32 %v852, 16
        %v1044 = vshll.u32 %v852, 16
        %v1046 = vrot.slane %v1044, 1
        %v1047 = vor.u32 %v1042, %v1046
        %v1049 = vshll.u32 %v670, 16
        %v1051 = vrot.slane %v1049, 1
        %v1052 = vsel %vm880, %v1047, %v1051
        %v1053 = vshrl.u32 %v670, 16
        %v1055 = vor.u32 %v1053, %v1051
        %v1057 = vshll.u32 %v870, 16
        %v1059 = vrot.slane %v1057, 1
        %v1060 = vsel %vm880, %v1055, %v1059
        %v1062 = vshrl.u32 %v853, 16
        %v1064 = vshll.u32 %v853, 16
        %v1066 = vrot.slane %v1064, 1
        %v1067 = vor.u32 %v1062, %v1066
        %v1069 = vshll.u32 %v685, 16
        %v1071 = vrot.slane %v1069, 1
        %v1072 = vsel %vm880, %v1067, %v1071
        %v1073 = vshrl.u32 %v685, 16
        %v1075 = vor.u32 %v1073, %v1071
        %v1077 = vshll.u32 %v871, 16
        %v1079 = vrot.slane %v1077, 1
        %v1080 = vsel %vm880, %v1075, %v1079
        %v1082 = vshrl.u32 %v854, 16
        %v1084 = vshll.u32 %v854, 16
        %v1086 = vrot.slane %v1084, 1
        %v1087 = vor.u32 %v1082, %v1086
        %v1089 = vshll.u32 %v700, 16
        %v1091 = vrot.slane %v1089, 1
        %v1092 = vsel %vm880, %v1087, %v1091
        %v1093 = vshrl.u32 %v700, 16
        %v1095 = vor.u32 %v1093, %v1091
        %v1097 = vshll.u32 %v872, 16
        %v1099 = vrot.slane %v1097, 1
        %v1100 = vsel %vm880, %v1095, %v1099
        %v1102 = vshrl.u32 %v855, 16
        %v1104 = vshll.u32 %v855, 16
        %v1106 = vrot.slane %v1104, 1
        %v1107 = vor.u32 %v1102, %v1106
        %v1109 = vshll.u32 %v715, 16
        %v1111 = vrot.slane %v1109, 1
        %v1112 = vsel %vm880, %v1107, %v1111
        %v1113 = vshrl.u32 %v715, 16
        %v1115 = vor.u32 %v1113, %v1111
        %v1117 = vshll.u32 %v873, 16
        %v1119 = vrot.slane %v1117, 1
        %v1120 = vsel %vm880, %v1115, %v1119
        %v1122 = vshrl.u32 %v856, 16
        %v1124 = vshll.u32 %v856, 16
        %v1126 = vrot.slane %v1124, 1
        %v1127 = vor.u32 %v1122, %v1126
        %v1129 = vshll.u32 %v730, 16
        %v1131 = vrot.slane %v1129, 1
        %v1132 = vsel %vm880, %v1127, %v1131
        %v1133 = vshrl.u32 %v730, 16
        %v1135 = vor.u32 %v1133, %v1131
        %v1137 = vshll.u32 %v874, 16
        %v1139 = vrot.slane %v1137, 1
        %v1140 = vsel %vm880, %v1135, %v1139
        %v1142 = vshrl.u32 %v857, 16
        %v1144 = vshll.u32 %v857, 16
        %v1146 = vrot.slane %v1144, 1
        %v1147 = vor.u32 %v1142, %v1146
        %v1149 = vshll.u32 %v745, 16
        %v1151 = vrot.slane %v1149, 1
        %v1152 = vsel %vm880, %v1147, %v1151
        %v1153 = vshrl.u32 %v745, 16
        %v1155 = vor.u32 %v1153, %v1151
        %v1157 = vshll.u32 %v875, 16
        %v1159 = vrot.slane %v1157, 1
        %v1160 = vsel %vm880, %v1155, %v1159
        %v1162 = vshrl.u32 %v858, 16
        %v1164 = vshll.u32 %v858, 16
        %v1166 = vrot.slane %v1164, 1
        %v1167 = vor.u32 %v1162, %v1166
        %v1169 = vshll.u32 %v760, 16
        %v1171 = vrot.slane %v1169, 1
        %v1172 = vsel %vm880, %v1167, %v1171
        %v1173 = vshrl.u32 %v760, 16
        %v1175 = vor.u32 %v1173, %v1171
        %v1177 = vshll.u32 %v876, 16
        %v1179 = vrot.slane %v1177, 1
        %v1180 = vsel %vm880, %v1175, %v1179
        %v1182 = vshrl.u32 %v859, 16
        %v1184 = vshll.u32 %v859, 16
        %v1186 = vrot.slane %v1184, 1
        %v1187 = vor.u32 %v1182, %v1186
        %v1189 = vshll.u32 %v775, 16
        %v1191 = vrot.slane %v1189, 1
        %v1192 = vsel %vm880, %v1187, %v1191
        %v1193 = vshrl.u32 %v775, 16
        %v1195 = vor.u32 %v1193, %v1191
        %v1197 = vshll.u32 %v877, 16
        %v1199 = vrot.slane %v1197, 1
        %v1200 = vsel %vm880, %v1195, %v1199
        %1201 = vrot.lane.b32.xlu0 %v892, 3
        %v1202 = vpop.permute.xlu0 %1201
        %1203 = vrot.lane.b32.xlu0 %v900, 3
        %v1204 = vpop.permute.xlu0 %1203
        %1205 = vrot.lane.b32.xlu0 %v912, 3
        %v1206 = vpop.permute.xlu0 %1205
        %1207 = vrot.lane.b32.xlu0 %v920, 3
        %v1208 = vpop.permute.xlu0 %1207
        %1209 = vrot.lane.b32.xlu0 %v932, 3
        %v1210 = vpop.permute.xlu0 %1209
        %1211 = vrot.lane.b32.xlu0 %v940, 3
        %v1212 = vpop.permute.xlu0 %1211
        %1213 = vrot.lane.b32.xlu0 %v952, 3
        %v1214 = vpop.permute.xlu0 %1213
        %1215 = vrot.lane.b32.xlu0 %v960, 3
        %v1216 = vpop.permute.xlu0 %1215
        %1217 = vrot.lane.b32.xlu0 %v972, 3
        %v1218 = vpop.permute.xlu0 %1217
        %1219 = vrot.lane.b32.xlu0 %v980, 3
        %v1220 = vpop.permute.xlu0 %1219
        %1221 = vrot.lane.b32.xlu0 %v992, 3
        %v1222 = vpop.permute.xlu0 %1221
        %1223 = vrot.lane.b32.xlu0 %v1000, 3
        %v1224 = vpop.permute.xlu0 %1223
        %1225 = vrot.lane.b32.xlu0 %v1012, 3
        %v1226 = vpop.permute.xlu0 %1225
        %1227 = vrot.lane.b32.xlu0 %v1020, 3
        %v1228 = vpop.permute.xlu0 %1227
        %1229 = vrot.lane.b32.xlu0 %v1032, 3
        %v1230 = vpop.permute.xlu0 %1229
        %1231 = vrot.lane.b32.xlu0 %v1040, 3
        %v1232 = vpop.permute.xlu0 %1231
        %1233 = vrot.lane.b32.xlu0 %v1052, 3
        %v1234 = vpop.permute.xlu0 %1233
        %1235 = vrot.lane.b32.xlu0 %v1060, 3
        %v1236 = vpop.permute.xlu0 %1235
        %1237 = vrot.lane.b32.xlu0 %v1072, 3
        %v1238 = vpop.permute.xlu0 %1237
        %1239 = vrot.lane.b32.xlu0 %v1080, 3
        %v1240 = vpop.permute.xlu0 %1239
        %1241 = vrot.lane.b32.xlu0 %v1092, 3
        %v1242 = vpop.permute.xlu0 %1241
        %1243 = vrot.lane.b32.xlu0 %v1100, 3
        %v1244 = vpop.permute.xlu0 %1243
        %1245 = vrot.lane.b32.xlu0 %v1112, 3
        %v1246 = vpop.permute.xlu0 %1245
        %1247 = vrot.lane.b32.xlu0 %v1120, 3
        %v1248 = vpop.permute.xlu0 %1247
        %1249 = vrot.lane.b32.xlu0 %v1132, 3
        %v1250 = vpop.permute.xlu0 %1249
        %1251 = vrot.lane.b32.xlu0 %v1140, 3
        %v1252 = vpop.permute.xlu0 %1251
        %1253 = vrot.lane.b32.xlu0 %v1152, 3
        %v1254 = vpop.permute.xlu0 %1253
        %1255 = vrot.lane.b32.xlu0 %v1160, 3
        %v1256 = vpop.permute.xlu0 %1255
        %1257 = vrot.lane.b32.xlu0 %v1172, 3
        %v1258 = vpop.permute.xlu0 %1257
        %1259 = vrot.lane.b32.xlu0 %v1180, 3
        %v1260 = vpop.permute.xlu0 %1259
        %1261 = vrot.lane.b32.xlu0 %v1192, 3
        %v1262 = vpop.permute.xlu0 %1261
        %1263 = vrot.lane.b32.xlu0 %v1200, 3
        %v1264 = vpop.permute.xlu0 %1263
        %vm1297 = vcmask 1046528
        %v1298 = vrot.slane %v844, 1
        %v1299 = vrot.slane %v550, 1
        %v1300 = vsel %vm1297, %v1298, %v1299
        %v1301 = vrot.slane %v862, 1
        %v1302 = vsel %vm1297, %v1299, %v1301
        %v1303 = vrot.slane %v845, 1
        %v1304 = vrot.slane %v565, 1
        %v1305 = vsel %vm1297, %v1303, %v1304
        %v1306 = vrot.slane %v863, 1
        %v1307 = vsel %vm1297, %v1304, %v1306
        %v1308 = vrot.slane %v846, 1
        %v1309 = vrot.slane %v580, 1
        %v1310 = vsel %vm1297, %v1308, %v1309
        %v1311 = vrot.slane %v864, 1
        %v1312 = vsel %vm1297, %v1309, %v1311
        %v1313 = vrot.slane %v847, 1
        %v1314 = vrot.slane %v595, 1
        %v1315 = vsel %vm1297, %v1313, %v1314
        %v1316 = vrot.slane %v865, 1
        %v1317 = vsel %vm1297, %v1314, %v1316
        %v1318 = vrot.slane %v848, 1
        %v1319 = vrot.slane %v610, 1
        %v1320 = vsel %vm1297, %v1318, %v1319
        %v1321 = vrot.slane %v866, 1
        %v1322 = vsel %vm1297, %v1319, %v1321
        %v1323 = vrot.slane %v849, 1
        %v1324 = vrot.slane %v625, 1
        %v1325 = vsel %vm1297, %v1323, %v1324
        %v1326 = vrot.slane %v867, 1
        %v1327 = vsel %vm1297, %v1324, %v1326
        %v1328 = vrot.slane %v850, 1
        %v1329 = vrot.slane %v640, 1
        %v1330 = vsel %vm1297, %v1328, %v1329
        %v1331 = vrot.slane %v868, 1
        %v1332 = vsel %vm1297, %v1329, %v1331
        %v1333 = vrot.slane %v851, 1
        %v1334 = vrot.slane %v655, 1
        %v1335 = vsel %vm1297, %v1333, %v1334
        %v1336 = vrot.slane %v869, 1
        %v1337 = vsel %vm1297, %v1334, %v1336
        %v1338 = vrot.slane %v852, 1
        %v1339 = vrot.slane %v670, 1
        %v1340 = vsel %vm1297, %v1338, %v1339
        %v1341 = vrot.slane %v870, 1
        %v1342 = vsel %vm1297, %v1339, %v1341
        %v1343 = vrot.slane %v853, 1
        %v1344 = vrot.slane %v685, 1
        %v1345 = vsel %vm1297, %v1343, %v1344
        %v1346 = vrot.slane %v871, 1
        %v1347 = vsel %vm1297, %v1344, %v1346
        %v1348 = vrot.slane %v854, 1
        %v1349 = vrot.slane %v700, 1
        %v1350 = vsel %vm1297, %v1348, %v1349
        %v1351 = vrot.slane %v872, 1
        %v1352 = vsel %vm1297, %v1349, %v1351
        %v1353 = vrot.slane %v855, 1
        %v1354 = vrot.slane %v715, 1
        %v1355 = vsel %vm1297, %v1353, %v1354
        %v1356 = vrot.slane %v873, 1
        %v1357 = vsel %vm1297, %v1354, %v1356
        %v1358 = vrot.slane %v856, 1
        %v1359 = vrot.slane %v730, 1
        %v1360 = vsel %vm1297, %v1358, %v1359
        %v1361 = vrot.slane %v874, 1
        %v1362 = vsel %vm1297, %v1359, %v1361
        %v1363 = vrot.slane %v857, 1
        %v1364 = vrot.slane %v745, 1
        %v1365 = vsel %vm1297, %v1363, %v1364
        %v1366 = vrot.slane %v875, 1
        %v1367 = vsel %vm1297, %v1364, %v1366
        %v1368 = vrot.slane %v858, 1
        %v1369 = vrot.slane %v760, 1
        %v1370 = vsel %vm1297, %v1368, %v1369
        %v1371 = vrot.slane %v876, 1
        %v1372 = vsel %vm1297, %v1369, %v1371
        %v1373 = vrot.slane %v859, 1
        %v1374 = vrot.slane %v775, 1
        %v1375 = vsel %vm1297, %v1373, %v1374
        %v1376 = vrot.slane %v877, 1
        %v1377 = vsel %vm1297, %v1374, %v1376
        %1378 = vrot.lane.b32.xlu0 %v1300, 6
        %v1379 = vpop.permute.xlu0 %1378
        %1380 = vrot.lane.b32.xlu0 %v1302, 6
        %v1381 = vpop.permute.xlu0 %1380
        %1382 = vrot.lane.b32.xlu0 %v1305, 6
        %v1383 = vpop.permute.xlu0 %1382
        %1384 = vrot.lane.b32.xlu0 %v1307, 6
        %v1385 = vpop.permute.xlu0 %1384
        %1386 = vrot.lane.b32.xlu0 %v1310, 6
        %v1387 = vpop.permute.xlu0 %1386
        %1388 = vrot.lane.b32.xlu0 %v1312, 6
        %v1389 = vpop.permute.xlu0 %1388
        %1390 = vrot.lane.b32.xlu0 %v1315, 6
        %v1391 = vpop.permute.xlu0 %1390
        %1392 = vrot.lane.b32.xlu0 %v1317, 6
        %v1393 = vpop.permute.xlu0 %1392
        %1394 = vrot.lane.b32.xlu0 %v1320, 6
        %v1395 = vpop.permute.xlu0 %1394
        %1396 = vrot.lane.b32.xlu0 %v1322, 6
        %v1397 = vpop.permute.xlu0 %1396
        %1398 = vrot.lane.b32.xlu0 %v1325, 6
        %v1399 = vpop.permute.xlu0 %1398
        %1400 = vrot.lane.b32.xlu0 %v1327, 6
        %v1401 = vpop.permute.xlu0 %1400
        %1402 = vrot.lane.b32.xlu0 %v1330, 6
        %v1403 = vpop.permute.xlu0 %1402
        %1404 = vrot.lane.b32.xlu0 %v1332, 6
        %v1405 = vpop.permute.xlu0 %1404
        %1406 = vrot.lane.b32.xlu0 %v1335, 6
        %v1407 = vpop.permute.xlu0 %1406
        %1408 = vrot.lane.b32.xlu0 %v1337, 6
        %v1409 = vpop.permute.xlu0 %1408
        %1410 = vrot.lane.b32.xlu0 %v1340, 6
        %v1411 = vpop.permute.xlu0 %1410
        %1412 = vrot.lane.b32.xlu0 %v1342, 6
        %v1413 = vpop.permute.xlu0 %1412
        %1414 = vrot.lane.b32.xlu0 %v1345, 6
        %v1415 = vpop.permute.xlu0 %1414
        %1416 = vrot.lane.b32.xlu0 %v1347, 6
        %v1417 = vpop.permute.xlu0 %1416
        %1418 = vrot.lane.b32.xlu0 %v1350, 6
        %v1419 = vpop.permute.xlu0 %1418
        %1420 = vrot.lane.b32.xlu0 %v1352, 6
        %v1421 = vpop.permute.xlu0 %1420
        %1422 = vrot.lane.b32.xlu0 %v1355, 6
        %v1423 = vpop.permute.xlu0 %1422
        %1424 = vrot.lane.b32.xlu0 %v1357, 6
        %v1425 = vpop.permute.xlu0 %1424
        %1426 = vrot.lane.b32.xlu0 %v1360, 6
        %v1427 = vpop.permute.xlu0 %1426
        %1428 = vrot.lane.b32.xlu0 %v1362, 6
        %v1429 = vpop.permute.xlu0 %1428
        %1430 = vrot.lane.b32.xlu0 %v1365, 6
        %v1431 = vpop.permute.xlu0 %1430
        %1432 = vrot.lane.b32.xlu0 %v1367, 6
        %v1433 = vpop.permute.xlu0 %1432
        %1434 = vrot.lane.b32.xlu0 %v1370, 6
        %v1435 = vpop.permute.xlu0 %1434
        %1436 = vrot.lane.b32.xlu0 %v1372, 6
        %v1437 = vpop.permute.xlu0 %1436
        %1438 = vrot.lane.b32.xlu0 %v1375, 6
        %v1439 = vpop.permute.xlu0 %1438
        %1440 = vrot.lane.b32.xlu0 %v1377, 6
        %v1441 = vpop.permute.xlu0 %1440
        %1443 = vrot.lane.b32.xlu0 %v845, 9
        %v1444 = vpop.permute.xlu0 %1443
        %1445 = vrot.lane.b32.xlu0 %v565, 9
        %v1446 = vpop.permute.xlu0 %1445
        %1447 = vrot.lane.b32.xlu0 %v846, 9
        %v1448 = vpop.permute.xlu0 %1447
        %1449 = vrot.lane.b32.xlu0 %v580, 9
        %v1450 = vpop.permute.xlu0 %1449
        %1451 = vrot.lane.b32.xlu0 %v847, 9
        %v1452 = vpop.permute.xlu0 %1451
        %1453 = vrot.lane.b32.xlu0 %v595, 9
        %v1454 = vpop.permute.xlu0 %1453
        %1455 = vrot.lane.b32.xlu0 %v848, 9
        %v1456 = vpop.permute.xlu0 %1455
        %1457 = vrot.lane.b32.xlu0 %v610, 9
        %v1458 = vpop.permute.xlu0 %1457
        %1459 = vrot.lane.b32.xlu0 %v849, 9
        %v1460 = vpop.permute.xlu0 %1459
        %1461 = vrot.lane.b32.xlu0 %v625, 9
        %v1462 = vpop.permute.xlu0 %1461
        %1463 = vrot.lane.b32.xlu0 %v850, 9
        %v1464 = vpop.permute.xlu0 %1463
        %1465 = vrot.lane.b32.xlu0 %v640, 9
        %v1466 = vpop.permute.xlu0 %1465
        %1467 = vrot.lane.b32.xlu0 %v851, 9
        %v1468 = vpop.permute.xlu0 %1467
        %1469 = vrot.lane.b32.xlu0 %v655, 9
        %v1470 = vpop.permute.xlu0 %1469
        %1471 = vrot.lane.b32.xlu0 %v852, 9
        %v1472 = vpop.permute.xlu0 %1471
        %1473 = vrot.lane.b32.xlu0 %v670, 9
        %v1474 = vpop.permute.xlu0 %1473
        %1475 = vrot.lane.b32.xlu0 %v853, 9
        %v1476 = vpop.permute.xlu0 %1475
        %1477 = vrot.lane.b32.xlu0 %v685, 9
        %v1478 = vpop.permute.xlu0 %1477
        %1479 = vrot.lane.b32.xlu0 %v854, 9
        %v1480 = vpop.permute.xlu0 %1479
        %1481 = vrot.lane.b32.xlu0 %v700, 9
        %v1482 = vpop.permute.xlu0 %1481
        %1483 = vrot.lane.b32.xlu0 %v855, 9
        %v1484 = vpop.permute.xlu0 %1483
        %1485 = vrot.lane.b32.xlu0 %v715, 9
        %v1486 = vpop.permute.xlu0 %1485
        %1487 = vrot.lane.b32.xlu0 %v856, 9
        %v1488 = vpop.permute.xlu0 %1487
        %1489 = vrot.lane.b32.xlu0 %v730, 9
        %v1490 = vpop.permute.xlu0 %1489
        %1491 = vrot.lane.b32.xlu0 %v857, 9
        %v1492 = vpop.permute.xlu0 %1491
        %1493 = vrot.lane.b32.xlu0 %v745, 9
        %v1494 = vpop.permute.xlu0 %1493
        %1495 = vrot.lane.b32.xlu0 %v858, 9
        %v1496 = vpop.permute.xlu0 %1495
        %1497 = vrot.lane.b32.xlu0 %v760, 9
        %v1498 = vpop.permute.xlu0 %1497
        %1499 = vrot.lane.b32.xlu0 %v859, 9
        %v1500 = vpop.permute.xlu0 %1499
        %1501 = vrot.lane.b32.xlu0 %v775, 9
        %v1502 = vpop.permute.xlu0 %1501
        %1503 = vrot.lane.b32.xlu0 %v860, 9
        %v1504 = vpop.permute.xlu0 %1503
        %1505 = vrot.lane.b32.xlu0 %v790, 9
        %v1506 = vpop.permute.xlu0 %1505
        %v1508 = vshrl.u32 %v860, 16
        %v1510 = vshll.u32 %v860, 16
        %v1512 = vrot.slane %v1510, 1
        %v1513 = vor.u32 %v1508, %v1512
        %v1515 = vshll.u32 %v790, 16
        %v1517 = vrot.slane %v1515, 1
        %v1518 = vsel %vm880, %v1513, %v1517
        %v1519 = vshrl.u32 %v790, 16
        %v1521 = vor.u32 %v1519, %v1517
        %v1523 = vshll.u32 %v878, 16
        %v1525 = vrot.slane %v1523, 1
        %v1526 = vsel %vm880, %v1521, %v1525
        %1527 = vrot.lane.b32.xlu0 %v912, 12
        %v1528 = vpop.permute.xlu0 %1527
        %1529 = vrot.lane.b32.xlu0 %v920, 12
        %v1530 = vpop.permute.xlu0 %1529
        %1531 = vrot.lane.b32.xlu0 %v932, 12
        %v1532 = vpop.permute.xlu0 %1531
        %1533 = vrot.lane.b32.xlu0 %v940, 12
        %v1534 = vpop.permute.xlu0 %1533
        %1535 = vrot.lane.b32.xlu0 %v952, 12
        %v1536 = vpop.permute.xlu0 %1535
        %1537 = vrot.lane.b32.xlu0 %v960, 12
        %v1538 = vpop.permute.xlu0 %1537
        %1539 = vrot.lane.b32.xlu0 %v972, 12
        %v1540 = vpop.permute.xlu0 %1539
        %1541 = vrot.lane.b32.xlu0 %v980, 12
        %v1542 = vpop.permute.xlu0 %1541
        %1543 = vrot.lane.b32.xlu0 %v992, 12
        %v1544 = vpop.permute.xlu0 %1543
        %1545 = vrot.lane.b32.xlu0 %v1000, 12
        %v1546 = vpop.permute.xlu0 %1545
        %1547 = vrot.lane.b32.xlu0 %v1012, 12
        %v1548 = vpop.permute.xlu0 %1547
        %1549 = vrot.lane.b32.xlu0 %v1020, 12
        %v1550 = vpop.permute.xlu0 %1549
        %1551 = vrot.lane.b32.xlu0 %v1032, 12
        %v1552 = vpop.permute.xlu0 %1551
        %1553 = vrot.lane.b32.xlu0 %v1040, 12
        %v1554 = vpop.permute.xlu0 %1553
        %1555 = vrot.lane.b32.xlu0 %v1052, 12
        %v1556 = vpop.permute.xlu0 %1555
        %1557 = vrot.lane.b32.xlu0 %v1060, 12
        %v1558 = vpop.permute.xlu0 %1557
        %1559 = vrot.lane.b32.xlu0 %v1072, 12
        %v1560 = vpop.permute.xlu0 %1559
        %1561 = vrot.lane.b32.xlu0 %v1080, 12
        %v1562 = vpop.permute.xlu0 %1561
        %1563 = vrot.lane.b32.xlu0 %v1092, 12
        %v1564 = vpop.permute.xlu0 %1563
        %1565 = vrot.lane.b32.xlu0 %v1100, 12
        %v1566 = vpop.permute.xlu0 %1565
        %1567 = vrot.lane.b32.xlu0 %v1112, 12
        %v1568 = vpop.permute.xlu0 %1567
        %1569 = vrot.lane.b32.xlu0 %v1120, 12
        %v1570 = vpop.permute.xlu0 %1569
        %1571 = vrot.lane.b32.xlu0 %v1132, 12
        %v1572 = vpop.permute.xlu0 %1571
        %1573 = vrot.lane.b32.xlu0 %v1140, 12
        %v1574 = vpop.permute.xlu0 %1573
        %1575 = vrot.lane.b32.xlu0 %v1152, 12
        %v1576 = vpop.permute.xlu0 %1575
        %1577 = vrot.lane.b32.xlu0 %v1160, 12
        %v1578 = vpop.permute.xlu0 %1577
        %1579 = vrot.lane.b32.xlu0 %v1172, 12
        %v1580 = vpop.permute.xlu0 %1579
        %1581 = vrot.lane.b32.xlu0 %v1180, 12
        %v1582 = vpop.permute.xlu0 %1581
        %1583 = vrot.lane.b32.xlu0 %v1192, 12
        %v1584 = vpop.permute.xlu0 %1583
        %1585 = vrot.lane.b32.xlu0 %v1200, 12
        %v1586 = vpop.permute.xlu0 %1585
        %1587 = vrot.lane.b32.xlu0 %v1518, 12
        %v1588 = vpop.permute.xlu0 %1587
        %1589 = vrot.lane.b32.xlu0 %v1526, 12
        %v1590 = vpop.permute.xlu0 %1589
        %v1592 = vrot.slane %v860, 1
        %v1593 = vrot.slane %v790, 1
        %v1594 = vsel %vm1297, %v1592, %v1593
        %v1595 = vrot.slane %v878, 1
        %v1596 = vsel %vm1297, %v1593, %v1595
        %1597 = vrot.lane.b32.xlu0 %v1305, 15
        %v1598 = vpop.permute.xlu0 %1597
        %1599 = vrot.lane.b32.xlu0 %v1307, 15
        %v1600 = vpop.permute.xlu0 %1599
        %1601 = vrot.lane.b32.xlu0 %v1310, 15
        %v1602 = vpop.permute.xlu0 %1601
        %1603 = vrot.lane.b32.xlu0 %v1312, 15
        %v1604 = vpop.permute.xlu0 %1603
        %1605 = vrot.lane.b32.xlu0 %v1315, 15
        %v1606 = vpop.permute.xlu0 %1605
        %1607 = vrot.lane.b32.xlu0 %v1317, 15
        %v1608 = vpop.permute.xlu0 %1607
        %1609 = vrot.lane.b32.xlu0 %v1320, 15
        %v1610 = vpop.permute.xlu0 %1609
        %1611 = vrot.lane.b32.xlu0 %v1322, 15
        %v1612 = vpop.permute.xlu0 %1611
        %1613 = vrot.lane.b32.xlu0 %v1325, 15
        %v1614 = vpop.permute.xlu0 %1613
        %1615 = vrot.lane.b32.xlu0 %v1327, 15
        %v1616 = vpop.permute.xlu0 %1615
        %1617 = vrot.lane.b32.xlu0 %v1330, 15
        %v1618 = vpop.permute.xlu0 %1617
        %1619 = vrot.lane.b32.xlu0 %v1332, 15
        %v1620 = vpop.permute.xlu0 %1619
        %1621 = vrot.lane.b32.xlu0 %v1335, 15
        %v1622 = vpop.permute.xlu0 %1621
        %1623 = vrot.lane.b32.xlu0 %v1337, 15
        %v1624 = vpop.permute.xlu0 %1623
        %1625 = vrot.lane.b32.xlu0 %v1340, 15
        %v1626 = vpop.permute.xlu0 %1625
        %1627 = vrot.lane.b32.xlu0 %v1342, 15
        %v1628 = vpop.permute.xlu0 %1627
        %1629 = vrot.lane.b32.xlu0 %v1345, 15
        %v1630 = vpop.permute.xlu0 %1629
        %1631 = vrot.lane.b32.xlu0 %v1347, 15
        %v1632 = vpop.permute.xlu0 %1631
        %1633 = vrot.lane.b32.xlu0 %v1350, 15
        %v1634 = vpop.permute.xlu0 %1633
        %1635 = vrot.lane.b32.xlu0 %v1352, 15
        %v1636 = vpop.permute.xlu0 %1635
        %1637 = vrot.lane.b32.xlu0 %v1355, 15
        %v1638 = vpop.permute.xlu0 %1637
        %1639 = vrot.lane.b32.xlu0 %v1357, 15
        %v1640 = vpop.permute.xlu0 %1639
        %1641 = vrot.lane.b32.xlu0 %v1360, 15
        %v1642 = vpop.permute.xlu0 %1641
        %1643 = vrot.lane.b32.xlu0 %v1362, 15
        %v1644 = vpop.permute.xlu0 %1643
        %1645 = vrot.lane.b32.xlu0 %v1365, 15
        %v1646 = vpop.permute.xlu0 %1645
        %1647 = vrot.lane.b32.xlu0 %v1367, 15
        %v1648 = vpop.permute.xlu0 %1647
        %1649 = vrot.lane.b32.xlu0 %v1370, 15
        %v1650 = vpop.permute.xlu0 %1649
        %1651 = vrot.lane.b32.xlu0 %v1372, 15
        %v1652 = vpop.permute.xlu0 %1651
        %1653 = vrot.lane.b32.xlu0 %v1375, 15
        %v1654 = vpop.permute.xlu0 %1653
        %1655 = vrot.lane.b32.xlu0 %v1377, 15
        %v1656 = vpop.permute.xlu0 %1655
        %1657 = vrot.lane.b32.xlu0 %v1594, 15
        %v1658 = vpop.permute.xlu0 %1657
        %1659 = vrot.lane.b32.xlu0 %v1596, 15
        %v1660 = vpop.permute.xlu0 %1659
        %1662 = vrot.lane.b32.xlu0 %v846, 18
        %v1663 = vpop.permute.xlu0 %1662
        %1664 = vrot.lane.b32.xlu0 %v580, 18
        %v1665 = vpop.permute.xlu0 %1664
        %1666 = vrot.lane.b32.xlu0 %v847, 18
        %v1667 = vpop.permute.xlu0 %1666
        %1668 = vrot.lane.b32.xlu0 %v595, 18
        %v1669 = vpop.permute.xlu0 %1668
        %1670 = vrot.lane.b32.xlu0 %v848, 18
        %v1671 = vpop.permute.xlu0 %1670
        %1672 = vrot.lane.b32.xlu0 %v610, 18
        %v1673 = vpop.permute.xlu0 %1672
        %1674 = vrot.lane.b32.xlu0 %v849, 18
        %v1675 = vpop.permute.xlu0 %1674
        %1676 = vrot.lane.b32.xlu0 %v625, 18
        %v1677 = vpop.permute.xlu0 %1676
        %1678 = vrot.lane.b32.xlu0 %v850, 18
        %v1679 = vpop.permute.xlu0 %1678
        %1680 = vrot.lane.b32.xlu0 %v640, 18
        %v1681 = vpop.permute.xlu0 %1680
        %1682 = vrot.lane.b32.xlu0 %v851, 18
        %v1683 = vpop.permute.xlu0 %1682
        %1684 = vrot.lane.b32.xlu0 %v655, 18
        %v1685 = vpop.permute.xlu0 %1684
        %1686 = vrot.lane.b32.xlu0 %v852, 18
        %v1687 = vpop.permute.xlu0 %1686
        %1688 = vrot.lane.b32.xlu0 %v670, 18
        %v1689 = vpop.permute.xlu0 %1688
        %1690 = vrot.lane.b32.xlu0 %v853, 18
        %v1691 = vpop.permute.xlu0 %1690
        %1692 = vrot.lane.b32.xlu0 %v685, 18
        %v1693 = vpop.permute.xlu0 %1692
        %1694 = vrot.lane.b32.xlu0 %v854, 18
        %v1695 = vpop.permute.xlu0 %1694
        %1696 = vrot.lane.b32.xlu0 %v700, 18
        %v1697 = vpop.permute.xlu0 %1696
        %1698 = vrot.lane.b32.xlu0 %v855, 18
        %v1699 = vpop.permute.xlu0 %1698
        %1700 = vrot.lane.b32.xlu0 %v715, 18
        %v1701 = vpop.permute.xlu0 %1700
        %1702 = vrot.lane.b32.xlu0 %v856, 18
        %v1703 = vpop.permute.xlu0 %1702
        %1704 = vrot.lane.b32.xlu0 %v730, 18
        %v1705 = vpop.permute.xlu0 %1704
        %1706 = vrot.lane.b32.xlu0 %v857, 18
        %v1707 = vpop.permute.xlu0 %1706
        %1708 = vrot.lane.b32.xlu0 %v745, 18
        %v1709 = vpop.permute.xlu0 %1708
        %1710 = vrot.lane.b32.xlu0 %v858, 18
        %v1711 = vpop.permute.xlu0 %1710
        %1712 = vrot.lane.b32.xlu0 %v760, 18
        %v1713 = vpop.permute.xlu0 %1712
        %1714 = vrot.lane.b32.xlu0 %v859, 18
        %v1715 = vpop.permute.xlu0 %1714
        %1716 = vrot.lane.b32.xlu0 %v775, 18
        %v1717 = vpop.permute.xlu0 %1716
        %1718 = vrot.lane.b32.xlu0 %v860, 18
        %v1719 = vpop.permute.xlu0 %1718
        %1720 = vrot.lane.b32.xlu0 %v790, 18
        %v1721 = vpop.permute.xlu0 %1720
        %1722 = vrot.lane.b32.xlu0 %v861, 18
        %v1723 = vpop.permute.xlu0 %1722
        %1724 = vrot.lane.b32.xlu0 %v805, 18
        %v1725 = vpop.permute.xlu0 %1724
        %v1727 = vshrl.u32 %v861, 16
        %v1729 = vshll.u32 %v861, 16
        %v1731 = vrot.slane %v1729, 1
        %v1732 = vor.u32 %v1727, %v1731
        %v1734 = vshll.u32 %v805, 16
        %v1736 = vrot.slane %v1734, 1
        %v1737 = vsel %vm880, %v1732, %v1736
        %v1738 = vshrl.u32 %v805, 16
        %v1740 = vor.u32 %v1738, %v1736
        %v1742 = vshll.u32 %v879, 16
        %v1744 = vrot.slane %v1742, 1
        %v1745 = vsel %vm880, %v1740, %v1744
        %1746 = vrot.lane.b32.xlu0 %v932, 21
        %v1747 = vpop.permute.xlu0 %1746
        %1748 = vrot.lane.b32.xlu0 %v940, 21
        %v1749 = vpop.permute.xlu0 %1748
        %1750 = vrot.lane.b32.xlu0 %v952, 21
        %v1751 = vpop.permute.xlu0 %1750
        %1752 = vrot.lane.b32.xlu0 %v960, 21
        %v1753 = vpop.permute.xlu0 %1752
        %1754 = vrot.lane.b32.xlu0 %v972, 21
        %v1755 = vpop.permute.xlu0 %1754
        %1756 = vrot.lane.b32.xlu0 %v980, 21
        %v1757 = vpop.permute.xlu0 %1756
        %1758 = vrot.lane.b32.xlu0 %v992, 21
        %v1759 = vpop.permute.xlu0 %1758
        %1760 = vrot.lane.b32.xlu0 %v1000, 21
        %v1761 = vpop.permute.xlu0 %1760
        %1762 = vrot.lane.b32.xlu0 %v1012, 21
        %v1763 = vpop.permute.xlu0 %1762
        %1764 = vrot.lane.b32.xlu0 %v1020, 21
        %v1765 = vpop.permute.xlu0 %1764
        %1766 = vrot.lane.b32.xlu0 %v1032, 21
        %v1767 = vpop.permute.xlu0 %1766
        %1768 = vrot.lane.b32.xlu0 %v1040, 21
        %v1769 = vpop.permute.xlu0 %1768
        %1770 = vrot.lane.b32.xlu0 %v1052, 21
        %v1771 = vpop.permute.xlu0 %1770
        %1772 = vrot.lane.b32.xlu0 %v1060, 21
        %v1773 = vpop.permute.xlu0 %1772
        %1774 = vrot.lane.b32.xlu0 %v1072, 21
        %v1775 = vpop.permute.xlu0 %1774
        %1776 = vrot.lane.b32.xlu0 %v1080, 21
        %v1777 = vpop.permute.xlu0 %1776
        %1778 = vrot.lane.b32.xlu0 %v1092, 21
        %v1779 = vpop.permute.xlu0 %1778
        %1780 = vrot.lane.b32.xlu0 %v1100, 21
        %v1781 = vpop.permute.xlu0 %1780
        %1782 = vrot.lane.b32.xlu0 %v1112, 21
        %v1783 = vpop.permute.xlu0 %1782
        %1784 = vrot.lane.b32.xlu0 %v1120, 21
        %v1785 = vpop.permute.xlu0 %1784
        %1786 = vrot.lane.b32.xlu0 %v1132, 21
        %v1787 = vpop.permute.xlu0 %1786
        %1788 = vrot.lane.b32.xlu0 %v1140, 21
        %v1789 = vpop.permute.xlu0 %1788
        %1790 = vrot.lane.b32.xlu0 %v1152, 21
        %v1791 = vpop.permute.xlu0 %1790
        %1792 = vrot.lane.b32.xlu0 %v1160, 21
        %v1793 = vpop.permute.xlu0 %1792
        %1794 = vrot.lane.b32.xlu0 %v1172, 21
        %v1795 = vpop.permute.xlu0 %1794
        %1796 = vrot.lane.b32.xlu0 %v1180, 21
        %v1797 = vpop.permute.xlu0 %1796
        %1798 = vrot.lane.b32.xlu0 %v1192, 21
        %v1799 = vpop.permute.xlu0 %1798
        %1800 = vrot.lane.b32.xlu0 %v1200, 21
        %v1801 = vpop.permute.xlu0 %1800
        %1802 = vrot.lane.b32.xlu0 %v1518, 21
        %v1803 = vpop.permute.xlu0 %1802
        %1804 = vrot.lane.b32.xlu0 %v1526, 21
        %v1805 = vpop.permute.xlu0 %1804
        %1806 = vrot.lane.b32.xlu0 %v1737, 21
        %v1807 = vpop.permute.xlu0 %1806
        %1808 = vrot.lane.b32.xlu0 %v1745, 21
        %v1809 = vpop.permute.xlu0 %1808
        %v1811 = vrot.slane %v861, 1
        %v1812 = vrot.slane %v805, 1
        %v1813 = vsel %vm1297, %v1811, %v1812
        %v1814 = vrot.slane %v879, 1
        %v1815 = vsel %vm1297, %v1812, %v1814
        %1816 = vrot.lane.b32.xlu0 %v1310, 24
        %v1817 = vpop.permute.xlu0 %1816
        %1818 = vrot.lane.b32.xlu0 %v1312, 24
        %v1819 = vpop.permute.xlu0 %1818
        %1820 = vrot.lane.b32.xlu0 %v1315, 24
        %v1821 = vpop.permute.xlu0 %1820
        %1822 = vrot.lane.b32.xlu0 %v1317, 24
        %v1823 = vpop.permute.xlu0 %1822
        %1824 = vrot.lane.b32.xlu0 %v1320, 24
        %v1825 = vpop.permute.xlu0 %1824
        %1826 = vrot.lane.b32.xlu0 %v1322, 24
        %v1827 = vpop.permute.xlu0 %1826
        %1828 = vrot.lane.b32.xlu0 %v1325, 24
        %v1829 = vpop.permute.xlu0 %1828
        %1830 = vrot.lane.b32.xlu0 %v1327, 24
        %v1831 = vpop.permute.xlu0 %1830
        %1832 = vrot.lane.b32.xlu0 %v1330, 24
        %v1833 = vpop.permute.xlu0 %1832
        %1834 = vrot.lane.b32.xlu0 %v1332, 24
        %v1835 = vpop.permute.xlu0 %1834
        %1836 = vrot.lane.b32.xlu0 %v1335, 24
        %v1837 = vpop.permute.xlu0 %1836
        %1838 = vrot.lane.b32.xlu0 %v1337, 24
        %v1839 = vpop.permute.xlu0 %1838
        %1840 = vrot.lane.b32.xlu0 %v1340, 24
        %v1841 = vpop.permute.xlu0 %1840
        %1842 = vrot.lane.b32.xlu0 %v1342, 24
        %v1843 = vpop.permute.xlu0 %1842
        %1844 = vrot.lane.b32.xlu0 %v1345, 24
        %v1845 = vpop.permute.xlu0 %1844
        %1846 = vrot.lane.b32.xlu0 %v1347, 24
        %v1847 = vpop.permute.xlu0 %1846
        %1848 = vrot.lane.b32.xlu0 %v1350, 24
        %v1849 = vpop.permute.xlu0 %1848
        %1850 = vrot.lane.b32.xlu0 %v1352, 24
        %v1851 = vpop.permute.xlu0 %1850
        %1852 = vrot.lane.b32.xlu0 %v1355, 24
        %v1853 = vpop.permute.xlu0 %1852
        %1854 = vrot.lane.b32.xlu0 %v1357, 24
        %v1855 = vpop.permute.xlu0 %1854
        %1856 = vrot.lane.b32.xlu0 %v1360, 24
        %v1857 = vpop.permute.xlu0 %1856
        %1858 = vrot.lane.b32.xlu0 %v1362, 24
        %v1859 = vpop.permute.xlu0 %1858
        %1860 = vrot.lane.b32.xlu0 %v1365, 24
        %v1861 = vpop.permute.xlu0 %1860
        %1862 = vrot.lane.b32.xlu0 %v1367, 24
        %v1863 = vpop.permute.xlu0 %1862
        %1864 = vrot.lane.b32.xlu0 %v1370, 24
        %v1865 = vpop.permute.xlu0 %1864
        %1866 = vrot.lane.b32.xlu0 %v1372, 24
        %v1867 = vpop.permute.xlu0 %1866
        %1868 = vrot.lane.b32.xlu0 %v1375, 24
        %v1869 = vpop.permute.xlu0 %1868
        %1870 = vrot.lane.b32.xlu0 %v1377, 24
        %v1871 = vpop.permute.xlu0 %1870
        %1872 = vrot.lane.b32.xlu0 %v1594, 24
        %v1873 = vpop.permute.xlu0 %1872
        %1874 = vrot.lane.b32.xlu0 %v1596, 24
        %v1875 = vpop.permute.xlu0 %1874
        %1876 = vrot.lane.b32.xlu0 %v1813, 24
        %v1877 = vpop.permute.xlu0 %1876
        %1878 = vrot.lane.b32.xlu0 %v1815, 24
        %v1879 = vpop.permute.xlu0 %1878
        %vm1880 = vcmask 23552
        %v1882 = vsel %vm1880, %v844, %v1202
        %v1884 = vsel %vm1880, %v550, %v1204
        %v1886 = vsel %vm1880, %v845, %v1206
        %v1888 = vsel %vm1880, %v565, %v1208
        %v1890 = vsel %vm1880, %v846, %v1210
        %v1892 = vsel %vm1880, %v580, %v1212
        %v1894 = vsel %vm1880, %v847, %v1214
        %v1896 = vsel %vm1880, %v595, %v1216
        %v1898 = vsel %vm1880, %v848, %v1218
        %v1900 = vsel %vm1880, %v610, %v1220
        %v1902 = vsel %vm1880, %v849, %v1222
        %v1904 = vsel %vm1880, %v625, %v1224
        %v1906 = vsel %vm1880, %v850, %v1226
        %v1908 = vsel %vm1880, %v640, %v1228
        %v1910 = vsel %vm1880, %v851, %v1230
        %v1912 = vsel %vm1880, %v655, %v1232
        %v1914 = vsel %vm1880, %v852, %v1234
        %v1916 = vsel %vm1880, %v670, %v1236
        %v1918 = vsel %vm1880, %v853, %v1238
        %v1920 = vsel %vm1880, %v685, %v1240
        %v1922 = vsel %vm1880, %v854, %v1242
        %v1924 = vsel %vm1880, %v700, %v1244
        %v1926 = vsel %vm1880, %v855, %v1246
        %v1928 = vsel %vm1880, %v715, %v1248
        %v1930 = vsel %vm1880, %v856, %v1250
        %v1932 = vsel %vm1880, %v730, %v1252
        %v1934 = vsel %vm1880, %v857, %v1254
        %v1936 = vsel %vm1880, %v745, %v1256
        %v1938 = vsel %vm1880, %v858, %v1258
        %v1940 = vsel %vm1880, %v760, %v1260
        %v1942 = vsel %vm1880, %v859, %v1262
        %v1944 = vsel %vm1880, %v775, %v1264
        %vm1945 = vcmask 48128
        %v1947 = vsel %vm1945, %v1882, %v1379
        %v1949 = vsel %vm1945, %v1884, %v1381
        %v1951 = vsel %vm1945, %v1886, %v1383
        %v1953 = vsel %vm1945, %v1888, %v1385
        %v1955 = vsel %vm1945, %v1890, %v1387
        %v1957 = vsel %vm1945, %v1892, %v1389
        %v1959 = vsel %vm1945, %v1894, %v1391
        %v1961 = vsel %vm1945, %v1896, %v1393
        %v1963 = vsel %vm1945, %v1898, %v1395
        %v1965 = vsel %vm1945, %v1900, %v1397
        %v1967 = vsel %vm1945, %v1902, %v1399
        %v1969 = vsel %vm1945, %v1904, %v1401
        %v1971 = vsel %vm1945, %v1906, %v1403
        %v1973 = vsel %vm1945, %v1908, %v1405
        %v1975 = vsel %vm1945, %v1910, %v1407
        %v1977 = vsel %vm1945, %v1912, %v1409
        %v1979 = vsel %vm1945, %v1914, %v1411
        %v1981 = vsel %vm1945, %v1916, %v1413
        %v1983 = vsel %vm1945, %v1918, %v1415
        %v1985 = vsel %vm1945, %v1920, %v1417
        %v1987 = vsel %vm1945, %v1922, %v1419
        %v1989 = vsel %vm1945, %v1924, %v1421
        %v1991 = vsel %vm1945, %v1926, %v1423
        %v1993 = vsel %vm1945, %v1928, %v1425
        %v1995 = vsel %vm1945, %v1930, %v1427
        %v1997 = vsel %vm1945, %v1932, %v1429
        %v1999 = vsel %vm1945, %v1934, %v1431
        %v2001 = vsel %vm1945, %v1936, %v1433
        %v2003 = vsel %vm1945, %v1938, %v1435
        %v2005 = vsel %vm1945, %v1940, %v1437
        %v2007 = vsel %vm1945, %v1942, %v1439
        %v2009 = vsel %vm1945, %v1944, %v1441
        %vm2010 = vcmask 72704
        %v2012 = vsel %vm2010, %v1947, %v1444
        %v2014 = vsel %vm2010, %v1949, %v1446
        %v2016 = vsel %vm2010, %v1951, %v1448
        %v2018 = vsel %vm2010, %v1953, %v1450
        %v2020 = vsel %vm2010, %v1955, %v1452
        %v2022 = vsel %vm2010, %v1957, %v1454
        %v2024 = vsel %vm2010, %v1959, %v1456
        %v2026 = vsel %vm2010, %v1961, %v1458
        %v2028 = vsel %vm2010, %v1963, %v1460
        %v2030 = vsel %vm2010, %v1965, %v1462
        %v2032 = vsel %vm2010, %v1967, %v1464
        %v2034 = vsel %vm2010, %v1969, %v1466
        %v2036 = vsel %vm2010, %v1971, %v1468
        %v2038 = vsel %vm2010, %v1973, %v1470
        %v2040 = vsel %vm2010, %v1975, %v1472
        %v2042 = vsel %vm2010, %v1977, %v1474
        %v2044 = vsel %vm2010, %v1979, %v1476
        %v2046 = vsel %vm2010, %v1981, %v1478
        %v2048 = vsel %vm2010, %v1983, %v1480
        %v2050 = vsel %vm2010, %v1985, %v1482
        %v2052 = vsel %vm2010, %v1987, %v1484
        %v2054 = vsel %vm2010, %v1989, %v1486
        %v2056 = vsel %vm2010, %v1991, %v1488
        %v2058 = vsel %vm2010, %v1993, %v1490
        %v2060 = vsel %vm2010, %v1995, %v1492
        %v2062 = vsel %vm2010, %v1997, %v1494
        %v2064 = vsel %vm2010, %v1999, %v1496
        %v2066 = vsel %vm2010, %v2001, %v1498
        %v2068 = vsel %vm2010, %v2003, %v1500
        %v2070 = vsel %vm2010, %v2005, %v1502
        %v2072 = vsel %vm2010, %v2007, %v1504
        %v2074 = vsel %vm2010, %v2009, %v1506
        %vm2075 = vcmask 97280
        %v2077 = vsel %vm2075, %v2012, %v1528
        %v2079 = vsel %vm2075, %v2014, %v1530
        %v2081 = vsel %vm2075, %v2016, %v1532
        %v2083 = vsel %vm2075, %v2018, %v1534
        %v2085 = vsel %vm2075, %v2020, %v1536
        %v2087 = vsel %vm2075, %v2022, %v1538
        %v2089 = vsel %vm2075, %v2024, %v1540
        %v2091 = vsel %vm2075, %v2026, %v1542
        %v2093 = vsel %vm2075, %v2028, %v1544
        %v2095 = vsel %vm2075, %v2030, %v1546
        %v2097 = vsel %vm2075, %v2032, %v1548
        %v2099 = vsel %vm2075, %v2034, %v1550
        %v2101 = vsel %vm2075, %v2036, %v1552
        %v2103 = vsel %vm2075, %v2038, %v1554
        %v2105 = vsel %vm2075, %v2040, %v1556
        %v2107 = vsel %vm2075, %v2042, %v1558
        %v2109 = vsel %vm2075, %v2044, %v1560
        %v2111 = vsel %vm2075, %v2046, %v1562
        %v2113 = vsel %vm2075, %v2048, %v1564
        %v2115 = vsel %vm2075, %v2050, %v1566
        %v2117 = vsel %vm2075, %v2052, %v1568
        %v2119 = vsel %vm2075, %v2054, %v1570
        %v2121 = vsel %vm2075, %v2056, %v1572
        %v2123 = vsel %vm2075, %v2058, %v1574
        %v2125 = vsel %vm2075, %v2060, %v1576
        %v2127 = vsel %vm2075, %v2062, %v1578
        %v2129 = vsel %vm2075, %v2064, %v1580
        %v2131 = vsel %vm2075, %v2066, %v1582
        %v2133 = vsel %vm2075, %v2068, %v1584
        %v2135 = vsel %vm2075, %v2070, %v1586
        %v2137 = vsel %vm2075, %v2072, %v1588
        %v2139 = vsel %vm2075, %v2074, %v1590
        %vm2140 = vcmask 121856
        %v2142 = vsel %vm2140, %v2077, %v1598
        %v2144 = vsel %vm2140, %v2079, %v1600
        %v2146 = vsel %vm2140, %v2081, %v1602
        %v2148 = vsel %vm2140, %v2083, %v1604
        %v2150 = vsel %vm2140, %v2085, %v1606
        %v2152 = vsel %vm2140, %v2087, %v1608
        %v2154 = vsel %vm2140, %v2089, %v1610
        %v2156 = vsel %vm2140, %v2091, %v1612
        %v2158 = vsel %vm2140, %v2093, %v1614
        %v2160 = vsel %vm2140, %v2095, %v1616
        %v2162 = vsel %vm2140, %v2097, %v1618
        %v2164 = vsel %vm2140, %v2099, %v1620
        %v2166 = vsel %vm2140, %v2101, %v1622
        %v2168 = vsel %vm2140, %v2103, %v1624
        %v2170 = vsel %vm2140, %v2105, %v1626
        %v2172 = vsel %vm2140, %v2107, %v1628
        %v2174 = vsel %vm2140, %v2109, %v1630
        %v2176 = vsel %vm2140, %v2111, %v1632
        %v2178 = vsel %vm2140, %v2113, %v1634
        %v2180 = vsel %vm2140, %v2115, %v1636
        %v2182 = vsel %vm2140, %v2117, %v1638
        %v2184 = vsel %vm2140, %v2119, %v1640
        %v2186 = vsel %vm2140, %v2121, %v1642
        %v2188 = vsel %vm2140, %v2123, %v1644
        %v2190 = vsel %vm2140, %v2125, %v1646
        %v2192 = vsel %vm2140, %v2127, %v1648
        %v2194 = vsel %vm2140, %v2129, %v1650
        %v2196 = vsel %vm2140, %v2131, %v1652
        %v2198 = vsel %vm2140, %v2133, %v1654
        %v2200 = vsel %vm2140, %v2135, %v1656
        %v2202 = vsel %vm2140, %v2137, %v1658
        %v2204 = vsel %vm2140, %v2139, %v1660
        %vm2205 = vcmask 146432
        %v2207 = vsel %vm2205, %v2142, %v1663
        %v2209 = vsel %vm2205, %v2144, %v1665
        %v2211 = vsel %vm2205, %v2146, %v1667
        %v2213 = vsel %vm2205, %v2148, %v1669
        %v2215 = vsel %vm2205, %v2150, %v1671
        %v2217 = vsel %vm2205, %v2152, %v1673
        %v2219 = vsel %vm2205, %v2154, %v1675
        %v2221 = vsel %vm2205, %v2156, %v1677
        %v2223 = vsel %vm2205, %v2158, %v1679
        %v2225 = vsel %vm2205, %v2160, %v1681
        %v2227 = vsel %vm2205, %v2162, %v1683
        %v2229 = vsel %vm2205, %v2164, %v1685
        %v2231 = vsel %vm2205, %v2166, %v1687
        %v2233 = vsel %vm2205, %v2168, %v1689
        %v2235 = vsel %vm2205, %v2170, %v1691
        %v2237 = vsel %vm2205, %v2172, %v1693
        %v2239 = vsel %vm2205, %v2174, %v1695
        %v2241 = vsel %vm2205, %v2176, %v1697
        %v2243 = vsel %vm2205, %v2178, %v1699
        %v2245 = vsel %vm2205, %v2180, %v1701
        %v2247 = vsel %vm2205, %v2182, %v1703
        %v2249 = vsel %vm2205, %v2184, %v1705
        %v2251 = vsel %vm2205, %v2186, %v1707
        %v2253 = vsel %vm2205, %v2188, %v1709
        %v2255 = vsel %vm2205, %v2190, %v1711
        %v2257 = vsel %vm2205, %v2192, %v1713
        %v2259 = vsel %vm2205, %v2194, %v1715
        %v2261 = vsel %vm2205, %v2196, %v1717
        %v2263 = vsel %vm2205, %v2198, %v1719
        %v2265 = vsel %vm2205, %v2200, %v1721
        %v2267 = vsel %vm2205, %v2202, %v1723
        %v2269 = vsel %vm2205, %v2204, %v1725
        %vm2270 = vcmask 171008
        %v2272 = vsel %vm2270, %v2207, %v1747
        %v2274 = vsel %vm2270, %v2209, %v1749
        %v2276 = vsel %vm2270, %v2211, %v1751
        %v2278 = vsel %vm2270, %v2213, %v1753
        %v2280 = vsel %vm2270, %v2215, %v1755
        %v2282 = vsel %vm2270, %v2217, %v1757
        %v2284 = vsel %vm2270, %v2219, %v1759
        %v2286 = vsel %vm2270, %v2221, %v1761
        %v2288 = vsel %vm2270, %v2223, %v1763
        %v2290 = vsel %vm2270, %v2225, %v1765
        %v2292 = vsel %vm2270, %v2227, %v1767
        %v2294 = vsel %vm2270, %v2229, %v1769
        %v2296 = vsel %vm2270, %v2231, %v1771
        %v2298 = vsel %vm2270, %v2233, %v1773
        %v2300 = vsel %vm2270, %v2235, %v1775
        %v2302 = vsel %vm2270, %v2237, %v1777
        %v2304 = vsel %vm2270, %v2239, %v1779
        %v2306 = vsel %vm2270, %v2241, %v1781
        %v2308 = vsel %vm2270, %v2243, %v1783
        %v2310 = vsel %vm2270, %v2245, %v1785
        %v2312 = vsel %vm2270, %v2247, %v1787
        %v2314 = vsel %vm2270, %v2249, %v1789
        %v2316 = vsel %vm2270, %v2251, %v1791
        %v2318 = vsel %vm2270, %v2253, %v1793
        %v2320 = vsel %vm2270, %v2255, %v1795
        %v2322 = vsel %vm2270, %v2257, %v1797
        %v2324 = vsel %vm2270, %v2259, %v1799
        %v2326 = vsel %vm2270, %v2261, %v1801
        %v2328 = vsel %vm2270, %v2263, %v1803
        %v2330 = vsel %vm2270, %v2265, %v1805
        %v2332 = vsel %vm2270, %v2267, %v1807
        %v2334 = vsel %vm2270, %v2269, %v1809
        %vm2335 = vcmask 195584
        %v2337 = vsel %vm2335, %v2272, %v1817
        %v2339 = vsel %vm2335, %v2274, %v1819
        %v2341 = vsel %vm2335, %v2276, %v1821
        %v2343 = vsel %vm2335, %v2278, %v1823
        %v2345 = vsel %vm2335, %v2280, %v1825
        %v2347 = vsel %vm2335, %v2282, %v1827
        %v2349 = vsel %vm2335, %v2284, %v1829
        %v2351 = vsel %vm2335, %v2286, %v1831
        %v2353 = vsel %vm2335, %v2288, %v1833
        %v2355 = vsel %vm2335, %v2290, %v1835
        %v2357 = vsel %vm2335, %v2292, %v1837
        %v2359 = vsel %vm2335, %v2294, %v1839
        %v2361 = vsel %vm2335, %v2296, %v1841
        %v2363 = vsel %vm2335, %v2298, %v1843
        %v2365 = vsel %vm2335, %v2300, %v1845
        %v2367 = vsel %vm2335, %v2302, %v1847
        %v2369 = vsel %vm2335, %v2304, %v1849
        %v2371 = vsel %vm2335, %v2306, %v1851
        %v2373 = vsel %vm2335, %v2308, %v1853
        %v2375 = vsel %vm2335, %v2310, %v1855
        %v2377 = vsel %vm2335, %v2312, %v1857
        %v2379 = vsel %vm2335, %v2314, %v1859
        %v2381 = vsel %vm2335, %v2316, %v1861
        %v2383 = vsel %vm2335, %v2318, %v1863
        %v2385 = vsel %vm2335, %v2320, %v1865
        %v2387 = vsel %vm2335, %v2322, %v1867
        %v2389 = vsel %vm2335, %v2324, %v1869
        %v2391 = vsel %vm2335, %v2326, %v1871
        %v2393 = vsel %vm2335, %v2328, %v1873
        %v2395 = vsel %vm2335, %v2330, %v1875
        %v2397 = vsel %vm2335, %v2332, %v1877
        %v2399 = vsel %vm2335, %v2334, %v1879
        %v2400 = vld [vmem:[#allocation3] sm:$0xf]
        %v2401 = vld [vmem:[#allocation3 + $0x4] sm:$0xf]
        %v2402 = vld [vmem:[#allocation3 + $0x8] sm:$0xf]
        %v2403 = vld [vmem:[#allocation3 + $0xc] sm:$0x3]
        %v2404 = vld [vmem:[#allocation5] sm:$0x1]
        %v2406 = vlaneseq
        %v2407 = vshrl.u32 %v2406, 7
        %v2408 = vsub.s32 0, %v2407
        %v2409 = vrot.slane %v2404, %v2408
        %v2415 = vunpack.c.l.b16 %v2400
        %v2416 = vunpack.c.l.b16 %v2401
        %v2417 = vunpack.c.l.b16 %v2402
        %v2418 = vunpack.c.l.b16 %v2403
        %v2419 = vpack.c.b16 %v2416, %v2415
        %v2420 = vpack.c.b16 %v2418, %v2417
        %vm2422 = vcmask 220160
        %v2423 = vsel %vm2422, %v2337, 0
        %v2425 = vsel %vm2422, %v2339, 0
        %v2427 = vsel %vm2422, %v2341, 0
        %v2429 = vsel %vm2422, %v2343, 0
        %v2431 = vsel %vm2422, %v2345, 0
        %v2433 = vsel %vm2422, %v2347, 0
        %v2435 = vsel %vm2422, %v2349, 0
        %v2437 = vsel %vm2422, %v2351, 0
        %v2439 = vsel %vm2422, %v2353, 0
        %v2441 = vsel %vm2422, %v2355, 0
        %v2443 = vsel %vm2422, %v2357, 0
        %v2445 = vsel %vm2422, %v2359, 0
        %v2447 = vsel %vm2422, %v2361, 0
        %v2449 = vsel %vm2422, %v2363, 0
        %v2451 = vsel %vm2422, %v2365, 0
        %v2453 = vsel %vm2422, %v2367, 0
        %v2455 = vsel %vm2422, %v2369, 0
        %v2457 = vsel %vm2422, %v2371, 0
        %v2459 = vsel %vm2422, %v2373, 0
        %v2461 = vsel %vm2422, %v2375, 0
        %v2463 = vsel %vm2422, %v2377, 0
        %v2465 = vsel %vm2422, %v2379, 0
        %v2467 = vsel %vm2422, %v2381, 0
        %v2469 = vsel %vm2422, %v2383, 0
        %v2471 = vsel %vm2422, %v2385, 0
        %v2473 = vsel %vm2422, %v2387, 0
        %v2475 = vsel %vm2422, %v2389, 0
        %v2477 = vsel %vm2422, %v2391, 0
        %v2479 = vsel %vm2422, %v2393, 0
        %v2481 = vsel %vm2422, %v2395, 0
        %v2483 = vsel %vm2422, %v2397, 0
        %v2485 = vsel %vm2422, %v2399, 0
        %vm2487 = vcmask 1044480
        %vm2488 = vcmask 1045504
        %v2489 = vsel %vm2487, 4294967295, 65535
        %v2490 = vsel %vm2488, %v2489, 0
        %v2492 = vand.u32 %v2420, %v2490
        %2494 = vmatprep.subr.bf16.mxu0 0
        %2495 = vmatpush1.bf16.msra.mxu0 %v2419
        %2496 = vmatprep.subr.bf16.mxu0 0
        %2497 = vmatpush1.bf16.msra.mxu0 %v2492
        %2498 = vmatprep.subr.bf16.mxu0 0
        %2499 = vmatpush1.bf16.msra.mxu0 0
        %2500 = vmatprep.subr.bf16.mxu0 0
        %2501 = vmatpush1.bf16.msra.mxu0 0
        %2502 = vmatprep.subr.bf16.mxu0 0
        %2503 = vmatpush1.bf16.msra.mxu0 0
        %2504 = vmatprep.subr.bf16.mxu0 0
        %2505 = vmatpush1.bf16.msra.mxu0 0
        %2506 = vmatprep.subr.bf16.mxu0 0
        %2507 = vmatpush1.bf16.msra.mxu0 0
        %2508 = vmatprep.subr.bf16.mxu0 0
        %2509 = vmatpush1.bf16.msra.mxu0 0
        %2510 = vmatprep.subr.bf16.mxu0 0
        %2511 = vmatpush1.bf16.msra.mxu0 0
        %2512 = vmatprep.subr.bf16.mxu0 0
        %2513 = vmatpush1.bf16.msra.mxu0 0
        %2514 = vmatprep.subr.bf16.mxu0 0
        %2515 = vmatpush1.bf16.msra.mxu0 0
        %2516 = vmatprep.subr.bf16.mxu0 0
        %2517 = vmatpush1.bf16.msra.mxu0 0
        %2518 = vmatprep.subr.bf16.mxu0 0
        %2519 = vmatpush1.bf16.msra.mxu0 0
        %2520 = vmatprep.subr.bf16.mxu0 0
        %2521 = vmatpush1.bf16.msra.mxu0 0
        %2522 = vmatprep.subr.bf16.mxu0 0
        %2523 = vmatpush1.bf16.msra.mxu0 0
        %2524 = vmatprep.subr.bf16.mxu0 0
        %2525 = vmatpush1.bf16.msra.mxu0 0
        %2526 = vmatprep.mubr.bf16.mxu0 0
        %2527 = vmatmul.mubr.bf16.gmra.mrb[0].mxu0 %v2423
        %v2528 = vpop.f32.mrb[0].mxu0
        %v2529 = vadd.f32 %v2409, %v2528
        %v2530 = vpop.f32.mrb[0].mxu0
        %v2531 = vpop.f32.mrb[0].mxu0
        %v2532 = vadd.f32 %v2409, %v2531
        %v2533 = vpop.f32.mrb[0].mxu0
        %2534 = vmatprep.mubr.bf16.mxu0 0
        %2535 = vmatmul.mubr.bf16.gmra.mrb[0].mxu0 %v2425
        %v2536 = vpop.f32.mrb[0].mxu0
        %v2537 = vadd.f32 %v2409, %v2536
        %v2538 = vpop.f32.mrb[0].mxu0
        %v2539 = vpop.f32.mrb[0].mxu0
        %v2540 = vadd.f32 %v2409, %v2539
        %v2541 = vpop.f32.mrb[0].mxu0
        %2542 = vmatprep.mubr.bf16.mxu0 0
        %2543 = vmatmul.mubr.bf16.gmra.mrb[0].mxu0 %v2427
        %v2544 = vpop.f32.mrb[0].mxu0
        %v2545 = vadd.f32 %v2409, %v2544
        %v2546 = vpop.f32.mrb[0].mxu0
        %v2547 = vpop.f32.mrb[0].mxu0
        %v2548 = vadd.f32 %v2409, %v2547
        %v2549 = vpop.f32.mrb[0].mxu0
        %2550 = vmatprep.mubr.bf16.mxu0 0
        %2551 = vmatmul.mubr.bf16.gmra.mrb[0].mxu0 %v2429
        %v2552 = vpop.f32.mrb[0].mxu0
        %v2553 = vadd.f32 %v2409, %v2552
        %v2554 = vpop.f32.mrb[0].mxu0
        %v2555 = vpop.f32.mrb[0].mxu0
        %v2556 = vadd.f32 %v2409, %v2555
        %v2557 = vpop.f32.mrb[0].mxu0
        %2558 = vmatprep.mubr.bf16.mxu0 0
        %2559 = vmatmul.mubr.bf16.gmra.mrb[0].mxu0 %v2431
        %v2560 = vpop.f32.mrb[0].mxu0
        %v2561 = vadd.f32 %v2409, %v2560
        %v2562 = vpop.f32.mrb[0].mxu0
        %v2563 = vpop.f32.mrb[0].mxu0
        %v2564 = vadd.f32 %v2409, %v2563
        %v2565 = vpop.f32.mrb[0].mxu0
        %2566 = vmatprep.mubr.bf16.mxu0 0
        %2567 = vmatmul.mubr.bf16.gmra.mrb[0].mxu0 %v2433
        %v2568 = vpop.f32.mrb[0].mxu0
        %v2569 = vadd.f32 %v2409, %v2568
        %v2570 = vpop.f32.mrb[0].mxu0
        %v2571 = vpop.f32.mrb[0].mxu0
        %v2572 = vadd.f32 %v2409, %v2571
        %v2573 = vpop.f32.mrb[0].mxu0
        %2574 = vmatprep.mubr.bf16.mxu0 0
        %2575 = vmatmul.mubr.bf16.gmra.mrb[0].mxu0 %v2435
        %v2576 = vpop.f32.mrb[0].mxu0
        %v2577 = vadd.f32 %v2409, %v2576
        %v2578 = vpop.f32.mrb[0].mxu0
        %v2579 = vpop.f32.mrb[0].mxu0
        %v2580 = vadd.f32 %v2409, %v2579
        %v2581 = vpop.f32.mrb[0].mxu0
        %2582 = vmatprep.mubr.bf16.mxu0 0
        %2583 = vmatmul.mubr.bf16.gmra.mrb[0].mxu0 %v2437
        %v2584 = vpop.f32.mrb[0].mxu0
        %v2585 = vadd.f32 %v2409, %v2584
        %v2586 = vpop.f32.mrb[0].mxu0
        %v2587 = vpop.f32.mrb[0].mxu0
        %v2588 = vadd.f32 %v2409, %v2587
        %v2589 = vpop.f32.mrb[0].mxu0
        %2590 = vmatprep.mubr.bf16.mxu0 0
        %2591 = vmatmul.mubr.bf16.gmra.mrb[0].mxu0 %v2439
        %v2592 = vpop.f32.mrb[0].mxu0
        %v2593 = vadd.f32 %v2409, %v2592
        %v2594 = vpop.f32.mrb[0].mxu0
        %v2595 = vpop.f32.mrb[0].mxu0
        %v2596 = vadd.f32 %v2409, %v2595
        %v2597 = vpop.f32.mrb[0].mxu0
        %2598 = vmatprep.mubr.bf16.mxu0 0
        %2599 = vmatmul.mubr.bf16.gmra.mrb[0].mxu0 %v2441
        %v2600 = vpop.f32.mrb[0].mxu0
        %v2601 = vadd.f32 %v2409, %v2600
        %v2602 = vpop.f32.mrb[0].mxu0
        %v2603 = vpop.f32.mrb[0].mxu0
        %v2604 = vadd.f32 %v2409, %v2603
        %v2605 = vpop.f32.mrb[0].mxu0
        %2606 = vmatprep.mubr.bf16.mxu0 0
        %2607 = vmatmul.mubr.bf16.gmra.mrb[0].mxu0 %v2443
        %v2608 = vpop.f32.mrb[0].mxu0
        %v2609 = vadd.f32 %v2409, %v2608
        %v2610 = vpop.f32.mrb[0].mxu0
        %v2611 = vpop.f32.mrb[0].mxu0
        %v2612 = vadd.f32 %v2409, %v2611
        %v2613 = vpop.f32.mrb[0].mxu0
        %2614 = vmatprep.mubr.bf16.mxu0 0
        %2615 = vmatmul.mubr.bf16.gmra.mrb[0].mxu0 %v2445
        %v2616 = vpop.f32.mrb[0].mxu0
        %v2617 = vadd.f32 %v2409, %v2616
        %v2618 = vpop.f32.mrb[0].mxu0
        %v2619 = vpop.f32.mrb[0].mxu0
        %v2620 = vadd.f32 %v2409, %v2619
        %v2621 = vpop.f32.mrb[0].mxu0
        %2622 = vmatprep.mubr.bf16.mxu0 0
        %2623 = vmatmul.mubr.bf16.gmra.mrb[0].mxu0 %v2447
        %v2624 = vpop.f32.mrb[0].mxu0
        %v2625 = vadd.f32 %v2409, %v2624
        %v2626 = vpop.f32.mrb[0].mxu0
        %v2627 = vpop.f32.mrb[0].mxu0
        %v2628 = vadd.f32 %v2409, %v2627
        %v2629 = vpop.f32.mrb[0].mxu0
        %2630 = vmatprep.mubr.bf16.mxu0 0
        %2631 = vmatmul.mubr.bf16.gmra.mrb[0].mxu0 %v2449
        %v2632 = vpop.f32.mrb[0].mxu0
        %v2633 = vadd.f32 %v2409, %v2632
        %v2634 = vpop.f32.mrb[0].mxu0
        %v2635 = vpop.f32.mrb[0].mxu0
        %v2636 = vadd.f32 %v2409, %v2635
        %v2637 = vpop.f32.mrb[0].mxu0
        %2638 = vmatprep.mubr.bf16.mxu0 0
        %2639 = vmatmul.mubr.bf16.gmra.mrb[0].mxu0 %v2451
        %v2640 = vpop.f32.mrb[0].mxu0
        %v2641 = vadd.f32 %v2409, %v2640
        %v2642 = vpop.f32.mrb[0].mxu0
        %v2643 = vpop.f32.mrb[0].mxu0
        %v2644 = vadd.f32 %v2409, %v2643
        %v2645 = vpop.f32.mrb[0].mxu0
        %2646 = vmatprep.mubr.bf16.mxu0 0
        %2647 = vmatmul.mubr.bf16.gmra.mrb[0].mxu0 %v2453
        %v2648 = vpop.f32.mrb[0].mxu0
        %v2649 = vadd.f32 %v2409, %v2648
        %v2650 = vpop.f32.mrb[0].mxu0
        %v2651 = vpop.f32.mrb[0].mxu0
        %v2652 = vadd.f32 %v2409, %v2651
        %v2653 = vpop.f32.mrb[0].mxu0
        %2654 = vmatprep.mubr.bf16.mxu0 0
        %2655 = vmatmul.mubr.bf16.gmra.mrb[0].mxu0 %v2455
        %v2656 = vpop.f32.mrb[0].mxu0
        %v2657 = vadd.f32 %v2409, %v2656
        %v2658 = vpop.f32.mrb[0].mxu0
        %v2659 = vpop.f32.mrb[0].mxu0
        %v2660 = vadd.f32 %v2409, %v2659
        %v2661 = vpop.f32.mrb[0].mxu0
        %2662 = vmatprep.mubr.bf16.mxu0 0
        %2663 = vmatmul.mubr.bf16.gmra.mrb[0].mxu0 %v2457
        %v2664 = vpop.f32.mrb[0].mxu0
        %v2665 = vadd.f32 %v2409, %v2664
        %v2666 = vpop.f32.mrb[0].mxu0
        %v2667 = vpop.f32.mrb[0].mxu0
        %v2668 = vadd.f32 %v2409, %v2667
        %v2669 = vpop.f32.mrb[0].mxu0
        %2670 = vmatprep.mubr.bf16.mxu0 0
        %2671 = vmatmul.mubr.bf16.gmra.mrb[0].mxu0 %v2459
        %v2672 = vpop.f32.mrb[0].mxu0
        %v2673 = vadd.f32 %v2409, %v2672
        %v2674 = vpop.f32.mrb[0].mxu0
        %v2675 = vpop.f32.mrb[0].mxu0
        %v2676 = vadd.f32 %v2409, %v2675
        %v2677 = vpop.f32.mrb[0].mxu0
        %2678 = vmatprep.mubr.bf16.mxu0 0
        %2679 = vmatmul.mubr.bf16.gmra.mrb[0].mxu0 %v2461
        %v2680 = vpop.f32.mrb[0].mxu0
        %v2681 = vadd.f32 %v2409, %v2680
        %v2682 = vpop.f32.mrb[0].mxu0
        %v2683 = vpop.f32.mrb[0].mxu0
        %v2684 = vadd.f32 %v2409, %v2683
        %v2685 = vpop.f32.mrb[0].mxu0
        %2686 = vmatprep.mubr.bf16.mxu0 0
        %2687 = vmatmul.mubr.bf16.gmra.mrb[0].mxu0 %v2463
        %v2688 = vpop.f32.mrb[0].mxu0
        %v2689 = vadd.f32 %v2409, %v2688
        %v2690 = vpop.f32.mrb[0].mxu0
        %v2691 = vpop.f32.mrb[0].mxu0
        %v2692 = vadd.f32 %v2409, %v2691
        %v2693 = vpop.f32.mrb[0].mxu0
        %2694 = vmatprep.mubr.bf16.mxu0 0
        %2695 = vmatmul.mubr.bf16.gmra.mrb[0].mxu0 %v2465
        %v2696 = vpop.f32.mrb[0].mxu0
        %v2697 = vadd.f32 %v2409, %v2696
        %v2698 = vpop.f32.mrb[0].mxu0
        %v2699 = vpop.f32.mrb[0].mxu0
        %v2700 = vadd.f32 %v2409, %v2699
        %v2701 = vpop.f32.mrb[0].mxu0
        %2702 = vmatprep.mubr.bf16.mxu0 0
        %2703 = vmatmul.mubr.bf16.gmra.mrb[0].mxu0 %v2467
        %v2704 = vpop.f32.mrb[0].mxu0
        %v2705 = vadd.f32 %v2409, %v2704
        %v2706 = vpop.f32.mrb[0].mxu0
        %v2707 = vpop.f32.mrb[0].mxu0
        %v2708 = vadd.f32 %v2409, %v2707
        %v2709 = vpop.f32.mrb[0].mxu0
        %2710 = vmatprep.mubr.bf16.mxu0 0
        %2711 = vmatmul.mubr.bf16.gmra.mrb[0].mxu0 %v2469
        %v2712 = vpop.f32.mrb[0].mxu0
        %v2713 = vadd.f32 %v2409, %v2712
        %v2714 = vpop.f32.mrb[0].mxu0
        %v2715 = vpop.f32.mrb[0].mxu0
        %v2716 = vadd.f32 %v2409, %v2715
        %v2717 = vpop.f32.mrb[0].mxu0
        %2718 = vmatprep.mubr.bf16.mxu0 0
        %2719 = vmatmul.mubr.bf16.gmra.mrb[0].mxu0 %v2471
        %v2720 = vpop.f32.mrb[0].mxu0
        %v2721 = vadd.f32 %v2409, %v2720
        %v2722 = vpop.f32.mrb[0].mxu0
        %v2723 = vpop.f32.mrb[0].mxu0
        %v2724 = vadd.f32 %v2409, %v2723
        %v2725 = vpop.f32.mrb[0].mxu0
        %2726 = vmatprep.mubr.bf16.mxu0 0
        %2727 = vmatmul.mubr.bf16.gmra.mrb[0].mxu0 %v2473
        %v2728 = vpop.f32.mrb[0].mxu0
        %v2729 = vadd.f32 %v2409, %v2728
        %v2730 = vpop.f32.mrb[0].mxu0
        %v2731 = vpop.f32.mrb[0].mxu0
        %v2732 = vadd.f32 %v2409, %v2731
        %v2733 = vpop.f32.mrb[0].mxu0
        %2734 = vmatprep.mubr.bf16.mxu0 0
        %2735 = vmatmul.mubr.bf16.gmra.mrb[0].mxu0 %v2475
        %v2736 = vpop.f32.mrb[0].mxu0
        %v2737 = vadd.f32 %v2409, %v2736
        %v2738 = vpop.f32.mrb[0].mxu0
        %v2739 = vpop.f32.mrb[0].mxu0
        %v2740 = vadd.f32 %v2409, %v2739
        %v2741 = vpop.f32.mrb[0].mxu0
        %2742 = vmatprep.mubr.bf16.mxu0 0
        %2743 = vmatmul.mubr.bf16.gmra.mrb[0].mxu0 %v2477
        %v2744 = vpop.f32.mrb[0].mxu0
        %v2745 = vadd.f32 %v2409, %v2744
        %v2746 = vpop.f32.mrb[0].mxu0
        %v2747 = vpop.f32.mrb[0].mxu0
        %v2748 = vadd.f32 %v2409, %v2747
        %v2749 = vpop.f32.mrb[0].mxu0
        %2750 = vmatprep.mubr.bf16.mxu0 0
        %2751 = vmatmul.mubr.bf16.gmra.mrb[0].mxu0 %v2479
        %v2752 = vpop.f32.mrb[0].mxu0
        %v2753 = vadd.f32 %v2409, %v2752
        %v2754 = vpop.f32.mrb[0].mxu0
        %v2755 = vpop.f32.mrb[0].mxu0
        %v2756 = vadd.f32 %v2409, %v2755
        %v2757 = vpop.f32.mrb[0].mxu0
        %2758 = vmatprep.mubr.bf16.mxu0 0
        %2759 = vmatmul.mubr.bf16.gmra.mrb[0].mxu0 %v2481
        %v2760 = vpop.f32.mrb[0].mxu0
        %v2761 = vadd.f32 %v2409, %v2760
        %v2762 = vpop.f32.mrb[0].mxu0
        %v2763 = vpop.f32.mrb[0].mxu0
        %v2764 = vadd.f32 %v2409, %v2763
        %v2765 = vpop.f32.mrb[0].mxu0
        %2766 = vmatprep.mubr.bf16.mxu0 0
        %2767 = vmatmul.mubr.bf16.gmra.mrb[0].mxu0 %v2483
        %v2768 = vpop.f32.mrb[0].mxu0
        %v2769 = vadd.f32 %v2409, %v2768
        %v2770 = vpop.f32.mrb[0].mxu0
        %v2771 = vpop.f32.mrb[0].mxu0
        %v2772 = vadd.f32 %v2409, %v2771
        %v2773 = vpop.f32.mrb[0].mxu0
        %2774 = vmatprep.mubr.bf16.mxu0 0
        %2775 = vmatmul.mubr.bf16.gmra.mrb[0].mxu0 %v2485
        %v2776 = vpop.f32.mrb[0].mxu0
        %v2777 = vadd.f32 %v2409, %v2776
        %v2778 = vpop.f32.mrb[0].mxu0
        %v2779 = vpop.f32.mrb[0].mxu0
        %v2780 = vadd.f32 %v2409, %v2779
        %v2781 = vpop.f32.mrb[0].mxu0
        %2782 = vdwg.mxu0
        %v2783 = vmax.f32 %v2529, 0.0
        %v2784 = vmax.f32 %v2532, 0.0
        %v2785 = vmax.f32 %v2537, 0.0
        %v2786 = vmax.f32 %v2540, 0.0
        %v2787 = vmax.f32 %v2545, 0.0
        %v2788 = vmax.f32 %v2548, 0.0
        %v2789 = vmax.f32 %v2553, 0.0
        %v2790 = vmax.f32 %v2556, 0.0
        %v2791 = vmax.f32 %v2561, 0.0
        %v2792 = vmax.f32 %v2564, 0.0
        %v2793 = vmax.f32 %v2569, 0.0
        %v2794 = vmax.f32 %v2572, 0.0
        %v2795 = vmax.f32 %v2577, 0.0
        %v2796 = vmax.f32 %v2580, 0.0
        %v2797 = vmax.f32 %v2585, 0.0
        %v2798 = vmax.f32 %v2588, 0.0
        %v2799 = vmax.f32 %v2593, 0.0
        %v2800 = vmax.f32 %v2596, 0.0
        %v2801 = vmax.f32 %v2601, 0.0
        %v2802 = vmax.f32 %v2604, 0.0
        %v2803 = vmax.f32 %v2609, 0.0
        %v2804 = vmax.f32 %v2612, 0.0
        %v2805 = vmax.f32 %v2617, 0.0
        %v2806 = vmax.f32 %v2620, 0.0
        %v2807 = vmax.f32 %v2625, 0.0
        %v2808 = vmax.f32 %v2628, 0.0
        %v2809 = vmax.f32 %v2633, 0.0
        %v2810 = vmax.f32 %v2636, 0.0
        %v2811 = vmax.f32 %v2641, 0.0
        %v2812 = vmax.f32 %v2644, 0.0
        %v2813 = vmax.f32 %v2649, 0.0
        %v2814 = vmax.f32 %v2652, 0.0
        %v2815 = vmax.f32 %v2657, 0.0
        %v2816 = vmax.f32 %v2660, 0.0
        %v2817 = vmax.f32 %v2665, 0.0
        %v2818 = vmax.f32 %v2668, 0.0
        %v2819 = vmax.f32 %v2673, 0.0
        %v2820 = vmax.f32 %v2676, 0.0
        %v2821 = vmax.f32 %v2681, 0.0
        %v2822 = vmax.f32 %v2684, 0.0
        %v2823 = vmax.f32 %v2689, 0.0
        %v2824 = vmax.f32 %v2692, 0.0
        %v2825 = vmax.f32 %v2697, 0.0
        %v2826 = vmax.f32 %v2700, 0.0
        %v2827 = vmax.f32 %v2705, 0.0
        %v2828 = vmax.f32 %v2708, 0.0
        %v2829 = vmax.f32 %v2713, 0.0
        %v2830 = vmax.f32 %v2716, 0.0
        %v2831 = vmax.f32 %v2721, 0.0
        %v2832 = vmax.f32 %v2724, 0.0
        %v2833 = vmax.f32 %v2729, 0.0
        %v2834 = vmax.f32 %v2732, 0.0
        %v2835 = vmax.f32 %v2737, 0.0
        %v2836 = vmax.f32 %v2740, 0.0
        %v2837 = vmax.f32 %v2745, 0.0
        %v2838 = vmax.f32 %v2748, 0.0
        %v2839 = vmax.f32 %v2753, 0.0
        %v2840 = vmax.f32 %v2756, 0.0
        %v2841 = vmax.f32 %v2761, 0.0
        %v2842 = vmax.f32 %v2764, 0.0
        %v2843 = vmax.f32 %v2769, 0.0
        %v2844 = vmax.f32 %v2772, 0.0
        %v2845 = vmax.f32 %v2777, 0.0
        %v2846 = vmax.f32 %v2780, 0.0
        %v2847 = vmax.f32 %v2783, %v2787
        %v2848 = vmax.f32 %v2784, %v2788
        %v2849 = vmax.f32 %v2785, %v2789
        %v2850 = vmax.f32 %v2786, %v2790
        %v2851 = vmax.f32 %v2791, %v2795
        %v2852 = vmax.f32 %v2792, %v2796
        %v2853 = vmax.f32 %v2793, %v2797
        %v2854 = vmax.f32 %v2794, %v2798
        %v2855 = vmax.f32 %v2799, %v2803
        %v2856 = vmax.f32 %v2800, %v2804
        %v2857 = vmax.f32 %v2801, %v2805
        %v2858 = vmax.f32 %v2802, %v2806
        %v2859 = vmax.f32 %v2807, %v2811
        %v2860 = vmax.f32 %v2808, %v2812
        %v2861 = vmax.f32 %v2809, %v2813
        %v2862 = vmax.f32 %v2810, %v2814
        %v2863 = vmax.f32 %v2815, %v2819
        %v2864 = vmax.f32 %v2816, %v2820
        %v2865 = vmax.f32 %v2817, %v2821
        %v2866 = vmax.f32 %v2818, %v2822
        %v2867 = vmax.f32 %v2823, %v2827
        %v2868 = vmax.f32 %v2824, %v2828
        %v2869 = vmax.f32 %v2825, %v2829
        %v2870 = vmax.f32 %v2826, %v2830
        %v2871 = vmax.f32 %v2831, %v2835
        %v2872 = vmax.f32 %v2832, %v2836
        %v2873 = vmax.f32 %v2833, %v2837
        %v2874 = vmax.f32 %v2834, %v2838
        %v2875 = vmax.f32 %v2839, %v2843
        %v2876 = vmax.f32 %v2840, %v2844
        %v2877 = vmax.f32 %v2841, %v2845
        %v2878 = vmax.f32 %v2842, %v2846
        %vm2879 = vcmask 261120
        %2880 = vst.msk [vmem:[#allocation2] sm:$0xff] %vm2879, %v2847
        %2881 = vst.msk [vmem:[#allocation2 + $0x8] sm:$0xff] %vm2879, %v2848
        %2882 = vst.msk [vmem:[#allocation2 + $0x10] sm:$0xff] %vm2879, %v2849
        %2883 = vst.msk [vmem:[#allocation2 + $0x18] sm:$0xff] %vm2879, %v2850
        %2884 = vst.msk [vmem:[#allocation2 + $0x20] sm:$0xff] %vm2879, %v2851
        %2885 = vst.msk [vmem:[#allocation2 + $0x28] sm:$0xff] %vm2879, %v2852
        %2886 = vst.msk [vmem:[#allocation2 + $0x30] sm:$0xff] %vm2879, %v2853
        %2887 = vst.msk [vmem:[#allocation2 + $0x38] sm:$0xff] %vm2879, %v2854
        %2888 = vst.msk [vmem:[#allocation2 + $0x40] sm:$0xff] %vm2879, %v2855
        %2889 = vst.msk [vmem:[#allocation2 + $0x48] sm:$0xff] %vm2879, %v2856
        %2890 = vst.msk [vmem:[#allocation2 + $0x50] sm:$0xff] %vm2879, %v2857
        %2891 = vst.msk [vmem:[#allocation2 + $0x58] sm:$0xff] %vm2879, %v2858
        %2892 = vst.msk [vmem:[#allocation2 + $0x60] sm:$0xff] %vm2879, %v2859
        %2893 = vst.msk [vmem:[#allocation2 + $0x68] sm:$0xff] %vm2879, %v2860
        %2894 = vst.msk [vmem:[#allocation2 + $0x70] sm:$0xff] %vm2879, %v2861
        %2895 = vst.msk [vmem:[#allocation2 + $0x78] sm:$0xff] %vm2879, %v2862
        %2896 = vst.msk [vmem:[#allocation2 + $0x80] sm:$0xff] %vm2879, %v2863
        %2897 = vst.msk [vmem:[#allocation2 + $0x88] sm:$0xff] %vm2879, %v2864
        %2898 = vst.msk [vmem:[#allocation2 + $0x90] sm:$0xff] %vm2879, %v2865
        %2899 = vst.msk [vmem:[#allocation2 + $0x98] sm:$0xff] %vm2879, %v2866
        %2900 = vst.msk [vmem:[#allocation2 + $0xa0] sm:$0xff] %vm2879, %v2867
        %2901 = vst.msk [vmem:[#allocation2 + $0xa8] sm:$0xff] %vm2879, %v2868
        %2902 = vst.msk [vmem:[#allocation2 + $0xb0] sm:$0xff] %vm2879, %v2869
        %2903 = vst.msk [vmem:[#allocation2 + $0xb8] sm:$0xff] %vm2879, %v2870
        %2904 = vst.msk [vmem:[#allocation2 + $0xc0] sm:$0xff] %vm2879, %v2871
        %2905 = vst.msk [vmem:[#allocation2 + $0xc8] sm:$0xff] %vm2879, %v2872
        %2906 = vst.msk [vmem:[#allocation2 + $0xd0] sm:$0xff] %vm2879, %v2873
        %2907 = vst.msk [vmem:[#allocation2 + $0xd8] sm:$0xff] %vm2879, %v2874
        %2908 = vst.msk [vmem:[#allocation2 + $0xe0] sm:$0xff] %vm2879, %v2875
        %2909 = vst.msk [vmem:[#allocation2 + $0xe8] sm:$0xff] %vm2879, %v2876
        %2910 = vst.msk [vmem:[#allocation2 + $0xf0] sm:$0xff] %vm2879, %v2877
        %2911 = vst.msk [vmem:[#allocation2 + $0xf8] sm:$0xff] %vm2879, %v2878
        %v2912 = vld [vmem:[#allocation2] ss:$2 sm:$0xff]
        %s2913 = scalar_lea.vmem [#allocation2], 16
        %v2914 = vld [vmem:[%s2913] ss:$2 sm:$0xff]
        %s2915 = scalar_lea.vmem [#allocation2], 32
        %v2916 = vld [vmem:[%s2915] ss:$2 sm:$0xff]
        %s2917 = scalar_lea.vmem [#allocation2], 48
        %v2918 = vld [vmem:[%s2917] ss:$2 sm:$0xff]
        %s2919 = scalar_lea.vmem [#allocation2], 64
        %v2920 = vld [vmem:[%s2919] ss:$2 sm:$0xff]
        %s2921 = scalar_lea.vmem [#allocation2], 80
        %v2922 = vld [vmem:[%s2921] ss:$2 sm:$0xff]
        %s2923 = scalar_lea.vmem [#allocation2], 96
        %v2924 = vld [vmem:[%s2923] ss:$2 sm:$0xff]
        %s2925 = scalar_lea.vmem [#allocation2], 112
        %v2926 = vld [vmem:[%s2925] ss:$2 sm:$0xff]
        %s2927 = scalar_lea.vmem [#allocation2], 128
        %v2928 = vld [vmem:[%s2927] ss:$2 sm:$0xff]
        %s2929 = scalar_lea.vmem [#allocation2], 144
        %v2930 = vld [vmem:[%s2929] ss:$2 sm:$0xff]
        %s2931 = scalar_lea.vmem [#allocation2], 160
        %v2932 = vld [vmem:[%s2931] ss:$2 sm:$0xff]
        %s2933 = scalar_lea.vmem [#allocation2], 176
        %v2934 = vld [vmem:[%s2933] ss:$2 sm:$0xff]
        %s2935 = scalar_lea.vmem [#allocation2], 192
        %v2936 = vld [vmem:[%s2935] ss:$2 sm:$0xff]
        %s2937 = scalar_lea.vmem [#allocation2], 208
        %v2938 = vld [vmem:[%s2937] ss:$2 sm:$0xff]
        %s2939 = scalar_lea.vmem [#allocation2], 224
        %v2940 = vld [vmem:[%s2939] ss:$2 sm:$0xff]
        %s2941 = scalar_lea.vmem [#allocation2], 240
        %v2942 = vld [vmem:[%s2941] ss:$2 sm:$0xff]
        %s2943 = scalar_lea.vmem [#allocation2], 1
        %v2944 = vld [vmem:[%s2943] ss:$2 sm:$0xff]
        %s2945 = scalar_lea.vmem [#allocation2], 17
        %v2946 = vld [vmem:[%s2945] ss:$2 sm:$0xff]
        %s2947 = scalar_lea.vmem [#allocation2], 33
        %v2948 = vld [vmem:[%s2947] ss:$2 sm:$0xff]
        %s2949 = scalar_lea.vmem [#allocation2], 49
        %v2950 = vld [vmem:[%s2949] ss:$2 sm:$0xff]
        %s2951 = scalar_lea.vmem [#allocation2], 65
        %v2952 = vld [vmem:[%s2951] ss:$2 sm:$0xff]
        %s2953 = scalar_lea.vmem [#allocation2], 81
        %v2954 = vld [vmem:[%s2953] ss:$2 sm:$0xff]
        %s2955 = scalar_lea.vmem [#allocation2], 97
        %v2956 = vld [vmem:[%s2955] ss:$2 sm:$0xff]
        %s2957 = scalar_lea.vmem [#allocation2], 113
        %v2958 = vld [vmem:[%s2957] ss:$2 sm:$0xff]
        %s2959 = scalar_lea.vmem [#allocation2], 129
        %v2960 = vld [vmem:[%s2959] ss:$2 sm:$0xff]
        %s2961 = scalar_lea.vmem [#allocation2], 145
        %v2962 = vld [vmem:[%s2961] ss:$2 sm:$0xff]
        %s2963 = scalar_lea.vmem [#allocation2], 161
        %v2964 = vld [vmem:[%s2963] ss:$2 sm:$0xff]
        %s2965 = scalar_lea.vmem [#allocation2], 177
        %v2966 = vld [vmem:[%s2965] ss:$2 sm:$0xff]
        %s2967 = scalar_lea.vmem [#allocation2], 193
        %v2968 = vld [vmem:[%s2967] ss:$2 sm:$0xff]
        %s2969 = scalar_lea.vmem [#allocation2], 209
        %v2970 = vld [vmem:[%s2969] ss:$2 sm:$0xff]
        %s2971 = scalar_lea.vmem [#allocation2], 225
        %v2972 = vld [vmem:[%s2971] ss:$2 sm:$0xff]
        %s2973 = scalar_lea.vmem [#allocation2], 241
        %v2974 = vld [vmem:[%s2973] ss:$2 sm:$0xff]
        %v2975 = vmax.f32 %v2912, %v2944
        %v2976 = vmax.f32 %v2914, %v2946
        %v2977 = vmax.f32 %v2916, %v2948
        %v2978 = vmax.f32 %v2918, %v2950
        %v2979 = vmax.f32 %v2920, %v2952
        %v2980 = vmax.f32 %v2922, %v2954
        %v2981 = vmax.f32 %v2924, %v2956
        %v2982 = vmax.f32 %v2926, %v2958
        %v2983 = vmax.f32 %v2928, %v2960
        %v2984 = vmax.f32 %v2930, %v2962
        %v2985 = vmax.f32 %v2932, %v2964
        %v2986 = vmax.f32 %v2934, %v2966
        %v2987 = vmax.f32 %v2936, %v2968
        %v2988 = vmax.f32 %v2938, %v2970
        %v2989 = vmax.f32 %v2940, %v2972
        %v2990 = vmax.f32 %v2942, %v2974
        %v2991 = vpack.c.bf16 %v2976, %v2975
        %v2992 = vpack.c.bf16 %v2978, %v2977
        %v2993 = vpack.c.bf16 %v2980, %v2979
        %v2994 = vpack.c.bf16 %v2982, %v2981
        %v2995 = vpack.c.bf16 %v2984, %v2983
        %v2996 = vpack.c.bf16 %v2986, %v2985
        %v2997 = vpack.c.bf16 %v2988, %v2987
        %v2998 = vpack.c.bf16 %v2990, %v2989
        %v3007 = vunpack.c.l.b16 %v2991
        %v3008 = vunpack.c.h.b16 %v2991
        %v3009 = vunpack.c.l.b16 %v2992
        %v3010 = vunpack.c.h.b16 %v2992
        %v3011 = vunpack.c.l.b16 %v2993
        %v3012 = vunpack.c.h.b16 %v2993
        %v3013 = vunpack.c.l.b16 %v2994
        %v3014 = vunpack.c.h.b16 %v2994
        %v3015 = vunpack.c.l.b16 %v2995
        %v3016 = vunpack.c.h.b16 %v2995
        %v3017 = vunpack.c.l.b16 %v2996
        %v3018 = vunpack.c.h.b16 %v2996
        %v3019 = vunpack.c.l.b16 %v2997
        %v3020 = vunpack.c.h.b16 %v2997
        %v3021 = vunpack.c.l.b16 %v2998
        %v3022 = vunpack.c.h.b16 %v2998
        %v3023 = vpack.c.b16 %v3007, %v3007
        %v3024 = vpack.c.b16 %v3008, %v3008
        %v3025 = vpack.c.b16 %v3009, %v3009
        %v3026 = vpack.c.b16 %v3010, %v3010
        %v3027 = vpack.c.b16 %v3011, %v3011
        %v3028 = vpack.c.b16 %v3012, %v3012
        %v3029 = vpack.c.b16 %v3013, %v3013
        %v3030 = vpack.c.b16 %v3014, %v3014
        %v3031 = vpack.c.b16 %v3015, %v3015
        %v3032 = vpack.c.b16 %v3016, %v3016
        %v3033 = vpack.c.b16 %v3017, %v3017
        %v3034 = vpack.c.b16 %v3018, %v3018
        %v3035 = vpack.c.b16 %v3019, %v3019
        %v3036 = vpack.c.b16 %v3020, %v3020
        %v3037 = vpack.c.b16 %v3021, %v3021
        %v3038 = vpack.c.b16 %v3022, %v3022
        %vm3055 = vcmask 257024
        %3056 = vst.msk [vmem:[%s222] sm:$0xf] %vm3055, %v3023
        %3057 = vst.msk [vmem:[%s222 + $0x4] sm:$0xf] %vm3055, %v3024
        %3058 = vst.msk [vmem:[%s222 + $0x8] sm:$0xf] %vm3055, %v3025
        %3059 = vst.msk [vmem:[%s222 + $0xc] sm:$0xf] %vm3055, %v3026
        %3060 = vst.msk [vmem:[%s222 + $0x10] sm:$0xf] %vm3055, %v3027
        %3061 = vst.msk [vmem:[%s222 + $0x14] sm:$0xf] %vm3055, %v3028
        %3062 = vst.msk [vmem:[%s222 + $0x18] sm:$0xf] %vm3055, %v3029
        %3063 = vst.msk [vmem:[%s222 + $0x1c] sm:$0xf] %vm3055, %v3030
        %3064 = vst.msk [vmem:[%s222 + $0x20] sm:$0xf] %vm3055, %v3031
        %3065 = vst.msk [vmem:[%s222 + $0x24] sm:$0xf] %vm3055, %v3032
        %3066 = vst.msk [vmem:[%s222 + $0x28] sm:$0xf] %vm3055, %v3033
        %3067 = vst.msk [vmem:[%s222 + $0x2c] sm:$0xf] %vm3055, %v3034
        %3068 = vst.msk [vmem:[%s222 + $0x30] sm:$0xf] %vm3055, %v3035
        %3069 = vst.msk [vmem:[%s222 + $0x34] sm:$0xf] %vm3055, %v3036
        %3070 = vst.msk [vmem:[%s222 + $0x38] sm:$0xf] %vm3055, %v3037
        %3071 = vst.msk [vmem:[%s222 + $0x3c] sm:$0xf] %vm3055, %v3038
        %s3072 = smul.u32 8, %s21
        %p3073 = scmp.lt.s32.totalorder %s20, 1
        %s3074 = scalar_select %p3073, %s20, 1
        %p3075 = scmp.lt.s32.totalorder %s3072, 15
        %s3076 = scalar_select %p3075, %s3072, 15
        %s3077 = smul.addr %s3076, 2
        %s3078 = smul.addr %s3074, 32
        %s3079 = sadd.s32 %s3077, %s3078
        %s3080 = smul.addr %s3079, 4
        %s3081 = scalar_lea.vmem %s3, %s3080
        // Predicated region
        $region41: #{cnn_image_encoder_forward.4} parent=31 // pred_check
          %p3082 = pneg %p116
        $region42: #{cnn_image_encoder_forward.4} parent=31 // pred_check_branch
          %3084 = sbr.rel (%p3082) target = $region44
        $region43: #{cnn_image_encoder_forward.4} parent=31 // pred_region
          %s3085 = smul.u32 8, %s21
        $region44: #{cnn_image_encoder_forward.4} parent=31 // pred_fallthru
          _
      $region32: #{cnn_image_encoder_forward.4} parent=5 // pred_fallthru
        _
      %p3086 = scmp.le.s32.totalorder 2, %s11
      // Predicated region
      $region45: #{cnn_image_encoder_forward.4} parent=5 // pred_check
        %p3087 = pneg %p3086
      $region46: #{cnn_image_encoder_forward.4} parent=5 // pred_check_branch
        %3089 = sbr.rel (%p3087) target = $region48
      $region47: #{cnn_image_encoder_forward.4} parent=5 // pred_region
        %s3090 = ssub.s32 %s11, 2
        // Predicated region
        $region49: #{cnn_image_encoder_forward.4} parent=47 // pred_check
          %p3091 = pneg %p122
        $region50: #{cnn_image_encoder_forward.4} parent=47 // pred_check_branch
          %3093 = sbr.rel (%p3091) target = $region52
        $region51: #{cnn_image_encoder_forward.4} parent=47 // pred_region
          %s3094 = smul.u32 8, %s23
          %p3095 = scmp.lt.s32.totalorder %s22, 1
          %s3096 = scalar_select %p3095, %s22, 1
          %p3097 = scmp.lt.s32.totalorder %s3094, 15
          %s3098 = scalar_select %p3097, %s3094, 15
          %s3099 = smul.addr %s3098, 2
          %s3100 = smul.addr %s3096, 32
          %s3101 = sadd.s32 %s3099, %s3100
          %s3102 = smul.addr %s3101, 4
          %s3103 = scalar_lea.vmem %s3, %s3102
        $region52: #{cnn_image_encoder_forward.4} parent=47 // pred_fallthru
          _
      $region48: #{cnn_image_encoder_forward.4} parent=5 // pred_fallthru
        _
    $region6: #{cnn_image_encoder_forward.4} parent=1 // loop_footer
      %s15 = sadd.s32 1, %s11
    $region7: #{cnn_image_encoder_forward.4} parent=1 // loop_footer_branch
      %10 = sbr.rel target = $region3
    $region8: #{cnn_image_encoder_forward.4} parent=1 // loop_exit
      _
    %3104 = vsyncpa [#allocation4], 1
    %s3105 = scalar_lea.sflag [#allocation4], 1
    %3106 = vsyncpa %s3105, 1
    %3107 = vsyncpa [#allocation6], 1

// kernel: cnn_image_encoder_forward.7
$region0: #{cnn_image_encoder_forward.7}
  #allocation0 [shape = 'u32[]', space=smem, size = 0x4, offset = 0x4, fixed_abs, tag = 'smem constant byte address 0x4 - core index']
  #allocation1 [shape = 'u32[144,128]{1,0:T(1,128)}', space=vmem, size = 0x12000, scoped, tag = 'internal scratch']
  #allocation2 [shape = 'f32[2,512]{1,0:T(2,128)}', space=vmem, size = 0x1000, scoped, tag = 'scratch operand']
  %s0 = inlined_call_operand.vmem [shape: bf16[2,2048], index: 0, kind: input, shape index: {}]
  %s1 = inlined_call_operand.hbm [shape: bf16[2048,1024], index: 1, kind: input, shape index: {}]
  %s2 = inlined_call_operand.hbm [shape: f32[1,1024], index: 2, kind: input, shape index: {}]
  %s3 = inlined_call_operand.hbm [shape: bf16[1024,512], index: 3, kind: input, shape index: {}]
  %s4 = inlined_call_operand.vmem [shape: f32[2,2,512], index: 4, kind: output, shape index: {}]
  %s5 = sld [smem:[#allocation0]]
  $region69: #{cnn_image_encoder_forward.7} parent=0
    _
  %s7 = ssub.s32 1, %s5
  %s8 = scalar_select 0, %s7, %s5
  $region1: #{cnn_image_encoder_forward.7} parent=0
    #allocation3 [shape = 'u8[4194304]{0}', space=vmem, size = 0x400000, scoped, tag = 'input window, operand 1']
    #allocation4 [shape = 's32[2]{0}', space=sflag, size = 0x8, scoped, tag = 'scoped memory for cnn_image_encoder_forward.7']
    #allocation5 [shape = 'u8[4096]{0}', space=vmem, size = 0x1000, scoped, tag = 'input window, operand 2']
    #allocation6 [shape = 's32[2]{0}', space=sflag, size = 0x8, scoped, tag = 'scoped memory for cnn_image_encoder_forward.7']
    #allocation7 [shape = 'u8[1048576]{0}', space=vmem, size = 0x100000, scoped, tag = 'input window, operand 3']
    %9 = vsyncpa [#allocation4], 0
    %s10 = scalar_lea.sflag [#allocation4], 1
    %11 = vsyncpa %s10, 0
    %12 = vsyncpa [#allocation6], 0
    %s13 = scalar_lea.sflag [#allocation6], 1
    %14 = vsyncpa %s13, 0
    loop: start=0, step=1, limit=4
    $region2: #{cnn_image_encoder_forward.7} parent=1 // loop_pre_header
      _
    $region3: #{cnn_image_encoder_forward.7} parent=1 // loop_header
      %s16 = sphi 0, %s20
      %p17 = scmp.ge.s32.totalorder %s16, 4
      %s23 = sphi 0, %s35
      %s24 = sphi 0, %s31
      %s25 = sphi 0, %s23
      %s26 = sphi 0, %s24
      %s27 = sphi 0, %s25
      %s28 = sphi 0, %s26
      %s38 = sphi 0, %s40
      %s41 = sphi 0, %s38
      %s42 = sphi 0, %s41
      %s58 = sphi 0, %s42
      %s66 = sphi 0, %s68
      %s69 = sphi 0, %s66
      %s70 = sphi 0, %s69
      %s86 = sphi 0, %s70
      %s92 = sphi 0, %s94
      %s95 = sphi 0, %s92
      %s96 = sphi 0, %s95
      %s112 = sphi 0, %s96
      %s118 = sphi 0, %s120
      %s121 = sphi 0, %s118
      %s122 = sphi 0, %s121
      %s138 = sphi 0, %s122
      %s144 = sphi 0, %s146
      %s147 = sphi 0, %s144
      %s148 = sphi 0, %s147
      %s164 = sphi 0, %s148
    $region4: #{cnn_image_encoder_forward.7} parent=1 // loop_header_branch
      %19 = sbr.rel (%p17) target = $region8
    $region5: #{cnn_image_encoder_forward.7} parent=1 // loop_body
      %s21 = ssub.s32 %s16, 1
      %s22 = ssub.s32 %s16, 2
      %s29 = sadd.s32 1, %s24
      %p30 = scmp.ge.s32.totalorder %s29, 1
      %s31 = scalar_select %p30, 0, %s29
      %s32 = sadd.s32 1, %s23
      %s33 = scalar_select %p30, %s32, %s23
      %p34 = scmp.ge.s32.totalorder %s33, 2
      %s35 = scalar_select %p34, 0, %s33
      %s36 = ssub.s32 %s24, %s31
      %p37 = scmp.eq.s32.totalorder %s36, 0
      %s39 = sadd.s32 %s38, 1
      %s40 = scalar_select %p37, %s38, %s39
      %p43 = pneg %p37
      %p44 = scmp.eq.s32.totalorder %s16, 1
      %p45 = por %p43, %p44
      %p46 = scmp.ne.s32.totalorder %s38, %s41
      %p47 = scmp.eq.s32.totalorder %s16, 0
      %p48 = por %p46, %p47
      %p49 = scmp.ne.s32.totalorder %s38, %s41
      %p50 = scmp.eq.s32.totalorder %s21, 1
      %p51 = por %p49, %p50
      %p52 = scmp.ne.s32.totalorder %s41, %s42
      %p53 = scmp.eq.s32.totalorder %s21, 0
      %p54 = por %p52, %p53
      %p55 = scmp.ne.s32.totalorder %s41, %s42
      %p56 = scmp.eq.s32.totalorder %s22, 1
      %p57 = por %p55, %p56
      %p59 = scmp.ne.s32.totalorder %s42, %s58
      %p60 = scmp.eq.s32.totalorder %s22, 0
      %p61 = por %p59, %p60
      %s62 = ssub.s32 %s24, %s31
      %s63 = ssub.s32 %s23, %s35
      %s64 = sor.u32 %s62, %s63
      %p65 = scmp.eq.s32.totalorder %s64, 0
      %s67 = sadd.s32 %s66, 1
      %s68 = scalar_select %p65, %s66, %s67
      %p71 = pneg %p65
      %p72 = scmp.eq.s32.totalorder %s16, 1
      %p73 = por %p71, %p72
      %p74 = scmp.ne.s32.totalorder %s66, %s69
      %p75 = scmp.eq.s32.totalorder %s16, 0
      %p76 = por %p74, %p75
      %p77 = scmp.ne.s32.totalorder %s66, %s69
      %p78 = scmp.eq.s32.totalorder %s21, 1
      %p79 = por %p77, %p78
      %p80 = scmp.ne.s32.totalorder %s69, %s70
      %p81 = scmp.eq.s32.totalorder %s21, 0
      %p82 = por %p80, %p81
      %p83 = scmp.ne.s32.totalorder %s69, %s70
      %p84 = scmp.eq.s32.totalorder %s22, 1
      %p85 = por %p83, %p84
      %p87 = scmp.ne.s32.totalorder %s70, %s86
      %p88 = scmp.eq.s32.totalorder %s22, 0
      %p89 = por %p87, %p88
      %s90 = ssub.s32 %s23, %s35
      %p91 = scmp.eq.s32.totalorder %s90, 0
      %s93 = sadd.s32 %s92, 1
      %s94 = scalar_select %p91, %s92, %s93
      %p97 = pneg %p91
      %p98 = scmp.eq.s32.totalorder %s16, 1
      %p99 = por %p97, %p98
      %p100 = scmp.ne.s32.totalorder %s92, %s95
      %p101 = scmp.eq.s32.totalorder %s16, 0
      %p102 = por %p100, %p101
      %p103 = scmp.ne.s32.totalorder %s92, %s95
      %p104 = scmp.eq.s32.totalorder %s21, 1
      %p105 = por %p103, %p104
      %p106 = scmp.ne.s32.totalorder %s95, %s96
      %p107 = scmp.eq.s32.totalorder %s21, 0
      %p108 = por %p106, %p107
      %p109 = scmp.ne.s32.totalorder %s95, %s96
      %p110 = scmp.eq.s32.totalorder %s22, 1
      %p111 = por %p109, %p110
      %p113 = scmp.ne.s32.totalorder %s96, %s112
      %p114 = scmp.eq.s32.totalorder %s22, 0
      %p115 = por %p113, %p114
      %s116 = ssub.s32 %s23, %s35
      %p117 = scmp.eq.s32.totalorder %s116, 0
      %s119 = sadd.s32 %s118, 1
      %s120 = scalar_select %p117, %s118, %s119
      %p123 = pneg %p117
      %p124 = scmp.eq.s32.totalorder %s16, 1
      %p125 = por %p123, %p124
      %p126 = scmp.ne.s32.totalorder %s118, %s121
      %p127 = scmp.eq.s32.totalorder %s16, 0
      %p128 = por %p126, %p127
      %p129 = scmp.ne.s32.totalorder %s118, %s121
      %p130 = scmp.eq.s32.totalorder %s21, 1
      %p131 = por %p129, %p130
      %p132 = scmp.ne.s32.totalorder %s121, %s122
      %p133 = scmp.eq.s32.totalorder %s21, 0
      %p134 = por %p132, %p133
      %p135 = scmp.ne.s32.totalorder %s121, %s122
      %p136 = scmp.eq.s32.totalorder %s22, 1
      %p137 = por %p135, %p136
      %p139 = scmp.ne.s32.totalorder %s122, %s138
      %p140 = scmp.eq.s32.totalorder %s22, 0
      %p141 = por %p139, %p140
      %s142 = ssub.s32 %s23, %s35
      %p143 = scmp.eq.s32.totalorder %s142, 0
      %s145 = sadd.s32 %s144, 1
      %s146 = scalar_select %p143, %s144, %s145
      %p149 = pneg %p143
      %p150 = scmp.eq.s32.totalorder %s16, 1
      %p151 = por %p149, %p150
      %p152 = scmp.ne.s32.totalorder %s144, %s147
      %p153 = scmp.eq.s32.totalorder %s16, 0
      %p154 = por %p152, %p153
      %p155 = scmp.ne.s32.totalorder %s144, %s147
      %p156 = scmp.eq.s32.totalorder %s21, 1
      %p157 = por %p155, %p156
      %p158 = scmp.ne.s32.totalorder %s147, %s148
      %p159 = scmp.eq.s32.totalorder %s21, 0
      %p160 = por %p158, %p159
      %p161 = scmp.ne.s32.totalorder %s147, %s148
      %p162 = scmp.eq.s32.totalorder %s22, 1
      %p163 = por %p161, %p162
      %p165 = scmp.ne.s32.totalorder %s148, %s164
      %p166 = scmp.eq.s32.totalorder %s22, 0
      %p167 = por %p165, %p166
      %p168 = scmp.le.s32.totalorder 1, %s16
      %p169 = scmp.lt.s32.totalorder %s16, 3
      %p170 = pnand %p168, %p169
      %p171 = pneg %p170
      // Predicated region
      $region9: #{cnn_image_encoder_forward.7} parent=5 // pred_check
        _
      $region10: #{cnn_image_encoder_forward.7} parent=5 // pred_check_branch
        %173 = sbr.rel (%p170) target = $region12
      $region11: #{cnn_image_encoder_forward.7} parent=5 // pred_region
        %s174 = ssub.s32 %s16, 1
        // Predicated region
        $region13: #{cnn_image_encoder_forward.7} parent=11 // pred_check
          %p175 = pneg %p54
        $region14: #{cnn_image_encoder_forward.7} parent=11 // pred_check_branch
          %177 = sbr.rel (%p175) target = $region16
        $region15: #{cnn_image_encoder_forward.7} parent=11 // pred_region
          %s178 = smul.u32 16, %s26
          %p179 = scmp.lt.s32.totalorder %s178, 15
          %s180 = scalar_select %p179, %s178, 15
          %s181 = scalar_lea.vmem %s0, %s180
          %s182 = smul.u32 16, %s26
        $region16: #{cnn_image_encoder_forward.7} parent=11 // pred_fallthru
          _
      $region12: #{cnn_image_encoder_forward.7} parent=5 // pred_fallthru
        _
      %p183 = scmp.lt.s32.totalorder %s16, 2
      // Predicated region
      $region17: #{cnn_image_encoder_forward.7} parent=5 // pred_check
        %p184 = pneg %p183
      $region18: #{cnn_image_encoder_forward.7} parent=5 // pred_check_branch
        %186 = sbr.rel (%p184) target = $region20
      $region19: #{cnn_image_encoder_forward.7} parent=5 // pred_region
        // Predicated region
        $region21: #{cnn_image_encoder_forward.7} parent=19 // pred_check
          %p187 = pneg %p76
        $region22: #{cnn_image_encoder_forward.7} parent=19 // pred_check_branch
          %189 = sbr.rel (%p187) target = $region24
        $region23: #{cnn_image_encoder_forward.7} parent=19 // pred_region
          %s190 = sand.u32 %s66, 1
          %s191 = scalar_lea.sflag [#allocation4], %s190
          %s192 = sand.u32 %s66, 1
          %s193 = smul.addr %s192, 4096
          %s194 = scalar_lea.vmem [#allocation3], %s193
          %s195 = smul.u32 256, %s24
          %s196 = smul.u32 4, %s23
          %s198 = ssub.s32 65536, 65536
          %199 = vsyncadd %s191, %s198
          %s200 = smul.addr %s195, 8
          %s201 = sadd.s32 %s196, %s200
          %s202 = smul.addr %s201, 64
          %s203 = scalar_lea.hbm %s1, %s202
          %s204 = sshll.u32 %s194, 4
          %s205 = int_to_ptr.vmem [resolvable:$true] %s204
          %210 = dma.hbm_to_vmem [thread:$0]  %s203, 65536, %s205, %s191, 512, 256, 16
        $region24: #{cnn_image_encoder_forward.7} parent=19 // pred_fallthru
          _
        // Predicated region
        $region25: #{cnn_image_encoder_forward.7} parent=19 // pred_check
          %p211 = pneg %p102
        $region26: #{cnn_image_encoder_forward.7} parent=19 // pred_check_branch
          %213 = sbr.rel (%p211) target = $region28
        $region27: #{cnn_image_encoder_forward.7} parent=19 // pred_region
          %s214 = sand.u32 %s16, 1
          %s215 = scalar_lea.sflag [#allocation6], %s214
          %s216 = sand.u32 %s92, 1
          %s217 = smul.addr %s216, 4
          %s218 = scalar_lea.vmem [#allocation5], %s217
          %s219 = smul.u32 4, %s23
          %s221 = ssub.s32 64, 64
          %222 = vsyncadd %s215, %s221
          %s223 = smul.addr %s219, 16
          %s224 = scalar_lea.hbm %s2, %s223
          %s226 = sshll.u32 %s218, 4
          %s227 = int_to_ptr.vmem [resolvable:$true] %s226
          %229 = dma.hbm_to_vmem [thread:$0]  %s224, 64, %s227, %s215
        $region28: #{cnn_image_encoder_forward.7} parent=19 // pred_fallthru
          _
        // Predicated region
        $region29: #{cnn_image_encoder_forward.7} parent=19 // pred_check
          %p230 = pneg %p128
        $region30: #{cnn_image_encoder_forward.7} parent=19 // pred_check_branch
          %232 = sbr.rel (%p230) target = $region32
        $region31: #{cnn_image_encoder_forward.7} parent=19 // pred_region
          %s233 = sand.u32 %s16, 1
          %s234 = scalar_lea.sflag [#allocation6], %s233
          %s235 = sand.u32 %s118, 1
          %s236 = smul.addr %s235, 1024
          %s237 = scalar_lea.vmem [#allocation7], %s236
          %s238 = smul.u32 64, %s23
          %s240 = ssub.s32 16384, 16384
          %241 = vsyncadd %s234, %s240
          %s242 = smul.addr %s238, 4
          %s243 = smul.addr %s242, 64
          %s244 = scalar_lea.hbm %s3, %s243
          %s245 = sshll.u32 %s237, 4
          %s246 = int_to_ptr.vmem [resolvable:$true] %s245
          %251 = dma.hbm_to_vmem [thread:$0]  %s244, 16384, %s246, %s234, 256, 256, 16
        $region32: #{cnn_image_encoder_forward.7} parent=19 // pred_fallthru
          _
      $region20: #{cnn_image_encoder_forward.7} parent=5 // pred_fallthru
        _
      %p252 = scmp.le.s32.totalorder 1, %s16
      %p253 = scmp.lt.s32.totalorder %s16, 3
      %p254 = pnand %p252, %p253
      %p255 = pneg %p254
      // Predicated region
      $region33: #{cnn_image_encoder_forward.7} parent=5 // pred_check
        _
      $region34: #{cnn_image_encoder_forward.7} parent=5 // pred_check_branch
        %257 = sbr.rel (%p254) target = $region36
      $region35: #{cnn_image_encoder_forward.7} parent=5 // pred_region
        %s258 = ssub.s32 %s16, 1
        %s259 = sand.u32 %s69, 1
        %s260 = scalar_lea.sflag [#allocation4], %s259
        %s261 = sand.u32 %s69, 1
        %s262 = smul.addr %s261, 4096
        %s263 = scalar_lea.vmem [#allocation3], %s262
        // Predicated region
        $region37: #{cnn_image_encoder_forward.7} parent=35 // pred_check
          %p264 = pneg %p82
        $region38: #{cnn_image_encoder_forward.7} parent=35 // pred_check_branch
          %266 = sbr.rel (%p264) target = $region40
        $region39: #{cnn_image_encoder_forward.7} parent=35 // pred_region
          %267 = dma.done %s260, 65536
        $region40: #{cnn_image_encoder_forward.7} parent=35 // pred_fallthru
          _
        %s268 = sand.u32 %s21, 1
        %s269 = scalar_lea.sflag [#allocation6], %s268
        %s270 = sand.u32 %s95, 1
        %s271 = smul.addr %s270, 4
        %s272 = scalar_lea.vmem [#allocation5], %s271
        // Predicated region
        $region41: #{cnn_image_encoder_forward.7} parent=35 // pred_check
          %p273 = pneg %p108
        $region42: #{cnn_image_encoder_forward.7} parent=35 // pred_check_branch
          %275 = sbr.rel (%p273) target = $region44
        $region43: #{cnn_image_encoder_forward.7} parent=35 // pred_region
          %276 = dma.done %s269, 64
        $region44: #{cnn_image_encoder_forward.7} parent=35 // pred_fallthru
          _
        %s277 = sand.u32 %s21, 1
        %s278 = scalar_lea.sflag [#allocation6], %s277
        %s279 = sand.u32 %s121, 1
        %s280 = smul.addr %s279, 1024
        %s281 = scalar_lea.vmem [#allocation7], %s280
        // Predicated region
        $region45: #{cnn_image_encoder_forward.7} parent=35 // pred_check
          %p282 = pneg %p134
        $region46: #{cnn_image_encoder_forward.7} parent=35 // pred_check_branch
          %284 = sbr.rel (%p282) target = $region48
        $region47: #{cnn_image_encoder_forward.7} parent=35 // pred_region
          %285 = dma.done %s278, 16384
        $region48: #{cnn_image_encoder_forward.7} parent=35 // pred_fallthru
          _
        %s286 = smul.u32 16, %s26
        %p287 = scmp.lt.s32.totalorder %s286, 15
        %s288 = scalar_select %p287, %s286, 15
        %s289 = scalar_lea.vmem %s0, %s288
        %p290 = pneg %p54
        %p291 = pneg %p51
        %s292 = sand.u32 %s69, 1
        %s293 = scalar_lea.sflag [#allocation4], %s292
        %s294 = sand.u32 %s69, 1
        %s295 = smul.addr %s294, 4096
        %s296 = scalar_lea.vmem [#allocation3], %s295
        %p297 = pneg %p82
        %p298 = pneg %p79
        %s299 = sand.u32 %s21, 1
        %s300 = scalar_lea.sflag [#allocation6], %s299
        %s301 = sand.u32 %s95, 1
        %s302 = smul.addr %s301, 4
        %s303 = scalar_lea.vmem [#allocation5], %s302
        %p304 = pneg %p108
        %p305 = pneg %p105
        %s306 = sand.u32 %s21, 1
        %s307 = scalar_lea.sflag [#allocation6], %s306
        %s308 = sand.u32 %s121, 1
        %s309 = smul.addr %s308, 1024
        %s310 = scalar_lea.vmem [#allocation7], %s309
        %p311 = pneg %p134
        %p312 = pneg %p131
        %p313 = pneg %p160
        %p314 = pneg %p157
        %p315 = scmp.lt.s32.totalorder %s25, 1
        %s316 = scalar_select %p315, %s25, 1
        %s317 = smul.addr %s316, 4
        %s318 = smul.addr %s317, 2
        %s319 = scalar_lea.vmem %s4, %s318
        %s320 = smul.u32 16, %s26
        %p321 = scmp.lt.s32.totalorder %s320, 15
        %s322 = scalar_select %p321, %s320, 15
        %s323 = scalar_lea.vmem %s0, %s322
        %s324 = smul.u32 16, %s26
        %s325 = smul.u32 256, %s26
        %s326 = smul.u32 4, %s25
        %s327 = smul.u32 4, %s25
        %s328 = smul.u32 64, %s25
        %p329 = scmp.lt.s32.totalorder %s25, 1
        %s330 = scalar_select %p329, %s25, 1
        %s331 = smul.addr %s330, 4
        %s332 = smul.addr %s331, 2
        %s333 = scalar_lea.vmem %s4, %s332
        %p334 = scmp.eq.s32.totalorder %s26, 0
        // Predicated region
        $region49: #{cnn_image_encoder_forward.7} parent=35 // pred_check
          %p335 = pneg %p334
        $region50: #{cnn_image_encoder_forward.7} parent=35 // pred_check_branch
          %337 = sbr.rel (%p335) target = $region52
        $region51: #{cnn_image_encoder_forward.7} parent=35 // pred_region
          %338 = vst [vmem:[#allocation2] sm:$0xff] 0.0
        $region52: #{cnn_image_encoder_forward.7} parent=35 // pred_fallthru
          _
        %v339 = vld [vmem:[#allocation2] sm:$0xff]
        %v340 = vld [vmem:[%s323] sm:$0xff]
        %v341 = vld [vmem:[%s323 + $0x8] sm:$0xff]
        %v342 = vld [vmem:[%s263] sm:$0xff]
        %v343 = vld [vmem:[%s263 + $0x8] sm:$0xff]
        %v344 = vld [vmem:[%s263 + $0x10] sm:$0xff]
        %v345 = vld [vmem:[%s263 + $0x18] sm:$0xff]
        %v346 = vld [vmem:[%s263 + $0x20] sm:$0xff]
        %v347 = vld [vmem:[%s263 + $0x28] sm:$0xff]
        %v348 = vld [vmem:[%s263 + $0x30] sm:$0xff]
        %v349 = vld [vmem:[%s263 + $0x38] sm:$0xff]
        %v350 = vld [vmem:[%s263 + $0x40] sm:$0xff]
        %v351 = vld [vmem:[%s263 + $0x48] sm:$0xff]
        %v352 = vld [vmem:[%s263 + $0x50] sm:$0xff]
        %v353 = vld [vmem:[%s263 + $0x58] sm:$0xff]
        %v354 = vld [vmem:[%s263 + $0x60] sm:$0xff]
        %v355 = vld [vmem:[%s263 + $0x68] sm:$0xff]
        %v356 = vld [vmem:[%s263 + $0x70] sm:$0xff]
        %v357 = vld [vmem:[%s263 + $0x78] sm:$0xff]
        %v358 = vld [vmem:[%s263 + $0x80] sm:$0xff]
        %v359 = vld [vmem:[%s263 + $0x88] sm:$0xff]
        %v360 = vld [vmem:[%s263 + $0x90] sm:$0xff]
        %v361 = vld [vmem:[%s263 + $0x98] sm:$0xff]
        %v362 = vld [vmem:[%s263 + $0xa0] sm:$0xff]
        %v363 = vld [vmem:[%s263 + $0xa8] sm:$0xff]
        %v364 = vld [vmem:[%s263 + $0xb0] sm:$0xff]
        %v365 = vld [vmem:[%s263 + $0xb8] sm:$0xff]
        %v366 = vld [vmem:[%s263 + $0xc0] sm:$0xff]
        %v367 = vld [vmem:[%s263 + $0xc8] sm:$0xff]
        %v368 = vld [vmem:[%s263 + $0xd0] sm:$0xff]
        %v369 = vld [vmem:[%s263 + $0xd8] sm:$0xff]
        %v370 = vld [vmem:[%s263 + $0xe0] sm:$0xff]
        %v371 = vld [vmem:[%s263 + $0xe8] sm:$0xff]
        %v372 = vld [vmem:[%s263 + $0xf0] sm:$0xff]
        %v373 = vld [vmem:[%s263 + $0xf8] sm:$0xff]
        %v374 = vld [vmem:[%s263 + $0x100] sm:$0xff]
        %v375 = vld [vmem:[%s263 + $0x108] sm:$0xff]
        %v376 = vld [vmem:[%s263 + $0x110] sm:$0xff]
        %v377 = vld [vmem:[%s263 + $0x118] sm:$0xff]
        %v378 = vld [vmem:[%s263 + $0x120] sm:$0xff]
        %v379 = vld [vmem:[%s263 + $0x128] sm:$0xff]
        %v380 = vld [vmem:[%s263 + $0x130] sm:$0xff]
        %v381 = vld [vmem:[%s263 + $0x138] sm:$0xff]
        %v382 = vld [vmem:[%s263 + $0x140] sm:$0xff]
        %v383 = vld [vmem:[%s263 + $0x148] sm:$0xff]
        %v384 = vld [vmem:[%s263 + $0x150] sm:$0xff]
        %v385 = vld [vmem:[%s263 + $0x158] sm:$0xff]
        %v386 = vld [vmem:[%s263 + $0x160] sm:$0xff]
        %v387 = vld [vmem:[%s263 + $0x168] sm:$0xff]
        %v388 = vld [vmem:[%s263 + $0x170] sm:$0xff]
        %v389 = vld [vmem:[%s263 + $0x178] sm:$0xff]
        %v390 = vld [vmem:[%s263 + $0x180] sm:$0xff]
        %v391 = vld [vmem:[%s263 + $0x188] sm:$0xff]
        %v392 = vld [vmem:[%s263 + $0x190] sm:$0xff]
        %v393 = vld [vmem:[%s263 + $0x198] sm:$0xff]
        %v394 = vld [vmem:[%s263 + $0x1a0] sm:$0xff]
        %v395 = vld [vmem:[%s263 + $0x1a8] sm:$0xff]
        %v396 = vld [vmem:[%s263 + $0x1b0] sm:$0xff]
        %v397 = vld [vmem:[%s263 + $0x1b8] sm:$0xff]
        %v398 = vld [vmem:[%s263 + $0x1c0] sm:$0xff]
        %v399 = vld [vmem:[%s263 + $0x1c8] sm:$0xff]
        %v400 = vld [vmem:[%s263 + $0x1d0] sm:$0xff]
        %v401 = vld [vmem:[%s263 + $0x1d8] sm:$0xff]
        %v402 = vld [vmem:[%s263 + $0x1e0] sm:$0xff]
        %v403 = vld [vmem:[%s263 + $0x1e8] sm:$0xff]
        %v404 = vld [vmem:[%s263 + $0x1f0] sm:$0xff]
        %v405 = vld [vmem:[%s263 + $0x1f8] sm:$0xff]
        %v406 = vld [vmem:[%s263 + $0x200] sm:$0xff]
        %v407 = vld [vmem:[%s263 + $0x208] sm:$0xff]
        %v408 = vld [vmem:[%s263 + $0x210] sm:$0xff]
        %v409 = vld [vmem:[%s263 + $0x218] sm:$0xff]
        %v410 = vld [vmem:[%s263 + $0x220] sm:$0xff]
        %v411 = vld [vmem:[%s263 + $0x228] sm:$0xff]
        %v412 = vld [vmem:[%s263 + $0x230] sm:$0xff]
        %v413 = vld [vmem:[%s263 + $0x238] sm:$0xff]
        %v414 = vld [vmem:[%s263 + $0x240] sm:$0xff]
        %v415 = vld [vmem:[%s263 + $0x248] sm:$0xff]
        %v416 = vld [vmem:[%s263 + $0x250] sm:$0xff]
        %v417 = vld [vmem:[%s263 + $0x258] sm:$0xff]
        %v418 = vld [vmem:[%s263 + $0x260] sm:$0xff]
        %v419 = vld [vmem:[%s263 + $0x268] sm:$0xff]
        %v420 = vld [vmem:[%s263 + $0x270] sm:$0xff]
        %v421 = vld [vmem:[%s263 + $0x278] sm:$0xff]
        %v422 = vld [vmem:[%s263 + $0x280] sm:$0xff]
        %v423 = vld [vmem:[%s263 + $0x288] sm:$0xff]
        %v424 = vld [vmem:[%s263 + $0x290] sm:$0xff]
        %v425 = vld [vmem:[%s263 + $0x298] sm:$0xff]
        %v426 = vld [vmem:[%s263 + $0x2a0] sm:$0xff]
        %v427 = vld [vmem:[%s263 + $0x2a8] sm:$0xff]
        %v428 = vld [vmem:[%s263 + $0x2b0] sm:$0xff]
        %v429 = vld [vmem:[%s263 + $0x2b8] sm:$0xff]
        %v430 = vld [vmem:[%s263 + $0x2c0] sm:$0xff]
        %v431 = vld [vmem:[%s263 + $0x2c8] sm:$0xff]
        %v432 = vld [vmem:[%s263 + $0x2d0] sm:$0xff]
        %v433 = vld [vmem:[%s263 + $0x2d8] sm:$0xff]
        %v434 = vld [vmem:[%s263 + $0x2e0] sm:$0xff]
        %v435 = vld [vmem:[%s263 + $0x2e8] sm:$0xff]
        %v436 = vld [vmem:[%s263 + $0x2f0] sm:$0xff]
        %v437 = vld [vmem:[%s263 + $0x2f8] sm:$0xff]
        %v438 = vld [vmem:[%s263 + $0x300] sm:$0xff]
        %v439 = vld [vmem:[%s263 + $0x308] sm:$0xff]
        %v440 = vld [vmem:[%s263 + $0x310] sm:$0xff]
        %v441 = vld [vmem:[%s263 + $0x318] sm:$0xff]
        %v442 = vld [vmem:[%s263 + $0x320] sm:$0xff]
        %v443 = vld [vmem:[%s263 + $0x328] sm:$0xff]
        %v444 = vld [vmem:[%s263 + $0x330] sm:$0xff]
        %v445 = vld [vmem:[%s263 + $0x338] sm:$0xff]
        %v446 = vld [vmem:[%s263 + $0x340] sm:$0xff]
        %v447 = vld [vmem:[%s263 + $0x348] sm:$0xff]
        %v448 = vld [vmem:[%s263 + $0x350] sm:$0xff]
        %v449 = vld [vmem:[%s263 + $0x358] sm:$0xff]
        %v450 = vld [vmem:[%s263 + $0x360] sm:$0xff]
        %v451 = vld [vmem:[%s263 + $0x368] sm:$0xff]
        %v452 = vld [vmem:[%s263 + $0x370] sm:$0xff]
        %v453 = vld [vmem:[%s263 + $0x378] sm:$0xff]
        %v454 = vld [vmem:[%s263 + $0x380] sm:$0xff]
        %v455 = vld [vmem:[%s263 + $0x388] sm:$0xff]
        %v456 = vld [vmem:[%s263 + $0x390] sm:$0xff]
        %v457 = vld [vmem:[%s263 + $0x398] sm:$0xff]
        %v458 = vld [vmem:[%s263 + $0x3a0] sm:$0xff]
        %v459 = vld [vmem:[%s263 + $0x3a8] sm:$0xff]
        %v460 = vld [vmem:[%s263 + $0x3b0] sm:$0xff]
        %v461 = vld [vmem:[%s263 + $0x3b8] sm:$0xff]
        %v462 = vld [vmem:[%s263 + $0x3c0] sm:$0xff]
        %v463 = vld [vmem:[%s263 + $0x3c8] sm:$0xff]
        %v464 = vld [vmem:[%s263 + $0x3d0] sm:$0xff]
        %v465 = vld [vmem:[%s263 + $0x3d8] sm:$0xff]
        %v466 = vld [vmem:[%s263 + $0x3e0] sm:$0xff]
        %v467 = vld [vmem:[%s263 + $0x3e8] sm:$0xff]
        %v468 = vld [vmem:[%s263 + $0x3f0] sm:$0xff]
        %v469 = vld [vmem:[%s263 + $0x3f8] sm:$0xff]
        %v470 = vld [vmem:[%s263 + $0x400] sm:$0xff]
        %v471 = vld [vmem:[%s263 + $0x408] sm:$0xff]
        %v472 = vld [vmem:[%s263 + $0x410] sm:$0xff]
        %v473 = vld [vmem:[%s263 + $0x418] sm:$0xff]
        %v474 = vld [vmem:[%s263 + $0x420] sm:$0xff]
        %v475 = vld [vmem:[%s263 + $0x428] sm:$0xff]
        %v476 = vld [vmem:[%s263 + $0x430] sm:$0xff]
        %v477 = vld [vmem:[%s263 + $0x438] sm:$0xff]
        %v478 = vld [vmem:[%s263 + $0x440] sm:$0xff]
        %v479 = vld [vmem:[%s263 + $0x448] sm:$0xff]
        %v480 = vld [vmem:[%s263 + $0x450] sm:$0xff]
        %v481 = vld [vmem:[%s263 + $0x458] sm:$0xff]
        %v482 = vld [vmem:[%s263 + $0x460] sm:$0xff]
        %v483 = vld [vmem:[%s263 + $0x468] sm:$0xff]
        %v484 = vld [vmem:[%s263 + $0x470] sm:$0xff]
        %v485 = vld [vmem:[%s263 + $0x478] sm:$0xff]
        %v486 = vld [vmem:[%s263 + $0x480] sm:$0xff]
        %v487 = vld [vmem:[%s263 + $0x488] sm:$0xff]
        %v488 = vld [vmem:[%s263 + $0x490] sm:$0xff]
        %v489 = vld [vmem:[%s263 + $0x498] sm:$0xff]
        %v490 = vld [vmem:[%s263 + $0x4a0] sm:$0xff]
        %v491 = vld [vmem:[%s263 + $0x4a8] sm:$0xff]
        %v492 = vld [vmem:[%s263 + $0x4b0] sm:$0xff]
        %v493 = vld [vmem:[%s263 + $0x4b8] sm:$0xff]
        %v494 = vld [vmem:[%s263 + $0x4c0] sm:$0xff]
        %v495 = vld [vmem:[%s263 + $0x4c8] sm:$0xff]
        %v496 = vld [vmem:[%s263 + $0x4d0] sm:$0xff]
        %v497 = vld [vmem:[%s263 + $0x4d8] sm:$0xff]
        %v498 = vld [vmem:[%s263 + $0x4e0] sm:$0xff]
        %v499 = vld [vmem:[%s263 + $0x4e8] sm:$0xff]
        %v500 = vld [vmem:[%s263 + $0x4f0] sm:$0xff]
        %v501 = vld [vmem:[%s263 + $0x4f8] sm:$0xff]
        %v502 = vld [vmem:[%s263 + $0x500] sm:$0xff]
        %v503 = vld [vmem:[%s263 + $0x508] sm:$0xff]
        %v504 = vld [vmem:[%s263 + $0x510] sm:$0xff]
        %v505 = vld [vmem:[%s263 + $0x518] sm:$0xff]
        %v506 = vld [vmem:[%s263 + $0x520] sm:$0xff]
        %v507 = vld [vmem:[%s263 + $0x528] sm:$0xff]
        %v508 = vld [vmem:[%s263 + $0x530] sm:$0xff]
        %v509 = vld [vmem:[%s263 + $0x538] sm:$0xff]
        %v510 = vld [vmem:[%s263 + $0x540] sm:$0xff]
        %v511 = vld [vmem:[%s263 + $0x548] sm:$0xff]
        %v512 = vld [vmem:[%s263 + $0x550] sm:$0xff]
        %v513 = vld [vmem:[%s263 + $0x558] sm:$0xff]
        %v514 = vld [vmem:[%s263 + $0x560] sm:$0xff]
        %v515 = vld [vmem:[%s263 + $0x568] sm:$0xff]
        %v516 = vld [vmem:[%s263 + $0x570] sm:$0xff]
        %v517 = vld [vmem:[%s263 + $0x578] sm:$0xff]
        %v518 = vld [vmem:[%s263 + $0x580] sm:$0xff]
        %v519 = vld [vmem:[%s263 + $0x588] sm:$0xff]
        %v520 = vld [vmem:[%s263 + $0x590] sm:$0xff]
        %v521 = vld [vmem:[%s263 + $0x598] sm:$0xff]
        %v522 = vld [vmem:[%s263 + $0x5a0] sm:$0xff]
        %v523 = vld [vmem:[%s263 + $0x5a8] sm:$0xff]
        %v524 = vld [vmem:[%s263 + $0x5b0] sm:$0xff]
        %v525 = vld [vmem:[%s263 + $0x5b8] sm:$0xff]
        %v526 = vld [vmem:[%s263 + $0x5c0] sm:$0xff]
        %v527 = vld [vmem:[%s263 + $0x5c8] sm:$0xff]
        %v528 = vld [vmem:[%s263 + $0x5d0] sm:$0xff]
        %v529 = vld [vmem:[%s263 + $0x5d8] sm:$0xff]
        %v530 = vld [vmem:[%s263 + $0x5e0] sm:$0xff]
        %v531 = vld [vmem:[%s263 + $0x5e8] sm:$0xff]
        %v532 = vld [vmem:[%s263 + $0x5f0] sm:$0xff]
        %v533 = vld [vmem:[%s263 + $0x5f8] sm:$0xff]
        %v534 = vld [vmem:[%s263 + $0x600] sm:$0xff]
        %v535 = vld [vmem:[%s263 + $0x608] sm:$0xff]
        %v536 = vld [vmem:[%s263 + $0x610] sm:$0xff]
        %v537 = vld [vmem:[%s263 + $0x618] sm:$0xff]
        %v538 = vld [vmem:[%s263 + $0x620] sm:$0xff]
        %v539 = vld [vmem:[%s263 + $0x628] sm:$0xff]
        %v540 = vld [vmem:[%s263 + $0x630] sm:$0xff]
        %v541 = vld [vmem:[%s263 + $0x638] sm:$0xff]
        %v542 = vld [vmem:[%s263 + $0x640] sm:$0xff]
        %v543 = vld [vmem:[%s263 + $0x648] sm:$0xff]
        %v544 = vld [vmem:[%s263 + $0x650] sm:$0xff]
        %v545 = vld [vmem:[%s263 + $0x658] sm:$0xff]
        %v546 = vld [vmem:[%s263 + $0x660] sm:$0xff]
        %v547 = vld [vmem:[%s263 + $0x668] sm:$0xff]
        %v548 = vld [vmem:[%s263 + $0x670] sm:$0xff]
        %v549 = vld [vmem:[%s263 + $0x678] sm:$0xff]
        %v550 = vld [vmem:[%s263 + $0x680] sm:$0xff]
        %v551 = vld [vmem:[%s263 + $0x688] sm:$0xff]
        %v552 = vld [vmem:[%s263 + $0x690] sm:$0xff]
        %v553 = vld [vmem:[%s263 + $0x698] sm:$0xff]
        %v554 = vld [vmem:[%s263 + $0x6a0] sm:$0xff]
        %v555 = vld [vmem:[%s263 + $0x6a8] sm:$0xff]
        %v556 = vld [vmem:[%s263 + $0x6b0] sm:$0xff]
        %v557 = vld [vmem:[%s263 + $0x6b8] sm:$0xff]
        %v558 = vld [vmem:[%s263 + $0x6c0] sm:$0xff]
        %v559 = vld [vmem:[%s263 + $0x6c8] sm:$0xff]
        %v560 = vld [vmem:[%s263 + $0x6d0] sm:$0xff]
        %v561 = vld [vmem:[%s263 + $0x6d8] sm:$0xff]
        %v562 = vld [vmem:[%s263 + $0x6e0] sm:$0xff]
        %v563 = vld [vmem:[%s263 + $0x6e8] sm:$0xff]
        %v564 = vld [vmem:[%s263 + $0x6f0] sm:$0xff]
        %v565 = vld [vmem:[%s263 + $0x6f8] sm:$0xff]
        %v566 = vld [vmem:[%s263 + $0x700] sm:$0xff]
        %v567 = vld [vmem:[%s263 + $0x708] sm:$0xff]
        %v568 = vld [vmem:[%s263 + $0x710] sm:$0xff]
        %v569 = vld [vmem:[%s263 + $0x718] sm:$0xff]
        %v570 = vld [vmem:[%s263 + $0x720] sm:$0xff]
        %v571 = vld [vmem:[%s263 + $0x728] sm:$0xff]
        %v572 = vld [vmem:[%s263 + $0x730] sm:$0xff]
        %v573 = vld [vmem:[%s263 + $0x738] sm:$0xff]
        %v574 = vld [vmem:[%s263 + $0x740] sm:$0xff]
        %v575 = vld [vmem:[%s263 + $0x748] sm:$0xff]
        %v576 = vld [vmem:[%s263 + $0x750] sm:$0xff]
        %v577 = vld [vmem:[%s263 + $0x758] sm:$0xff]
        %v578 = vld [vmem:[%s263 + $0x760] sm:$0xff]
        %v579 = vld [vmem:[%s263 + $0x768] sm:$0xff]
        %v580 = vld [vmem:[%s263 + $0x770] sm:$0xff]
        %v581 = vld [vmem:[%s263 + $0x778] sm:$0xff]
        %v582 = vld [vmem:[%s263 + $0x780] sm:$0xff]
        %v583 = vld [vmem:[%s263 + $0x788] sm:$0xff]
        %v584 = vld [vmem:[%s263 + $0x790] sm:$0xff]
        %v585 = vld [vmem:[%s263 + $0x798] sm:$0xff]
        %v586 = vld [vmem:[%s263 + $0x7a0] sm:$0xff]
        %v587 = vld [vmem:[%s263 + $0x7a8] sm:$0xff]
        %v588 = vld [vmem:[%s263 + $0x7b0] sm:$0xff]
        %v589 = vld [vmem:[%s263 + $0x7b8] sm:$0xff]
        %v590 = vld [vmem:[%s263 + $0x7c0] sm:$0xff]
        %v591 = vld [vmem:[%s263 + $0x7c8] sm:$0xff]
        %v592 = vld [vmem:[%s263 + $0x7d0] sm:$0xff]
        %v593 = vld [vmem:[%s263 + $0x7d8] sm:$0xff]
        %v594 = vld [vmem:[%s263 + $0x7e0] sm:$0xff]
        %v595 = vld [vmem:[%s263 + $0x7e8] sm:$0xff]
        %v596 = vld [vmem:[%s263 + $0x7f0] sm:$0xff]
        %v597 = vld [vmem:[%s263 + $0x7f8] sm:$0xff]
        %v598 = vld [vmem:[%s263 + $0x800] sm:$0xff]
        %v599 = vld [vmem:[%s263 + $0x808] sm:$0xff]
        %v600 = vld [vmem:[%s263 + $0x810] sm:$0xff]
        %v601 = vld [vmem:[%s263 + $0x818] sm:$0xff]
        %v602 = vld [vmem:[%s263 + $0x820] sm:$0xff]
        %v603 = vld [vmem:[%s263 + $0x828] sm:$0xff]
        %v604 = vld [vmem:[%s263 + $0x830] sm:$0xff]
        %v605 = vld [vmem:[%s263 + $0x838] sm:$0xff]
        %v606 = vld [vmem:[%s263 + $0x840] sm:$0xff]
        %v607 = vld [vmem:[%s263 + $0x848] sm:$0xff]
        %v608 = vld [vmem:[%s263 + $0x850] sm:$0xff]
        %v609 = vld [vmem:[%s263 + $0x858] sm:$0xff]
        %v610 = vld [vmem:[%s263 + $0x860] sm:$0xff]
        %v611 = vld [vmem:[%s263 + $0x868] sm:$0xff]
        %v612 = vld [vmem:[%s263 + $0x870] sm:$0xff]
        %v613 = vld [vmem:[%s263 + $0x878] sm:$0xff]
        %v614 = vld [vmem:[%s263 + $0x880] sm:$0xff]
        %v615 = vld [vmem:[%s263 + $0x888] sm:$0xff]
        %v616 = vld [vmem:[%s263 + $0x890] sm:$0xff]
        %v617 = vld [vmem:[%s263 + $0x898] sm:$0xff]
        %v618 = vld [vmem:[%s263 + $0x8a0] sm:$0xff]
        %v619 = vld [vmem:[%s263 + $0x8a8] sm:$0xff]
        %v620 = vld [vmem:[%s263 + $0x8b0] sm:$0xff]
        %v621 = vld [vmem:[%s263 + $0x8b8] sm:$0xff]
        %v622 = vld [vmem:[%s263 + $0x8c0] sm:$0xff]
        %v623 = vld [vmem:[%s263 + $0x8c8] sm:$0xff]
        %v624 = vld [vmem:[%s263 + $0x8d0] sm:$0xff]
        %v625 = vld [vmem:[%s263 + $0x8d8] sm:$0xff]
        %v626 = vld [vmem:[%s263 + $0x8e0] sm:$0xff]
        %v627 = vld [vmem:[%s263 + $0x8e8] sm:$0xff]
        %v628 = vld [vmem:[%s263 + $0x8f0] sm:$0xff]
        %v629 = vld [vmem:[%s263 + $0x8f8] sm:$0xff]
        %v630 = vld [vmem:[%s263 + $0x900] sm:$0xff]
        %v631 = vld [vmem:[%s263 + $0x908] sm:$0xff]
        %v632 = vld [vmem:[%s263 + $0x910] sm:$0xff]
        %v633 = vld [vmem:[%s263 + $0x918] sm:$0xff]
        %v634 = vld [vmem:[%s263 + $0x920] sm:$0xff]
        %v635 = vld [vmem:[%s263 + $0x928] sm:$0xff]
        %v636 = vld [vmem:[%s263 + $0x930] sm:$0xff]
        %v637 = vld [vmem:[%s263 + $0x938] sm:$0xff]
        %v638 = vld [vmem:[%s263 + $0x940] sm:$0xff]
        %v639 = vld [vmem:[%s263 + $0x948] sm:$0xff]
        %v640 = vld [vmem:[%s263 + $0x950] sm:$0xff]
        %v641 = vld [vmem:[%s263 + $0x958] sm:$0xff]
        %v642 = vld [vmem:[%s263 + $0x960] sm:$0xff]
        %v643 = vld [vmem:[%s263 + $0x968] sm:$0xff]
        %v644 = vld [vmem:[%s263 + $0x970] sm:$0xff]
        %v645 = vld [vmem:[%s263 + $0x978] sm:$0xff]
        %v646 = vld [vmem:[%s263 + $0x980] sm:$0xff]
        %v647 = vld [vmem:[%s263 + $0x988] sm:$0xff]
        %v648 = vld [vmem:[%s263 + $0x990] sm:$0xff]
        %v649 = vld [vmem:[%s263 + $0x998] sm:$0xff]
        %v650 = vld [vmem:[%s263 + $0x9a0] sm:$0xff]
        %v651 = vld [vmem:[%s263 + $0x9a8] sm:$0xff]
        %v652 = vld [vmem:[%s263 + $0x9b0] sm:$0xff]
        %v653 = vld [vmem:[%s263 + $0x9b8] sm:$0xff]
        %v654 = vld [vmem:[%s263 + $0x9c0] sm:$0xff]
        %v655 = vld [vmem:[%s263 + $0x9c8] sm:$0xff]
        %v656 = vld [vmem:[%s263 + $0x9d0] sm:$0xff]
        %v657 = vld [vmem:[%s263 + $0x9d8] sm:$0xff]
        %v658 = vld [vmem:[%s263 + $0x9e0] sm:$0xff]
        %v659 = vld [vmem:[%s263 + $0x9e8] sm:$0xff]
        %v660 = vld [vmem:[%s263 + $0x9f0] sm:$0xff]
        %v661 = vld [vmem:[%s263 + $0x9f8] sm:$0xff]
        %v662 = vld [vmem:[%s263 + $0xa00] sm:$0xff]
        %v663 = vld [vmem:[%s263 + $0xa08] sm:$0xff]
        %v664 = vld [vmem:[%s263 + $0xa10] sm:$0xff]
        %v665 = vld [vmem:[%s263 + $0xa18] sm:$0xff]
        %v666 = vld [vmem:[%s263 + $0xa20] sm:$0xff]
        %v667 = vld [vmem:[%s263 + $0xa28] sm:$0xff]
        %v668 = vld [vmem:[%s263 + $0xa30] sm:$0xff]
        %v669 = vld [vmem:[%s263 + $0xa38] sm:$0xff]
        %v670 = vld [vmem:[%s263 + $0xa40] sm:$0xff]
        %v671 = vld [vmem:[%s263 + $0xa48] sm:$0xff]
        %v672 = vld [vmem:[%s263 + $0xa50] sm:$0xff]
        %v673 = vld [vmem:[%s263 + $0xa58] sm:$0xff]
        %v674 = vld [vmem:[%s263 + $0xa60] sm:$0xff]
        %v675 = vld [vmem:[%s263 + $0xa68] sm:$0xff]
        %v676 = vld [vmem:[%s263 + $0xa70] sm:$0xff]
        %v677 = vld [vmem:[%s263 + $0xa78] sm:$0xff]
        %v678 = vld [vmem:[%s263 + $0xa80] sm:$0xff]
        %v679 = vld [vmem:[%s263 + $0xa88] sm:$0xff]
        %v680 = vld [vmem:[%s263 + $0xa90] sm:$0xff]
        %v681 = vld [vmem:[%s263 + $0xa98] sm:$0xff]
        %v682 = vld [vmem:[%s263 + $0xaa0] sm:$0xff]
        %v683 = vld [vmem:[%s263 + $0xaa8] sm:$0xff]
        %v684 = vld [vmem:[%s263 + $0xab0] sm:$0xff]
        %v685 = vld [vmem:[%s263 + $0xab8] sm:$0xff]
        %v686 = vld [vmem:[%s263 + $0xac0] sm:$0xff]
        %v687 = vld [vmem:[%s263 + $0xac8] sm:$0xff]
        %v688 = vld [vmem:[%s263 + $0xad0] sm:$0xff]
        %v689 = vld [vmem:[%s263 + $0xad8] sm:$0xff]
        %v690 = vld [vmem:[%s263 + $0xae0] sm:$0xff]
        %v691 = vld [vmem:[%s263 + $0xae8] sm:$0xff]
        %v692 = vld [vmem:[%s263 + $0xaf0] sm:$0xff]
        %v693 = vld [vmem:[%s263 + $0xaf8] sm:$0xff]
        %v694 = vld [vmem:[%s263 + $0xb00] sm:$0xff]
        %v695 = vld [vmem:[%s263 + $0xb08] sm:$0xff]
        %v696 = vld [vmem:[%s263 + $0xb10] sm:$0xff]
        %v697 = vld [vmem:[%s263 + $0xb18] sm:$0xff]
        %v698 = vld [vmem:[%s263 + $0xb20] sm:$0xff]
        %v699 = vld [vmem:[%s263 + $0xb28] sm:$0xff]
        %v700 = vld [vmem:[%s263 + $0xb30] sm:$0xff]
        %v701 = vld [vmem:[%s263 + $0xb38] sm:$0xff]
        %v702 = vld [vmem:[%s263 + $0xb40] sm:$0xff]
        %v703 = vld [vmem:[%s263 + $0xb48] sm:$0xff]
        %v704 = vld [vmem:[%s263 + $0xb50] sm:$0xff]
        %v705 = vld [vmem:[%s263 + $0xb58] sm:$0xff]
        %v706 = vld [vmem:[%s263 + $0xb60] sm:$0xff]
        %v707 = vld [vmem:[%s263 + $0xb68] sm:$0xff]
        %v708 = vld [vmem:[%s263 + $0xb70] sm:$0xff]
        %v709 = vld [vmem:[%s263 + $0xb78] sm:$0xff]
        %v710 = vld [vmem:[%s263 + $0xb80] sm:$0xff]
        %v711 = vld [vmem:[%s263 + $0xb88] sm:$0xff]
        %v712 = vld [vmem:[%s263 + $0xb90] sm:$0xff]
        %v713 = vld [vmem:[%s263 + $0xb98] sm:$0xff]
        %v714 = vld [vmem:[%s263 + $0xba0] sm:$0xff]
        %v715 = vld [vmem:[%s263 + $0xba8] sm:$0xff]
        %v716 = vld [vmem:[%s263 + $0xbb0] sm:$0xff]
        %v717 = vld [vmem:[%s263 + $0xbb8] sm:$0xff]
        %v718 = vld [vmem:[%s263 + $0xbc0] sm:$0xff]
        %v719 = vld [vmem:[%s263 + $0xbc8] sm:$0xff]
        %v720 = vld [vmem:[%s263 + $0xbd0] sm:$0xff]
        %v721 = vld [vmem:[%s263 + $0xbd8] sm:$0xff]
        %v722 = vld [vmem:[%s263 + $0xbe0] sm:$0xff]
        %v723 = vld [vmem:[%s263 + $0xbe8] sm:$0xff]
        %v724 = vld [vmem:[%s263 + $0xbf0] sm:$0xff]
        %v725 = vld [vmem:[%s263 + $0xbf8] sm:$0xff]
        %v726 = vld [vmem:[%s263 + $0xc00] sm:$0xff]
        %v727 = vld [vmem:[%s263 + $0xc08] sm:$0xff]
        %v728 = vld [vmem:[%s263 + $0xc10] sm:$0xff]
        %v729 = vld [vmem:[%s263 + $0xc18] sm:$0xff]
        %v730 = vld [vmem:[%s263 + $0xc20] sm:$0xff]
        %v731 = vld [vmem:[%s263 + $0xc28] sm:$0xff]
        %v732 = vld [vmem:[%s263 + $0xc30] sm:$0xff]
        %v733 = vld [vmem:[%s263 + $0xc38] sm:$0xff]
        %v734 = vld [vmem:[%s263 + $0xc40] sm:$0xff]
        %v735 = vld [vmem:[%s263 + $0xc48] sm:$0xff]
        %v736 = vld [vmem:[%s263 + $0xc50] sm:$0xff]
        %v737 = vld [vmem:[%s263 + $0xc58] sm:$0xff]
        %v738 = vld [vmem:[%s263 + $0xc60] sm:$0xff]
        %v739 = vld [vmem:[%s263 + $0xc68] sm:$0xff]
        %v740 = vld [vmem:[%s263 + $0xc70] sm:$0xff]
        %v741 = vld [vmem:[%s263 + $0xc78] sm:$0xff]
        %v742 = vld [vmem:[%s263 + $0xc80] sm:$0xff]
        %v743 = vld [vmem:[%s263 + $0xc88] sm:$0xff]
        %v744 = vld [vmem:[%s263 + $0xc90] sm:$0xff]
        %v745 = vld [vmem:[%s263 + $0xc98] sm:$0xff]
        %v746 = vld [vmem:[%s263 + $0xca0] sm:$0xff]
        %v747 = vld [vmem:[%s263 + $0xca8] sm:$0xff]
        %v748 = vld [vmem:[%s263 + $0xcb0] sm:$0xff]
        %v749 = vld [vmem:[%s263 + $0xcb8] sm:$0xff]
        %v750 = vld [vmem:[%s263 + $0xcc0] sm:$0xff]
        %v751 = vld [vmem:[%s263 + $0xcc8] sm:$0xff]
        %v752 = vld [vmem:[%s263 + $0xcd0] sm:$0xff]
        %v753 = vld [vmem:[%s263 + $0xcd8] sm:$0xff]
        %v754 = vld [vmem:[%s263 + $0xce0] sm:$0xff]
        %v755 = vld [vmem:[%s263 + $0xce8] sm:$0xff]
        %v756 = vld [vmem:[%s263 + $0xcf0] sm:$0xff]
        %v757 = vld [vmem:[%s263 + $0xcf8] sm:$0xff]
        %v758 = vld [vmem:[%s263 + $0xd00] sm:$0xff]
        %v759 = vld [vmem:[%s263 + $0xd08] sm:$0xff]
        %v760 = vld [vmem:[%s263 + $0xd10] sm:$0xff]
        %v761 = vld [vmem:[%s263 + $0xd18] sm:$0xff]
        %v762 = vld [vmem:[%s263 + $0xd20] sm:$0xff]
        %v763 = vld [vmem:[%s263 + $0xd28] sm:$0xff]
        %v764 = vld [vmem:[%s263 + $0xd30] sm:$0xff]
        %v765 = vld [vmem:[%s263 + $0xd38] sm:$0xff]
        %v766 = vld [vmem:[%s263 + $0xd40] sm:$0xff]
        %v767 = vld [vmem:[%s263 + $0xd48] sm:$0xff]
        %v768 = vld [vmem:[%s263 + $0xd50] sm:$0xff]
        %v769 = vld [vmem:[%s263 + $0xd58] sm:$0xff]
        %v770 = vld [vmem:[%s263 + $0xd60] sm:$0xff]
        %v771 = vld [vmem:[%s263 + $0xd68] sm:$0xff]
        %v772 = vld [vmem:[%s263 + $0xd70] sm:$0xff]
        %v773 = vld [vmem:[%s263 + $0xd78] sm:$0xff]
        %v774 = vld [vmem:[%s263 + $0xd80] sm:$0xff]
        %v775 = vld [vmem:[%s263 + $0xd88] sm:$0xff]
        %v776 = vld [vmem:[%s263 + $0xd90] sm:$0xff]
        %v777 = vld [vmem:[%s263 + $0xd98] sm:$0xff]
        %v778 = vld [vmem:[%s263 + $0xda0] sm:$0xff]
        %v779 = vld [vmem:[%s263 + $0xda8] sm:$0xff]
        %v780 = vld [vmem:[%s263 + $0xdb0] sm:$0xff]
        %v781 = vld [vmem:[%s263 + $0xdb8] sm:$0xff]
        %v782 = vld [vmem:[%s263 + $0xdc0] sm:$0xff]
        %v783 = vld [vmem:[%s263 + $0xdc8] sm:$0xff]
        %v784 = vld [vmem:[%s263 + $0xdd0] sm:$0xff]
        %v785 = vld [vmem:[%s263 + $0xdd8] sm:$0xff]
        %v786 = vld [vmem:[%s263 + $0xde0] sm:$0xff]
        %v787 = vld [vmem:[%s263 + $0xde8] sm:$0xff]
        %v788 = vld [vmem:[%s263 + $0xdf0] sm:$0xff]
        %v789 = vld [vmem:[%s263 + $0xdf8] sm:$0xff]
        %v790 = vld [vmem:[%s263 + $0xe00] sm:$0xff]
        %v791 = vld [vmem:[%s263 + $0xe08] sm:$0xff]
        %v792 = vld [vmem:[%s263 + $0xe10] sm:$0xff]
        %v793 = vld [vmem:[%s263 + $0xe18] sm:$0xff]
        %v794 = vld [vmem:[%s263 + $0xe20] sm:$0xff]
        %v795 = vld [vmem:[%s263 + $0xe28] sm:$0xff]
        %v796 = vld [vmem:[%s263 + $0xe30] sm:$0xff]
        %v797 = vld [vmem:[%s263 + $0xe38] sm:$0xff]
        %v798 = vld [vmem:[%s263 + $0xe40] sm:$0xff]
        %v799 = vld [vmem:[%s263 + $0xe48] sm:$0xff]
        %v800 = vld [vmem:[%s263 + $0xe50] sm:$0xff]
        %v801 = vld [vmem:[%s263 + $0xe58] sm:$0xff]
        %v802 = vld [vmem:[%s263 + $0xe60] sm:$0xff]
        %v803 = vld [vmem:[%s263 + $0xe68] sm:$0xff]
        %v804 = vld [vmem:[%s263 + $0xe70] sm:$0xff]
        %v805 = vld [vmem:[%s263 + $0xe78] sm:$0xff]
        %v806 = vld [vmem:[%s263 + $0xe80] sm:$0xff]
        %v807 = vld [vmem:[%s263 + $0xe88] sm:$0xff]
        %v808 = vld [vmem:[%s263 + $0xe90] sm:$0xff]
        %v809 = vld [vmem:[%s263 + $0xe98] sm:$0xff]
        %v810 = vld [vmem:[%s263 + $0xea0] sm:$0xff]
        %v811 = vld [vmem:[%s263 + $0xea8] sm:$0xff]
        %v812 = vld [vmem:[%s263 + $0xeb0] sm:$0xff]
        %v813 = vld [vmem:[%s263 + $0xeb8] sm:$0xff]
        %v814 = vld [vmem:[%s263 + $0xec0] sm:$0xff]
        %v815 = vld [vmem:[%s263 + $0xec8] sm:$0xff]
        %v816 = vld [vmem:[%s263 + $0xed0] sm:$0xff]
        %v817 = vld [vmem:[%s263 + $0xed8] sm:$0xff]
        %v818 = vld [vmem:[%s263 + $0xee0] sm:$0xff]
        %v819 = vld [vmem:[%s263 + $0xee8] sm:$0xff]
        %v820 = vld [vmem:[%s263 + $0xef0] sm:$0xff]
        %v821 = vld [vmem:[%s263 + $0xef8] sm:$0xff]
        %v822 = vld [vmem:[%s263 + $0xf00] sm:$0xff]
        %v823 = vld [vmem:[%s263 + $0xf08] sm:$0xff]
        %v824 = vld [vmem:[%s263 + $0xf10] sm:$0xff]
        %v825 = vld [vmem:[%s263 + $0xf18] sm:$0xff]
        %v826 = vld [vmem:[%s263 + $0xf20] sm:$0xff]
        %v827 = vld [vmem:[%s263 + $0xf28] sm:$0xff]
        %v828 = vld [vmem:[%s263 + $0xf30] sm:$0xff]
        %v829 = vld [vmem:[%s263 + $0xf38] sm:$0xff]
        %v830 = vld [vmem:[%s263 + $0xf40] sm:$0xff]
        %v831 = vld [vmem:[%s263 + $0xf48] sm:$0xff]
        %v832 = vld [vmem:[%s263 + $0xf50] sm:$0xff]
        %v833 = vld [vmem:[%s263 + $0xf58] sm:$0xff]
        %v834 = vld [vmem:[%s263 + $0xf60] sm:$0xff]
        %v835 = vld [vmem:[%s263 + $0xf68] sm:$0xff]
        %v836 = vld [vmem:[%s263 + $0xf70] sm:$0xff]
        %v837 = vld [vmem:[%s263 + $0xf78] sm:$0xff]
        %v838 = vld [vmem:[%s263 + $0xf80] sm:$0xff]
        %v839 = vld [vmem:[%s263 + $0xf88] sm:$0xff]
        %v840 = vld [vmem:[%s263 + $0xf90] sm:$0xff]
        %v841 = vld [vmem:[%s263 + $0xf98] sm:$0xff]
        %v842 = vld [vmem:[%s263 + $0xfa0] sm:$0xff]
        %v843 = vld [vmem:[%s263 + $0xfa8] sm:$0xff]
        %v844 = vld [vmem:[%s263 + $0xfb0] sm:$0xff]
        %v845 = vld [vmem:[%s263 + $0xfb8] sm:$0xff]
        %v846 = vld [vmem:[%s263 + $0xfc0] sm:$0xff]
        %v847 = vld [vmem:[%s263 + $0xfc8] sm:$0xff]
        %v848 = vld [vmem:[%s263 + $0xfd0] sm:$0xff]
        %v849 = vld [vmem:[%s263 + $0xfd8] sm:$0xff]
        %v850 = vld [vmem:[%s263 + $0xfe0] sm:$0xff]
        %v851 = vld [vmem:[%s263 + $0xfe8] sm:$0xff]
        %v852 = vld [vmem:[%s263 + $0xff0] sm:$0xff]
        %v853 = vld [vmem:[%s263 + $0xff8] sm:$0xff]
        %v856 = vcombine.high %v340, %v340
        %v858 = vunpack.c.l.s4 1966171168
        %v859 = vunpack.c.0.s8 %v858
        %v860 = vlaneseq
        %v861 = vshrl.u32 %v860, 7
        %v862 = vsub.s32 %v859, %v861
        %v863 = vrot.slane %v340, %v862
        %v865 = vunpack.c.l.s4 1966171168
        %v866 = vunpack.c.0.s8 %v865
        %v867 = vlaneseq
        %v868 = vshrl.u32 %v867, 7
        %v869 = vsub.s32 %v866, %v868
        %v870 = vrot.slane %v856, %v869
        %v871 = vcombine.high %v863, %v863
        %v872 = vcombine.high %v870, %v870
        %v874 = vunpack.c.l.s4 1966171168
        %v875 = vunpack.c.0.s8 %v874
        %v876 = vlaneseq
        %v877 = vshrl.u32 %v876, 7
        %v878 = vsub.s32 %v875, %v877
        %v879 = vrot.slane %v863, %v878
        %v881 = vunpack.c.l.s4 1966171168
        %v882 = vunpack.c.0.s8 %v881
        %v883 = vlaneseq
        %v884 = vshrl.u32 %v883, 7
        %v885 = vsub.s32 %v882, %v884
        %v886 = vrot.slane %v870, %v885
        %v888 = vunpack.c.l.s4 1966171168
        %v889 = vunpack.c.0.s8 %v888
        %v890 = vlaneseq
        %v891 = vshrl.u32 %v890, 7
        %v892 = vsub.s32 %v889, %v891
        %v893 = vrot.slane %v871, %v892
        %v895 = vunpack.c.l.s4 1966171168
        %v896 = vunpack.c.0.s8 %v895
        %v897 = vlaneseq
        %v898 = vshrl.u32 %v897, 7
        %v899 = vsub.s32 %v896, %v898
        %v900 = vrot.slane %v872, %v899
        %v901 = vcombine.high %v879, %v879
        %v902 = vcombine.high %v886, %v886
        %v903 = vcombine.high %v893, %v893
        %v904 = vcombine.high %v900, %v900
        %v905 = vcombine.high %v341, %v341
        %v907 = vunpack.c.l.s4 1966171168
        %v908 = vunpack.c.0.s8 %v907
        %v909 = vlaneseq
        %v910 = vshrl.u32 %v909, 7
        %v911 = vsub.s32 %v908, %v910
        %v912 = vrot.slane %v341, %v911
        %v914 = vunpack.c.l.s4 1966171168
        %v915 = vunpack.c.0.s8 %v914
        %v916 = vlaneseq
        %v917 = vshrl.u32 %v916, 7
        %v918 = vsub.s32 %v915, %v917
        %v919 = vrot.slane %v905, %v918
        %v920 = vcombine.high %v912, %v912
        %v921 = vcombine.high %v919, %v919
        %v923 = vunpack.c.l.s4 1966171168
        %v924 = vunpack.c.0.s8 %v923
        %v925 = vlaneseq
        %v926 = vshrl.u32 %v925, 7
        %v927 = vsub.s32 %v924, %v926
        %v928 = vrot.slane %v912, %v927
        %v930 = vunpack.c.l.s4 1966171168
        %v931 = vunpack.c.0.s8 %v930
        %v932 = vlaneseq
        %v933 = vshrl.u32 %v932, 7
        %v934 = vsub.s32 %v931, %v933
        %v935 = vrot.slane %v919, %v934
        %v937 = vunpack.c.l.s4 1966171168
        %v938 = vunpack.c.0.s8 %v937
        %v939 = vlaneseq
        %v940 = vshrl.u32 %v939, 7
        %v941 = vsub.s32 %v938, %v940
        %v942 = vrot.slane %v920, %v941
        %v944 = vunpack.c.l.s4 1966171168
        %v945 = vunpack.c.0.s8 %v944
        %v946 = vlaneseq
        %v947 = vshrl.u32 %v946, 7
        %v948 = vsub.s32 %v945, %v947
        %v949 = vrot.slane %v921, %v948
        %v950 = vcombine.high %v928, %v928
        %v951 = vcombine.high %v935, %v935
        %v952 = vcombine.high %v942, %v942
        %v953 = vcombine.high %v949, %v949
        %v1482 = vunpack.c.l.b16 %v342
        %v1483 = vunpack.c.h.b16 %v342
        %v1484 = vunpack.c.l.b16 %v343
        %v1485 = vunpack.c.h.b16 %v343
        %v1486 = vunpack.c.l.b16 %v344
        %v1487 = vunpack.c.h.b16 %v344
        %v1488 = vunpack.c.l.b16 %v345
        %v1489 = vunpack.c.h.b16 %v345
        %v1490 = vunpack.c.l.b16 %v346
        %v1491 = vunpack.c.h.b16 %v346
        %v1492 = vunpack.c.l.b16 %v347
        %v1493 = vunpack.c.h.b16 %v347
        %v1494 = vunpack.c.l.b16 %v348
        %v1495 = vunpack.c.h.b16 %v348
        %v1496 = vunpack.c.l.b16 %v349
        %v1497 = vunpack.c.h.b16 %v349
        %v1498 = vunpack.c.l.b16 %v350
        %v1499 = vunpack.c.h.b16 %v350
        %v1500 = vunpack.c.l.b16 %v351
        %v1501 = vunpack.c.h.b16 %v351
        %v1502 = vunpack.c.l.b16 %v352
        %v1503 = vunpack.c.h.b16 %v352
        %v1504 = vunpack.c.l.b16 %v353
        %v1505 = vunpack.c.h.b16 %v353
        %v1506 = vunpack.c.l.b16 %v354
        %v1507 = vunpack.c.h.b16 %v354
        %v1508 = vunpack.c.l.b16 %v355
        %v1509 = vunpack.c.h.b16 %v355
        %v1510 = vunpack.c.l.b16 %v356
        %v1511 = vunpack.c.h.b16 %v356
        %v1512 = vunpack.c.l.b16 %v357
        %v1513 = vunpack.c.h.b16 %v357
        %v1514 = vunpack.c.l.b16 %v358
        %v1515 = vunpack.c.h.b16 %v358
        %v1516 = vunpack.c.l.b16 %v359
        %v1517 = vunpack.c.h.b16 %v359
        %v1518 = vunpack.c.l.b16 %v360
        %v1519 = vunpack.c.h.b16 %v360
        %v1520 = vunpack.c.l.b16 %v361
        %v1521 = vunpack.c.h.b16 %v361
        %v1522 = vunpack.c.l.b16 %v362
        %v1523 = vunpack.c.h.b16 %v362
        %v1524 = vunpack.c.l.b16 %v363
        %v1525 = vunpack.c.h.b16 %v363
        %v1526 = vunpack.c.l.b16 %v364
        %v1527 = vunpack.c.h.b16 %v364
        %v1528 = vunpack.c.l.b16 %v365
        %v1529 = vunpack.c.h.b16 %v365
        %v1530 = vunpack.c.l.b16 %v366
        %v1531 = vunpack.c.h.b16 %v366
        %v1532 = vunpack.c.l.b16 %v367
        %v1533 = vunpack.c.h.b16 %v367
        %v1534 = vunpack.c.l.b16 %v368
        %v1535 = vunpack.c.h.b16 %v368
        %v1536 = vunpack.c.l.b16 %v369
        %v1537 = vunpack.c.h.b16 %v369
        %v1538 = vunpack.c.l.b16 %v370
        %v1539 = vunpack.c.h.b16 %v370
        %v1540 = vunpack.c.l.b16 %v371
        %v1541 = vunpack.c.h.b16 %v371
        %v1542 = vunpack.c.l.b16 %v372
        %v1543 = vunpack.c.h.b16 %v372
        %v1544 = vunpack.c.l.b16 %v373
        %v1545 = vunpack.c.h.b16 %v373
        %v1546 = vunpack.c.l.b16 %v374
        %v1547 = vunpack.c.h.b16 %v374
        %v1548 = vunpack.c.l.b16 %v375
        %v1549 = vunpack.c.h.b16 %v375
        %v1550 = vunpack.c.l.b16 %v376
        %v1551 = vunpack.c.h.b16 %v376
        %v1552 = vunpack.c.l.b16 %v377
        %v1553 = vunpack.c.h.b16 %v377
        %v1554 = vunpack.c.l.b16 %v378
        %v1555 = vunpack.c.h.b16 %v378
        %v1556 = vunpack.c.l.b16 %v379
        %v1557 = vunpack.c.h.b16 %v379
        %v1558 = vunpack.c.l.b16 %v380
        %v1559 = vunpack.c.h.b16 %v380
        %v1560 = vunpack.c.l.b16 %v381
        %v1561 = vunpack.c.h.b16 %v381
        %v1562 = vunpack.c.l.b16 %v382
        %v1563 = vunpack.c.h.b16 %v382
        %v1564 = vunpack.c.l.b16 %v383
        %v1565 = vunpack.c.h.b16 %v383
        %v1566 = vunpack.c.l.b16 %v384
        %v1567 = vunpack.c.h.b16 %v384
        %v1568 = vunpack.c.l.b16 %v385
        %v1569 = vunpack.c.h.b16 %v385
        %v1570 = vunpack.c.l.b16 %v386
        %v1571 = vunpack.c.h.b16 %v386
        %v1572 = vunpack.c.l.b16 %v387
        %v1573 = vunpack.c.h.b16 %v387
        %v1574 = vunpack.c.l.b16 %v388
        %v1575 = vunpack.c.h.b16 %v388
        %v1576 = vunpack.c.l.b16 %v389
        %v1577 = vunpack.c.h.b16 %v389
        %v1578 = vunpack.c.l.b16 %v390
        %v1579 = vunpack.c.h.b16 %v390
        %v1580 = vunpack.c.l.b16 %v391
        %v1581 = vunpack.c.h.b16 %v391
        %v1582 = vunpack.c.l.b16 %v392
        %v1583 = vunpack.c.h.b16 %v392
        %v1584 = vunpack.c.l.b16 %v393
        %v1585 = vunpack.c.h.b16 %v393
        %v1586 = vunpack.c.l.b16 %v394
        %v1587 = vunpack.c.h.b16 %v394
        %v1588 = vunpack.c.l.b16 %v395
        %v1589 = vunpack.c.h.b16 %v395
        %v1590 = vunpack.c.l.b16 %v396
        %v1591 = vunpack.c.h.b16 %v396
        %v1592 = vunpack.c.l.b16 %v397
        %v1593 = vunpack.c.h.b16 %v397
        %v1594 = vunpack.c.l.b16 %v398
        %v1595 = vunpack.c.h.b16 %v398
        %v1596 = vunpack.c.l.b16 %v399
        %v1597 = vunpack.c.h.b16 %v399
        %v1598 = vunpack.c.l.b16 %v400
        %v1599 = vunpack.c.h.b16 %v400
        %v1600 = vunpack.c.l.b16 %v401
        %v1601 = vunpack.c.h.b16 %v401
        %v1602 = vunpack.c.l.b16 %v402
        %v1603 = vunpack.c.h.b16 %v402
        %v1604 = vunpack.c.l.b16 %v403
        %v1605 = vunpack.c.h.b16 %v403
        %v1606 = vunpack.c.l.b16 %v404
        %v1607 = vunpack.c.h.b16 %v404
        %v1608 = vunpack.c.l.b16 %v405
        %v1609 = vunpack.c.h.b16 %v405
        %v1610 = vunpack.c.l.b16 %v406
        %v1611 = vunpack.c.h.b16 %v406
        %v1612 = vunpack.c.l.b16 %v407
        %v1613 = vunpack.c.h.b16 %v407
        %v1614 = vunpack.c.l.b16 %v408
        %v1615 = vunpack.c.h.b16 %v408
        %v1616 = vunpack.c.l.b16 %v409
        %v1617 = vunpack.c.h.b16 %v409
        %v1618 = vunpack.c.l.b16 %v410
        %v1619 = vunpack.c.h.b16 %v410
        %v1620 = vunpack.c.l.b16 %v411
        %v1621 = vunpack.c.h.b16 %v411
        %v1622 = vunpack.c.l.b16 %v412
        %v1623 = vunpack.c.h.b16 %v412
        %v1624 = vunpack.c.l.b16 %v413
        %v1625 = vunpack.c.h.b16 %v413
        %v1626 = vunpack.c.l.b16 %v414
        %v1627 = vunpack.c.h.b16 %v414
        %v1628 = vunpack.c.l.b16 %v415
        %v1629 = vunpack.c.h.b16 %v415
        %v1630 = vunpack.c.l.b16 %v416
        %v1631 = vunpack.c.h.b16 %v416
        %v1632 = vunpack.c.l.b16 %v417
        %v1633 = vunpack.c.h.b16 %v417
        %v1634 = vunpack.c.l.b16 %v418
        %v1635 = vunpack.c.h.b16 %v418
        %v1636 = vunpack.c.l.b16 %v419
        %v1637 = vunpack.c.h.b16 %v419
        %v1638 = vunpack.c.l.b16 %v420
        %v1639 = vunpack.c.h.b16 %v420
        %v1640 = vunpack.c.l.b16 %v421
        %v1641 = vunpack.c.h.b16 %v421
        %v1642 = vunpack.c.l.b16 %v422
        %v1643 = vunpack.c.h.b16 %v422
        %v1644 = vunpack.c.l.b16 %v423
        %v1645 = vunpack.c.h.b16 %v423
        %v1646 = vunpack.c.l.b16 %v424
        %v1647 = vunpack.c.h.b16 %v424
        %v1648 = vunpack.c.l.b16 %v425
        %v1649 = vunpack.c.h.b16 %v425
        %v1650 = vunpack.c.l.b16 %v426
        %v1651 = vunpack.c.h.b16 %v426
        %v1652 = vunpack.c.l.b16 %v427
        %v1653 = vunpack.c.h.b16 %v427
        %v1654 = vunpack.c.l.b16 %v428
        %v1655 = vunpack.c.h.b16 %v428
        %v1656 = vunpack.c.l.b16 %v429
        %v1657 = vunpack.c.h.b16 %v429
        %v1658 = vunpack.c.l.b16 %v430
        %v1659 = vunpack.c.h.b16 %v430
        %v1660 = vunpack.c.l.b16 %v431
        %v1661 = vunpack.c.h.b16 %v431
        %v1662 = vunpack.c.l.b16 %v432
        %v1663 = vunpack.c.h.b16 %v432
        %v1664 = vunpack.c.l.b16 %v433
        %v1665 = vunpack.c.h.b16 %v433
        %v1666 = vunpack.c.l.b16 %v434
        %v1667 = vunpack.c.h.b16 %v434
        %v1668 = vunpack.c.l.b16 %v435
        %v1669 = vunpack.c.h.b16 %v435
        %v1670 = vunpack.c.l.b16 %v436
        %v1671 = vunpack.c.h.b16 %v436
        %v1672 = vunpack.c.l.b16 %v437
        %v1673 = vunpack.c.h.b16 %v437
        %v1674 = vunpack.c.l.b16 %v438
        %v1675 = vunpack.c.h.b16 %v438
        %v1676 = vunpack.c.l.b16 %v439
        %v1677 = vunpack.c.h.b16 %v439
        %v1678 = vunpack.c.l.b16 %v440
        %v1679 = vunpack.c.h.b16 %v440
        %v1680 = vunpack.c.l.b16 %v441
        %v1681 = vunpack.c.h.b16 %v441
        %v1682 = vunpack.c.l.b16 %v442
        %v1683 = vunpack.c.h.b16 %v442
        %v1684 = vunpack.c.l.b16 %v443
        %v1685 = vunpack.c.h.b16 %v443
        %v1686 = vunpack.c.l.b16 %v444
        %v1687 = vunpack.c.h.b16 %v444
        %v1688 = vunpack.c.l.b16 %v445
        %v1689 = vunpack.c.h.b16 %v445
        %v1690 = vunpack.c.l.b16 %v446
        %v1691 = vunpack.c.h.b16 %v446
        %v1692 = vunpack.c.l.b16 %v447
        %v1693 = vunpack.c.h.b16 %v447
        %v1694 = vunpack.c.l.b16 %v448
        %v1695 = vunpack.c.h.b16 %v448
        %v1696 = vunpack.c.l.b16 %v449
        %v1697 = vunpack.c.h.b16 %v449
        %v1698 = vunpack.c.l.b16 %v450
        %v1699 = vunpack.c.h.b16 %v450
        %v1700 = vunpack.c.l.b16 %v451
        %v1701 = vunpack.c.h.b16 %v451
        %v1702 = vunpack.c.l.b16 %v452
        %v1703 = vunpack.c.h.b16 %v452
        %v1704 = vunpack.c.l.b16 %v453
        %v1705 = vunpack.c.h.b16 %v453
        %v1706 = vunpack.c.l.b16 %v454
        %v1707 = vunpack.c.h.b16 %v454
        %v1708 = vunpack.c.l.b16 %v455
        %v1709 = vunpack.c.h.b16 %v455
        %v1710 = vunpack.c.l.b16 %v456
        %v1711 = vunpack.c.h.b16 %v456
        %v1712 = vunpack.c.l.b16 %v457
        %v1713 = vunpack.c.h.b16 %v457
        %v1714 = vunpack.c.l.b16 %v458
        %v1715 = vunpack.c.h.b16 %v458
        %v1716 = vunpack.c.l.b16 %v459
        %v1717 = vunpack.c.h.b16 %v459
        %v1718 = vunpack.c.l.b16 %v460
        %v1719 = vunpack.c.h.b16 %v460
        %v1720 = vunpack.c.l.b16 %v461
        %v1721 = vunpack.c.h.b16 %v461
        %v1722 = vunpack.c.l.b16 %v462
        %v1723 = vunpack.c.h.b16 %v462
        %v1724 = vunpack.c.l.b16 %v463
        %v1725 = vunpack.c.h.b16 %v463
        %v1726 = vunpack.c.l.b16 %v464
        %v1727 = vunpack.c.h.b16 %v464
        %v1728 = vunpack.c.l.b16 %v465
        %v1729 = vunpack.c.h.b16 %v465
        %v1730 = vunpack.c.l.b16 %v466
        %v1731 = vunpack.c.h.b16 %v466
        %v1732 = vunpack.c.l.b16 %v467
        %v1733 = vunpack.c.h.b16 %v467
        %v1734 = vunpack.c.l.b16 %v468
        %v1735 = vunpack.c.h.b16 %v468
        %v1736 = vunpack.c.l.b16 %v469
        %v1737 = vunpack.c.h.b16 %v469
        %v1738 = vunpack.c.l.b16 %v470
        %v1739 = vunpack.c.h.b16 %v470
        %v1740 = vunpack.c.l.b16 %v471
        %v1741 = vunpack.c.h.b16 %v471
        %v1742 = vunpack.c.l.b16 %v472
        %v1743 = vunpack.c.h.b16 %v472
        %v1744 = vunpack.c.l.b16 %v473
        %v1745 = vunpack.c.h.b16 %v473
        %v1746 = vunpack.c.l.b16 %v474
        %v1747 = vunpack.c.h.b16 %v474
        %v1748 = vunpack.c.l.b16 %v475
        %v1749 = vunpack.c.h.b16 %v475
        %v1750 = vunpack.c.l.b16 %v476
        %v1751 = vunpack.c.h.b16 %v476
        %v1752 = vunpack.c.l.b16 %v477
        %v1753 = vunpack.c.h.b16 %v477
        %v1754 = vunpack.c.l.b16 %v478
        %v1755 = vunpack.c.h.b16 %v478
        %v1756 = vunpack.c.l.b16 %v479
        %v1757 = vunpack.c.h.b16 %v479
        %v1758 = vunpack.c.l.b16 %v480
        %v1759 = vunpack.c.h.b16 %v480
        %v1760 = vunpack.c.l.b16 %v481
        %v1761 = vunpack.c.h.b16 %v481
        %v1762 = vunpack.c.l.b16 %v482
        %v1763 = vunpack.c.h.b16 %v482
        %v1764 = vunpack.c.l.b16 %v483
        %v1765 = vunpack.c.h.b16 %v483
        %v1766 = vunpack.c.l.b16 %v484
        %v1767 = vunpack.c.h.b16 %v484
        %v1768 = vunpack.c.l.b16 %v485
        %v1769 = vunpack.c.h.b16 %v485
        %v1770 = vunpack.c.l.b16 %v486
        %v1771 = vunpack.c.h.b16 %v486
        %v1772 = vunpack.c.l.b16 %v487
        %v1773 = vunpack.c.h.b16 %v487
        %v1774 = vunpack.c.l.b16 %v488
        %v1775 = vunpack.c.h.b16 %v488
        %v1776 = vunpack.c.l.b16 %v489
        %v1777 = vunpack.c.h.b16 %v489
        %v1778 = vunpack.c.l.b16 %v490
        %v1779 = vunpack.c.h.b16 %v490
        %v1780 = vunpack.c.l.b16 %v491
        %v1781 = vunpack.c.h.b16 %v491
        %v1782 = vunpack.c.l.b16 %v492
        %v1783 = vunpack.c.h.b16 %v492
        %v1784 = vunpack.c.l.b16 %v493
        %v1785 = vunpack.c.h.b16 %v493
        %v1786 = vunpack.c.l.b16 %v494
        %v1787 = vunpack.c.h.b16 %v494
        %v1788 = vunpack.c.l.b16 %v495
        %v1789 = vunpack.c.h.b16 %v495
        %v1790 = vunpack.c.l.b16 %v496
        %v1791 = vunpack.c.h.b16 %v496
        %v1792 = vunpack.c.l.b16 %v497
        %v1793 = vunpack.c.h.b16 %v497
        %v1794 = vunpack.c.l.b16 %v498
        %v1795 = vunpack.c.h.b16 %v498
        %v1796 = vunpack.c.l.b16 %v499
        %v1797 = vunpack.c.h.b16 %v499
        %v1798 = vunpack.c.l.b16 %v500
        %v1799 = vunpack.c.h.b16 %v500
        %v1800 = vunpack.c.l.b16 %v501
        %v1801 = vunpack.c.h.b16 %v501
        %v1802 = vunpack.c.l.b16 %v502
        %v1803 = vunpack.c.h.b16 %v502
        %v1804 = vunpack.c.l.b16 %v503
        %v1805 = vunpack.c.h.b16 %v503
        %v1806 = vunpack.c.l.b16 %v504
        %v1807 = vunpack.c.h.b16 %v504
        %v1808 = vunpack.c.l.b16 %v505
        %v1809 = vunpack.c.h.b16 %v505
        %v1810 = vunpack.c.l.b16 %v506
        %v1811 = vunpack.c.h.b16 %v506
        %v1812 = vunpack.c.l.b16 %v507
        %v1813 = vunpack.c.h.b16 %v507
        %v1814 = vunpack.c.l.b16 %v508
        %v1815 = vunpack.c.h.b16 %v508
        %v1816 = vunpack.c.l.b16 %v509
        %v1817 = vunpack.c.h.b16 %v509
        %v1818 = vunpack.c.l.b16 %v510
        %v1819 = vunpack.c.h.b16 %v510
        %v1820 = vunpack.c.l.b16 %v511
        %v1821 = vunpack.c.h.b16 %v511
        %v1822 = vunpack.c.l.b16 %v512
        %v1823 = vunpack.c.h.b16 %v512
        %v1824 = vunpack.c.l.b16 %v513
        %v1825 = vunpack.c.h.b16 %v513
        %v1826 = vunpack.c.l.b16 %v514
        %v1827 = vunpack.c.h.b16 %v514
        %v1828 = vunpack.c.l.b16 %v515
        %v1829 = vunpack.c.h.b16 %v515
        %v1830 = vunpack.c.l.b16 %v516
        %v1831 = vunpack.c.h.b16 %v516
        %v1832 = vunpack.c.l.b16 %v517
        %v1833 = vunpack.c.h.b16 %v517
        %v1834 = vunpack.c.l.b16 %v518
        %v1835 = vunpack.c.h.b16 %v518
        %v1836 = vunpack.c.l.b16 %v519
        %v1837 = vunpack.c.h.b16 %v519
        %v1838 = vunpack.c.l.b16 %v520
        %v1839 = vunpack.c.h.b16 %v520
        %v1840 = vunpack.c.l.b16 %v521
        %v1841 = vunpack.c.h.b16 %v521
        %v1842 = vunpack.c.l.b16 %v522
        %v1843 = vunpack.c.h.b16 %v522
        %v1844 = vunpack.c.l.b16 %v523
        %v1845 = vunpack.c.h.b16 %v523
        %v1846 = vunpack.c.l.b16 %v524
        %v1847 = vunpack.c.h.b16 %v524
        %v1848 = vunpack.c.l.b16 %v525
        %v1849 = vunpack.c.h.b16 %v525
        %v1850 = vunpack.c.l.b16 %v526
        %v1851 = vunpack.c.h.b16 %v526
        %v1852 = vunpack.c.l.b16 %v527
        %v1853 = vunpack.c.h.b16 %v527
        %v1854 = vunpack.c.l.b16 %v528
        %v1855 = vunpack.c.h.b16 %v528
        %v1856 = vunpack.c.l.b16 %v529
        %v1857 = vunpack.c.h.b16 %v529
        %v1858 = vunpack.c.l.b16 %v530
        %v1859 = vunpack.c.h.b16 %v530
        %v1860 = vunpack.c.l.b16 %v531
        %v1861 = vunpack.c.h.b16 %v531
        %v1862 = vunpack.c.l.b16 %v532
        %v1863 = vunpack.c.h.b16 %v532
        %v1864 = vunpack.c.l.b16 %v533
        %v1865 = vunpack.c.h.b16 %v533
        %v1866 = vunpack.c.l.b16 %v534
        %v1867 = vunpack.c.h.b16 %v534
        %v1868 = vunpack.c.l.b16 %v535
        %v1869 = vunpack.c.h.b16 %v535
        %v1870 = vunpack.c.l.b16 %v536
        %v1871 = vunpack.c.h.b16 %v536
        %v1872 = vunpack.c.l.b16 %v537
        %v1873 = vunpack.c.h.b16 %v537
        %v1874 = vunpack.c.l.b16 %v538
        %v1875 = vunpack.c.h.b16 %v538
        %v1876 = vunpack.c.l.b16 %v539
        %v1877 = vunpack.c.h.b16 %v539
        %v1878 = vunpack.c.l.b16 %v540
        %v1879 = vunpack.c.h.b16 %v540
        %v1880 = vunpack.c.l.b16 %v541
        %v1881 = vunpack.c.h.b16 %v541
        %v1882 = vunpack.c.l.b16 %v542
        %v1883 = vunpack.c.h.b16 %v542
        %v1884 = vunpack.c.l.b16 %v543
        %v1885 = vunpack.c.h.b16 %v543
        %v1886 = vunpack.c.l.b16 %v544
        %v1887 = vunpack.c.h.b16 %v544
        %v1888 = vunpack.c.l.b16 %v545
        %v1889 = vunpack.c.h.b16 %v545
        %v1890 = vunpack.c.l.b16 %v546
        %v1891 = vunpack.c.h.b16 %v546
        %v1892 = vunpack.c.l.b16 %v547
        %v1893 = vunpack.c.h.b16 %v547
        %v1894 = vunpack.c.l.b16 %v548
        %v1895 = vunpack.c.h.b16 %v548
        %v1896 = vunpack.c.l.b16 %v549
        %v1897 = vunpack.c.h.b16 %v549
        %v1898 = vunpack.c.l.b16 %v550
        %v1899 = vunpack.c.h.b16 %v550
        %v1900 = vunpack.c.l.b16 %v551
        %v1901 = vunpack.c.h.b16 %v551
        %v1902 = vunpack.c.l.b16 %v552
        %v1903 = vunpack.c.h.b16 %v552
        %v1904 = vunpack.c.l.b16 %v553
        %v1905 = vunpack.c.h.b16 %v553
        %v1906 = vunpack.c.l.b16 %v554
        %v1907 = vunpack.c.h.b16 %v554
        %v1908 = vunpack.c.l.b16 %v555
        %v1909 = vunpack.c.h.b16 %v555
        %v1910 = vunpack.c.l.b16 %v556
        %v1911 = vunpack.c.h.b16 %v556
        %v1912 = vunpack.c.l.b16 %v557
        %v1913 = vunpack.c.h.b16 %v557
        %v1914 = vunpack.c.l.b16 %v558
        %v1915 = vunpack.c.h.b16 %v558
        %v1916 = vunpack.c.l.b16 %v559
        %v1917 = vunpack.c.h.b16 %v559
        %v1918 = vunpack.c.l.b16 %v560
        %v1919 = vunpack.c.h.b16 %v560
        %v1920 = vunpack.c.l.b16 %v561
        %v1921 = vunpack.c.h.b16 %v561
        %v1922 = vunpack.c.l.b16 %v562
        %v1923 = vunpack.c.h.b16 %v562
        %v1924 = vunpack.c.l.b16 %v563
        %v1925 = vunpack.c.h.b16 %v563
        %v1926 = vunpack.c.l.b16 %v564
        %v1927 = vunpack.c.h.b16 %v564
        %v1928 = vunpack.c.l.b16 %v565
        %v1929 = vunpack.c.h.b16 %v565
        %v1930 = vunpack.c.l.b16 %v566
        %v1931 = vunpack.c.h.b16 %v566
        %v1932 = vunpack.c.l.b16 %v567
        %v1933 = vunpack.c.h.b16 %v567
        %v1934 = vunpack.c.l.b16 %v568
        %v1935 = vunpack.c.h.b16 %v568
        %v1936 = vunpack.c.l.b16 %v569
        %v1937 = vunpack.c.h.b16 %v569
        %v1938 = vunpack.c.l.b16 %v570
        %v1939 = vunpack.c.h.b16 %v570
        %v1940 = vunpack.c.l.b16 %v571
        %v1941 = vunpack.c.h.b16 %v571
        %v1942 = vunpack.c.l.b16 %v572
        %v1943 = vunpack.c.h.b16 %v572
        %v1944 = vunpack.c.l.b16 %v573
        %v1945 = vunpack.c.h.b16 %v573
        %v1946 = vunpack.c.l.b16 %v574
        %v1947 = vunpack.c.h.b16 %v574
        %v1948 = vunpack.c.l.b16 %v575
        %v1949 = vunpack.c.h.b16 %v575
        %v1950 = vunpack.c.l.b16 %v576
        %v1951 = vunpack.c.h.b16 %v576
        %v1952 = vunpack.c.l.b16 %v577
        %v1953 = vunpack.c.h.b16 %v577
        %v1954 = vunpack.c.l.b16 %v578
        %v1955 = vunpack.c.h.b16 %v578
        %v1956 = vunpack.c.l.b16 %v579
        %v1957 = vunpack.c.h.b16 %v579
        %v1958 = vunpack.c.l.b16 %v580
        %v1959 = vunpack.c.h.b16 %v580
        %v1960 = vunpack.c.l.b16 %v581
        %v1961 = vunpack.c.h.b16 %v581
        %v1962 = vunpack.c.l.b16 %v582
        %v1963 = vunpack.c.h.b16 %v582
        %v1964 = vunpack.c.l.b16 %v583
        %v1965 = vunpack.c.h.b16 %v583
        %v1966 = vunpack.c.l.b16 %v584
        %v1967 = vunpack.c.h.b16 %v584
        %v1968 = vunpack.c.l.b16 %v585
        %v1969 = vunpack.c.h.b16 %v585
        %v1970 = vunpack.c.l.b16 %v586
        %v1971 = vunpack.c.h.b16 %v586
        %v1972 = vunpack.c.l.b16 %v587
        %v1973 = vunpack.c.h.b16 %v587
        %v1974 = vunpack.c.l.b16 %v588
        %v1975 = vunpack.c.h.b16 %v588
        %v1976 = vunpack.c.l.b16 %v589
        %v1977 = vunpack.c.h.b16 %v589
        %v1978 = vunpack.c.l.b16 %v590
        %v1979 = vunpack.c.h.b16 %v590
        %v1980 = vunpack.c.l.b16 %v591
        %v1981 = vunpack.c.h.b16 %v591
        %v1982 = vunpack.c.l.b16 %v592
        %v1983 = vunpack.c.h.b16 %v592
        %v1984 = vunpack.c.l.b16 %v593
        %v1985 = vunpack.c.h.b16 %v593
        %v1986 = vunpack.c.l.b16 %v594
        %v1987 = vunpack.c.h.b16 %v594
        %v1988 = vunpack.c.l.b16 %v595
        %v1989 = vunpack.c.h.b16 %v595
        %v1990 = vunpack.c.l.b16 %v596
        %v1991 = vunpack.c.h.b16 %v596
        %v1992 = vunpack.c.l.b16 %v597
        %v1993 = vunpack.c.h.b16 %v597
        %v1994 = vunpack.c.l.b16 %v598
        %v1995 = vunpack.c.h.b16 %v598
        %v1996 = vunpack.c.l.b16 %v599
        %v1997 = vunpack.c.h.b16 %v599
        %v1998 = vunpack.c.l.b16 %v600
        %v1999 = vunpack.c.h.b16 %v600
        %v2000 = vunpack.c.l.b16 %v601
        %v2001 = vunpack.c.h.b16 %v601
        %v2002 = vunpack.c.l.b16 %v602
        %v2003 = vunpack.c.h.b16 %v602
        %v2004 = vunpack.c.l.b16 %v603
        %v2005 = vunpack.c.h.b16 %v603
        %v2006 = vunpack.c.l.b16 %v604
        %v2007 = vunpack.c.h.b16 %v604
        %v2008 = vunpack.c.l.b16 %v605
        %v2009 = vunpack.c.h.b16 %v605
        %v2010 = vunpack.c.l.b16 %v606
        %v2011 = vunpack.c.h.b16 %v606
        %v2012 = vunpack.c.l.b16 %v607
        %v2013 = vunpack.c.h.b16 %v607
        %v2014 = vunpack.c.l.b16 %v608
        %v2015 = vunpack.c.h.b16 %v608
        %v2016 = vunpack.c.l.b16 %v609
        %v2017 = vunpack.c.h.b16 %v609
        %v2018 = vunpack.c.l.b16 %v610
        %v2019 = vunpack.c.h.b16 %v610
        %v2020 = vunpack.c.l.b16 %v611
        %v2021 = vunpack.c.h.b16 %v611
        %v2022 = vunpack.c.l.b16 %v612
        %v2023 = vunpack.c.h.b16 %v612
        %v2024 = vunpack.c.l.b16 %v613
        %v2025 = vunpack.c.h.b16 %v613
        %v2026 = vunpack.c.l.b16 %v614
        %v2027 = vunpack.c.h.b16 %v614
        %v2028 = vunpack.c.l.b16 %v615
        %v2029 = vunpack.c.h.b16 %v615
        %v2030 = vunpack.c.l.b16 %v616
        %v2031 = vunpack.c.h.b16 %v616
        %v2032 = vunpack.c.l.b16 %v617
        %v2033 = vunpack.c.h.b16 %v617
        %v2034 = vunpack.c.l.b16 %v618
        %v2035 = vunpack.c.h.b16 %v618
        %v2036 = vunpack.c.l.b16 %v619
        %v2037 = vunpack.c.h.b16 %v619
        %v2038 = vunpack.c.l.b16 %v620
        %v2039 = vunpack.c.h.b16 %v620
        %v2040 = vunpack.c.l.b16 %v621
        %v2041 = vunpack.c.h.b16 %v621
        %v2042 = vunpack.c.l.b16 %v622
        %v2043 = vunpack.c.h.b16 %v622
        %v2044 = vunpack.c.l.b16 %v623
        %v2045 = vunpack.c.h.b16 %v623
        %v2046 = vunpack.c.l.b16 %v624
        %v2047 = vunpack.c.h.b16 %v624
        %v2048 = vunpack.c.l.b16 %v625
        %v2049 = vunpack.c.h.b16 %v625
        %v2050 = vunpack.c.l.b16 %v626
        %v2051 = vunpack.c.h.b16 %v626
        %v2052 = vunpack.c.l.b16 %v627
        %v2053 = vunpack.c.h.b16 %v627
        %v2054 = vunpack.c.l.b16 %v628
        %v2055 = vunpack.c.h.b16 %v628
        %v2056 = vunpack.c.l.b16 %v629
        %v2057 = vunpack.c.h.b16 %v629
        %v2058 = vunpack.c.l.b16 %v630
        %v2059 = vunpack.c.h.b16 %v630
        %v2060 = vunpack.c.l.b16 %v631
        %v2061 = vunpack.c.h.b16 %v631
        %v2062 = vunpack.c.l.b16 %v632
        %v2063 = vunpack.c.h.b16 %v632
        %v2064 = vunpack.c.l.b16 %v633
        %v2065 = vunpack.c.h.b16 %v633
        %v2066 = vunpack.c.l.b16 %v634
        %v2067 = vunpack.c.h.b16 %v634
        %v2068 = vunpack.c.l.b16 %v635
        %v2069 = vunpack.c.h.b16 %v635
        %v2070 = vunpack.c.l.b16 %v636
        %v2071 = vunpack.c.h.b16 %v636
        %v2072 = vunpack.c.l.b16 %v637
        %v2073 = vunpack.c.h.b16 %v637
        %v2074 = vunpack.c.l.b16 %v638
        %v2075 = vunpack.c.h.b16 %v638
        %v2076 = vunpack.c.l.b16 %v639
        %v2077 = vunpack.c.h.b16 %v639
        %v2078 = vunpack.c.l.b16 %v640
        %v2079 = vunpack.c.h.b16 %v640
        %v2080 = vunpack.c.l.b16 %v641
        %v2081 = vunpack.c.h.b16 %v641
        %v2082 = vunpack.c.l.b16 %v642
        %v2083 = vunpack.c.h.b16 %v642
        %v2084 = vunpack.c.l.b16 %v643
        %v2085 = vunpack.c.h.b16 %v643
        %v2086 = vunpack.c.l.b16 %v644
        %v2087 = vunpack.c.h.b16 %v644
        %v2088 = vunpack.c.l.b16 %v645
        %v2089 = vunpack.c.h.b16 %v645
        %v2090 = vunpack.c.l.b16 %v646
        %v2091 = vunpack.c.h.b16 %v646
        %v2092 = vunpack.c.l.b16 %v647
        %v2093 = vunpack.c.h.b16 %v647
        %v2094 = vunpack.c.l.b16 %v648
        %v2095 = vunpack.c.h.b16 %v648
        %v2096 = vunpack.c.l.b16 %v649
        %v2097 = vunpack.c.h.b16 %v649
        %v2098 = vunpack.c.l.b16 %v650
        %v2099 = vunpack.c.h.b16 %v650
        %v2100 = vunpack.c.l.b16 %v651
        %v2101 = vunpack.c.h.b16 %v651
        %v2102 = vunpack.c.l.b16 %v652
        %v2103 = vunpack.c.h.b16 %v652
        %v2104 = vunpack.c.l.b16 %v653
        %v2105 = vunpack.c.h.b16 %v653
        %v2106 = vunpack.c.l.b16 %v654
        %v2107 = vunpack.c.h.b16 %v654
        %v2108 = vunpack.c.l.b16 %v655
        %v2109 = vunpack.c.h.b16 %v655
        %v2110 = vunpack.c.l.b16 %v656
        %v2111 = vunpack.c.h.b16 %v656
        %v2112 = vunpack.c.l.b16 %v657
        %v2113 = vunpack.c.h.b16 %v657
        %v2114 = vunpack.c.l.b16 %v658
        %v2115 = vunpack.c.h.b16 %v658
        %v2116 = vunpack.c.l.b16 %v659
        %v2117 = vunpack.c.h.b16 %v659
        %v2118 = vunpack.c.l.b16 %v660
        %v2119 = vunpack.c.h.b16 %v660
        %v2120 = vunpack.c.l.b16 %v661
        %v2121 = vunpack.c.h.b16 %v661
        %v2122 = vunpack.c.l.b16 %v662
        %v2123 = vunpack.c.h.b16 %v662
        %v2124 = vunpack.c.l.b16 %v663
        %v2125 = vunpack.c.h.b16 %v663
        %v2126 = vunpack.c.l.b16 %v664
        %v2127 = vunpack.c.h.b16 %v664
        %v2128 = vunpack.c.l.b16 %v665
        %v2129 = vunpack.c.h.b16 %v665
        %v2130 = vunpack.c.l.b16 %v666
        %v2131 = vunpack.c.h.b16 %v666
        %v2132 = vunpack.c.l.b16 %v667
        %v2133 = vunpack.c.h.b16 %v667
        %v2134 = vunpack.c.l.b16 %v668
        %v2135 = vunpack.c.h.b16 %v668
        %v2136 = vunpack.c.l.b16 %v669
        %v2137 = vunpack.c.h.b16 %v669
        %v2138 = vunpack.c.l.b16 %v670
        %v2139 = vunpack.c.h.b16 %v670
        %v2140 = vunpack.c.l.b16 %v671
        %v2141 = vunpack.c.h.b16 %v671
        %v2142 = vunpack.c.l.b16 %v672
        %v2143 = vunpack.c.h.b16 %v672
        %v2144 = vunpack.c.l.b16 %v673
        %v2145 = vunpack.c.h.b16 %v673
        %v2146 = vunpack.c.l.b16 %v674
        %v2147 = vunpack.c.h.b16 %v674
        %v2148 = vunpack.c.l.b16 %v675
        %v2149 = vunpack.c.h.b16 %v675
        %v2150 = vunpack.c.l.b16 %v676
        %v2151 = vunpack.c.h.b16 %v676
        %v2152 = vunpack.c.l.b16 %v677
        %v2153 = vunpack.c.h.b16 %v677
        %v2154 = vunpack.c.l.b16 %v678
        %v2155 = vunpack.c.h.b16 %v678
        %v2156 = vunpack.c.l.b16 %v679
        %v2157 = vunpack.c.h.b16 %v679
        %v2158 = vunpack.c.l.b16 %v680
        %v2159 = vunpack.c.h.b16 %v680
        %v2160 = vunpack.c.l.b16 %v681
        %v2161 = vunpack.c.h.b16 %v681
        %v2162 = vunpack.c.l.b16 %v682
        %v2163 = vunpack.c.h.b16 %v682
        %v2164 = vunpack.c.l.b16 %v683
        %v2165 = vunpack.c.h.b16 %v683
        %v2166 = vunpack.c.l.b16 %v684
        %v2167 = vunpack.c.h.b16 %v684
        %v2168 = vunpack.c.l.b16 %v685
        %v2169 = vunpack.c.h.b16 %v685
        %v2170 = vunpack.c.l.b16 %v686
        %v2171 = vunpack.c.h.b16 %v686
        %v2172 = vunpack.c.l.b16 %v687
        %v2173 = vunpack.c.h.b16 %v687
        %v2174 = vunpack.c.l.b16 %v688
        %v2175 = vunpack.c.h.b16 %v688
        %v2176 = vunpack.c.l.b16 %v689
        %v2177 = vunpack.c.h.b16 %v689
        %v2178 = vunpack.c.l.b16 %v690
        %v2179 = vunpack.c.h.b16 %v690
        %v2180 = vunpack.c.l.b16 %v691
        %v2181 = vunpack.c.h.b16 %v691
        %v2182 = vunpack.c.l.b16 %v692
        %v2183 = vunpack.c.h.b16 %v692
        %v2184 = vunpack.c.l.b16 %v693
        %v2185 = vunpack.c.h.b16 %v693
        %v2186 = vunpack.c.l.b16 %v694
        %v2187 = vunpack.c.h.b16 %v694
        %v2188 = vunpack.c.l.b16 %v695
        %v2189 = vunpack.c.h.b16 %v695
        %v2190 = vunpack.c.l.b16 %v696
        %v2191 = vunpack.c.h.b16 %v696
        %v2192 = vunpack.c.l.b16 %v697
        %v2193 = vunpack.c.h.b16 %v697
        %v2194 = vunpack.c.l.b16 %v698
        %v2195 = vunpack.c.h.b16 %v698
        %v2196 = vunpack.c.l.b16 %v699
        %v2197 = vunpack.c.h.b16 %v699
        %v2198 = vunpack.c.l.b16 %v700
        %v2199 = vunpack.c.h.b16 %v700
        %v2200 = vunpack.c.l.b16 %v701
        %v2201 = vunpack.c.h.b16 %v701
        %v2202 = vunpack.c.l.b16 %v702
        %v2203 = vunpack.c.h.b16 %v702
        %v2204 = vunpack.c.l.b16 %v703
        %v2205 = vunpack.c.h.b16 %v703
        %v2206 = vunpack.c.l.b16 %v704
        %v2207 = vunpack.c.h.b16 %v704
        %v2208 = vunpack.c.l.b16 %v705
        %v2209 = vunpack.c.h.b16 %v705
        %v2210 = vunpack.c.l.b16 %v706
        %v2211 = vunpack.c.h.b16 %v706
        %v2212 = vunpack.c.l.b16 %v707
        %v2213 = vunpack.c.h.b16 %v707
        %v2214 = vunpack.c.l.b16 %v708
        %v2215 = vunpack.c.h.b16 %v708
        %v2216 = vunpack.c.l.b16 %v709
        %v2217 = vunpack.c.h.b16 %v709
        %v2218 = vunpack.c.l.b16 %v710
        %v2219 = vunpack.c.h.b16 %v710
        %v2220 = vunpack.c.l.b16 %v711
        %v2221 = vunpack.c.h.b16 %v711
        %v2222 = vunpack.c.l.b16 %v712
        %v2223 = vunpack.c.h.b16 %v712
        %v2224 = vunpack.c.l.b16 %v713
        %v2225 = vunpack.c.h.b16 %v713
        %v2226 = vunpack.c.l.b16 %v714
        %v2227 = vunpack.c.h.b16 %v714
        %v2228 = vunpack.c.l.b16 %v715
        %v2229 = vunpack.c.h.b16 %v715
        %v2230 = vunpack.c.l.b16 %v716
        %v2231 = vunpack.c.h.b16 %v716
        %v2232 = vunpack.c.l.b16 %v717
        %v2233 = vunpack.c.h.b16 %v717
        %v2234 = vunpack.c.l.b16 %v718
        %v2235 = vunpack.c.h.b16 %v718
        %v2236 = vunpack.c.l.b16 %v719
        %v2237 = vunpack.c.h.b16 %v719
        %v2238 = vunpack.c.l.b16 %v720
        %v2239 = vunpack.c.h.b16 %v720
        %v2240 = vunpack.c.l.b16 %v721
        %v2241 = vunpack.c.h.b16 %v721
        %v2242 = vunpack.c.l.b16 %v722
        %v2243 = vunpack.c.h.b16 %v722
        %v2244 = vunpack.c.l.b16 %v723
        %v2245 = vunpack.c.h.b16 %v723
        %v2246 = vunpack.c.l.b16 %v724
        %v2247 = vunpack.c.h.b16 %v724
        %v2248 = vunpack.c.l.b16 %v725
        %v2249 = vunpack.c.h.b16 %v725
        %v2250 = vunpack.c.l.b16 %v726
        %v2251 = vunpack.c.h.b16 %v726
        %v2252 = vunpack.c.l.b16 %v727
        %v2253 = vunpack.c.h.b16 %v727
        %v2254 = vunpack.c.l.b16 %v728
        %v2255 = vunpack.c.h.b16 %v728
        %v2256 = vunpack.c.l.b16 %v729
        %v2257 = vunpack.c.h.b16 %v729
        %v2258 = vunpack.c.l.b16 %v730
        %v2259 = vunpack.c.h.b16 %v730
        %v2260 = vunpack.c.l.b16 %v731
        %v2261 = vunpack.c.h.b16 %v731
        %v2262 = vunpack.c.l.b16 %v732
        %v2263 = vunpack.c.h.b16 %v732
        %v2264 = vunpack.c.l.b16 %v733
        %v2265 = vunpack.c.h.b16 %v733
        %v2266 = vunpack.c.l.b16 %v734
        %v2267 = vunpack.c.h.b16 %v734
        %v2268 = vunpack.c.l.b16 %v735
        %v2269 = vunpack.c.h.b16 %v735
        %v2270 = vunpack.c.l.b16 %v736
        %v2271 = vunpack.c.h.b16 %v736
        %v2272 = vunpack.c.l.b16 %v737
        %v2273 = vunpack.c.h.b16 %v737
        %v2274 = vunpack.c.l.b16 %v738
        %v2275 = vunpack.c.h.b16 %v738
        %v2276 = vunpack.c.l.b16 %v739
        %v2277 = vunpack.c.h.b16 %v739
        %v2278 = vunpack.c.l.b16 %v740
        %v2279 = vunpack.c.h.b16 %v740
        %v2280 = vunpack.c.l.b16 %v741
        %v2281 = vunpack.c.h.b16 %v741
        %v2282 = vunpack.c.l.b16 %v742
        %v2283 = vunpack.c.h.b16 %v742
        %v2284 = vunpack.c.l.b16 %v743
        %v2285 = vunpack.c.h.b16 %v743
        %v2286 = vunpack.c.l.b16 %v744
        %v2287 = vunpack.c.h.b16 %v744
        %v2288 = vunpack.c.l.b16 %v745
        %v2289 = vunpack.c.h.b16 %v745
        %v2290 = vunpack.c.l.b16 %v746
        %v2291 = vunpack.c.h.b16 %v746
        %v2292 = vunpack.c.l.b16 %v747
        %v2293 = vunpack.c.h.b16 %v747
        %v2294 = vunpack.c.l.b16 %v748
        %v2295 = vunpack.c.h.b16 %v748
        %v2296 = vunpack.c.l.b16 %v749
        %v2297 = vunpack.c.h.b16 %v749
        %v2298 = vunpack.c.l.b16 %v750
        %v2299 = vunpack.c.h.b16 %v750
        %v2300 = vunpack.c.l.b16 %v751
        %v2301 = vunpack.c.h.b16 %v751
        %v2302 = vunpack.c.l.b16 %v752
        %v2303 = vunpack.c.h.b16 %v752
        %v2304 = vunpack.c.l.b16 %v753
        %v2305 = vunpack.c.h.b16 %v753
        %v2306 = vunpack.c.l.b16 %v754
        %v2307 = vunpack.c.h.b16 %v754
        %v2308 = vunpack.c.l.b16 %v755
        %v2309 = vunpack.c.h.b16 %v755
        %v2310 = vunpack.c.l.b16 %v756
        %v2311 = vunpack.c.h.b16 %v756
        %v2312 = vunpack.c.l.b16 %v757
        %v2313 = vunpack.c.h.b16 %v757
        %v2314 = vunpack.c.l.b16 %v758
        %v2315 = vunpack.c.h.b16 %v758
        %v2316 = vunpack.c.l.b16 %v759
        %v2317 = vunpack.c.h.b16 %v759
        %v2318 = vunpack.c.l.b16 %v760
        %v2319 = vunpack.c.h.b16 %v760
        %v2320 = vunpack.c.l.b16 %v761
        %v2321 = vunpack.c.h.b16 %v761
        %v2322 = vunpack.c.l.b16 %v762
        %v2323 = vunpack.c.h.b16 %v762
        %v2324 = vunpack.c.l.b16 %v763
        %v2325 = vunpack.c.h.b16 %v763
        %v2326 = vunpack.c.l.b16 %v764
        %v2327 = vunpack.c.h.b16 %v764
        %v2328 = vunpack.c.l.b16 %v765
        %v2329 = vunpack.c.h.b16 %v765
        %v2330 = vunpack.c.l.b16 %v766
        %v2331 = vunpack.c.h.b16 %v766
        %v2332 = vunpack.c.l.b16 %v767
        %v2333 = vunpack.c.h.b16 %v767
        %v2334 = vunpack.c.l.b16 %v768
        %v2335 = vunpack.c.h.b16 %v768
        %v2336 = vunpack.c.l.b16 %v769
        %v2337 = vunpack.c.h.b16 %v769
        %v2338 = vunpack.c.l.b16 %v770
        %v2339 = vunpack.c.h.b16 %v770
        %v2340 = vunpack.c.l.b16 %v771
        %v2341 = vunpack.c.h.b16 %v771
        %v2342 = vunpack.c.l.b16 %v772
        %v2343 = vunpack.c.h.b16 %v772
        %v2344 = vunpack.c.l.b16 %v773
        %v2345 = vunpack.c.h.b16 %v773
        %v2346 = vunpack.c.l.b16 %v774
        %v2347 = vunpack.c.h.b16 %v774
        %v2348 = vunpack.c.l.b16 %v775
        %v2349 = vunpack.c.h.b16 %v775
        %v2350 = vunpack.c.l.b16 %v776
        %v2351 = vunpack.c.h.b16 %v776
        %v2352 = vunpack.c.l.b16 %v777
        %v2353 = vunpack.c.h.b16 %v777
        %v2354 = vunpack.c.l.b16 %v778
        %v2355 = vunpack.c.h.b16 %v778
        %v2356 = vunpack.c.l.b16 %v779
        %v2357 = vunpack.c.h.b16 %v779
        %v2358 = vunpack.c.l.b16 %v780
        %v2359 = vunpack.c.h.b16 %v780
        %v2360 = vunpack.c.l.b16 %v781
        %v2361 = vunpack.c.h.b16 %v781
        %v2362 = vunpack.c.l.b16 %v782
        %v2363 = vunpack.c.h.b16 %v782
        %v2364 = vunpack.c.l.b16 %v783
        %v2365 = vunpack.c.h.b16 %v783
        %v2366 = vunpack.c.l.b16 %v784
        %v2367 = vunpack.c.h.b16 %v784
        %v2368 = vunpack.c.l.b16 %v785
        %v2369 = vunpack.c.h.b16 %v785
        %v2370 = vunpack.c.l.b16 %v786
        %v2371 = vunpack.c.h.b16 %v786
        %v2372 = vunpack.c.l.b16 %v787
        %v2373 = vunpack.c.h.b16 %v787
        %v2374 = vunpack.c.l.b16 %v788
        %v2375 = vunpack.c.h.b16 %v788
        %v2376 = vunpack.c.l.b16 %v789
        %v2377 = vunpack.c.h.b16 %v789
        %v2378 = vunpack.c.l.b16 %v790
        %v2379 = vunpack.c.h.b16 %v790
        %v2380 = vunpack.c.l.b16 %v791
        %v2381 = vunpack.c.h.b16 %v791
        %v2382 = vunpack.c.l.b16 %v792
        %v2383 = vunpack.c.h.b16 %v792
        %v2384 = vunpack.c.l.b16 %v793
        %v2385 = vunpack.c.h.b16 %v793
        %v2386 = vunpack.c.l.b16 %v794
        %v2387 = vunpack.c.h.b16 %v794
        %v2388 = vunpack.c.l.b16 %v795
        %v2389 = vunpack.c.h.b16 %v795
        %v2390 = vunpack.c.l.b16 %v796
        %v2391 = vunpack.c.h.b16 %v796
        %v2392 = vunpack.c.l.b16 %v797
        %v2393 = vunpack.c.h.b16 %v797
        %v2394 = vunpack.c.l.b16 %v798
        %v2395 = vunpack.c.h.b16 %v798
        %v2396 = vunpack.c.l.b16 %v799
        %v2397 = vunpack.c.h.b16 %v799
        %v2398 = vunpack.c.l.b16 %v800
        %v2399 = vunpack.c.h.b16 %v800
        %v2400 = vunpack.c.l.b16 %v801
        %v2401 = vunpack.c.h.b16 %v801
        %v2402 = vunpack.c.l.b16 %v802
        %v2403 = vunpack.c.h.b16 %v802
        %v2404 = vunpack.c.l.b16 %v803
        %v2405 = vunpack.c.h.b16 %v803
        %v2406 = vunpack.c.l.b16 %v804
        %v2407 = vunpack.c.h.b16 %v804
        %v2408 = vunpack.c.l.b16 %v805
        %v2409 = vunpack.c.h.b16 %v805
        %v2410 = vunpack.c.l.b16 %v806
        %v2411 = vunpack.c.h.b16 %v806
        %v2412 = vunpack.c.l.b16 %v807
        %v2413 = vunpack.c.h.b16 %v807
        %v2414 = vunpack.c.l.b16 %v808
        %v2415 = vunpack.c.h.b16 %v808
        %v2416 = vunpack.c.l.b16 %v809
        %v2417 = vunpack.c.h.b16 %v809
        %v2418 = vunpack.c.l.b16 %v810
        %v2419 = vunpack.c.h.b16 %v810
        %v2420 = vunpack.c.l.b16 %v811
        %v2421 = vunpack.c.h.b16 %v811
        %v2422 = vunpack.c.l.b16 %v812
        %v2423 = vunpack.c.h.b16 %v812
        %v2424 = vunpack.c.l.b16 %v813
        %v2425 = vunpack.c.h.b16 %v813
        %v2426 = vunpack.c.l.b16 %v814
        %v2427 = vunpack.c.h.b16 %v814
        %v2428 = vunpack.c.l.b16 %v815
        %v2429 = vunpack.c.h.b16 %v815
        %v2430 = vunpack.c.l.b16 %v816
        %v2431 = vunpack.c.h.b16 %v816
        %v2432 = vunpack.c.l.b16 %v817
        %v2433 = vunpack.c.h.b16 %v817
        %v2434 = vunpack.c.l.b16 %v818
        %v2435 = vunpack.c.h.b16 %v818
        %v2436 = vunpack.c.l.b16 %v819
        %v2437 = vunpack.c.h.b16 %v819
        %v2438 = vunpack.c.l.b16 %v820
        %v2439 = vunpack.c.h.b16 %v820
        %v2440 = vunpack.c.l.b16 %v821
        %v2441 = vunpack.c.h.b16 %v821
        %v2442 = vunpack.c.l.b16 %v822
        %v2443 = vunpack.c.h.b16 %v822
        %v2444 = vunpack.c.l.b16 %v823
        %v2445 = vunpack.c.h.b16 %v823
        %v2446 = vunpack.c.l.b16 %v824
        %v2447 = vunpack.c.h.b16 %v824
        %v2448 = vunpack.c.l.b16 %v825
        %v2449 = vunpack.c.h.b16 %v825
        %v2450 = vunpack.c.l.b16 %v826
        %v2451 = vunpack.c.h.b16 %v826
        %v2452 = vunpack.c.l.b16 %v827
        %v2453 = vunpack.c.h.b16 %v827
        %v2454 = vunpack.c.l.b16 %v828
        %v2455 = vunpack.c.h.b16 %v828
        %v2456 = vunpack.c.l.b16 %v829
        %v2457 = vunpack.c.h.b16 %v829
        %v2458 = vunpack.c.l.b16 %v830
        %v2459 = vunpack.c.h.b16 %v830
        %v2460 = vunpack.c.l.b16 %v831
        %v2461 = vunpack.c.h.b16 %v831
        %v2462 = vunpack.c.l.b16 %v832
        %v2463 = vunpack.c.h.b16 %v832
        %v2464 = vunpack.c.l.b16 %v833
        %v2465 = vunpack.c.h.b16 %v833
        %v2466 = vunpack.c.l.b16 %v834
        %v2467 = vunpack.c.h.b16 %v834
        %v2468 = vunpack.c.l.b16 %v835
        %v2469 = vunpack.c.h.b16 %v835
        %v2470 = vunpack.c.l.b16 %v836
        %v2471 = vunpack.c.h.b16 %v836
        %v2472 = vunpack.c.l.b16 %v837
        %v2473 = vunpack.c.h.b16 %v837
        %v2474 = vunpack.c.l.b16 %v838
        %v2475 = vunpack.c.h.b16 %v838
        %v2476 = vunpack.c.l.b16 %v839
        %v2477 = vunpack.c.h.b16 %v839
        %v2478 = vunpack.c.l.b16 %v840
        %v2479 = vunpack.c.h.b16 %v840
        %v2480 = vunpack.c.l.b16 %v841
        %v2481 = vunpack.c.h.b16 %v841
        %v2482 = vunpack.c.l.b16 %v842
        %v2483 = vunpack.c.h.b16 %v842
        %v2484 = vunpack.c.l.b16 %v843
        %v2485 = vunpack.c.h.b16 %v843
        %v2486 = vunpack.c.l.b16 %v844
        %v2487 = vunpack.c.h.b16 %v844
        %v2488 = vunpack.c.l.b16 %v845
        %v2489 = vunpack.c.h.b16 %v845
        %v2490 = vunpack.c.l.b16 %v846
        %v2491 = vunpack.c.h.b16 %v846
        %v2492 = vunpack.c.l.b16 %v847
        %v2493 = vunpack.c.h.b16 %v847
        %v2494 = vunpack.c.l.b16 %v848
        %v2495 = vunpack.c.h.b16 %v848
        %v2496 = vunpack.c.l.b16 %v849
        %v2497 = vunpack.c.h.b16 %v849
        %v2498 = vunpack.c.l.b16 %v850
        %v2499 = vunpack.c.h.b16 %v850
        %v2500 = vunpack.c.l.b16 %v851
        %v2501 = vunpack.c.h.b16 %v851
        %v2502 = vunpack.c.l.b16 %v852
        %v2503 = vunpack.c.h.b16 %v852
        %v2504 = vunpack.c.l.b16 %v853
        %v2505 = vunpack.c.h.b16 %v853
        %v2506 = vpack.c.b16 %v1486, %v1482
        %v2507 = vpack.c.b16 %v1487, %v1483
        %v2508 = vpack.c.b16 %v1488, %v1484
        %v2509 = vpack.c.b16 %v1489, %v1485
        %v2510 = vpack.c.b16 %v1494, %v1490
        %v2511 = vpack.c.b16 %v1495, %v1491
        %v2512 = vpack.c.b16 %v1496, %v1492
        %v2513 = vpack.c.b16 %v1497, %v1493
        %v2514 = vpack.c.b16 %v1502, %v1498
        %v2515 = vpack.c.b16 %v1503, %v1499
        %v2516 = vpack.c.b16 %v1504, %v1500
        %v2517 = vpack.c.b16 %v1505, %v1501
        %v2518 = vpack.c.b16 %v1510, %v1506
        %v2519 = vpack.c.b16 %v1511, %v1507
        %v2520 = vpack.c.b16 %v1512, %v1508
        %v2521 = vpack.c.b16 %v1513, %v1509
        %v2522 = vpack.c.b16 %v1518, %v1514
        %v2523 = vpack.c.b16 %v1519, %v1515
        %v2524 = vpack.c.b16 %v1520, %v1516
        %v2525 = vpack.c.b16 %v1521, %v1517
        %v2526 = vpack.c.b16 %v1526, %v1522
        %v2527 = vpack.c.b16 %v1527, %v1523
        %v2528 = vpack.c.b16 %v1528, %v1524
        %v2529 = vpack.c.b16 %v1529, %v1525
        %v2530 = vpack.c.b16 %v1534, %v1530
        %v2531 = vpack.c.b16 %v1535, %v1531
        %v2532 = vpack.c.b16 %v1536, %v1532
        %v2533 = vpack.c.b16 %v1537, %v1533
        %v2534 = vpack.c.b16 %v1542, %v1538
        %v2535 = vpack.c.b16 %v1543, %v1539
        %v2536 = vpack.c.b16 %v1544, %v1540
        %v2537 = vpack.c.b16 %v1545, %v1541
        %v2538 = vpack.c.b16 %v1550, %v1546
        %v2539 = vpack.c.b16 %v1551, %v1547
        %v2540 = vpack.c.b16 %v1552, %v1548
        %v2541 = vpack.c.b16 %v1553, %v1549
        %v2542 = vpack.c.b16 %v1558, %v1554
        %v2543 = vpack.c.b16 %v1559, %v1555
        %v2544 = vpack.c.b16 %v1560, %v1556
        %v2545 = vpack.c.b16 %v1561, %v1557
        %v2546 = vpack.c.b16 %v1566, %v1562
        %v2547 = vpack.c.b16 %v1567, %v1563
        %v2548 = vpack.c.b16 %v1568, %v1564
        %v2549 = vpack.c.b16 %v1569, %v1565
        %v2550 = vpack.c.b16 %v1574, %v1570
        %v2551 = vpack.c.b16 %v1575, %v1571
        %v2552 = vpack.c.b16 %v1576, %v1572
        %v2553 = vpack.c.b16 %v1577, %v1573
        %v2554 = vpack.c.b16 %v1582, %v1578
        %v2555 = vpack.c.b16 %v1583, %v1579
        %v2556 = vpack.c.b16 %v1584, %v1580
        %v2557 = vpack.c.b16 %v1585, %v1581
        %v2558 = vpack.c.b16 %v1590, %v1586
        %v2559 = vpack.c.b16 %v1591, %v1587
        %v2560 = vpack.c.b16 %v1592, %v1588
        %v2561 = vpack.c.b16 %v1593, %v1589
        %v2562 = vpack.c.b16 %v1598, %v1594
        %v2563 = vpack.c.b16 %v1599, %v1595
        %v2564 = vpack.c.b16 %v1600, %v1596
        %v2565 = vpack.c.b16 %v1601, %v1597
        %v2566 = vpack.c.b16 %v1606, %v1602
        %v2567 = vpack.c.b16 %v1607, %v1603
        %v2568 = vpack.c.b16 %v1608, %v1604
        %v2569 = vpack.c.b16 %v1609, %v1605
        %v2570 = vpack.c.b16 %v1614, %v1610
        %v2571 = vpack.c.b16 %v1615, %v1611
        %v2572 = vpack.c.b16 %v1616, %v1612
        %v2573 = vpack.c.b16 %v1617, %v1613
        %v2574 = vpack.c.b16 %v1622, %v1618
        %v2575 = vpack.c.b16 %v1623, %v1619
        %v2576 = vpack.c.b16 %v1624, %v1620
        %v2577 = vpack.c.b16 %v1625, %v1621
        %v2578 = vpack.c.b16 %v1630, %v1626
        %v2579 = vpack.c.b16 %v1631, %v1627
        %v2580 = vpack.c.b16 %v1632, %v1628
        %v2581 = vpack.c.b16 %v1633, %v1629
        %v2582 = vpack.c.b16 %v1638, %v1634
        %v2583 = vpack.c.b16 %v1639, %v1635
        %v2584 = vpack.c.b16 %v1640, %v1636
        %v2585 = vpack.c.b16 %v1641, %v1637
        %v2586 = vpack.c.b16 %v1646, %v1642
        %v2587 = vpack.c.b16 %v1647, %v1643
        %v2588 = vpack.c.b16 %v1648, %v1644
        %v2589 = vpack.c.b16 %v1649, %v1645
        %v2590 = vpack.c.b16 %v1654, %v1650
        %v2591 = vpack.c.b16 %v1655, %v1651
        %v2592 = vpack.c.b16 %v1656, %v1652
        %v2593 = vpack.c.b16 %v1657, %v1653
        %v2594 = vpack.c.b16 %v1662, %v1658
        %v2595 = vpack.c.b16 %v1663, %v1659
        %v2596 = vpack.c.b16 %v1664, %v1660
        %v2597 = vpack.c.b16 %v1665, %v1661
        %v2598 = vpack.c.b16 %v1670, %v1666
        %v2599 = vpack.c.b16 %v1671, %v1667
        %v2600 = vpack.c.b16 %v1672, %v1668
        %v2601 = vpack.c.b16 %v1673, %v1669
        %v2602 = vpack.c.b16 %v1678, %v1674
        %v2603 = vpack.c.b16 %v1679, %v1675
        %v2604 = vpack.c.b16 %v1680, %v1676
        %v2605 = vpack.c.b16 %v1681, %v1677
        %v2606 = vpack.c.b16 %v1686, %v1682
        %v2607 = vpack.c.b16 %v1687, %v1683
        %v2608 = vpack.c.b16 %v1688, %v1684
        %v2609 = vpack.c.b16 %v1689, %v1685
        %v2610 = vpack.c.b16 %v1694, %v1690
        %v2611 = vpack.c.b16 %v1695, %v1691
        %v2612 = vpack.c.b16 %v1696, %v1692
        %v2613 = vpack.c.b16 %v1697, %v1693
        %v2614 = vpack.c.b16 %v1702, %v1698
        %v2615 = vpack.c.b16 %v1703, %v1699
        %v2616 = vpack.c.b16 %v1704, %v1700
        %v2617 = vpack.c.b16 %v1705, %v1701
        %v2618 = vpack.c.b16 %v1710, %v1706
        %v2619 = vpack.c.b16 %v1711, %v1707
        %v2620 = vpack.c.b16 %v1712, %v1708
        %v2621 = vpack.c.b16 %v1713, %v1709
        %v2622 = vpack.c.b16 %v1718, %v1714
        %v2623 = vpack.c.b16 %v1719, %v1715
        %v2624 = vpack.c.b16 %v1720, %v1716
        %v2625 = vpack.c.b16 %v1721, %v1717
        %v2626 = vpack.c.b16 %v1726, %v1722
        %v2627 = vpack.c.b16 %v1727, %v1723
        %v2628 = vpack.c.b16 %v1728, %v1724
        %v2629 = vpack.c.b16 %v1729, %v1725
        %v2630 = vpack.c.b16 %v1734, %v1730
        %v2631 = vpack.c.b16 %v1735, %v1731
        %v2632 = vpack.c.b16 %v1736, %v1732
        %v2633 = vpack.c.b16 %v1737, %v1733
        %v2634 = vpack.c.b16 %v1742, %v1738
        %v2635 = vpack.c.b16 %v1743, %v1739
        %v2636 = vpack.c.b16 %v1744, %v1740
        %v2637 = vpack.c.b16 %v1745, %v1741
        %v2638 = vpack.c.b16 %v1750, %v1746
        %v2639 = vpack.c.b16 %v1751, %v1747
        %v2640 = vpack.c.b16 %v1752, %v1748
        %v2641 = vpack.c.b16 %v1753, %v1749
        %v2642 = vpack.c.b16 %v1758, %v1754
        %v2643 = vpack.c.b16 %v1759, %v1755
        %v2644 = vpack.c.b16 %v1760, %v1756
        %v2645 = vpack.c.b16 %v1761, %v1757
        %v2646 = vpack.c.b16 %v1766, %v1762
        %v2647 = vpack.c.b16 %v1767, %v1763
        %v2648 = vpack.c.b16 %v1768, %v1764
        %v2649 = vpack.c.b16 %v1769, %v1765
        %v2650 = vpack.c.b16 %v1774, %v1770
        %v2651 = vpack.c.b16 %v1775, %v1771
        %v2652 = vpack.c.b16 %v1776, %v1772
        %v2653 = vpack.c.b16 %v1777, %v1773
        %v2654 = vpack.c.b16 %v1782, %v1778
        %v2655 = vpack.c.b16 %v1783, %v1779
        %v2656 = vpack.c.b16 %v1784, %v1780
        %v2657 = vpack.c.b16 %v1785, %v1781
        %v2658 = vpack.c.b16 %v1790, %v1786
        %v2659 = vpack.c.b16 %v1791, %v1787
        %v2660 = vpack.c.b16 %v1792, %v1788
        %v2661 = vpack.c.b16 %v1793, %v1789
        %v2662 = vpack.c.b16 %v1798, %v1794
        %v2663 = vpack.c.b16 %v1799, %v1795
        %v2664 = vpack.c.b16 %v1800, %v1796
        %v2665 = vpack.c.b16 %v1801, %v1797
        %v2666 = vpack.c.b16 %v1806, %v1802
        %v2667 = vpack.c.b16 %v1807, %v1803
        %v2668 = vpack.c.b16 %v1808, %v1804
        %v2669 = vpack.c.b16 %v1809, %v1805
        %v2670 = vpack.c.b16 %v1814, %v1810
        %v2671 = vpack.c.b16 %v1815, %v1811
        %v2672 = vpack.c.b16 %v1816, %v1812
        %v2673 = vpack.c.b16 %v1817, %v1813
        %v2674 = vpack.c.b16 %v1822, %v1818
        %v2675 = vpack.c.b16 %v1823, %v1819
        %v2676 = vpack.c.b16 %v1824, %v1820
        %v2677 = vpack.c.b16 %v1825, %v1821
        %v2678 = vpack.c.b16 %v1830, %v1826
        %v2679 = vpack.c.b16 %v1831, %v1827
        %v2680 = vpack.c.b16 %v1832, %v1828
        %v2681 = vpack.c.b16 %v1833, %v1829
        %v2682 = vpack.c.b16 %v1838, %v1834
        %v2683 = vpack.c.b16 %v1839, %v1835
        %v2684 = vpack.c.b16 %v1840, %v1836
        %v2685 = vpack.c.b16 %v1841, %v1837
        %v2686 = vpack.c.b16 %v1846, %v1842
        %v2687 = vpack.c.b16 %v1847, %v1843
        %v2688 = vpack.c.b16 %v1848, %v1844
        %v2689 = vpack.c.b16 %v1849, %v1845
        %v2690 = vpack.c.b16 %v1854, %v1850
        %v2691 = vpack.c.b16 %v1855, %v1851
        %v2692 = vpack.c.b16 %v1856, %v1852
        %v2693 = vpack.c.b16 %v1857, %v1853
        %v2694 = vpack.c.b16 %v1862, %v1858
        %v2695 = vpack.c.b16 %v1863, %v1859
        %v2696 = vpack.c.b16 %v1864, %v1860
        %v2697 = vpack.c.b16 %v1865, %v1861
        %v2698 = vpack.c.b16 %v1870, %v1866
        %v2699 = vpack.c.b16 %v1871, %v1867
        %v2700 = vpack.c.b16 %v1872, %v1868
        %v2701 = vpack.c.b16 %v1873, %v1869
        %v2702 = vpack.c.b16 %v1878, %v1874
        %v2703 = vpack.c.b16 %v1879, %v1875
        %v2704 = vpack.c.b16 %v1880, %v1876
        %v2705 = vpack.c.b16 %v1881, %v1877
        %v2706 = vpack.c.b16 %v1886, %v1882
        %v2707 = vpack.c.b16 %v1887, %v1883
        %v2708 = vpack.c.b16 %v1888, %v1884
        %v2709 = vpack.c.b16 %v1889, %v1885
        %v2710 = vpack.c.b16 %v1894, %v1890
        %v2711 = vpack.c.b16 %v1895, %v1891
        %v2712 = vpack.c.b16 %v1896, %v1892
        %v2713 = vpack.c.b16 %v1897, %v1893
        %v2714 = vpack.c.b16 %v1902, %v1898
        %v2715 = vpack.c.b16 %v1903, %v1899
        %v2716 = vpack.c.b16 %v1904, %v1900
        %v2717 = vpack.c.b16 %v1905, %v1901
        %v2718 = vpack.c.b16 %v1910, %v1906
        %v2719 = vpack.c.b16 %v1911, %v1907
        %v2720 = vpack.c.b16 %v1912, %v1908
        %v2721 = vpack.c.b16 %v1913, %v1909
        %v2722 = vpack.c.b16 %v1918, %v1914
        %v2723 = vpack.c.b16 %v1919, %v1915
        %v2724 = vpack.c.b16 %v1920, %v1916
        %v2725 = vpack.c.b16 %v1921, %v1917
        %v2726 = vpack.c.b16 %v1926, %v1922
        %v2727 = vpack.c.b16 %v1927, %v1923
        %v2728 = vpack.c.b16 %v1928, %v1924
        %v2729 = vpack.c.b16 %v1929, %v1925
        %v2730 = vpack.c.b16 %v1934, %v1930
        %v2731 = vpack.c.b16 %v1935, %v1931
        %v2732 = vpack.c.b16 %v1936, %v1932
        %v2733 = vpack.c.b16 %v1937, %v1933
        %v2734 = vpack.c.b16 %v1942, %v1938
        %v2735 = vpack.c.b16 %v1943, %v1939
        %v2736 = vpack.c.b16 %v1944, %v1940
        %v2737 = vpack.c.b16 %v1945, %v1941
        %v2738 = vpack.c.b16 %v1950, %v1946
        %v2739 = vpack.c.b16 %v1951, %v1947
        %v2740 = vpack.c.b16 %v1952, %v1948
        %v2741 = vpack.c.b16 %v1953, %v1949
        %v2742 = vpack.c.b16 %v1958, %v1954
        %v2743 = vpack.c.b16 %v1959, %v1955
        %v2744 = vpack.c.b16 %v1960, %v1956
        %v2745 = vpack.c.b16 %v1961, %v1957
        %v2746 = vpack.c.b16 %v1966, %v1962
        %v2747 = vpack.c.b16 %v1967, %v1963
        %v2748 = vpack.c.b16 %v1968, %v1964
        %v2749 = vpack.c.b16 %v1969, %v1965
        %v2750 = vpack.c.b16 %v1974, %v1970
        %v2751 = vpack.c.b16 %v1975, %v1971
        %v2752 = vpack.c.b16 %v1976, %v1972
        %v2753 = vpack.c.b16 %v1977, %v1973
        %v2754 = vpack.c.b16 %v1982, %v1978
        %v2755 = vpack.c.b16 %v1983, %v1979
        %v2756 = vpack.c.b16 %v1984, %v1980
        %v2757 = vpack.c.b16 %v1985, %v1981
        %v2758 = vpack.c.b16 %v1990, %v1986
        %v2759 = vpack.c.b16 %v1991, %v1987
        %v2760 = vpack.c.b16 %v1992, %v1988
        %v2761 = vpack.c.b16 %v1993, %v1989
        %v2762 = vpack.c.b16 %v1998, %v1994
        %v2763 = vpack.c.b16 %v1999, %v1995
        %v2764 = vpack.c.b16 %v2000, %v1996
        %v2765 = vpack.c.b16 %v2001, %v1997
        %v2766 = vpack.c.b16 %v2006, %v2002
        %v2767 = vpack.c.b16 %v2007, %v2003
        %v2768 = vpack.c.b16 %v2008, %v2004
        %v2769 = vpack.c.b16 %v2009, %v2005
        %v2770 = vpack.c.b16 %v2014, %v2010
        %v2771 = vpack.c.b16 %v2015, %v2011
        %v2772 = vpack.c.b16 %v2016, %v2012
        %v2773 = vpack.c.b16 %v2017, %v2013
        %v2774 = vpack.c.b16 %v2022, %v2018
        %v2775 = vpack.c.b16 %v2023, %v2019
        %v2776 = vpack.c.b16 %v2024, %v2020
        %v2777 = vpack.c.b16 %v2025, %v2021
        %v2778 = vpack.c.b16 %v2030, %v2026
        %v2779 = vpack.c.b16 %v2031, %v2027
        %v2780 = vpack.c.b16 %v2032, %v2028
        %v2781 = vpack.c.b16 %v2033, %v2029
        %v2782 = vpack.c.b16 %v2038, %v2034
        %v2783 = vpack.c.b16 %v2039, %v2035
        %v2784 = vpack.c.b16 %v2040, %v2036
        %v2785 = vpack.c.b16 %v2041, %v2037
        %v2786 = vpack.c.b16 %v2046, %v2042
        %v2787 = vpack.c.b16 %v2047, %v2043
        %v2788 = vpack.c.b16 %v2048, %v2044
        %v2789 = vpack.c.b16 %v2049, %v2045
        %v2790 = vpack.c.b16 %v2054, %v2050
        %v2791 = vpack.c.b16 %v2055, %v2051
        %v2792 = vpack.c.b16 %v2056, %v2052
        %v2793 = vpack.c.b16 %v2057, %v2053
        %v2794 = vpack.c.b16 %v2062, %v2058
        %v2795 = vpack.c.b16 %v2063, %v2059
        %v2796 = vpack.c.b16 %v2064, %v2060
        %v2797 = vpack.c.b16 %v2065, %v2061
        %v2798 = vpack.c.b16 %v2070, %v2066
        %v2799 = vpack.c.b16 %v2071, %v2067
        %v2800 = vpack.c.b16 %v2072, %v2068
        %v2801 = vpack.c.b16 %v2073, %v2069
        %v2802 = vpack.c.b16 %v2078, %v2074
        %v2803 = vpack.c.b16 %v2079, %v2075
        %v2804 = vpack.c.b16 %v2080, %v2076
        %v2805 = vpack.c.b16 %v2081, %v2077
        %v2806 = vpack.c.b16 %v2086, %v2082
        %v2807 = vpack.c.b16 %v2087, %v2083
        %v2808 = vpack.c.b16 %v2088, %v2084
        %v2809 = vpack.c.b16 %v2089, %v2085
        %v2810 = vpack.c.b16 %v2094, %v2090
        %v2811 = vpack.c.b16 %v2095, %v2091
        %v2812 = vpack.c.b16 %v2096, %v2092
        %v2813 = vpack.c.b16 %v2097, %v2093
        %v2814 = vpack.c.b16 %v2102, %v2098
        %v2815 = vpack.c.b16 %v2103, %v2099
        %v2816 = vpack.c.b16 %v2104, %v2100
        %v2817 = vpack.c.b16 %v2105, %v2101
        %v2818 = vpack.c.b16 %v2110, %v2106
        %v2819 = vpack.c.b16 %v2111, %v2107
        %v2820 = vpack.c.b16 %v2112, %v2108
        %v2821 = vpack.c.b16 %v2113, %v2109
        %v2822 = vpack.c.b16 %v2118, %v2114
        %v2823 = vpack.c.b16 %v2119, %v2115
        %v2824 = vpack.c.b16 %v2120, %v2116
        %v2825 = vpack.c.b16 %v2121, %v2117
        %v2826 = vpack.c.b16 %v2126, %v2122
        %v2827 = vpack.c.b16 %v2127, %v2123
        %v2828 = vpack.c.b16 %v2128, %v2124
        %v2829 = vpack.c.b16 %v2129, %v2125
        %v2830 = vpack.c.b16 %v2134, %v2130
        %v2831 = vpack.c.b16 %v2135, %v2131
        %v2832 = vpack.c.b16 %v2136, %v2132
        %v2833 = vpack.c.b16 %v2137, %v2133
        %v2834 = vpack.c.b16 %v2142, %v2138
        %v2835 = vpack.c.b16 %v2143, %v2139
        %v2836 = vpack.c.b16 %v2144, %v2140
        %v2837 = vpack.c.b16 %v2145, %v2141
        %v2838 = vpack.c.b16 %v2150, %v2146
        %v2839 = vpack.c.b16 %v2151, %v2147
        %v2840 = vpack.c.b16 %v2152, %v2148
        %v2841 = vpack.c.b16 %v2153, %v2149
        %v2842 = vpack.c.b16 %v2158, %v2154
        %v2843 = vpack.c.b16 %v2159, %v2155
        %v2844 = vpack.c.b16 %v2160, %v2156
        %v2845 = vpack.c.b16 %v2161, %v2157
        %v2846 = vpack.c.b16 %v2166, %v2162
        %v2847 = vpack.c.b16 %v2167, %v2163
        %v2848 = vpack.c.b16 %v2168, %v2164
        %v2849 = vpack.c.b16 %v2169, %v2165
        %v2850 = vpack.c.b16 %v2174, %v2170
        %v2851 = vpack.c.b16 %v2175, %v2171
        %v2852 = vpack.c.b16 %v2176, %v2172
        %v2853 = vpack.c.b16 %v2177, %v2173
        %v2854 = vpack.c.b16 %v2182, %v2178
        %v2855 = vpack.c.b16 %v2183, %v2179
        %v2856 = vpack.c.b16 %v2184, %v2180
        %v2857 = vpack.c.b16 %v2185, %v2181
        %v2858 = vpack.c.b16 %v2190, %v2186
        %v2859 = vpack.c.b16 %v2191, %v2187
        %v2860 = vpack.c.b16 %v2192, %v2188
        %v2861 = vpack.c.b16 %v2193, %v2189
        %v2862 = vpack.c.b16 %v2198, %v2194
        %v2863 = vpack.c.b16 %v2199, %v2195
        %v2864 = vpack.c.b16 %v2200, %v2196
        %v2865 = vpack.c.b16 %v2201, %v2197
        %v2866 = vpack.c.b16 %v2206, %v2202
        %v2867 = vpack.c.b16 %v2207, %v2203
        %v2868 = vpack.c.b16 %v2208, %v2204
        %v2869 = vpack.c.b16 %v2209, %v2205
        %v2870 = vpack.c.b16 %v2214, %v2210
        %v2871 = vpack.c.b16 %v2215, %v2211
        %v2872 = vpack.c.b16 %v2216, %v2212
        %v2873 = vpack.c.b16 %v2217, %v2213
        %v2874 = vpack.c.b16 %v2222, %v2218
        %v2875 = vpack.c.b16 %v2223, %v2219
        %v2876 = vpack.c.b16 %v2224, %v2220
        %v2877 = vpack.c.b16 %v2225, %v2221
        %v2878 = vpack.c.b16 %v2230, %v2226
        %v2879 = vpack.c.b16 %v2231, %v2227
        %v2880 = vpack.c.b16 %v2232, %v2228
        %v2881 = vpack.c.b16 %v2233, %v2229
        %v2882 = vpack.c.b16 %v2238, %v2234
        %v2883 = vpack.c.b16 %v2239, %v2235
        %v2884 = vpack.c.b16 %v2240, %v2236
        %v2885 = vpack.c.b16 %v2241, %v2237
        %v2886 = vpack.c.b16 %v2246, %v2242
        %v2887 = vpack.c.b16 %v2247, %v2243
        %v2888 = vpack.c.b16 %v2248, %v2244
        %v2889 = vpack.c.b16 %v2249, %v2245
        %v2890 = vpack.c.b16 %v2254, %v2250
        %v2891 = vpack.c.b16 %v2255, %v2251
        %v2892 = vpack.c.b16 %v2256, %v2252
        %v2893 = vpack.c.b16 %v2257, %v2253
        %v2894 = vpack.c.b16 %v2262, %v2258
        %v2895 = vpack.c.b16 %v2263, %v2259
        %v2896 = vpack.c.b16 %v2264, %v2260
        %v2897 = vpack.c.b16 %v2265, %v2261
        %v2898 = vpack.c.b16 %v2270, %v2266
        %v2899 = vpack.c.b16 %v2271, %v2267
        %v2900 = vpack.c.b16 %v2272, %v2268
        %v2901 = vpack.c.b16 %v2273, %v2269
        %v2902 = vpack.c.b16 %v2278, %v2274
        %v2903 = vpack.c.b16 %v2279, %v2275
        %v2904 = vpack.c.b16 %v2280, %v2276
        %v2905 = vpack.c.b16 %v2281, %v2277
        %v2906 = vpack.c.b16 %v2286, %v2282
        %v2907 = vpack.c.b16 %v2287, %v2283
        %v2908 = vpack.c.b16 %v2288, %v2284
        %v2909 = vpack.c.b16 %v2289, %v2285
        %v2910 = vpack.c.b16 %v2294, %v2290
        %v2911 = vpack.c.b16 %v2295, %v2291
        %v2912 = vpack.c.b16 %v2296, %v2292
        %v2913 = vpack.c.b16 %v2297, %v2293
        %v2914 = vpack.c.b16 %v2302, %v2298
        %v2915 = vpack.c.b16 %v2303, %v2299
        %v2916 = vpack.c.b16 %v2304, %v2300
        %v2917 = vpack.c.b16 %v2305, %v2301
        %v2918 = vpack.c.b16 %v2310, %v2306
        %v2919 = vpack.c.b16 %v2311, %v2307
        %v2920 = vpack.c.b16 %v2312, %v2308
        %v2921 = vpack.c.b16 %v2313, %v2309
        %v2922 = vpack.c.b16 %v2318, %v2314
        %v2923 = vpack.c.b16 %v2319, %v2315
        %v2924 = vpack.c.b16 %v2320, %v2316
        %v2925 = vpack.c.b16 %v2321, %v2317
        %v2926 = vpack.c.b16 %v2326, %v2322
        %v2927 = vpack.c.b16 %v2327, %v2323
        %v2928 = vpack.c.b16 %v2328, %v2324
        %v2929 = vpack.c.b16 %v2329, %v2325
        %v2930 = vpack.c.b16 %v2334, %v2330
        %v2931 = vpack.c.b16 %v2335, %v2331
        %v2932 = vpack.c.b16 %v2336, %v2332
        %v2933 = vpack.c.b16 %v2337, %v2333
        %v2934 = vpack.c.b16 %v2342, %v2338
        %v2935 = vpack.c.b16 %v2343, %v2339
        %v2936 = vpack.c.b16 %v2344, %v2340
        %v2937 = vpack.c.b16 %v2345, %v2341
        %v2938 = vpack.c.b16 %v2350, %v2346
        %v2939 = vpack.c.b16 %v2351, %v2347
        %v2940 = vpack.c.b16 %v2352, %v2348
        %v2941 = vpack.c.b16 %v2353, %v2349
        %v2942 = vpack.c.b16 %v2358, %v2354
        %v2943 = vpack.c.b16 %v2359, %v2355
        %v2944 = vpack.c.b16 %v2360, %v2356
        %v2945 = vpack.c.b16 %v2361, %v2357
        %v2946 = vpack.c.b16 %v2366, %v2362
        %v2947 = vpack.c.b16 %v2367, %v2363
        %v2948 = vpack.c.b16 %v2368, %v2364
        %v2949 = vpack.c.b16 %v2369, %v2365
        %v2950 = vpack.c.b16 %v2374, %v2370
        %v2951 = vpack.c.b16 %v2375, %v2371
        %v2952 = vpack.c.b16 %v2376, %v2372
        %v2953 = vpack.c.b16 %v2377, %v2373
        %v2954 = vpack.c.b16 %v2382, %v2378
        %v2955 = vpack.c.b16 %v2383, %v2379
        %v2956 = vpack.c.b16 %v2384, %v2380
        %v2957 = vpack.c.b16 %v2385, %v2381
        %v2958 = vpack.c.b16 %v2390, %v2386
        %v2959 = vpack.c.b16 %v2391, %v2387
        %v2960 = vpack.c.b16 %v2392, %v2388
        %v2961 = vpack.c.b16 %v2393, %v2389
        %v2962 = vpack.c.b16 %v2398, %v2394
        %v2963 = vpack.c.b16 %v2399, %v2395
        %v2964 = vpack.c.b16 %v2400, %v2396
        %v2965 = vpack.c.b16 %v2401, %v2397
        %v2966 = vpack.c.b16 %v2406, %v2402
        %v2967 = vpack.c.b16 %v2407, %v2403
        %v2968 = vpack.c.b16 %v2408, %v2404
        %v2969 = vpack.c.b16 %v2409, %v2405
        %v2970 = vpack.c.b16 %v2414, %v2410
        %v2971 = vpack.c.b16 %v2415, %v2411
        %v2972 = vpack.c.b16 %v2416, %v2412
        %v2973 = vpack.c.b16 %v2417, %v2413
        %v2974 = vpack.c.b16 %v2422, %v2418
        %v2975 = vpack.c.b16 %v2423, %v2419
        %v2976 = vpack.c.b16 %v2424, %v2420
        %v2977 = vpack.c.b16 %v2425, %v2421
        %v2978 = vpack.c.b16 %v2430, %v2426
        %v2979 = vpack.c.b16 %v2431, %v2427
        %v2980 = vpack.c.b16 %v2432, %v2428
        %v2981 = vpack.c.b16 %v2433, %v2429
        %v2982 = vpack.c.b16 %v2438, %v2434
        %v2983 = vpack.c.b16 %v2439, %v2435
        %v2984 = vpack.c.b16 %v2440, %v2436
        %v2985 = vpack.c.b16 %v2441, %v2437
        %v2986 = vpack.c.b16 %v2446, %v2442
        %v2987 = vpack.c.b16 %v2447, %v2443
        %v2988 = vpack.c.b16 %v2448, %v2444
        %v2989 = vpack.c.b16 %v2449, %v2445
        %v2990 = vpack.c.b16 %v2454, %v2450
        %v2991 = vpack.c.b16 %v2455, %v2451
        %v2992 = vpack.c.b16 %v2456, %v2452
        %v2993 = vpack.c.b16 %v2457, %v2453
        %v2994 = vpack.c.b16 %v2462, %v2458
        %v2995 = vpack.c.b16 %v2463, %v2459
        %v2996 = vpack.c.b16 %v2464, %v2460
        %v2997 = vpack.c.b16 %v2465, %v2461
        %v2998 = vpack.c.b16 %v2470, %v2466
        %v2999 = vpack.c.b16 %v2471, %v2467
        %v3000 = vpack.c.b16 %v2472, %v2468
        %v3001 = vpack.c.b16 %v2473, %v2469
        %v3002 = vpack.c.b16 %v2478, %v2474
        %v3003 = vpack.c.b16 %v2479, %v2475
        %v3004 = vpack.c.b16 %v2480, %v2476
        %v3005 = vpack.c.b16 %v2481, %v2477
        %v3006 = vpack.c.b16 %v2486, %v2482
        %v3007 = vpack.c.b16 %v2487, %v2483
        %v3008 = vpack.c.b16 %v2488, %v2484
        %v3009 = vpack.c.b16 %v2489, %v2485
        %v3010 = vpack.c.b16 %v2494, %v2490
        %v3011 = vpack.c.b16 %v2495, %v2491
        %v3012 = vpack.c.b16 %v2496, %v2492
        %v3013 = vpack.c.b16 %v2497, %v2493
        %v3014 = vpack.c.b16 %v2502, %v2498
        %v3015 = vpack.c.b16 %v2503, %v2499
        %v3016 = vpack.c.b16 %v2504, %v2500
        %v3017 = vpack.c.b16 %v2505, %v2501
        %3530 = vmatprep.subr.bf16.mxu0 %v2507
        %3531 = vmatpush1.bf16.msra.mxu0 %v2506
        %3532 = vmatprep.subr.bf16.mxu0 %v2511
        %3533 = vmatpush1.bf16.msra.mxu0 %v2510
        %3534 = vmatprep.subr.bf16.mxu0 %v2515
        %3535 = vmatpush1.bf16.msra.mxu0 %v2514
        %3536 = vmatprep.subr.bf16.mxu0 %v2519
        %3537 = vmatpush1.bf16.msra.mxu0 %v2518
        %3538 = vmatprep.subr.bf16.mxu0 %v2523
        %3539 = vmatpush1.bf16.msra.mxu0 %v2522
        %3540 = vmatprep.subr.bf16.mxu0 %v2527
        %3541 = vmatpush1.bf16.msra.mxu0 %v2526
        %3542 = vmatprep.subr.bf16.mxu0 %v2531
        %3543 = vmatpush1.bf16.msra.mxu0 %v2530
        %3544 = vmatprep.subr.bf16.mxu0 %v2535
        %3545 = vmatpush1.bf16.msra.mxu0 %v2534
        %3546 = vmatprep.subr.bf16.mxu0 %v2539
        %3547 = vmatpush1.bf16.msra.mxu0 %v2538
        %3548 = vmatprep.subr.bf16.mxu0 %v2543
        %3549 = vmatpush1.bf16.msra.mxu0 %v2542
        %3550 = vmatprep.subr.bf16.mxu0 %v2547
        %3551 = vmatpush1.bf16.msra.mxu0 %v2546
        %3552 = vmatprep.subr.bf16.mxu0 %v2551
        %3553 = vmatpush1.bf16.msra.mxu0 %v2550
        %3554 = vmatprep.subr.bf16.mxu0 %v2555
        %3555 = vmatpush1.bf16.msra.mxu0 %v2554
        %3556 = vmatprep.subr.bf16.mxu0 %v2559
        %3557 = vmatpush1.bf16.msra.mxu0 %v2558
        %3558 = vmatprep.subr.bf16.mxu0 %v2563
        %3559 = vmatpush1.bf16.msra.mxu0 %v2562
        %3560 = vmatprep.subr.bf16.mxu0 %v2567
        %3561 = vmatpush1.bf16.msra.mxu0 %v2566
        %3562 = vmatprep.mubr.bf16.mxu0 %v893
        %3563 = vmatmul.mubr.bf16.gmra.mrb[0].mxu0 %v879
        %v3564 = vpop.f32.mrb[0].mxu0
        %v3565 = vadd.f32 0.0, %v3564
        %v3566 = vpop.f32.mrb[0].mxu0
        %v3567 = vadd.f32 0.0, %v3566
        %v3568 = vpop.f32.mrb[0].mxu0
        %v3569 = vpop.f32.mrb[0].mxu0
        %3570 = vdwg.mxu0
        %3571 = vmatprep.subr.bf16.mxu0 %v2571
        %3572 = vmatpush1.bf16.msra.mxu0 %v2570
        %3573 = vmatprep.subr.bf16.mxu0 %v2575
        %3574 = vmatpush1.bf16.msra.mxu0 %v2574
        %3575 = vmatprep.subr.bf16.mxu0 %v2579
        %3576 = vmatpush1.bf16.msra.mxu0 %v2578
        %3577 = vmatprep.subr.bf16.mxu0 %v2583
        %3578 = vmatpush1.bf16.msra.mxu0 %v2582
        %3579 = vmatprep.subr.bf16.mxu0 %v2587
        %3580 = vmatpush1.bf16.msra.mxu0 %v2586
        %3581 = vmatprep.subr.bf16.mxu0 %v2591
        %3582 = vmatpush1.bf16.msra.mxu0 %v2590
        %3583 = vmatprep.subr.bf16.mxu0 %v2595
        %3584 = vmatpush1.bf16.msra.mxu0 %v2594
        %3585 = vmatprep.subr.bf16.mxu0 %v2599
        %3586 = vmatpush1.bf16.msra.mxu0 %v2598
        %3587 = vmatprep.subr.bf16.mxu0 %v2603
        %3588 = vmatpush1.bf16.msra.mxu0 %v2602
        %3589 = vmatprep.subr.bf16.mxu0 %v2607
        %3590 = vmatpush1.bf16.msra.mxu0 %v2606
        %3591 = vmatprep.subr.bf16.mxu0 %v2611
        %3592 = vmatpush1.bf16.msra.mxu0 %v2610
        %3593 = vmatprep.subr.bf16.mxu0 %v2615
        %3594 = vmatpush1.bf16.msra.mxu0 %v2614
        %3595 = vmatprep.subr.bf16.mxu0 %v2619
        %3596 = vmatpush1.bf16.msra.mxu0 %v2618
        %3597 = vmatprep.subr.bf16.mxu0 %v2623
        %3598 = vmatpush1.bf16.msra.mxu0 %v2622
        %3599 = vmatprep.subr.bf16.mxu0 %v2627
        %3600 = vmatpush1.bf16.msra.mxu0 %v2626
        %3601 = vmatprep.subr.bf16.mxu0 %v2631
        %3602 = vmatpush1.bf16.msra.mxu0 %v2630
        %3603 = vmatprep.mubr.bf16.mxu0 %v903
        %3604 = vmatmul.mubr.bf16.gmra.mrb[0].mxu0 %v901
        %v3605 = vpop.f32.mrb[0].mxu0
        %v3606 = vadd.f32 %v3565, %v3605
        %v3607 = vpop.f32.mrb[0].mxu0
        %v3608 = vadd.f32 %v3567, %v3607
        %v3609 = vpop.f32.mrb[0].mxu0
        %v3610 = vpop.f32.mrb[0].mxu0
        %3611 = vdwg.mxu0
        %3612 = vmatprep.subr.bf16.mxu0 %v2635
        %3613 = vmatpush1.bf16.msra.mxu0 %v2634
        %3614 = vmatprep.subr.bf16.mxu0 %v2639
        %3615 = vmatpush1.bf16.msra.mxu0 %v2638
        %3616 = vmatprep.subr.bf16.mxu0 %v2643
        %3617 = vmatpush1.bf16.msra.mxu0 %v2642
        %3618 = vmatprep.subr.bf16.mxu0 %v2647
        %3619 = vmatpush1.bf16.msra.mxu0 %v2646
        %3620 = vmatprep.subr.bf16.mxu0 %v2651
        %3621 = vmatpush1.bf16.msra.mxu0 %v2650
        %3622 = vmatprep.subr.bf16.mxu0 %v2655
        %3623 = vmatpush1.bf16.msra.mxu0 %v2654
        %3624 = vmatprep.subr.bf16.mxu0 %v2659
        %3625 = vmatpush1.bf16.msra.mxu0 %v2658
        %3626 = vmatprep.subr.bf16.mxu0 %v2663
        %3627 = vmatpush1.bf16.msra.mxu0 %v2662
        %3628 = vmatprep.subr.bf16.mxu0 %v2667
        %3629 = vmatpush1.bf16.msra.mxu0 %v2666
        %3630 = vmatprep.subr.bf16.mxu0 %v2671
        %3631 = vmatpush1.bf16.msra.mxu0 %v2670
        %3632 = vmatprep.subr.bf16.mxu0 %v2675
        %3633 = vmatpush1.bf16.msra.mxu0 %v2674
        %3634 = vmatprep.subr.bf16.mxu0 %v2679
        %3635 = vmatpush1.bf16.msra.mxu0 %v2678
        %3636 = vmatprep.subr.bf16.mxu0 %v2683
        %3637 = vmatpush1.bf16.msra.mxu0 %v2682
        %3638 = vmatprep.subr.bf16.mxu0 %v2687
        %3639 = vmatpush1.bf16.msra.mxu0 %v2686
        %3640 = vmatprep.subr.bf16.mxu0 %v2691
        %3641 = vmatpush1.bf16.msra.mxu0 %v2690
        %3642 = vmatprep.subr.bf16.mxu0 %v2695
        %3643 = vmatpush1.bf16.msra.mxu0 %v2694
        %3644 = vmatprep.mubr.bf16.mxu0 %v900
        %3645 = vmatmul.mubr.bf16.gmra.mrb[0].mxu0 %v886
        %v3646 = vpop.f32.mrb[0].mxu0
        %v3647 = vadd.f32 %v3606, %v3646
        %v3648 = vpop.f32.mrb[0].mxu0
        %v3649 = vadd.f32 %v3608, %v3648
        %v3650 = vpop.f32.mrb[0].mxu0
        %v3651 = vpop.f32.mrb[0].mxu0
        %3652 = vdwg.mxu0
        %3653 = vmatprep.subr.bf16.mxu0 %v2699
        %3654 = vmatpush1.bf16.msra.mxu0 %v2698
        %3655 = vmatprep.subr.bf16.mxu0 %v2703
        %3656 = vmatpush1.bf16.msra.mxu0 %v2702
        %3657 = vmatprep.subr.bf16.mxu0 %v2707
        %3658 = vmatpush1.bf16.msra.mxu0 %v2706
        %3659 = vmatprep.subr.bf16.mxu0 %v2711
        %3660 = vmatpush1.bf16.msra.mxu0 %v2710
        %3661 = vmatprep.subr.bf16.mxu0 %v2715
        %3662 = vmatpush1.bf16.msra.mxu0 %v2714
        %3663 = vmatprep.subr.bf16.mxu0 %v2719
        %3664 = vmatpush1.bf16.msra.mxu0 %v2718
        %3665 = vmatprep.subr.bf16.mxu0 %v2723
        %3666 = vmatpush1.bf16.msra.mxu0 %v2722
        %3667 = vmatprep.subr.bf16.mxu0 %v2727
        %3668 = vmatpush1.bf16.msra.mxu0 %v2726
        %3669 = vmatprep.subr.bf16.mxu0 %v2731
        %3670 = vmatpush1.bf16.msra.mxu0 %v2730
        %3671 = vmatprep.subr.bf16.mxu0 %v2735
        %3672 = vmatpush1.bf16.msra.mxu0 %v2734
        %3673 = vmatprep.subr.bf16.mxu0 %v2739
        %3674 = vmatpush1.bf16.msra.mxu0 %v2738
        %3675 = vmatprep.subr.bf16.mxu0 %v2743
        %3676 = vmatpush1.bf16.msra.mxu0 %v2742
        %3677 = vmatprep.subr.bf16.mxu0 %v2747
        %3678 = vmatpush1.bf16.msra.mxu0 %v2746
        %3679 = vmatprep.subr.bf16.mxu0 %v2751
        %3680 = vmatpush1.bf16.msra.mxu0 %v2750
        %3681 = vmatprep.subr.bf16.mxu0 %v2755
        %3682 = vmatpush1.bf16.msra.mxu0 %v2754
        %3683 = vmatprep.subr.bf16.mxu0 %v2759
        %3684 = vmatpush1.bf16.msra.mxu0 %v2758
        %3685 = vmatprep.mubr.bf16.mxu0 %v904
        %3686 = vmatmul.mubr.bf16.gmra.mrb[0].mxu0 %v902
        %v3687 = vpop.f32.mrb[0].mxu0
        %v3688 = vadd.f32 %v3647, %v3687
        %v3689 = vpop.f32.mrb[0].mxu0
        %v3690 = vadd.f32 %v3649, %v3689
        %v3691 = vpop.f32.mrb[0].mxu0
        %v3692 = vpop.f32.mrb[0].mxu0
        %3693 = vdwg.mxu0
        %3694 = vmatprep.subr.bf16.mxu0 %v2763
        %3695 = vmatpush1.bf16.msra.mxu0 %v2762
        %3696 = vmatprep.subr.bf16.mxu0 %v2767
        %3697 = vmatpush1.bf16.msra.mxu0 %v2766
        %3698 = vmatprep.subr.bf16.mxu0 %v2771
        %3699 = vmatpush1.bf16.msra.mxu0 %v2770
        %3700 = vmatprep.subr.bf16.mxu0 %v2775
        %3701 = vmatpush1.bf16.msra.mxu0 %v2774
        %3702 = vmatprep.subr.bf16.mxu0 %v2779
        %3703 = vmatpush1.bf16.msra.mxu0 %v2778
        %3704 = vmatprep.subr.bf16.mxu0 %v2783
        %3705 = vmatpush1.bf16.msra.mxu0 %v2782
        %3706 = vmatprep.subr.bf16.mxu0 %v2787
        %3707 = vmatpush1.bf16.msra.mxu0 %v2786
        %3708 = vmatprep.subr.bf16.mxu0 %v2791
        %3709 = vmatpush1.bf16.msra.mxu0 %v2790
        %3710 = vmatprep.subr.bf16.mxu0 %v2795
        %3711 = vmatpush1.bf16.msra.mxu0 %v2794
        %3712 = vmatprep.subr.bf16.mxu0 %v2799
        %3713 = vmatpush1.bf16.msra.mxu0 %v2798
        %3714 = vmatprep.subr.bf16.mxu0 %v2803
        %3715 = vmatpush1.bf16.msra.mxu0 %v2802
        %3716 = vmatprep.subr.bf16.mxu0 %v2807
        %3717 = vmatpush1.bf16.msra.mxu0 %v2806
        %3718 = vmatprep.subr.bf16.mxu0 %v2811
        %3719 = vmatpush1.bf16.msra.mxu0 %v2810
        %3720 = vmatprep.subr.bf16.mxu0 %v2815
        %3721 = vmatpush1.bf16.msra.mxu0 %v2814
        %3722 = vmatprep.subr.bf16.mxu0 %v2819
        %3723 = vmatpush1.bf16.msra.mxu0 %v2818
        %3724 = vmatprep.subr.bf16.mxu0 %v2823
        %3725 = vmatpush1.bf16.msra.mxu0 %v2822
        %3726 = vmatprep.mubr.bf16.mxu0 %v942
        %3727 = vmatmul.mubr.bf16.gmra.mrb[0].mxu0 %v928
        %v3728 = vpop.f32.mrb[0].mxu0
        %v3729 = vadd.f32 %v3688, %v3728
        %v3730 = vpop.f32.mrb[0].mxu0
        %v3731 = vadd.f32 %v3690, %v3730
        %v3732 = vpop.f32.mrb[0].mxu0
        %v3733 = vpop.f32.mrb[0].mxu0
        %3734 = vdwg.mxu0
        %3735 = vmatprep.subr.bf16.mxu0 %v2827
        %3736 = vmatpush1.bf16.msra.mxu0 %v2826
        %3737 = vmatprep.subr.bf16.mxu0 %v2831
        %3738 = vmatpush1.bf16.msra.mxu0 %v2830
        %3739 = vmatprep.subr.bf16.mxu0 %v2835
        %3740 = vmatpush1.bf16.msra.mxu0 %v2834
        %3741 = vmatprep.subr.bf16.mxu0 %v2839
        %3742 = vmatpush1.bf16.msra.mxu0 %v2838
        %3743 = vmatprep.subr.bf16.mxu0 %v2843
        %3744 = vmatpush1.bf16.msra.mxu0 %v2842
        %3745 = vmatprep.subr.bf16.mxu0 %v2847
        %3746 = vmatpush1.bf16.msra.mxu0 %v2846
        %3747 = vmatprep.subr.bf16.mxu0 %v2851
        %3748 = vmatpush1.bf16.msra.mxu0 %v2850
        %3749 = vmatprep.subr.bf16.mxu0 %v2855
        %3750 = vmatpush1.bf16.msra.mxu0 %v2854
        %3751 = vmatprep.subr.bf16.mxu0 %v2859
        %3752 = vmatpush1.bf16.msra.mxu0 %v2858
        %3753 = vmatprep.subr.bf16.mxu0 %v2863
        %3754 = vmatpush1.bf16.msra.mxu0 %v2862
        %3755 = vmatprep.subr.bf16.mxu0 %v2867
        %3756 = vmatpush1.bf16.msra.mxu0 %v2866
        %3757 = vmatprep.subr.bf16.mxu0 %v2871
        %3758 = vmatpush1.bf16.msra.mxu0 %v2870
        %3759 = vmatprep.subr.bf16.mxu0 %v2875
        %3760 = vmatpush1.bf16.msra.mxu0 %v2874
        %3761 = vmatprep.subr.bf16.mxu0 %v2879
        %3762 = vmatpush1.bf16.msra.mxu0 %v2878
        %3763 = vmatprep.subr.bf16.mxu0 %v2883
        %3764 = vmatpush1.bf16.msra.mxu0 %v2882
        %3765 = vmatprep.subr.bf16.mxu0 %v2887
        %3766 = vmatpush1.bf16.msra.mxu0 %v2886
        %3767 = vmatprep.mubr.bf16.mxu0 %v952
        %3768 = vmatmul.mubr.bf16.gmra.mrb[0].mxu0 %v950
        %v3769 = vpop.f32.mrb[0].mxu0
        %v3770 = vadd.f32 %v3729, %v3769
        %v3771 = vpop.f32.mrb[0].mxu0
        %v3772 = vadd.f32 %v3731, %v3771
        %v3773 = vpop.f32.mrb[0].mxu0
        %v3774 = vpop.f32.mrb[0].mxu0
        %3775 = vdwg.mxu0
        %3776 = vmatprep.subr.bf16.mxu0 %v2891
        %3777 = vmatpush1.bf16.msra.mxu0 %v2890
        %3778 = vmatprep.subr.bf16.mxu0 %v2895
        %3779 = vmatpush1.bf16.msra.mxu0 %v2894
        %3780 = vmatprep.subr.bf16.mxu0 %v2899
        %3781 = vmatpush1.bf16.msra.mxu0 %v2898
        %3782 = vmatprep.subr.bf16.mxu0 %v2903
        %3783 = vmatpush1.bf16.msra.mxu0 %v2902
        %3784 = vmatprep.subr.bf16.mxu0 %v2907
        %3785 = vmatpush1.bf16.msra.mxu0 %v2906
        %3786 = vmatprep.subr.bf16.mxu0 %v2911
        %3787 = vmatpush1.bf16.msra.mxu0 %v2910
        %3788 = vmatprep.subr.bf16.mxu0 %v2915
        %3789 = vmatpush1.bf16.msra.mxu0 %v2914
        %3790 = vmatprep.subr.bf16.mxu0 %v2919
        %3791 = vmatpush1.bf16.msra.mxu0 %v2918
        %3792 = vmatprep.subr.bf16.mxu0 %v2923
        %3793 = vmatpush1.bf16.msra.mxu0 %v2922
        %3794 = vmatprep.subr.bf16.mxu0 %v2927
        %3795 = vmatpush1.bf16.msra.mxu0 %v2926
        %3796 = vmatprep.subr.bf16.mxu0 %v2931
        %3797 = vmatpush1.bf16.msra.mxu0 %v2930
        %3798 = vmatprep.subr.bf16.mxu0 %v2935
        %3799 = vmatpush1.bf16.msra.mxu0 %v2934
        %3800 = vmatprep.subr.bf16.mxu0 %v2939
        %3801 = vmatpush1.bf16.msra.mxu0 %v2938
        %3802 = vmatprep.subr.bf16.mxu0 %v2943
        %3803 = vmatpush1.bf16.msra.mxu0 %v2942
        %3804 = vmatprep.subr.bf16.mxu0 %v2947
        %3805 = vmatpush1.bf16.msra.mxu0 %v2946
        %3806 = vmatprep.subr.bf16.mxu0 %v2951
        %3807 = vmatpush1.bf16.msra.mxu0 %v2950
        %3808 = vmatprep.mubr.bf16.mxu0 %v949
        %3809 = vmatmul.mubr.bf16.gmra.mrb[0].mxu0 %v935
        %v3810 = vpop.f32.mrb[0].mxu0
        %v3811 = vadd.f32 %v3770, %v3810
        %v3812 = vpop.f32.mrb[0].mxu0
        %v3813 = vadd.f32 %v3772, %v3812
        %v3814 = vpop.f32.mrb[0].mxu0
        %v3815 = vpop.f32.mrb[0].mxu0
        %3816 = vdwg.mxu0
        %3817 = vmatprep.subr.bf16.mxu0 %v2955
        %3818 = vmatpush1.bf16.msra.mxu0 %v2954
        %3819 = vmatprep.subr.bf16.mxu0 %v2959
        %3820 = vmatpush1.bf16.msra.mxu0 %v2958
        %3821 = vmatprep.subr.bf16.mxu0 %v2963
        %3822 = vmatpush1.bf16.msra.mxu0 %v2962
        %3823 = vmatprep.subr.bf16.mxu0 %v2967
        %3824 = vmatpush1.bf16.msra.mxu0 %v2966
        %3825 = vmatprep.subr.bf16.mxu0 %v2971
        %3826 = vmatpush1.bf16.msra.mxu0 %v2970
        %3827 = vmatprep.subr.bf16.mxu0 %v2975
        %3828 = vmatpush1.bf16.msra.mxu0 %v2974
        %3829 = vmatprep.subr.bf16.mxu0 %v2979
        %3830 = vmatpush1.bf16.msra.mxu0 %v2978
        %3831 = vmatprep.subr.bf16.mxu0 %v2983
        %3832 = vmatpush1.bf16.msra.mxu0 %v2982
        %3833 = vmatprep.subr.bf16.mxu0 %v2987
        %3834 = vmatpush1.bf16.msra.mxu0 %v2986
        %3835 = vmatprep.subr.bf16.mxu0 %v2991
        %3836 = vmatpush1.bf16.msra.mxu0 %v2990
        %3837 = vmatprep.subr.bf16.mxu0 %v2995
        %3838 = vmatpush1.bf16.msra.mxu0 %v2994
        %3839 = vmatprep.subr.bf16.mxu0 %v2999
        %3840 = vmatpush1.bf16.msra.mxu0 %v2998
        %3841 = vmatprep.subr.bf16.mxu0 %v3003
        %3842 = vmatpush1.bf16.msra.mxu0 %v3002
        %3843 = vmatprep.subr.bf16.mxu0 %v3007
        %3844 = vmatpush1.bf16.msra.mxu0 %v3006
        %3845 = vmatprep.subr.bf16.mxu0 %v3011
        %3846 = vmatpush1.bf16.msra.mxu0 %v3010
        %3847 = vmatprep.subr.bf16.mxu0 %v3015
        %3848 = vmatpush1.bf16.msra.mxu0 %v3014
        %3849 = vmatprep.mubr.bf16.mxu0 %v953
        %3850 = vmatmul.mubr.bf16.gmra.mrb[0].mxu0 %v951
        %v3851 = vpop.f32.mrb[0].mxu0
        %v3852 = vadd.f32 %v3811, %v3851
        %v3853 = vpop.f32.mrb[0].mxu0
        %v3854 = vadd.f32 %v3813, %v3853
        %v3855 = vpop.f32.mrb[0].mxu0
        %v3856 = vpop.f32.mrb[0].mxu0
        %3857 = vdwg.mxu0
        %3858 = vmatprep.subr.bf16.mxu0 %v2509
        %3859 = vmatpush1.bf16.msra.mxu0 %v2508
        %3860 = vmatprep.subr.bf16.mxu0 %v2513
        %3861 = vmatpush1.bf16.msra.mxu0 %v2512
        %3862 = vmatprep.subr.bf16.mxu0 %v2517
        %3863 = vmatpush1.bf16.msra.mxu0 %v2516
        %3864 = vmatprep.subr.bf16.mxu0 %v2521
        %3865 = vmatpush1.bf16.msra.mxu0 %v2520
        %3866 = vmatprep.subr.bf16.mxu0 %v2525
        %3867 = vmatpush1.bf16.msra.mxu0 %v2524
        %3868 = vmatprep.subr.bf16.mxu0 %v2529
        %3869 = vmatpush1.bf16.msra.mxu0 %v2528
        %3870 = vmatprep.subr.bf16.mxu0 %v2533
        %3871 = vmatpush1.bf16.msra.mxu0 %v2532
        %3872 = vmatprep.subr.bf16.mxu0 %v2537
        %3873 = vmatpush1.bf16.msra.mxu0 %v2536
        %3874 = vmatprep.subr.bf16.mxu0 %v2541
        %3875 = vmatpush1.bf16.msra.mxu0 %v2540
        %3876 = vmatprep.subr.bf16.mxu0 %v2545
        %3877 = vmatpush1.bf16.msra.mxu0 %v2544
        %3878 = vmatprep.subr.bf16.mxu0 %v2549
        %3879 = vmatpush1.bf16.msra.mxu0 %v2548
        %3880 = vmatprep.subr.bf16.mxu0 %v2553
        %3881 = vmatpush1.bf16.msra.mxu0 %v2552
        %3882 = vmatprep.subr.bf16.mxu0 %v2557
        %3883 = vmatpush1.bf16.msra.mxu0 %v2556
        %3884 = vmatprep.subr.bf16.mxu0 %v2561
        %3885 = vmatpush1.bf16.msra.mxu0 %v2560
        %3886 = vmatprep.subr.bf16.mxu0 %v2565
        %3887 = vmatpush1.bf16.msra.mxu0 %v2564
        %3888 = vmatprep.subr.bf16.mxu0 %v2569
        %3889 = vmatpush1.bf16.msra.mxu0 %v2568
        %3890 = vmatprep.mubr.bf16.mxu0 %v893
        %3891 = vmatmul.mubr.bf16.gmra.mrb[0].mxu0 %v879
        %v3892 = vpop.f32.mrb[0].mxu0
        %v3893 = vadd.f32 0.0, %v3892
        %v3894 = vpop.f32.mrb[0].mxu0
        %v3895 = vadd.f32 0.0, %v3894
        %v3896 = vpop.f32.mrb[0].mxu0
        %v3897 = vpop.f32.mrb[0].mxu0
        %3898 = vdwg.mxu0
        %3899 = vmatprep.subr.bf16.mxu0 %v2573
        %3900 = vmatpush1.bf16.msra.mxu0 %v2572
        %3901 = vmatprep.subr.bf16.mxu0 %v2577
        %3902 = vmatpush1.bf16.msra.mxu0 %v2576
        %3903 = vmatprep.subr.bf16.mxu0 %v2581
        %3904 = vmatpush1.bf16.msra.mxu0 %v2580
        %3905 = vmatprep.subr.bf16.mxu0 %v2585
        %3906 = vmatpush1.bf16.msra.mxu0 %v2584
        %3907 = vmatprep.subr.bf16.mxu0 %v2589
        %3908 = vmatpush1.bf16.msra.mxu0 %v2588
        %3909 = vmatprep.subr.bf16.mxu0 %v2593
        %3910 = vmatpush1.bf16.msra.mxu0 %v2592
        %3911 = vmatprep.subr.bf16.mxu0 %v2597
        %3912 = vmatpush1.bf16.msra.mxu0 %v2596
        %3913 = vmatprep.subr.bf16.mxu0 %v2601
        %3914 = vmatpush1.bf16.msra.mxu0 %v2600
        %3915 = vmatprep.subr.bf16.mxu0 %v2605
        %3916 = vmatpush1.bf16.msra.mxu0 %v2604
        %3917 = vmatprep.subr.bf16.mxu0 %v2609
        %3918 = vmatpush1.bf16.msra.mxu0 %v2608
        %3919 = vmatprep.subr.bf16.mxu0 %v2613
        %3920 = vmatpush1.bf16.msra.mxu0 %v2612
        %3921 = vmatprep.subr.bf16.mxu0 %v2617
        %3922 = vmatpush1.bf16.msra.mxu0 %v2616
        %3923 = vmatprep.subr.bf16.mxu0 %v2621
        %3924 = vmatpush1.bf16.msra.mxu0 %v2620
        %3925 = vmatprep.subr.bf16.mxu0 %v2625
        %3926 = vmatpush1.bf16.msra.mxu0 %v2624
        %3927 = vmatprep.subr.bf16.mxu0 %v2629
        %3928 = vmatpush1.bf16.msra.mxu0 %v2628
        %3929 = vmatprep.subr.bf16.mxu0 %v2633
        %3930 = vmatpush1.bf16.msra.mxu0 %v2632
        %3931 = vmatprep.mubr.bf16.mxu0 %v903
        %3932 = vmatmul.mubr.bf16.gmra.mrb[0].mxu0 %v901
        %v3933 = vpop.f32.mrb[0].mxu0
        %v3934 = vadd.f32 %v3893, %v3933
        %v3935 = vpop.f32.mrb[0].mxu0
        %v3936 = vadd.f32 %v3895, %v3935
        %v3937 = vpop.f32.mrb[0].mxu0
        %v3938 = vpop.f32.mrb[0].mxu0
        %3939 = vdwg.mxu0
        %3940 = vmatprep.subr.bf16.mxu0 %v2637
        %3941 = vmatpush1.bf16.msra.mxu0 %v2636
        %3942 = vmatprep.subr.bf16.mxu0 %v2641
        %3943 = vmatpush1.bf16.msra.mxu0 %v2640
        %3944 = vmatprep.subr.bf16.mxu0 %v2645
        %3945 = vmatpush1.bf16.msra.mxu0 %v2644
        %3946 = vmatprep.subr.bf16.mxu0 %v2649
        %3947 = vmatpush1.bf16.msra.mxu0 %v2648
        %3948 = vmatprep.subr.bf16.mxu0 %v2653
        %3949 = vmatpush1.bf16.msra.mxu0 %v2652
        %3950 = vmatprep.subr.bf16.mxu0 %v2657
        %3951 = vmatpush1.bf16.msra.mxu0 %v2656
        %3952 = vmatprep.subr.bf16.mxu0 %v2661
        %3953 = vmatpush1.bf16.msra.mxu0 %v2660
        %3954 = vmatprep.subr.bf16.mxu0 %v2665
        %3955 = vmatpush1.bf16.msra.mxu0 %v2664
        %3956 = vmatprep.subr.bf16.mxu0 %v2669
        %3957 = vmatpush1.bf16.msra.mxu0 %v2668
        %3958 = vmatprep.subr.bf16.mxu0 %v2673
        %3959 = vmatpush1.bf16.msra.mxu0 %v2672
        %3960 = vmatprep.subr.bf16.mxu0 %v2677
        %3961 = vmatpush1.bf16.msra.mxu0 %v2676
        %3962 = vmatprep.subr.bf16.mxu0 %v2681
        %3963 = vmatpush1.bf16.msra.mxu0 %v2680
        %3964 = vmatprep.subr.bf16.mxu0 %v2685
        %3965 = vmatpush1.bf16.msra.mxu0 %v2684
        %3966 = vmatprep.subr.bf16.mxu0 %v2689
        %3967 = vmatpush1.bf16.msra.mxu0 %v2688
        %3968 = vmatprep.subr.bf16.mxu0 %v2693
        %3969 = vmatpush1.bf16.msra.mxu0 %v2692
        %3970 = vmatprep.subr.bf16.mxu0 %v2697
        %3971 = vmatpush1.bf16.msra.mxu0 %v2696
        %3972 = vmatprep.mubr.bf16.mxu0 %v900
        %3973 = vmatmul.mubr.bf16.gmra.mrb[0].mxu0 %v886
        %v3974 = vpop.f32.mrb[0].mxu0
        %v3975 = vadd.f32 %v3934, %v3974
        %v3976 = vpop.f32.mrb[0].mxu0
        %v3977 = vadd.f32 %v3936, %v3976
        %v3978 = vpop.f32.mrb[0].mxu0
        %v3979 = vpop.f32.mrb[0].mxu0
        %3980 = vdwg.mxu0
        %3981 = vmatprep.subr.bf16.mxu0 %v2701
        %3982 = vmatpush1.bf16.msra.mxu0 %v2700
        %3983 = vmatprep.subr.bf16.mxu0 %v2705
        %3984 = vmatpush1.bf16.msra.mxu0 %v2704
        %3985 = vmatprep.subr.bf16.mxu0 %v2709
        %3986 = vmatpush1.bf16.msra.mxu0 %v2708
        %3987 = vmatprep.subr.bf16.mxu0 %v2713
        %3988 = vmatpush1.bf16.msra.mxu0 %v2712
        %3989 = vmatprep.subr.bf16.mxu0 %v2717
        %3990 = vmatpush1.bf16.msra.mxu0 %v2716
        %3991 = vmatprep.subr.bf16.mxu0 %v2721
        %3992 = vmatpush1.bf16.msra.mxu0 %v2720
        %3993 = vmatprep.subr.bf16.mxu0 %v2725
        %3994 = vmatpush1.bf16.msra.mxu0 %v2724
        %3995 = vmatprep.subr.bf16.mxu0 %v2729
        %3996 = vmatpush1.bf16.msra.mxu0 %v2728
        %3997 = vmatprep.subr.bf16.mxu0 %v2733
        %3998 = vmatpush1.bf16.msra.mxu0 %v2732
        %3999 = vmatprep.subr.bf16.mxu0 %v2737
        %4000 = vmatpush1.bf16.msra.mxu0 %v2736
        %4001 = vmatprep.subr.bf16.mxu0 %v2741
        %4002 = vmatpush1.bf16.msra.mxu0 %v2740
        %4003 = vmatprep.subr.bf16.mxu0 %v2745
        %4004 = vmatpush1.bf16.msra.mxu0 %v2744
        %4005 = vmatprep.subr.bf16.mxu0 %v2749
        %4006 = vmatpush1.bf16.msra.mxu0 %v2748
        %4007 = vmatprep.subr.bf16.mxu0 %v2753
        %4008 = vmatpush1.bf16.msra.mxu0 %v2752
        %4009 = vmatprep.subr.bf16.mxu0 %v2757
        %4010 = vmatpush1.bf16.msra.mxu0 %v2756
        %4011 = vmatprep.subr.bf16.mxu0 %v2761
        %4012 = vmatpush1.bf16.msra.mxu0 %v2760
        %4013 = vmatprep.mubr.bf16.mxu0 %v904
        %4014 = vmatmul.mubr.bf16.gmra.mrb[0].mxu0 %v902
        %v4015 = vpop.f32.mrb[0].mxu0
        %v4016 = vadd.f32 %v3975, %v4015
        %v4017 = vpop.f32.mrb[0].mxu0
        %v4018 = vadd.f32 %v3977, %v4017
        %v4019 = vpop.f32.mrb[0].mxu0
        %v4020 = vpop.f32.mrb[0].mxu0
        %4021 = vdwg.mxu0
        %4022 = vmatprep.subr.bf16.mxu0 %v2765
        %4023 = vmatpush1.bf16.msra.mxu0 %v2764
        %4024 = vmatprep.subr.bf16.mxu0 %v2769
        %4025 = vmatpush1.bf16.msra.mxu0 %v2768
        %4026 = vmatprep.subr.bf16.mxu0 %v2773
        %4027 = vmatpush1.bf16.msra.mxu0 %v2772
        %4028 = vmatprep.subr.bf16.mxu0 %v2777
        %4029 = vmatpush1.bf16.msra.mxu0 %v2776
        %4030 = vmatprep.subr.bf16.mxu0 %v2781
        %4031 = vmatpush1.bf16.msra.mxu0 %v2780
        %4032 = vmatprep.subr.bf16.mxu0 %v2785
        %4033 = vmatpush1.bf16.msra.mxu0 %v2784
        %4034 = vmatprep.subr.bf16.mxu0 %v2789
        %4035 = vmatpush1.bf16.msra.mxu0 %v2788
        %4036 = vmatprep.subr.bf16.mxu0 %v2793
        %4037 = vmatpush1.bf16.msra.mxu0 %v2792
        %4038 = vmatprep.subr.bf16.mxu0 %v2797
        %4039 = vmatpush1.bf16.msra.mxu0 %v2796
        %4040 = vmatprep.subr.bf16.mxu0 %v2801
        %4041 = vmatpush1.bf16.msra.mxu0 %v2800
        %4042 = vmatprep.subr.bf16.mxu0 %v2805
        %4043 = vmatpush1.bf16.msra.mxu0 %v2804
        %4044 = vmatprep.subr.bf16.mxu0 %v2809
        %4045 = vmatpush1.bf16.msra.mxu0 %v2808
        %4046 = vmatprep.subr.bf16.mxu0 %v2813
        %4047 = vmatpush1.bf16.msra.mxu0 %v2812
        %4048 = vmatprep.subr.bf16.mxu0 %v2817
        %4049 = vmatpush1.bf16.msra.mxu0 %v2816
        %4050 = vmatprep.subr.bf16.mxu0 %v2821
        %4051 = vmatpush1.bf16.msra.mxu0 %v2820
        %4052 = vmatprep.subr.bf16.mxu0 %v2825
        %4053 = vmatpush1.bf16.msra.mxu0 %v2824
        %4054 = vmatprep.mubr.bf16.mxu0 %v942
        %4055 = vmatmul.mubr.bf16.gmra.mrb[0].mxu0 %v928
        %v4056 = vpop.f32.mrb[0].mxu0
        %v4057 = vadd.f32 %v4016, %v4056
        %v4058 = vpop.f32.mrb[0].mxu0
        %v4059 = vadd.f32 %v4018, %v4058
        %v4060 = vpop.f32.mrb[0].mxu0
        %v4061 = vpop.f32.mrb[0].mxu0
        %4062 = vdwg.mxu0
        %4063 = vmatprep.subr.bf16.mxu0 %v2829
        %4064 = vmatpush1.bf16.msra.mxu0 %v2828
        %4065 = vmatprep.subr.bf16.mxu0 %v2833
        %4066 = vmatpush1.bf16.msra.mxu0 %v2832
        %4067 = vmatprep.subr.bf16.mxu0 %v2837
        %4068 = vmatpush1.bf16.msra.mxu0 %v2836
        %4069 = vmatprep.subr.bf16.mxu0 %v2841
        %4070 = vmatpush1.bf16.msra.mxu0 %v2840
        %4071 = vmatprep.subr.bf16.mxu0 %v2845
        %4072 = vmatpush1.bf16.msra.mxu0 %v2844
        %4073 = vmatprep.subr.bf16.mxu0 %v2849
        %4074 = vmatpush1.bf16.msra.mxu0 %v2848
        %4075 = vmatprep.subr.bf16.mxu0 %v2853
        %4076 = vmatpush1.bf16.msra.mxu0 %v2852
        %4077 = vmatprep.subr.bf16.mxu0 %v2857
        %4078 = vmatpush1.bf16.msra.mxu0 %v2856
        %4079 = vmatprep.subr.bf16.mxu0 %v2861
        %4080 = vmatpush1.bf16.msra.mxu0 %v2860
        %4081 = vmatprep.subr.bf16.mxu0 %v2865
        %4082 = vmatpush1.bf16.msra.mxu0 %v2864
        %4083 = vmatprep.subr.bf16.mxu0 %v2869
        %4084 = vmatpush1.bf16.msra.mxu0 %v2868
        %4085 = vmatprep.subr.bf16.mxu0 %v2873
        %4086 = vmatpush1.bf16.msra.mxu0 %v2872
        %4087 = vmatprep.subr.bf16.mxu0 %v2877
        %4088 = vmatpush1.bf16.msra.mxu0 %v2876
        %4089 = vmatprep.subr.bf16.mxu0 %v2881
        %4090 = vmatpush1.bf16.msra.mxu0 %v2880
        %4091 = vmatprep.subr.bf16.mxu0 %v2885
        %4092 = vmatpush1.bf16.msra.mxu0 %v2884
        %4093 = vmatprep.subr.bf16.mxu0 %v2889
        %4094 = vmatpush1.bf16.msra.mxu0 %v2888
        %4095 = vmatprep.mubr.bf16.mxu0 %v952
        %4096 = vmatmul.mubr.bf16.gmra.mrb[0].mxu0 %v950
        %v4097 = vpop.f32.mrb[0].mxu0
        %v4098 = vadd.f32 %v4057, %v4097
        %v4099 = vpop.f32.mrb[0].mxu0
        %v4100 = vadd.f32 %v4059, %v4099
        %v4101 = vpop.f32.mrb[0].mxu0
        %v4102 = vpop.f32.mrb[0].mxu0
        %4103 = vdwg.mxu0
        %4104 = vmatprep.subr.bf16.mxu0 %v2893
        %4105 = vmatpush1.bf16.msra.mxu0 %v2892
        %4106 = vmatprep.subr.bf16.mxu0 %v2897
        %4107 = vmatpush1.bf16.msra.mxu0 %v2896
        %4108 = vmatprep.subr.bf16.mxu0 %v2901
        %4109 = vmatpush1.bf16.msra.mxu0 %v2900
        %4110 = vmatprep.subr.bf16.mxu0 %v2905
        %4111 = vmatpush1.bf16.msra.mxu0 %v2904
        %4112 = vmatprep.subr.bf16.mxu0 %v2909
        %4113 = vmatpush1.bf16.msra.mxu0 %v2908
        %4114 = vmatprep.subr.bf16.mxu0 %v2913
        %4115 = vmatpush1.bf16.msra.mxu0 %v2912
        %4116 = vmatprep.subr.bf16.mxu0 %v2917
        %4117 = vmatpush1.bf16.msra.mxu0 %v2916
        %4118 = vmatprep.subr.bf16.mxu0 %v2921
        %4119 = vmatpush1.bf16.msra.mxu0 %v2920
        %4120 = vmatprep.subr.bf16.mxu0 %v2925
        %4121 = vmatpush1.bf16.msra.mxu0 %v2924
        %4122 = vmatprep.subr.bf16.mxu0 %v2929
        %4123 = vmatpush1.bf16.msra.mxu0 %v2928
        %4124 = vmatprep.subr.bf16.mxu0 %v2933
        %4125 = vmatpush1.bf16.msra.mxu0 %v2932
        %4126 = vmatprep.subr.bf16.mxu0 %v2937
        %4127 = vmatpush1.bf16.msra.mxu0 %v2936
        %4128 = vmatprep.subr.bf16.mxu0 %v2941
        %4129 = vmatpush1.bf16.msra.mxu0 %v2940
        %4130 = vmatprep.subr.bf16.mxu0 %v2945
        %4131 = vmatpush1.bf16.msra.mxu0 %v2944
        %4132 = vmatprep.subr.bf16.mxu0 %v2949
        %4133 = vmatpush1.bf16.msra.mxu0 %v2948
        %4134 = vmatprep.subr.bf16.mxu0 %v2953
        %4135 = vmatpush1.bf16.msra.mxu0 %v2952
        %4136 = vmatprep.mubr.bf16.mxu0 %v949
        %4137 = vmatmul.mubr.bf16.gmra.mrb[0].mxu0 %v935
        %v4138 = vpop.f32.mrb[0].mxu0
        %v4139 = vadd.f32 %v4098, %v4138
        %v4140 = vpop.f32.mrb[0].mxu0
        %v4141 = vadd.f32 %v4100, %v4140
        %v4142 = vpop.f32.mrb[0].mxu0
        %v4143 = vpop.f32.mrb[0].mxu0
        %4144 = vdwg.mxu0
        %4145 = vmatprep.subr.bf16.mxu0 %v2957
        %4146 = vmatpush1.bf16.msra.mxu0 %v2956
        %4147 = vmatprep.subr.bf16.mxu0 %v2961
        %4148 = vmatpush1.bf16.msra.mxu0 %v2960
        %4149 = vmatprep.subr.bf16.mxu0 %v2965
        %4150 = vmatpush1.bf16.msra.mxu0 %v2964
        %4151 = vmatprep.subr.bf16.mxu0 %v2969
        %4152 = vmatpush1.bf16.msra.mxu0 %v2968
        %4153 = vmatprep.subr.bf16.mxu0 %v2973
        %4154 = vmatpush1.bf16.msra.mxu0 %v2972
        %4155 = vmatprep.subr.bf16.mxu0 %v2977
        %4156 = vmatpush1.bf16.msra.mxu0 %v2976
        %4157 = vmatprep.subr.bf16.mxu0 %v2981
        %4158 = vmatpush1.bf16.msra.mxu0 %v2980
        %4159 = vmatprep.subr.bf16.mxu0 %v2985
        %4160 = vmatpush1.bf16.msra.mxu0 %v2984
        %4161 = vmatprep.subr.bf16.mxu0 %v2989
        %4162 = vmatpush1.bf16.msra.mxu0 %v2988
        %4163 = vmatprep.subr.bf16.mxu0 %v2993
        %4164 = vmatpush1.bf16.msra.mxu0 %v2992
        %4165 = vmatprep.subr.bf16.mxu0 %v2997
        %4166 = vmatpush1.bf16.msra.mxu0 %v2996
        %4167 = vmatprep.subr.bf16.mxu0 %v3001
        %4168 = vmatpush1.bf16.msra.mxu0 %v3000
        %4169 = vmatprep.subr.bf16.mxu0 %v3005
        %4170 = vmatpush1.bf16.msra.mxu0 %v3004
        %4171 = vmatprep.subr.bf16.mxu0 %v3009
        %4172 = vmatpush1.bf16.msra.mxu0 %v3008
        %4173 = vmatprep.subr.bf16.mxu0 %v3013
        %4174 = vmatpush1.bf16.msra.mxu0 %v3012
        %4175 = vmatprep.subr.bf16.mxu0 %v3017
        %4176 = vmatpush1.bf16.msra.mxu0 %v3016
        %4177 = vmatprep.mubr.bf16.mxu0 %v953
        %4178 = vmatmul.mubr.bf16.gmra.mrb[0].mxu0 %v951
        %v4179 = vpop.f32.mrb[0].mxu0
        %v4180 = vadd.f32 %v4139, %v4179
        %v4181 = vpop.f32.mrb[0].mxu0
        %v4182 = vadd.f32 %v4141, %v4181
        %v4183 = vpop.f32.mrb[0].mxu0
        %v4184 = vpop.f32.mrb[0].mxu0
        %4185 = vdwg.mxu0
        %v4190 = vcombine.low %v3852, %v3854
        %v4191 = vcombine.low %v4180, %v4182
        %v4193 = vunpack.c.l.s4 1983009808
        %v4194 = vunpack.c.0.s8 %v4193
        %v4195 = vlaneseq
        %v4196 = vshrl.u32 %v4195, 7
        %v4197 = vsub.s32 %v4194, %v4196
        %v4198 = vrot.slane %v4190, %v4197
        %v4200 = vunpack.c.l.s4 1983009808
        %v4201 = vunpack.c.0.s8 %v4200
        %v4202 = vlaneseq
        %v4203 = vshrl.u32 %v4202, 7
        %v4204 = vsub.s32 %v4201, %v4203
        %v4205 = vrot.slane %v4191, %v4204
        %v4206 = vcombine.low %v4198, %v4205
        %v4208 = vadd.f32 %v339, %v4206
        %4209 = vst [vmem:[#allocation2] sm:$0xff] %v4208
        // Predicated region
        $region53: #{cnn_image_encoder_forward.7} parent=35 // pred_check
          %p4210 = pneg %p334
        $region54: #{cnn_image_encoder_forward.7} parent=35 // pred_check_branch
          %4212 = sbr.rel (%p4210) target = $region56
        $region55: #{cnn_image_encoder_forward.7} parent=35 // pred_region
          %v4213 = vld [vmem:[#allocation2] sm:$0xff]
          %v4214 = vld [vmem:[%s272] sm:$0xf]
          %v4216 = vlaneseq
          %v4217 = vshrl.u32 %v4216, 7
          %v4218 = vsub.s32 0, %v4217
          %v4219 = vrot.slane %v4214, %v4218
          %v4220 = vlaneseq
          %v4221 = vshrl.u32 %v4220, 7
          %v4222 = vsub.s32 1, %v4221
          %v4223 = vrot.slane %v4214, %v4222
          %v4224 = vlaneseq
          %v4225 = vshrl.u32 %v4224, 7
          %v4226 = vsub.s32 2, %v4225
          %v4227 = vrot.slane %v4214, %v4226
          %v4228 = vlaneseq
          %v4229 = vshrl.u32 %v4228, 7
          %v4230 = vsub.s32 3, %v4229
          %v4231 = vrot.slane %v4214, %v4230
          %v4232 = vcombine.low %v4219, %v4223
          %v4233 = vcombine.low %v4227, %v4231
          %v4235 = vunpack.c.l.s4 1983009808
          %v4236 = vunpack.c.0.s8 %v4235
          %v4237 = vlaneseq
          %v4238 = vshrl.u32 %v4237, 7
          %v4239 = vsub.s32 %v4236, %v4238
          %v4240 = vrot.slane %v4232, %v4239
          %v4242 = vunpack.c.l.s4 1983009808
          %v4243 = vunpack.c.0.s8 %v4242
          %v4244 = vlaneseq
          %v4245 = vshrl.u32 %v4244, 7
          %v4246 = vsub.s32 %v4243, %v4245
          %v4247 = vrot.slane %v4233, %v4246
          %v4248 = vcombine.low %v4240, %v4247
          %v4250 = vadd.f32 %v4213, %v4248
          %v4251 = vmax.f32 %v4250, 0.0
          %v4253 = vcombine.high %v4251, %v4251
          %v4255 = vunpack.c.l.s4 1983009808
          %v4256 = vunpack.c.0.s8 %v4255
          %v4257 = vlaneseq
          %v4258 = vshrl.u32 %v4257, 7
          %v4259 = vsub.s32 %v4256, %v4258
          %v4260 = vrot.slane %v4251, %v4259
          %v4262 = vunpack.c.l.s4 1983009808
          %v4263 = vunpack.c.0.s8 %v4262
          %v4264 = vlaneseq
          %v4265 = vshrl.u32 %v4264, 7
          %v4266 = vsub.s32 %v4263, %v4265
          %v4267 = vrot.slane %v4253, %v4266
          %v4268 = vcombine.high %v4260, %v4260
          %v4269 = vcombine.high %v4267, %v4267
          %v4274 = vpack.c.bf16 %v4260, %v4260
          %v4275 = vpack.c.bf16 %v4268, %v4268
          %v4276 = vpack.c.bf16 %v4267, %v4267
          %v4277 = vpack.c.bf16 %v4269, %v4269
          %v4278 = vld [vmem:[%s281] sm:$0xff]
          %v4279 = vld [vmem:[%s281 + $0x8] sm:$0xff]
          %v4280 = vld [vmem:[%s281 + $0x10] sm:$0xff]
          %v4281 = vld [vmem:[%s281 + $0x18] sm:$0xff]
          %v4282 = vld [vmem:[%s281 + $0x20] sm:$0xff]
          %v4283 = vld [vmem:[%s281 + $0x28] sm:$0xff]
          %v4284 = vld [vmem:[%s281 + $0x30] sm:$0xff]
          %v4285 = vld [vmem:[%s281 + $0x38] sm:$0xff]
          %v4286 = vld [vmem:[%s281 + $0x40] sm:$0xff]
          %v4287 = vld [vmem:[%s281 + $0x48] sm:$0xff]
          %v4288 = vld [vmem:[%s281 + $0x50] sm:$0xff]
          %v4289 = vld [vmem:[%s281 + $0x58] sm:$0xff]
          %v4290 = vld [vmem:[%s281 + $0x60] sm:$0xff]
          %v4291 = vld [vmem:[%s281 + $0x68] sm:$0xff]
          %v4292 = vld [vmem:[%s281 + $0x70] sm:$0xff]
          %v4293 = vld [vmem:[%s281 + $0x78] sm:$0xff]
          %v4294 = vld [vmem:[%s281 + $0x80] sm:$0xff]
          %v4295 = vld [vmem:[%s281 + $0x88] sm:$0xff]
          %v4296 = vld [vmem:[%s281 + $0x90] sm:$0xff]
          %v4297 = vld [vmem:[%s281 + $0x98] sm:$0xff]
          %v4298 = vld [vmem:[%s281 + $0xa0] sm:$0xff]
          %v4299 = vld [vmem:[%s281 + $0xa8] sm:$0xff]
          %v4300 = vld [vmem:[%s281 + $0xb0] sm:$0xff]
          %v4301 = vld [vmem:[%s281 + $0xb8] sm:$0xff]
          %v4302 = vld [vmem:[%s281 + $0xc0] sm:$0xff]
          %v4303 = vld [vmem:[%s281 + $0xc8] sm:$0xff]
          %v4304 = vld [vmem:[%s281 + $0xd0] sm:$0xff]
          %v4305 = vld [vmem:[%s281 + $0xd8] sm:$0xff]
          %v4306 = vld [vmem:[%s281 + $0xe0] sm:$0xff]
          %v4307 = vld [vmem:[%s281 + $0xe8] sm:$0xff]
          %v4308 = vld [vmem:[%s281 + $0xf0] sm:$0xff]
          %v4309 = vld [vmem:[%s281 + $0xf8] sm:$0xff]
          %v4310 = vld [vmem:[%s281 + $0x100] sm:$0xff]
          %v4311 = vld [vmem:[%s281 + $0x108] sm:$0xff]
          %v4312 = vld [vmem:[%s281 + $0x110] sm:$0xff]
          %v4313 = vld [vmem:[%s281 + $0x118] sm:$0xff]
          %v4314 = vld [vmem:[%s281 + $0x120] sm:$0xff]
          %v4315 = vld [vmem:[%s281 + $0x128] sm:$0xff]
          %v4316 = vld [vmem:[%s281 + $0x130] sm:$0xff]
          %v4317 = vld [vmem:[%s281 + $0x138] sm:$0xff]
          %v4318 = vld [vmem:[%s281 + $0x140] sm:$0xff]
          %v4319 = vld [vmem:[%s281 + $0x148] sm:$0xff]
          %v4320 = vld [vmem:[%s281 + $0x150] sm:$0xff]
          %v4321 = vld [vmem:[%s281 + $0x158] sm:$0xff]
          %v4322 = vld [vmem:[%s281 + $0x160] sm:$0xff]
          %v4323 = vld [vmem:[%s281 + $0x168] sm:$0xff]
          %v4324 = vld [vmem:[%s281 + $0x170] sm:$0xff]
          %v4325 = vld [vmem:[%s281 + $0x178] sm:$0xff]
          %v4326 = vld [vmem:[%s281 + $0x180] sm:$0xff]
          %v4327 = vld [vmem:[%s281 + $0x188] sm:$0xff]
          %v4328 = vld [vmem:[%s281 + $0x190] sm:$0xff]
          %v4329 = vld [vmem:[%s281 + $0x198] sm:$0xff]
          %v4330 = vld [vmem:[%s281 + $0x1a0] sm:$0xff]
          %v4331 = vld [vmem:[%s281 + $0x1a8] sm:$0xff]
          %v4332 = vld [vmem:[%s281 + $0x1b0] sm:$0xff]
          %v4333 = vld [vmem:[%s281 + $0x1b8] sm:$0xff]
          %v4334 = vld [vmem:[%s281 + $0x1c0] sm:$0xff]
          %v4335 = vld [vmem:[%s281 + $0x1c8] sm:$0xff]
          %v4336 = vld [vmem:[%s281 + $0x1d0] sm:$0xff]
          %v4337 = vld [vmem:[%s281 + $0x1d8] sm:$0xff]
          %v4338 = vld [vmem:[%s281 + $0x1e0] sm:$0xff]
          %v4339 = vld [vmem:[%s281 + $0x1e8] sm:$0xff]
          %v4340 = vld [vmem:[%s281 + $0x1f0] sm:$0xff]
          %v4341 = vld [vmem:[%s281 + $0x1f8] sm:$0xff]
          %v4342 = vld [vmem:[%s281 + $0x200] sm:$0xff]
          %v4343 = vld [vmem:[%s281 + $0x208] sm:$0xff]
          %v4344 = vld [vmem:[%s281 + $0x210] sm:$0xff]
          %v4345 = vld [vmem:[%s281 + $0x218] sm:$0xff]
          %v4346 = vld [vmem:[%s281 + $0x220] sm:$0xff]
          %v4347 = vld [vmem:[%s281 + $0x228] sm:$0xff]
          %v4348 = vld [vmem:[%s281 + $0x230] sm:$0xff]
          %v4349 = vld [vmem:[%s281 + $0x238] sm:$0xff]
          %v4350 = vld [vmem:[%s281 + $0x240] sm:$0xff]
          %v4351 = vld [vmem:[%s281 + $0x248] sm:$0xff]
          %v4352 = vld [vmem:[%s281 + $0x250] sm:$0xff]
          %v4353 = vld [vmem:[%s281 + $0x258] sm:$0xff]
          %v4354 = vld [vmem:[%s281 + $0x260] sm:$0xff]
          %v4355 = vld [vmem:[%s281 + $0x268] sm:$0xff]
          %v4356 = vld [vmem:[%s281 + $0x270] sm:$0xff]
          %v4357 = vld [vmem:[%s281 + $0x278] sm:$0xff]
          %v4358 = vld [vmem:[%s281 + $0x280] sm:$0xff]
          %v4359 = vld [vmem:[%s281 + $0x288] sm:$0xff]
          %v4360 = vld [vmem:[%s281 + $0x290] sm:$0xff]
          %v4361 = vld [vmem:[%s281 + $0x298] sm:$0xff]
          %v4362 = vld [vmem:[%s281 + $0x2a0] sm:$0xff]
          %v4363 = vld [vmem:[%s281 + $0x2a8] sm:$0xff]
          %v4364 = vld [vmem:[%s281 + $0x2b0] sm:$0xff]
          %v4365 = vld [vmem:[%s281 + $0x2b8] sm:$0xff]
          %v4366 = vld [vmem:[%s281 + $0x2c0] sm:$0xff]
          %v4367 = vld [vmem:[%s281 + $0x2c8] sm:$0xff]
          %v4368 = vld [vmem:[%s281 + $0x2d0] sm:$0xff]
          %v4369 = vld [vmem:[%s281 + $0x2d8] sm:$0xff]
          %v4370 = vld [vmem:[%s281 + $0x2e0] sm:$0xff]
          %v4371 = vld [vmem:[%s281 + $0x2e8] sm:$0xff]
          %v4372 = vld [vmem:[%s281 + $0x2f0] sm:$0xff]
          %v4373 = vld [vmem:[%s281 + $0x2f8] sm:$0xff]
          %v4374 = vld [vmem:[%s281 + $0x300] sm:$0xff]
          %v4375 = vld [vmem:[%s281 + $0x308] sm:$0xff]
          %v4376 = vld [vmem:[%s281 + $0x310] sm:$0xff]
          %v4377 = vld [vmem:[%s281 + $0x318] sm:$0xff]
          %v4378 = vld [vmem:[%s281 + $0x320] sm:$0xff]
          %v4379 = vld [vmem:[%s281 + $0x328] sm:$0xff]
          %v4380 = vld [vmem:[%s281 + $0x330] sm:$0xff]
          %v4381 = vld [vmem:[%s281 + $0x338] sm:$0xff]
          %v4382 = vld [vmem:[%s281 + $0x340] sm:$0xff]
          %v4383 = vld [vmem:[%s281 + $0x348] sm:$0xff]
          %v4384 = vld [vmem:[%s281 + $0x350] sm:$0xff]
          %v4385 = vld [vmem:[%s281 + $0x358] sm:$0xff]
          %v4386 = vld [vmem:[%s281 + $0x360] sm:$0xff]
          %v4387 = vld [vmem:[%s281 + $0x368] sm:$0xff]
          %v4388 = vld [vmem:[%s281 + $0x370] sm:$0xff]
          %v4389 = vld [vmem:[%s281 + $0x378] sm:$0xff]
          %v4390 = vld [vmem:[%s281 + $0x380] sm:$0xff]
          %v4391 = vld [vmem:[%s281 + $0x388] sm:$0xff]
          %v4392 = vld [vmem:[%s281 + $0x390] sm:$0xff]
          %v4393 = vld [vmem:[%s281 + $0x398] sm:$0xff]
          %v4394 = vld [vmem:[%s281 + $0x3a0] sm:$0xff]
          %v4395 = vld [vmem:[%s281 + $0x3a8] sm:$0xff]
          %v4396 = vld [vmem:[%s281 + $0x3b0] sm:$0xff]
          %v4397 = vld [vmem:[%s281 + $0x3b8] sm:$0xff]
          %v4398 = vld [vmem:[%s281 + $0x3c0] sm:$0xff]
          %v4399 = vld [vmem:[%s281 + $0x3c8] sm:$0xff]
          %v4400 = vld [vmem:[%s281 + $0x3d0] sm:$0xff]
          %v4401 = vld [vmem:[%s281 + $0x3d8] sm:$0xff]
          %v4402 = vld [vmem:[%s281 + $0x3e0] sm:$0xff]
          %v4403 = vld [vmem:[%s281 + $0x3e8] sm:$0xff]
          %v4404 = vld [vmem:[%s281 + $0x3f0] sm:$0xff]
          %v4405 = vld [vmem:[%s281 + $0x3f8] sm:$0xff]
          %v4534 = vunpack.c.l.b16 %v4278
          %v4535 = vunpack.c.h.b16 %v4278
          %v4536 = vunpack.c.l.b16 %v4279
          %v4537 = vunpack.c.h.b16 %v4279
          %v4538 = vunpack.c.l.b16 %v4280
          %v4539 = vunpack.c.h.b16 %v4280
          %v4540 = vunpack.c.l.b16 %v4281
          %v4541 = vunpack.c.h.b16 %v4281
          %v4542 = vunpack.c.l.b16 %v4282
          %v4543 = vunpack.c.h.b16 %v4282
          %v4544 = vunpack.c.l.b16 %v4283
          %v4545 = vunpack.c.h.b16 %v4283
          %v4546 = vunpack.c.l.b16 %v4284
          %v4547 = vunpack.c.h.b16 %v4284
          %v4548 = vunpack.c.l.b16 %v4285
          %v4549 = vunpack.c.h.b16 %v4285
          %v4550 = vunpack.c.l.b16 %v4286
          %v4551 = vunpack.c.h.b16 %v4286
          %v4552 = vunpack.c.l.b16 %v4287
          %v4553 = vunpack.c.h.b16 %v4287
          %v4554 = vunpack.c.l.b16 %v4288
          %v4555 = vunpack.c.h.b16 %v4288
          %v4556 = vunpack.c.l.b16 %v4289
          %v4557 = vunpack.c.h.b16 %v4289
          %v4558 = vunpack.c.l.b16 %v4290
          %v4559 = vunpack.c.h.b16 %v4290
          %v4560 = vunpack.c.l.b16 %v4291
          %v4561 = vunpack.c.h.b16 %v4291
          %v4562 = vunpack.c.l.b16 %v4292
          %v4563 = vunpack.c.h.b16 %v4292
          %v4564 = vunpack.c.l.b16 %v4293
          %v4565 = vunpack.c.h.b16 %v4293
          %v4566 = vunpack.c.l.b16 %v4294
          %v4567 = vunpack.c.h.b16 %v4294
          %v4568 = vunpack.c.l.b16 %v4295
          %v4569 = vunpack.c.h.b16 %v4295
          %v4570 = vunpack.c.l.b16 %v4296
          %v4571 = vunpack.c.h.b16 %v4296
          %v4572 = vunpack.c.l.b16 %v4297
          %v4573 = vunpack.c.h.b16 %v4297
          %v4574 = vunpack.c.l.b16 %v4298
          %v4575 = vunpack.c.h.b16 %v4298
          %v4576 = vunpack.c.l.b16 %v4299
          %v4577 = vunpack.c.h.b16 %v4299
          %v4578 = vunpack.c.l.b16 %v4300
          %v4579 = vunpack.c.h.b16 %v4300
          %v4580 = vunpack.c.l.b16 %v4301
          %v4581 = vunpack.c.h.b16 %v4301
          %v4582 = vunpack.c.l.b16 %v4302
          %v4583 = vunpack.c.h.b16 %v4302
          %v4584 = vunpack.c.l.b16 %v4303
          %v4585 = vunpack.c.h.b16 %v4303
          %v4586 = vunpack.c.l.b16 %v4304
          %v4587 = vunpack.c.h.b16 %v4304
          %v4588 = vunpack.c.l.b16 %v4305
          %v4589 = vunpack.c.h.b16 %v4305
          %v4590 = vunpack.c.l.b16 %v4306
          %v4591 = vunpack.c.h.b16 %v4306
          %v4592 = vunpack.c.l.b16 %v4307
          %v4593 = vunpack.c.h.b16 %v4307
          %v4594 = vunpack.c.l.b16 %v4308
          %v4595 = vunpack.c.h.b16 %v4308
          %v4596 = vunpack.c.l.b16 %v4309
          %v4597 = vunpack.c.h.b16 %v4309
          %v4598 = vunpack.c.l.b16 %v4310
          %v4599 = vunpack.c.h.b16 %v4310
          %v4600 = vunpack.c.l.b16 %v4311
          %v4601 = vunpack.c.h.b16 %v4311
          %v4602 = vunpack.c.l.b16 %v4312
          %v4603 = vunpack.c.h.b16 %v4312
          %v4604 = vunpack.c.l.b16 %v4313
          %v4605 = vunpack.c.h.b16 %v4313
          %v4606 = vunpack.c.l.b16 %v4314
          %v4607 = vunpack.c.h.b16 %v4314
          %v4608 = vunpack.c.l.b16 %v4315
          %v4609 = vunpack.c.h.b16 %v4315
          %v4610 = vunpack.c.l.b16 %v4316
          %v4611 = vunpack.c.h.b16 %v4316
          %v4612 = vunpack.c.l.b16 %v4317
          %v4613 = vunpack.c.h.b16 %v4317
          %v4614 = vunpack.c.l.b16 %v4318
          %v4615 = vunpack.c.h.b16 %v4318
          %v4616 = vunpack.c.l.b16 %v4319
          %v4617 = vunpack.c.h.b16 %v4319
          %v4618 = vunpack.c.l.b16 %v4320
          %v4619 = vunpack.c.h.b16 %v4320
          %v4620 = vunpack.c.l.b16 %v4321
          %v4621 = vunpack.c.h.b16 %v4321
          %v4622 = vunpack.c.l.b16 %v4322
          %v4623 = vunpack.c.h.b16 %v4322
          %v4624 = vunpack.c.l.b16 %v4323
          %v4625 = vunpack.c.h.b16 %v4323
          %v4626 = vunpack.c.l.b16 %v4324
          %v4627 = vunpack.c.h.b16 %v4324
          %v4628 = vunpack.c.l.b16 %v4325
          %v4629 = vunpack.c.h.b16 %v4325
          %v4630 = vunpack.c.l.b16 %v4326
          %v4631 = vunpack.c.h.b16 %v4326
          %v4632 = vunpack.c.l.b16 %v4327
          %v4633 = vunpack.c.h.b16 %v4327
          %v4634 = vunpack.c.l.b16 %v4328
          %v4635 = vunpack.c.h.b16 %v4328
          %v4636 = vunpack.c.l.b16 %v4329
          %v4637 = vunpack.c.h.b16 %v4329
          %v4638 = vunpack.c.l.b16 %v4330
          %v4639 = vunpack.c.h.b16 %v4330
          %v4640 = vunpack.c.l.b16 %v4331
          %v4641 = vunpack.c.h.b16 %v4331
          %v4642 = vunpack.c.l.b16 %v4332
          %v4643 = vunpack.c.h.b16 %v4332
          %v4644 = vunpack.c.l.b16 %v4333
          %v4645 = vunpack.c.h.b16 %v4333
          %v4646 = vunpack.c.l.b16 %v4334
          %v4647 = vunpack.c.h.b16 %v4334
          %v4648 = vunpack.c.l.b16 %v4335
          %v4649 = vunpack.c.h.b16 %v4335
          %v4650 = vunpack.c.l.b16 %v4336
          %v4651 = vunpack.c.h.b16 %v4336
          %v4652 = vunpack.c.l.b16 %v4337
          %v4653 = vunpack.c.h.b16 %v4337
          %v4654 = vunpack.c.l.b16 %v4338
          %v4655 = vunpack.c.h.b16 %v4338
          %v4656 = vunpack.c.l.b16 %v4339
          %v4657 = vunpack.c.h.b16 %v4339
          %v4658 = vunpack.c.l.b16 %v4340
          %v4659 = vunpack.c.h.b16 %v4340
          %v4660 = vunpack.c.l.b16 %v4341
          %v4661 = vunpack.c.h.b16 %v4341
          %v4662 = vunpack.c.l.b16 %v4342
          %v4663 = vunpack.c.h.b16 %v4342
          %v4664 = vunpack.c.l.b16 %v4343
          %v4665 = vunpack.c.h.b16 %v4343
          %v4666 = vunpack.c.l.b16 %v4344
          %v4667 = vunpack.c.h.b16 %v4344
          %v4668 = vunpack.c.l.b16 %v4345
          %v4669 = vunpack.c.h.b16 %v4345
          %v4670 = vunpack.c.l.b16 %v4346
          %v4671 = vunpack.c.h.b16 %v4346
          %v4672 = vunpack.c.l.b16 %v4347
          %v4673 = vunpack.c.h.b16 %v4347
          %v4674 = vunpack.c.l.b16 %v4348
          %v4675 = vunpack.c.h.b16 %v4348
          %v4676 = vunpack.c.l.b16 %v4349
          %v4677 = vunpack.c.h.b16 %v4349
          %v4678 = vunpack.c.l.b16 %v4350
          %v4679 = vunpack.c.h.b16 %v4350
          %v4680 = vunpack.c.l.b16 %v4351
          %v4681 = vunpack.c.h.b16 %v4351
          %v4682 = vunpack.c.l.b16 %v4352
          %v4683 = vunpack.c.h.b16 %v4352
          %v4684 = vunpack.c.l.b16 %v4353
          %v4685 = vunpack.c.h.b16 %v4353
          %v4686 = vunpack.c.l.b16 %v4354
          %v4687 = vunpack.c.h.b16 %v4354
          %v4688 = vunpack.c.l.b16 %v4355
          %v4689 = vunpack.c.h.b16 %v4355
          %v4690 = vunpack.c.l.b16 %v4356
          %v4691 = vunpack.c.h.b16 %v4356
          %v4692 = vunpack.c.l.b16 %v4357
          %v4693 = vunpack.c.h.b16 %v4357
          %v4694 = vunpack.c.l.b16 %v4358
          %v4695 = vunpack.c.h.b16 %v4358
          %v4696 = vunpack.c.l.b16 %v4359
          %v4697 = vunpack.c.h.b16 %v4359
          %v4698 = vunpack.c.l.b16 %v4360
          %v4699 = vunpack.c.h.b16 %v4360
          %v4700 = vunpack.c.l.b16 %v4361
          %v4701 = vunpack.c.h.b16 %v4361
          %v4702 = vunpack.c.l.b16 %v4362
          %v4703 = vunpack.c.h.b16 %v4362
          %v4704 = vunpack.c.l.b16 %v4363
          %v4705 = vunpack.c.h.b16 %v4363
          %v4706 = vunpack.c.l.b16 %v4364
          %v4707 = vunpack.c.h.b16 %v4364
          %v4708 = vunpack.c.l.b16 %v4365
          %v4709 = vunpack.c.h.b16 %v4365
          %v4710 = vunpack.c.l.b16 %v4366
          %v4711 = vunpack.c.h.b16 %v4366
          %v4712 = vunpack.c.l.b16 %v4367
          %v4713 = vunpack.c.h.b16 %v4367
          %v4714 = vunpack.c.l.b16 %v4368
          %v4715 = vunpack.c.h.b16 %v4368
          %v4716 = vunpack.c.l.b16 %v4369
          %v4717 = vunpack.c.h.b16 %v4369
          %v4718 = vunpack.c.l.b16 %v4370
          %v4719 = vunpack.c.h.b16 %v4370
          %v4720 = vunpack.c.l.b16 %v4371
          %v4721 = vunpack.c.h.b16 %v4371
          %v4722 = vunpack.c.l.b16 %v4372
          %v4723 = vunpack.c.h.b16 %v4372
          %v4724 = vunpack.c.l.b16 %v4373
          %v4725 = vunpack.c.h.b16 %v4373
          %v4726 = vunpack.c.l.b16 %v4374
          %v4727 = vunpack.c.h.b16 %v4374
          %v4728 = vunpack.c.l.b16 %v4375
          %v4729 = vunpack.c.h.b16 %v4375
          %v4730 = vunpack.c.l.b16 %v4376
          %v4731 = vunpack.c.h.b16 %v4376
          %v4732 = vunpack.c.l.b16 %v4377
          %v4733 = vunpack.c.h.b16 %v4377
          %v4734 = vunpack.c.l.b16 %v4378
          %v4735 = vunpack.c.h.b16 %v4378
          %v4736 = vunpack.c.l.b16 %v4379
          %v4737 = vunpack.c.h.b16 %v4379
          %v4738 = vunpack.c.l.b16 %v4380
          %v4739 = vunpack.c.h.b16 %v4380
          %v4740 = vunpack.c.l.b16 %v4381
          %v4741 = vunpack.c.h.b16 %v4381
          %v4742 = vunpack.c.l.b16 %v4382
          %v4743 = vunpack.c.h.b16 %v4382
          %v4744 = vunpack.c.l.b16 %v4383
          %v4745 = vunpack.c.h.b16 %v4383
          %v4746 = vunpack.c.l.b16 %v4384
          %v4747 = vunpack.c.h.b16 %v4384
          %v4748 = vunpack.c.l.b16 %v4385
          %v4749 = vunpack.c.h.b16 %v4385
          %v4750 = vunpack.c.l.b16 %v4386
          %v4751 = vunpack.c.h.b16 %v4386
          %v4752 = vunpack.c.l.b16 %v4387
          %v4753 = vunpack.c.h.b16 %v4387
          %v4754 = vunpack.c.l.b16 %v4388
          %v4755 = vunpack.c.h.b16 %v4388
          %v4756 = vunpack.c.l.b16 %v4389
          %v4757 = vunpack.c.h.b16 %v4389
          %v4758 = vunpack.c.l.b16 %v4390
          %v4759 = vunpack.c.h.b16 %v4390
          %v4760 = vunpack.c.l.b16 %v4391
          %v4761 = vunpack.c.h.b16 %v4391
          %v4762 = vunpack.c.l.b16 %v4392
          %v4763 = vunpack.c.h.b16 %v4392
          %v4764 = vunpack.c.l.b16 %v4393
          %v4765 = vunpack.c.h.b16 %v4393
          %v4766 = vunpack.c.l.b16 %v4394
          %v4767 = vunpack.c.h.b16 %v4394
          %v4768 = vunpack.c.l.b16 %v4395
          %v4769 = vunpack.c.h.b16 %v4395
          %v4770 = vunpack.c.l.b16 %v4396
          %v4771 = vunpack.c.h.b16 %v4396
          %v4772 = vunpack.c.l.b16 %v4397
          %v4773 = vunpack.c.h.b16 %v4397
          %v4774 = vunpack.c.l.b16 %v4398
          %v4775 = vunpack.c.h.b16 %v4398
          %v4776 = vunpack.c.l.b16 %v4399
          %v4777 = vunpack.c.h.b16 %v4399
          %v4778 = vunpack.c.l.b16 %v4400
          %v4779 = vunpack.c.h.b16 %v4400
          %v4780 = vunpack.c.l.b16 %v4401
          %v4781 = vunpack.c.h.b16 %v4401
          %v4782 = vunpack.c.l.b16 %v4402
          %v4783 = vunpack.c.h.b16 %v4402
          %v4784 = vunpack.c.l.b16 %v4403
          %v4785 = vunpack.c.h.b16 %v4403
          %v4786 = vunpack.c.l.b16 %v4404
          %v4787 = vunpack.c.h.b16 %v4404
          %v4788 = vunpack.c.l.b16 %v4405
          %v4789 = vunpack.c.h.b16 %v4405
          %v4790 = vpack.c.b16 %v4538, %v4534
          %v4791 = vpack.c.b16 %v4539, %v4535
          %v4792 = vpack.c.b16 %v4540, %v4536
          %v4793 = vpack.c.b16 %v4541, %v4537
          %v4794 = vpack.c.b16 %v4546, %v4542
          %v4795 = vpack.c.b16 %v4547, %v4543
          %v4796 = vpack.c.b16 %v4548, %v4544
          %v4797 = vpack.c.b16 %v4549, %v4545
          %v4798 = vpack.c.b16 %v4554, %v4550
          %v4799 = vpack.c.b16 %v4555, %v4551
          %v4800 = vpack.c.b16 %v4556, %v4552
          %v4801 = vpack.c.b16 %v4557, %v4553
          %v4802 = vpack.c.b16 %v4562, %v4558
          %v4803 = vpack.c.b16 %v4563, %v4559
          %v4804 = vpack.c.b16 %v4564, %v4560
          %v4805 = vpack.c.b16 %v4565, %v4561
          %v4806 = vpack.c.b16 %v4570, %v4566
          %v4807 = vpack.c.b16 %v4571, %v4567
          %v4808 = vpack.c.b16 %v4572, %v4568
          %v4809 = vpack.c.b16 %v4573, %v4569
          %v4810 = vpack.c.b16 %v4578, %v4574
          %v4811 = vpack.c.b16 %v4579, %v4575
          %v4812 = vpack.c.b16 %v4580, %v4576
          %v4813 = vpack.c.b16 %v4581, %v4577
          %v4814 = vpack.c.b16 %v4586, %v4582
          %v4815 = vpack.c.b16 %v4587, %v4583
          %v4816 = vpack.c.b16 %v4588, %v4584
          %v4817 = vpack.c.b16 %v4589, %v4585
          %v4818 = vpack.c.b16 %v4594, %v4590
          %v4819 = vpack.c.b16 %v4595, %v4591
          %v4820 = vpack.c.b16 %v4596, %v4592
          %v4821 = vpack.c.b16 %v4597, %v4593
          %v4822 = vpack.c.b16 %v4602, %v4598
          %v4823 = vpack.c.b16 %v4603, %v4599
          %v4824 = vpack.c.b16 %v4604, %v4600
          %v4825 = vpack.c.b16 %v4605, %v4601
          %v4826 = vpack.c.b16 %v4610, %v4606
          %v4827 = vpack.c.b16 %v4611, %v4607
          %v4828 = vpack.c.b16 %v4612, %v4608
          %v4829 = vpack.c.b16 %v4613, %v4609
          %v4830 = vpack.c.b16 %v4618, %v4614
          %v4831 = vpack.c.b16 %v4619, %v4615
          %v4832 = vpack.c.b16 %v4620, %v4616
          %v4833 = vpack.c.b16 %v4621, %v4617
          %v4834 = vpack.c.b16 %v4626, %v4622
          %v4835 = vpack.c.b16 %v4627, %v4623
          %v4836 = vpack.c.b16 %v4628, %v4624
          %v4837 = vpack.c.b16 %v4629, %v4625
          %v4838 = vpack.c.b16 %v4634, %v4630
          %v4839 = vpack.c.b16 %v4635, %v4631
          %v4840 = vpack.c.b16 %v4636, %v4632
          %v4841 = vpack.c.b16 %v4637, %v4633
          %v4842 = vpack.c.b16 %v4642, %v4638
          %v4843 = vpack.c.b16 %v4643, %v4639
          %v4844 = vpack.c.b16 %v4644, %v4640
          %v4845 = vpack.c.b16 %v4645, %v4641
          %v4846 = vpack.c.b16 %v4650, %v4646
          %v4847 = vpack.c.b16 %v4651, %v4647
          %v4848 = vpack.c.b16 %v4652, %v4648
          %v4849 = vpack.c.b16 %v4653, %v4649
          %v4850 = vpack.c.b16 %v4658, %v4654
          %v4851 = vpack.c.b16 %v4659, %v4655
          %v4852 = vpack.c.b16 %v4660, %v4656
          %v4853 = vpack.c.b16 %v4661, %v4657
          %v4854 = vpack.c.b16 %v4666, %v4662
          %v4855 = vpack.c.b16 %v4667, %v4663
          %v4856 = vpack.c.b16 %v4668, %v4664
          %v4857 = vpack.c.b16 %v4669, %v4665
          %v4858 = vpack.c.b16 %v4674, %v4670
          %v4859 = vpack.c.b16 %v4675, %v4671
          %v4860 = vpack.c.b16 %v4676, %v4672
          %v4861 = vpack.c.b16 %v4677, %v4673
          %v4862 = vpack.c.b16 %v4682, %v4678
          %v4863 = vpack.c.b16 %v4683, %v4679
          %v4864 = vpack.c.b16 %v4684, %v4680
          %v4865 = vpack.c.b16 %v4685, %v4681
          %v4866 = vpack.c.b16 %v4690, %v4686
          %v4867 = vpack.c.b16 %v4691, %v4687
          %v4868 = vpack.c.b16 %v4692, %v4688
          %v4869 = vpack.c.b16 %v4693, %v4689
          %v4870 = vpack.c.b16 %v4698, %v4694
          %v4871 = vpack.c.b16 %v4699, %v4695
          %v4872 = vpack.c.b16 %v4700, %v4696
          %v4873 = vpack.c.b16 %v4701, %v4697
          %v4874 = vpack.c.b16 %v4706, %v4702
          %v4875 = vpack.c.b16 %v4707, %v4703
          %v4876 = vpack.c.b16 %v4708, %v4704
          %v4877 = vpack.c.b16 %v4709, %v4705
          %v4878 = vpack.c.b16 %v4714, %v4710
          %v4879 = vpack.c.b16 %v4715, %v4711
          %v4880 = vpack.c.b16 %v4716, %v4712
          %v4881 = vpack.c.b16 %v4717, %v4713
          %v4882 = vpack.c.b16 %v4722, %v4718
          %v4883 = vpack.c.b16 %v4723, %v4719
          %v4884 = vpack.c.b16 %v4724, %v4720
          %v4885 = vpack.c.b16 %v4725, %v4721
          %v4886 = vpack.c.b16 %v4730, %v4726
          %v4887 = vpack.c.b16 %v4731, %v4727
          %v4888 = vpack.c.b16 %v4732, %v4728
          %v4889 = vpack.c.b16 %v4733, %v4729
          %v4890 = vpack.c.b16 %v4738, %v4734
          %v4891 = vpack.c.b16 %v4739, %v4735
          %v4892 = vpack.c.b16 %v4740, %v4736
          %v4893 = vpack.c.b16 %v4741, %v4737
          %v4894 = vpack.c.b16 %v4746, %v4742
          %v4895 = vpack.c.b16 %v4747, %v4743
          %v4896 = vpack.c.b16 %v4748, %v4744
          %v4897 = vpack.c.b16 %v4749, %v4745
          %v4898 = vpack.c.b16 %v4754, %v4750
          %v4899 = vpack.c.b16 %v4755, %v4751
          %v4900 = vpack.c.b16 %v4756, %v4752
          %v4901 = vpack.c.b16 %v4757, %v4753
          %v4902 = vpack.c.b16 %v4762, %v4758
          %v4903 = vpack.c.b16 %v4763, %v4759
          %v4904 = vpack.c.b16 %v4764, %v4760
          %v4905 = vpack.c.b16 %v4765, %v4761
          %v4906 = vpack.c.b16 %v4770, %v4766
          %v4907 = vpack.c.b16 %v4771, %v4767
          %v4908 = vpack.c.b16 %v4772, %v4768
          %v4909 = vpack.c.b16 %v4773, %v4769
          %v4910 = vpack.c.b16 %v4778, %v4774
          %v4911 = vpack.c.b16 %v4779, %v4775
          %v4912 = vpack.c.b16 %v4780, %v4776
          %v4913 = vpack.c.b16 %v4781, %v4777
          %v4914 = vpack.c.b16 %v4786, %v4782
          %v4915 = vpack.c.b16 %v4787, %v4783
          %v4916 = vpack.c.b16 %v4788, %v4784
          %v4917 = vpack.c.b16 %v4789, %v4785
          %5046 = vmatprep.subr.bf16.mxu0 %v4791
          %5047 = vmatpush1.bf16.msra.mxu0 %v4790
          %5048 = vmatprep.subr.bf16.mxu0 %v4795
          %5049 = vmatpush1.bf16.msra.mxu0 %v4794
          %5050 = vmatprep.subr.bf16.mxu0 %v4799
          %5051 = vmatpush1.bf16.msra.mxu0 %v4798
          %5052 = vmatprep.subr.bf16.mxu0 %v4803
          %5053 = vmatpush1.bf16.msra.mxu0 %v4802
          %5054 = vmatprep.subr.bf16.mxu0 %v4807
          %5055 = vmatpush1.bf16.msra.mxu0 %v4806
          %5056 = vmatprep.subr.bf16.mxu0 %v4811
          %5057 = vmatpush1.bf16.msra.mxu0 %v4810
          %5058 = vmatprep.subr.bf16.mxu0 %v4815
          %5059 = vmatpush1.bf16.msra.mxu0 %v4814
          %5060 = vmatprep.subr.bf16.mxu0 %v4819
          %5061 = vmatpush1.bf16.msra.mxu0 %v4818
          %5062 = vmatprep.subr.bf16.mxu0 %v4823
          %5063 = vmatpush1.bf16.msra.mxu0 %v4822
          %5064 = vmatprep.subr.bf16.mxu0 %v4827
          %5065 = vmatpush1.bf16.msra.mxu0 %v4826
          %5066 = vmatprep.subr.bf16.mxu0 %v4831
          %5067 = vmatpush1.bf16.msra.mxu0 %v4830
          %5068 = vmatprep.subr.bf16.mxu0 %v4835
          %5069 = vmatpush1.bf16.msra.mxu0 %v4834
          %5070 = vmatprep.subr.bf16.mxu0 %v4839
          %5071 = vmatpush1.bf16.msra.mxu0 %v4838
          %5072 = vmatprep.subr.bf16.mxu0 %v4843
          %5073 = vmatpush1.bf16.msra.mxu0 %v4842
          %5074 = vmatprep.subr.bf16.mxu0 %v4847
          %5075 = vmatpush1.bf16.msra.mxu0 %v4846
          %5076 = vmatprep.subr.bf16.mxu0 %v4851
          %5077 = vmatpush1.bf16.msra.mxu0 %v4850
          %5078 = vmatprep.mubr.bf16.mxu0 %v4275
          %5079 = vmatmul.mubr.bf16.gmra.mrb[0].mxu0 %v4274
          %v5080 = vpop.f32.mrb[0].mxu0
          %v5081 = vadd.f32 0.0, %v5080
          %v5082 = vpop.f32.mrb[0].mxu0
          %v5083 = vadd.f32 0.0, %v5082
          %v5084 = vpop.f32.mrb[0].mxu0
          %v5085 = vpop.f32.mrb[0].mxu0
          %5086 = vdwg.mxu0
          %5087 = vmatprep.subr.bf16.mxu0 %v4855
          %5088 = vmatpush1.bf16.msra.mxu0 %v4854
          %5089 = vmatprep.subr.bf16.mxu0 %v4859
          %5090 = vmatpush1.bf16.msra.mxu0 %v4858
          %5091 = vmatprep.subr.bf16.mxu0 %v4863
          %5092 = vmatpush1.bf16.msra.mxu0 %v4862
          %5093 = vmatprep.subr.bf16.mxu0 %v4867
          %5094 = vmatpush1.bf16.msra.mxu0 %v4866
          %5095 = vmatprep.subr.bf16.mxu0 %v4871
          %5096 = vmatpush1.bf16.msra.mxu0 %v4870
          %5097 = vmatprep.subr.bf16.mxu0 %v4875
          %5098 = vmatpush1.bf16.msra.mxu0 %v4874
          %5099 = vmatprep.subr.bf16.mxu0 %v4879
          %5100 = vmatpush1.bf16.msra.mxu0 %v4878
          %5101 = vmatprep.subr.bf16.mxu0 %v4883
          %5102 = vmatpush1.bf16.msra.mxu0 %v4882
          %5103 = vmatprep.subr.bf16.mxu0 %v4887
          %5104 = vmatpush1.bf16.msra.mxu0 %v4886
          %5105 = vmatprep.subr.bf16.mxu0 %v4891
          %5106 = vmatpush1.bf16.msra.mxu0 %v4890
          %5107 = vmatprep.subr.bf16.mxu0 %v4895
          %5108 = vmatpush1.bf16.msra.mxu0 %v4894
          %5109 = vmatprep.subr.bf16.mxu0 %v4899
          %5110 = vmatpush1.bf16.msra.mxu0 %v4898
          %5111 = vmatprep.subr.bf16.mxu0 %v4903
          %5112 = vmatpush1.bf16.msra.mxu0 %v4902
          %5113 = vmatprep.subr.bf16.mxu0 %v4907
          %5114 = vmatpush1.bf16.msra.mxu0 %v4906
          %5115 = vmatprep.subr.bf16.mxu0 %v4911
          %5116 = vmatpush1.bf16.msra.mxu0 %v4910
          %5117 = vmatprep.subr.bf16.mxu0 %v4915
          %5118 = vmatpush1.bf16.msra.mxu0 %v4914
          %5119 = vmatprep.mubr.bf16.mxu0 %v4277
          %5120 = vmatmul.mubr.bf16.gmra.mrb[0].mxu0 %v4276
          %v5121 = vpop.f32.mrb[0].mxu0
          %v5122 = vadd.f32 %v5081, %v5121
          %v5123 = vpop.f32.mrb[0].mxu0
          %v5124 = vadd.f32 %v5083, %v5123
          %v5125 = vpop.f32.mrb[0].mxu0
          %v5126 = vpop.f32.mrb[0].mxu0
          %5127 = vdwg.mxu0
          %5128 = vmatprep.subr.bf16.mxu0 %v4793
          %5129 = vmatpush1.bf16.msra.mxu0 %v4792
          %5130 = vmatprep.subr.bf16.mxu0 %v4797
          %5131 = vmatpush1.bf16.msra.mxu0 %v4796
          %5132 = vmatprep.subr.bf16.mxu0 %v4801
          %5133 = vmatpush1.bf16.msra.mxu0 %v4800
          %5134 = vmatprep.subr.bf16.mxu0 %v4805
          %5135 = vmatpush1.bf16.msra.mxu0 %v4804
          %5136 = vmatprep.subr.bf16.mxu0 %v4809
          %5137 = vmatpush1.bf16.msra.mxu0 %v4808
          %5138 = vmatprep.subr.bf16.mxu0 %v4813
          %5139 = vmatpush1.bf16.msra.mxu0 %v4812
          %5140 = vmatprep.subr.bf16.mxu0 %v4817
          %5141 = vmatpush1.bf16.msra.mxu0 %v4816
          %5142 = vmatprep.subr.bf16.mxu0 %v4821
          %5143 = vmatpush1.bf16.msra.mxu0 %v4820
          %5144 = vmatprep.subr.bf16.mxu0 %v4825
          %5145 = vmatpush1.bf16.msra.mxu0 %v4824
          %5146 = vmatprep.subr.bf16.mxu0 %v4829
          %5147 = vmatpush1.bf16.msra.mxu0 %v4828
          %5148 = vmatprep.subr.bf16.mxu0 %v4833
          %5149 = vmatpush1.bf16.msra.mxu0 %v4832
          %5150 = vmatprep.subr.bf16.mxu0 %v4837
          %5151 = vmatpush1.bf16.msra.mxu0 %v4836
          %5152 = vmatprep.subr.bf16.mxu0 %v4841
          %5153 = vmatpush1.bf16.msra.mxu0 %v4840
          %5154 = vmatprep.subr.bf16.mxu0 %v4845
          %5155 = vmatpush1.bf16.msra.mxu0 %v4844
          %5156 = vmatprep.subr.bf16.mxu0 %v4849
          %5157 = vmatpush1.bf16.msra.mxu0 %v4848
          %5158 = vmatprep.subr.bf16.mxu0 %v4853
          %5159 = vmatpush1.bf16.msra.mxu0 %v4852
          %5160 = vmatprep.mubr.bf16.mxu0 %v4275
          %5161 = vmatmul.mubr.bf16.gmra.mrb[0].mxu0 %v4274
          %v5162 = vpop.f32.mrb[0].mxu0
          %v5163 = vadd.f32 0.0, %v5162
          %v5164 = vpop.f32.mrb[0].mxu0
          %v5165 = vadd.f32 0.0, %v5164
          %v5166 = vpop.f32.mrb[0].mxu0
          %v5167 = vpop.f32.mrb[0].mxu0
          %5168 = vdwg.mxu0
          %5169 = vmatprep.subr.bf16.mxu0 %v4857
          %5170 = vmatpush1.bf16.msra.mxu0 %v4856
          %5171 = vmatprep.subr.bf16.mxu0 %v4861
          %5172 = vmatpush1.bf16.msra.mxu0 %v4860
          %5173 = vmatprep.subr.bf16.mxu0 %v4865
          %5174 = vmatpush1.bf16.msra.mxu0 %v4864
          %5175 = vmatprep.subr.bf16.mxu0 %v4869
          %5176 = vmatpush1.bf16.msra.mxu0 %v4868
          %5177 = vmatprep.subr.bf16.mxu0 %v4873
          %5178 = vmatpush1.bf16.msra.mxu0 %v4872
          %5179 = vmatprep.subr.bf16.mxu0 %v4877
          %5180 = vmatpush1.bf16.msra.mxu0 %v4876
          %5181 = vmatprep.subr.bf16.mxu0 %v4881
          %5182 = vmatpush1.bf16.msra.mxu0 %v4880
          %5183 = vmatprep.subr.bf16.mxu0 %v4885
          %5184 = vmatpush1.bf16.msra.mxu0 %v4884
          %5185 = vmatprep.subr.bf16.mxu0 %v4889
          %5186 = vmatpush1.bf16.msra.mxu0 %v4888
          %5187 = vmatprep.subr.bf16.mxu0 %v4893
          %5188 = vmatpush1.bf16.msra.mxu0 %v4892
          %5189 = vmatprep.subr.bf16.mxu0 %v4897
          %5190 = vmatpush1.bf16.msra.mxu0 %v4896
          %5191 = vmatprep.subr.bf16.mxu0 %v4901
          %5192 = vmatpush1.bf16.msra.mxu0 %v4900
          %5193 = vmatprep.subr.bf16.mxu0 %v4905
          %5194 = vmatpush1.bf16.msra.mxu0 %v4904
          %5195 = vmatprep.subr.bf16.mxu0 %v4909
          %5196 = vmatpush1.bf16.msra.mxu0 %v4908
          %5197 = vmatprep.subr.bf16.mxu0 %v4913
          %5198 = vmatpush1.bf16.msra.mxu0 %v4912
          %5199 = vmatprep.subr.bf16.mxu0 %v4917
          %5200 = vmatpush1.bf16.msra.mxu0 %v4916
          %5201 = vmatprep.mubr.bf16.mxu0 %v4277
          %5202 = vmatmul.mubr.bf16.gmra.mrb[0].mxu0 %v4276
          %v5203 = vpop.f32.mrb[0].mxu0
          %v5204 = vadd.f32 %v5163, %v5203
          %v5205 = vpop.f32.mrb[0].mxu0
          %v5206 = vadd.f32 %v5165, %v5205
          %v5207 = vpop.f32.mrb[0].mxu0
          %v5208 = vpop.f32.mrb[0].mxu0
          %5209 = vdwg.mxu0
          %v5214 = vcombine.low %v5122, %v5124
          %v5215 = vcombine.low %v5204, %v5206
          %v5217 = vunpack.c.l.s4 1983009808
          %v5218 = vunpack.c.0.s8 %v5217
          %v5219 = vlaneseq
          %v5220 = vshrl.u32 %v5219, 7
          %v5221 = vsub.s32 %v5218, %v5220
          %v5222 = vrot.slane %v5214, %v5221
          %v5224 = vunpack.c.l.s4 1983009808
          %v5225 = vunpack.c.0.s8 %v5224
          %v5226 = vlaneseq
          %v5227 = vshrl.u32 %v5226, 7
          %v5228 = vsub.s32 %v5225, %v5227
          %v5229 = vrot.slane %v5215, %v5228
          %v5230 = vcombine.low %v5222, %v5229
          %5232 = vst [vmem:[%s333] sm:$0xff] %v5230
        $region56: #{cnn_image_encoder_forward.7} parent=35 // pred_fallthru
          _
        %p5233 = scmp.lt.s32.totalorder %s25, 1
        %s5234 = scalar_select %p5233, %s25, 1
        %s5235 = smul.addr %s5234, 4
        %s5236 = smul.addr %s5235, 2
        %s5237 = scalar_lea.vmem %s4, %s5236
        // Predicated region
        $region57: #{cnn_image_encoder_forward.7} parent=35 // pred_check
          %p5238 = pneg %p157
        $region58: #{cnn_image_encoder_forward.7} parent=35 // pred_check_branch
          %5240 = sbr.rel (%p5238) target = $region60
        $region59: #{cnn_image_encoder_forward.7} parent=35 // pred_region
          _
        $region60: #{cnn_image_encoder_forward.7} parent=35 // pred_fallthru
          _
      $region36: #{cnn_image_encoder_forward.7} parent=5 // pred_fallthru
        _
      %p5241 = scmp.le.s32.totalorder 2, %s16
      // Predicated region
      $region61: #{cnn_image_encoder_forward.7} parent=5 // pred_check
        %p5242 = pneg %p5241
      $region62: #{cnn_image_encoder_forward.7} parent=5 // pred_check_branch
        %5244 = sbr.rel (%p5242) target = $region64
      $region63: #{cnn_image_encoder_forward.7} parent=5 // pred_region
        %s5245 = ssub.s32 %s16, 2
        // Predicated region
        $region65: #{cnn_image_encoder_forward.7} parent=63 // pred_check
          %p5246 = pneg %p163
        $region66: #{cnn_image_encoder_forward.7} parent=63 // pred_check_branch
          %5248 = sbr.rel (%p5246) target = $region68
        $region67: #{cnn_image_encoder_forward.7} parent=63 // pred_region
          %p5249 = scmp.lt.s32.totalorder %s27, 1
          %s5250 = scalar_select %p5249, %s27, 1
          %s5251 = smul.addr %s5250, 4
          %s5252 = smul.addr %s5251, 2
          %s5253 = scalar_lea.vmem %s4, %s5252
        $region68: #{cnn_image_encoder_forward.7} parent=63 // pred_fallthru
          _
      $region64: #{cnn_image_encoder_forward.7} parent=5 // pred_fallthru
        _
    $region6: #{cnn_image_encoder_forward.7} parent=1 // loop_footer
      %s20 = sadd.s32 1, %s16
    $region7: #{cnn_image_encoder_forward.7} parent=1 // loop_footer_branch
      %15 = sbr.rel target = $region3
    $region8: #{cnn_image_encoder_forward.7} parent=1 // loop_exit
      _
    %5254 = vsyncpa [#allocation4], 1
    %s5255 = scalar_lea.sflag [#allocation4], 1
    %5256 = vsyncpa %s5255, 1
    %5257 = vsyncpa [#allocation6], 1
    %s5258 = scalar_lea.sflag [#allocation6], 1
    %5259 = vsyncpa %s5258, 1

</llo_original>
